<compile_context>
chip_gen: v7x
topology: tpu7x:2x2x1
jax: 0.10.0
libtpu: 0.0.40
codegen_flags: <defaults>
</compile_context>

<pallas_src>
import numpy as np
import jax
import jax.numpy as jnp
from jax import lax
from jax.experimental import pallas as pl
from jax.experimental.pallas import tpu as pltpu  # noqa: F401  (kept per harness contract)


# ----------------------------- configuration -----------------------------
B = 2                 # batch
T_SRC = 8             # source sequence length (decoder sees T_SRC + 1)
DMODEL = 32
N_HEADS = 4
DK = 8
DV = 8                # N_HEADS * DV == DMODEL (required by the torch module)
HDK = N_HEADS * DK    # 32
FF_INNER = 64
N_STACKS_ENC = 2
N_STACKS_DEC = 2
LEN_VOCAB_SOURCE = 11
LEN_VOCAB_TARGET_INV = 13
VOCAB_SIZE_TARGET = LEN_VOCAB_TARGET_INV + 4          # output_linear out dim (17)
SLAB_LANES = 128                                      # lane-dense slab / padded vocab
PAD_VOCAB = 128
SRC_EMB_ROWS = LEN_VOCAB_SOURCE + 4
TGT_EMB_ROWS = VOCAB_SIZE_TARGET + 4
MAX_SIZE = 16
PAD_TOKEN, OOV_TOKEN, SOS_TOKEN, EOS_TOKEN = 0, 1, 2, 3
NEG_BIG = -1e30


# ------------------------- in-kernel helper math --------------------------
def _std_norm(x):
    """(x - mean) / std with torch's default unbiased std (ddof=1), no eps."""
    mean = jnp.mean(x, axis=-1, keepdims=True)
    diff = x - mean
    var = jnp.sum(diff * diff, axis=-1, keepdims=True) * np.float32(
        1.0 / (DMODEL - 1))
    return diff * lax.rsqrt(var)                       # rsqrt -> EUP


def _attn_core(qp, kp, vproj, mask4, tk_tot):
    """Multi-head attention core on batch-stacked activations.

    qp:    (Tq_tot, H*dk) fused Q projection (scale already folded in).
    kp:    (Tk_tot, H*dk) fused K projection.
    vproj: (Tk_tot, H*dmodel) = V @ (Wv_h @ Wo_h) per head, lane-concatenated.
    mask4: (Tq_tot, H*Tk_tot) additive batch-separation mask (0 / -1e30).
    """
    scores = []
    for h in range(N_HEADS):                           # static unroll
        qh = qp[:, h * DK:(h + 1) * DK]
        kh = kp[:, h * DK:(h + 1) * DK]
        scores.append(lax.dot_general(qh, kh, (((1,), (1,)), ((), ())),
                                      preferred_element_type=jnp.float32))
    s = jnp.concatenate(scores, axis=-1) + mask4       # (Tq, H*Tk)
    # fused softmax over axis -2 (the query axis) for all heads at once
    m = jnp.max(s, axis=-2, keepdims=True)
    e = jnp.exp(s - m)
    p = e * pl.reciprocal(jnp.sum(e, axis=-2, keepdims=True), approx=True)
    # context: MXU-accumulated sum over heads of P_h @ (V * WvWo)_h
    out = jnp.dot(p[:, :tk_tot], vproj[:, :DMODEL],
                  preferred_element_type=jnp.float32)
    for h in range(1, N_HEADS):
        out = out + jnp.dot(p[:, h * tk_tot:(h + 1) * tk_tot],
                            vproj[:, h * DMODEL:(h + 1) * DMODEL],
                            preferred_element_type=jnp.float32)
    return out


def _ff(x, w1, b1, w2, b2):
    h = jnp.maximum(jnp.dot(x, w1, preferred_element_type=jnp.float32) + b1, 0.0)
    return jnp.dot(h, w2, preferred_element_type=jnp.float32) + b2


# ------------------------------ fused kernel -------------------------------
def _make_kernel(layout):
    """Builds the single-invocation kernel; `layout` maps name -> (row0, rows, cols)
    inside the packed weight slab (all static Python ints)."""

    def load(ref, name):
        r0, nr, nc = layout[name]
        return ref[r0:r0 + nr, :nc]

    def kernel(x_ref, y_ref, slab_ref, out_ref):
        x = x_ref[...]                                 # (B*T, 32)
        y = y_ref[...]                                 # (B*(T+1), 32)
        n_src = x.shape[0]
        n_dec = y.shape[0]

        mask_enc = load(slab_ref, "mask_enc")          # (n_src, H*n_src)
        mask_dec = load(slab_ref, "mask_dec")          # (n_dec, H*n_dec)
        mask_crs = load(slab_ref, "mask_cross")        # (n_dec, H*n_src)

        # ------------------------------ encoder ------------------------------
        for i in range(N_STACKS_ENC):
            wqk = load(slab_ref, f"enc{i}_att_wqk")    # (32, 64) [Wq*scale | Wk]
            wvo = load(slab_ref, f"enc{i}_att_wvo")    # (32, 128) WvWo fused
            qk = jnp.dot(x, wqk, preferred_element_type=jnp.float32)
            vp = jnp.dot(x, wvo, preferred_element_type=jnp.float32)
            att = _attn_core(qk[:, :HDK], qk[:, HDK:], vp, mask_enc, n_src)
            o1 = _std_norm(att + x)
            x = _std_norm(_ff(o1,
                              load(slab_ref, f"enc{i}_ff_w1"),
                              load(slab_ref, f"enc{i}_ff_b1"),
                              load(slab_ref, f"enc{i}_ff_w2"),
                              load(slab_ref, f"enc{i}_ff_b2")) + o1)

        # ------------------------------ decoder ------------------------------
        for i in range(N_STACKS_DEC):
            # masked self-attention (masked weight-softmax precomputed)
            wqk1 = load(slab_ref, f"dec{i}_a1_wqk")
            wvo1 = load(slab_ref, f"dec{i}_a1_wvo")
            qk = jnp.dot(y, wqk1, preferred_element_type=jnp.float32)
            vp = jnp.dot(y, wvo1, preferred_element_type=jnp.float32)
            a1 = _attn_core(qk[:, :HDK], qk[:, HDK:], vp, mask_dec, n_dec)
            o1 = _std_norm(a1 + y)

            # cross-attention: Q from decoder, K/V from encoder output
            wq2 = load(slab_ref, f"dec{i}_a2_wq")      # (32, 32)
            wk2 = load(slab_ref, f"dec{i}_a2_wk")      # (32, 32)
            wvo2 = load(slab_ref, f"dec{i}_a2_wvo")    # (32, 128)
            qp = jnp.dot(o1, wq2, preferred_element_type=jnp.float32)
            kp = jnp.dot(x, wk2, preferred_element_type=jnp.float32)
            vp2 = jnp.dot(x, wvo2, preferred_element_type=jnp.float32)
            a2 = _attn_core(qp, kp, vp2, mask_crs, n_src)
            o2 = _std_norm(a2 + o1)

            y = _std_norm(_ff(o2,
                              load(slab_ref, f"dec{i}_ff_w1"),
                              load(slab_ref, f"dec{i}_ff_b1"),
                              load(slab_ref, f"dec{i}_ff_w2"),
                              load(slab_ref, f"dec{i}_ff_b2")) + o2)

        # ---------- output linear + softmax (lane-dense, padded to 128) -------
        w_out = load(slab_ref, "out_w")                # (32, 128)
        b_out = load(slab_ref, "out_b")                # (1, 128), pads = -1e30
        logits = jnp.dot(y, w_out, preferred_element_type=jnp.float32) + b_out
        m = jnp.max(logits, axis=-1, keepdims=True)
        e = jnp.exp(logits - m)                        # padded cols -> exactly 0
        out_ref[...] = e / jnp.sum(e, axis=-1, keepdims=True)

    return kernel


# --------------------- parameter / slab preprocessing ----------------------
def build_encoding(size, dimension):
    """Matches Transformer.build_encoding exactly (sin/cos column ordering)."""
    pos = np.arange(size, dtype=np.float64).reshape(-1, 1)
    cols = []
    for i in range(dimension // 2):
        cols.append(np.sin(pos / 10000 ** (2 * i / dimension)))
        cols.append(np.cos(pos / 10000 ** ((2 * i + 1) / dimension)))
    return jnp.asarray(np.concatenate(cols, axis=1), dtype=jnp.float32)


def _fuse_heads_np(w):
    """(H, d, f) -> (d, H*f), head-major (matches torch's permute/view concat)."""
    w = np.asarray(w, np.float32)
    H, d, f = w.shape
    return np.transpose(w, (1, 0, 2)).reshape(d, H * f)


def _masked_weight_softmax_np(w):
    """softmax(W + tril-mask, axis=-2) — input-independent, done once."""
    mask = np.tril(np.ones((DMODEL, DK), np.float32))
    mask = np.where(mask == 0.0, -np.inf, 0.0)
    z = np.asarray(w, np.float64) + mask[None, :, :]
    z = z - np.max(z, axis=-2, keepdims=True)
    e = np.exp(z)
    return (e / np.sum(e, axis=-2, keepdims=True)).astype(np.float32)


def _fold_wv_wo_np(wv, wo):
    """WvWo_h = Wv_h @ Wo[h*dv:(h+1)*dv, :]; concat over heads -> (d, H*d)."""
    wv = np.asarray(wv, np.float32)
    wo = np.asarray(wo, np.float32)
    blocks = [wv[h] @ wo[h * DV:(h + 1) * DV, :] for h in range(N_HEADS)]
    return np.concatenate(blocks, axis=1)


def _batch_block_mask_np(batch, tq, tk):
    """Additive mask (0 on own-batch block, -1e30 elsewhere), tiled per head."""
    qb = np.repeat(np.arange(batch), tq)
    kb = np.repeat(np.arange(batch), tk)
    m = np.where(qb[:, None] == kb[None, :], 0.0, NEG_BIG)
    return np.concatenate([m] * N_HEADS, axis=1)


class _SlabBuilder:
    """Packs 2-D weight blocks into one (rows, 128) f32 slab; row offsets are
    padded to multiples of 8 so every in-kernel slice is sublane-aligned."""

    def __init__(self, lanes=SLAB_LANES):
        self.lanes = lanes
        self.rows = 0
        self.blocks = []
        self.layout = {}

    def add(self, name, arr):
        arr = np.asarray(arr, np.float32)
        assert arr.ndim == 2 and arr.shape[1] <= self.lanes, (name, arr.shape)
        self.layout[name] = (self.rows, arr.shape[0], arr.shape[1])
        self.blocks.append((self.rows, arr))
        self.rows += ((arr.shape[0] + 7) // 8) * 8

    def build(self):
        slab = np.zeros((self.rows, self.lanes), np.float32)
        for r0, arr in self.blocks:
            slab[r0:r0 + arr.shape[0], :arr.shape[1]] = arr
        return jnp.asarray(slab), dict(self.layout)


def preprocess_params(params, batch, t_src):
    """One-time weight preprocessing: fuse heads, fold scale & Wv·Wo, apply the
    decoder's masked weight-softmax, pad the output head, precompute the batch
    separation masks, and pack everything into a single lane-dense slab."""
    t_dec = t_src + 1
    sb = _SlabBuilder()
    inv_sqrt_dk = np.float32(1.0 / np.sqrt(DK))

    def add_self_attn(prefix, att, masked):
        wq, wk = np.asarray(att["wq"]), np.asarray(att["wk"])
        if masked:
            wq = _masked_weight_softmax_np(wq)
            wk = _masked_weight_softmax_np(wk)
        wqf = _fuse_heads_np(wq) * inv_sqrt_dk         # fold 1/sqrt(dk)
        wkf = _fuse_heads_np(wk)
        sb.add(prefix + "_wqk", np.concatenate([wqf, wkf], axis=1))   # (32, 64)
        sb.add(prefix + "_wvo", _fold_wv_wo_np(att["wv"], att["wo"])) # (32, 128)

    def add_cross_attn(prefix, att):
        sb.add(prefix + "_wq", _fuse_heads_np(np.asarray(att["wq"])) * inv_sqrt_dk)
        sb.add(prefix + "_wk", _fuse_heads_np(np.asarray(att["wk"])))
        sb.add(prefix + "_wvo", _fold_wv_wo_np(att["wv"], att["wo"]))

    def add_ff(prefix, ff):
        sb.add(prefix + "_w1", np.asarray(ff["w1"]))
        sb.add(prefix + "_b1", np.asarray(ff["b1"]))
        sb.add(prefix + "_w2", np.asarray(ff["w2"]))
        sb.add(prefix + "_b2", np.asarray(ff["b2"]))

    for i, p in enumerate(params["encoder"]):
        add_self_attn(f"enc{i}_att", p["att"], masked=False)
        add_ff(f"enc{i}_ff", p["ff"])
    for i, p in enumerate(params["decoder"]):
        add_self_attn(f"dec{i}_a1", p["att1"], masked=True)
        add_cross_attn(f"dec{i}_a2", p["att2"])
        add_ff(f"dec{i}_ff", p["ff"])

    # lane-dense output head: zero-pad weights, -1e30-pad bias (softmax -> 0)
    w_out_pad = np.zeros((DMODEL, PAD_VOCAB), np.float32)
    w_out_pad[:, :VOCAB_SIZE_TARGET] = np.asarray(params["w_out"])
    b_out_pad = np.full((1, PAD_VOCAB), NEG_BIG, np.float32)
    b_out_pad[:, :VOCAB_SIZE_TARGET] = np.asarray(params["b_out"])
    sb.add("out_w", w_out_pad)
    sb.add("out_b", b_out_pad)

    # input-independent batch-separation masks (kept out of the kernel body)
    sb.add("mask_enc", _batch_block_mask_np(batch, t_src, t_src))
    sb.add("mask_dec", _batch_block_mask_np(batch, t_dec, t_dec))
    sb.add("mask_cross", _batch_block_mask_np(batch, t_dec, t_src))

    slab, layout = sb.build()
    arrays = dict(src_emb=params["src_emb"], tgt_emb=params["tgt_emb"],
                  pe=params["pe"], slab=slab)
    return arrays, layout


# ------------------------------ forward glue -------------------------------
def make_transformer_forward(layout, batch, t_src):
    """Returns a jitted eval-mode forward: (arrays, tokens) -> probabilities."""
    kernel = _make_kernel(layout)
    t_dec = t_src + 1

    @jax.jit
    def forward(arrays, x_tokens):
        assert x_tokens.shape == (batch, t_src)
        pe = arrays["pe"]
        # TODO(synk): embedding gathers + PE add stay as 2 cheap XLA ops feeding
        # the single fused Pallas kernel (data-dependent gather).
        x_source = jnp.take(arrays["src_emb"], x_tokens, axis=0) + pe[:t_src]
        sos = jnp.full((batch, 1), SOS_TOKEN, dtype=x_tokens.dtype)
        y_tok = jnp.concatenate([sos, x_tokens], axis=1)
        target = jnp.take(arrays["tgt_emb"], y_tok, axis=0) + pe[:t_dec]

        # stack the batch along sublanes -> one kernel step for everything
        x_stacked = x_source.reshape(batch * t_src, DMODEL)
        y_stacked = target.reshape(batch * t_dec, DMODEL)

        out = pl.pallas_call(
            kernel,
            out_shape=jax.ShapeDtypeStruct((batch * t_dec, PAD_VOCAB), jnp.float32),
        )(x_stacked, y_stacked, arrays["slab"])

        return out.reshape(batch, t_dec, PAD_VOCAB)[:, :, :VOCAB_SIZE_TARGET]

    return forward


# ------------------------------ parameter init ----------------------------
def _init_mha(key):
    k1, k2, k3, k4 = jax.random.split(key, 4)
    return dict(
        wq=jax.random.normal(k1, (N_HEADS, DMODEL, DK), jnp.float32),
        wk=jax.random.normal(k2, (N_HEADS, DMODEL, DK), jnp.float32),
        wv=jax.random.normal(k3, (N_HEADS, DMODEL, DV), jnp.float32),
        wo=jax.random.normal(k4, (DMODEL, DMODEL), jnp.float32),
    )


def _init_ff(key):
    k1, k2, k3, k4 = jax.random.split(key, 4)
    return dict(
        w1=jax.random.normal(k1, (DMODEL, FF_INNER), jnp.float32) / np.sqrt(DMODEL),
        b1=jax.random.normal(k2, (1, FF_INNER), jnp.float32) * 0.01,
        w2=jax.random.normal(k3, (FF_INNER, DMODEL), jnp.float32) / np.sqrt(FF_INNER),
        b2=jax.random.normal(k4, (1, DMODEL), jnp.float32) * 0.01,
    )


def init_params(key):
    keys = jax.random.split(key, 8)
    src_emb = jax.random.normal(keys[0], (SRC_EMB_ROWS, DMODEL), jnp.float32)
    src_emb = src_emb.at[PAD_TOKEN].set(0.0)          # padding_idx row is zero
    tgt_emb = jax.random.normal(keys[1], (TGT_EMB_ROWS, DMODEL), jnp.float32)
    tgt_emb = tgt_emb.at[PAD_TOKEN].set(0.0)

    encoder = []
    for ek in jax.random.split(keys[2], N_STACKS_ENC):
        ka, kf = jax.random.split(ek)
        encoder.append(dict(att=_init_mha(ka), ff=_init_ff(kf)))

    decoder = []
    for dk_ in jax.random.split(keys[3], N_STACKS_DEC):
        ka, kb, kf = jax.random.split(dk_, 3)
        decoder.append(dict(att1=_init_mha(ka), att2=_init_mha(kb), ff=_init_ff(kf)))

    w_out = jax.random.normal(keys[4], (DMODEL, VOCAB_SIZE_TARGET), jnp.float32) / np.sqrt(DMODEL)
    b_out = jax.random.normal(keys[5], (1, VOCAB_SIZE_TARGET), jnp.float32) * 0.01

    return dict(src_emb=src_emb, tgt_emb=tgt_emb, encoder=encoder,
                decoder=decoder, w_out=w_out, b_out=b_out,
                pe=build_encoding(MAX_SIZE, DMODEL))


# ---------------------------------- main -----------------------------------
if __name__ == "__main__":
    key = jax.random.PRNGKey(0)
    kparam, kx = jax.random.split(key)
    params = init_params(kparam)
    arrays, layout = preprocess_params(params, B, T_SRC)   # one-time packing

    # deterministic source sentence ids (avoid the special tokens 0..3)
    x_tokens = jax.random.randint(kx, (B, T_SRC), minval=4, maxval=SRC_EMB_ROWS,
                                  dtype=jnp.int32)

    fwd = make_transformer_forward(layout, B, T_SRC)
    out = jax.block_until_ready(fwd(arrays, x_tokens))

    assert out.shape == (B, T_SRC + 1, VOCAB_SIZE_TARGET), out.shape
    assert bool(jnp.all(jnp.isfinite(out)))
    # rows are probability distributions (softmax over vocab)
    row_sums = jnp.sum(out, axis=-1)
    assert bool(jnp.all(jnp.abs(row_sums - 1.0) < 1e-4))

    print("KERNEL_OK")
</pallas_src>

<mosaic_0001>
module attributes {stable_mosaic.version = 11 : i64} {
  func.func @kernel(%arg0: memref<16x32xf32, #tpu.memory_space<vmem>>, %arg1: memref<18x32xf32, #tpu.memory_space<vmem>>, %arg2: memref<1000x128xf32, #tpu.memory_space<vmem>>, %arg3: memref<18x128xf32, #tpu.memory_space<vmem>>) attributes {dimension_semantics = [], scalar_prefetch = 0 : i64, scratch_operands = 0 : i64, tpu.core_type = #tpu.core_type<tc>} {
    %c0 = arith.constant 0 : index
    %c0_0 = arith.constant 0 : index
    %0 = vector.load %arg0[%c0, %c0_0] : memref<16x32xf32, #tpu.memory_space<vmem>>, vector<16x32xf32>
    %c0_1 = arith.constant 0 : index
    %c0_2 = arith.constant 0 : index
    %1 = vector.load %arg1[%c0_1, %c0_2] : memref<18x32xf32, #tpu.memory_space<vmem>>, vector<18x32xf32>
    %c936 = arith.constant 936 : index
    %c0_3 = arith.constant 0 : index
    %2 = vector.load %arg2[%c936, %c0_3] : memref<1000x128xf32, #tpu.memory_space<vmem>>, vector<16x64xf32>
    %c952 = arith.constant 952 : index
    %c0_4 = arith.constant 0 : index
    %3 = vector.load %arg2[%c952, %c0_4] : memref<1000x128xf32, #tpu.memory_space<vmem>>, vector<18x72xf32>
    %c976 = arith.constant 976 : index
    %c0_5 = arith.constant 0 : index
    %4 = vector.load %arg2[%c976, %c0_5] : memref<1000x128xf32, #tpu.memory_space<vmem>>, vector<18x64xf32>
    %c0_6 = arith.constant 0 : index
    %c0_7 = arith.constant 0 : index
    %5 = vector.load %arg2[%c0_6, %c0_7] : memref<1000x128xf32, #tpu.memory_space<vmem>>, vector<32x64xf32>
    %c32 = arith.constant 32 : index
    %c0_8 = arith.constant 0 : index
    %6 = vector.load %arg2[%c32, %c0_8] : memref<1000x128xf32, #tpu.memory_space<vmem>>, vector<32x128xf32>
    %cst = arith.constant dense<0.000000e+00> : vector<16x64xf32>
    %7 = tpu.matmul %0, %5, %cst {dimension_numbers = #tpu.dot_dimension_numbers<[1], [0], [0], [1], [0, 0, 1, 1], [], []>} : vector<16x32xf32>, vector<32x64xf32>, vector<16x64xf32> -> vector<16x64xf32>
    %cst_9 = arith.constant dense<0.000000e+00> : vector<16x128xf32>
    %8 = tpu.matmul %0, %6, %cst_9 {dimension_numbers = #tpu.dot_dimension_numbers<[1], [0], [0], [1], [0, 0, 1, 1], [], []>} : vector<16x32xf32>, vector<32x128xf32>, vector<16x128xf32> -> vector<16x128xf32>
    %9 = vector.extract_strided_slice %7 {offsets = [0, 0], sizes = [16, 32], strides = [1, 1]} : vector<16x64xf32> to vector<16x32xf32>
    %10 = vector.extract_strided_slice %7 {offsets = [0, 32], sizes = [16, 32], strides = [1, 1]} : vector<16x64xf32> to vector<16x32xf32>
    %11 = vector.extract_strided_slice %9 {offsets = [0, 0], sizes = [16, 8], strides = [1, 1]} : vector<16x32xf32> to vector<16x8xf32>
    %12 = vector.extract_strided_slice %10 {offsets = [0, 0], sizes = [16, 8], strides = [1, 1]} : vector<16x32xf32> to vector<16x8xf32>
    %cst_10 = arith.constant dense<0.000000e+00> : vector<16x16xf32>
    %13 = tpu.matmul %11, %12, %cst_10 {dimension_numbers = #tpu.dot_dimension_numbers<[1], [1], [0], [0], [0, 0, 1, 0], [], []>} : vector<16x8xf32>, vector<16x8xf32>, vector<16x16xf32> -> vector<16x16xf32>
    %14 = vector.extract_strided_slice %9 {offsets = [0, 8], sizes = [16, 8], strides = [1, 1]} : vector<16x32xf32> to vector<16x8xf32>
    %15 = vector.extract_strided_slice %10 {offsets = [0, 8], sizes = [16, 8], strides = [1, 1]} : vector<16x32xf32> to vector<16x8xf32>
    %cst_11 = arith.constant dense<0.000000e+00> : vector<16x16xf32>
    %16 = tpu.matmul %14, %15, %cst_11 {dimension_numbers = #tpu.dot_dimension_numbers<[1], [1], [0], [0], [0, 0, 1, 0], [], []>} : vector<16x8xf32>, vector<16x8xf32>, vector<16x16xf32> -> vector<16x16xf32>
    %17 = vector.extract_strided_slice %9 {offsets = [0, 16], sizes = [16, 8], strides = [1, 1]} : vector<16x32xf32> to vector<16x8xf32>
    %18 = vector.extract_strided_slice %10 {offsets = [0, 16], sizes = [16, 8], strides = [1, 1]} : vector<16x32xf32> to vector<16x8xf32>
    %cst_12 = arith.constant dense<0.000000e+00> : vector<16x16xf32>
    %19 = tpu.matmul %17, %18, %cst_12 {dimension_numbers = #tpu.dot_dimension_numbers<[1], [1], [0], [0], [0, 0, 1, 0], [], []>} : vector<16x8xf32>, vector<16x8xf32>, vector<16x16xf32> -> vector<16x16xf32>
    %20 = vector.extract_strided_slice %9 {offsets = [0, 24], sizes = [16, 8], strides = [1, 1]} : vector<16x32xf32> to vector<16x8xf32>
    %21 = vector.extract_strided_slice %10 {offsets = [0, 24], sizes = [16, 8], strides = [1, 1]} : vector<16x32xf32> to vector<16x8xf32>
    %cst_13 = arith.constant dense<0.000000e+00> : vector<16x16xf32>
    %22 = tpu.matmul %20, %21, %cst_13 {dimension_numbers = #tpu.dot_dimension_numbers<[1], [1], [0], [0], [0, 0, 1, 0], [], []>} : vector<16x8xf32>, vector<16x8xf32>, vector<16x16xf32> -> vector<16x16xf32>
    %23 = tpu.concatenate %13, %16, %19, %22 in 1 : vector<16x16xf32>, vector<16x16xf32>, vector<16x16xf32>, vector<16x16xf32> -> vector<16x64xf32>
    %24 = arith.addf %23, %2 : vector<16x64xf32>
    %cst_14 = arith.constant dense<0xFF800000> : vector<64xf32>
    %25 = vector.multi_reduction <maximumf>, %24, %cst_14 [0] : vector<16x64xf32> to vector<64xf32>
    %26 = vector.shape_cast %25 : vector<64xf32> to vector<1x64xf32>
    %27 = vector.broadcast %26 : vector<1x64xf32> to vector<16x64xf32>
    %28 = arith.subf %24, %27 : vector<16x64xf32>
    %29 = math.exp %28 : vector<16x64xf32>
    %cst_15 = arith.constant dense<0.000000e+00> : vector<64xf32>
    %30 = vector.multi_reduction <add>, %29, %cst_15 [0] : vector<16x64xf32> to vector<64xf32>
    %31 = vector.shape_cast %30 : vector<64xf32> to vector<1x64xf32>
    %32 = tpu.reciprocal %31 {approx = true} : vector<1x64xf32> -> vector<1x64xf32>
    %33 = vector.broadcast %32 : vector<1x64xf32> to vector<16x64xf32>
    %34 = arith.mulf %29, %33 : vector<16x64xf32>
    %35 = vector.extract_strided_slice %34 {offsets = [0, 0], sizes = [16, 16], strides = [1, 1]} : vector<16x64xf32> to vector<16x16xf32>
    %36 = vector.extract_strided_slice %8 {offsets = [0, 0], sizes = [16, 32], strides = [1, 1]} : vector<16x128xf32> to vector<16x32xf32>
    %cst_16 = arith.constant dense<0.000000e+00> : vector<16x32xf32>
    %37 = tpu.matmul %35, %36, %cst_16 {dimension_numbers = #tpu.dot_dimension_numbers<[1], [0], [0], [1], [0, 0, 1, 1], [], []>} : vector<16x16xf32>, vector<16x32xf32>, vector<16x32xf32> -> vector<16x32xf32>
    %38 = vector.extract_strided_slice %34 {offsets = [0, 16], sizes = [16, 16], strides = [1, 1]} : vector<16x64xf32> to vector<16x16xf32>
    %39 = vector.extract_strided_slice %8 {offsets = [0, 32], sizes = [16, 32], strides = [1, 1]} : vector<16x128xf32> to vector<16x32xf32>
    %cst_17 = arith.constant dense<0.000000e+00> : vector<16x32xf32>
    %40 = tpu.matmul %38, %39, %cst_17 {dimension_numbers = #tpu.dot_dimension_numbers<[1], [0], [0], [1], [0, 0, 1, 1], [], []>} : vector<16x16xf32>, vector<16x32xf32>, vector<16x32xf32> -> vector<16x32xf32>
    %41 = arith.addf %37, %40 : vector<16x32xf32>
    %42 = vector.extract_strided_slice %34 {offsets = [0, 32], sizes = [16, 16], strides = [1, 1]} : vector<16x64xf32> to vector<16x16xf32>
    %43 = vector.extract_strided_slice %8 {offsets = [0, 64], sizes = [16, 32], strides = [1, 1]} : vector<16x128xf32> to vector<16x32xf32>
    %cst_18 = arith.constant dense<0.000000e+00> : vector<16x32xf32>
    %44 = tpu.matmul %42, %43, %cst_18 {dimension_numbers = #tpu.dot_dimension_numbers<[1], [0], [0], [1], [0, 0, 1, 1], [], []>} : vector<16x16xf32>, vector<16x32xf32>, vector<16x32xf32> -> vector<16x32xf32>
    %45 = arith.addf %41, %44 : vector<16x32xf32>
    %46 = vector.extract_strided_slice %34 {offsets = [0, 48], sizes = [16, 16], strides = [1, 1]} : vector<16x64xf32> to vector<16x16xf32>
    %47 = vector.extract_strided_slice %8 {offsets = [0, 96], sizes = [16, 32], strides = [1, 1]} : vector<16x128xf32> to vector<16x32xf32>
    %cst_19 = arith.constant dense<0.000000e+00> : vector<16x32xf32>
    %48 = tpu.matmul %46, %47, %cst_19 {dimension_numbers = #tpu.dot_dimension_numbers<[1], [0], [0], [1], [0, 0, 1, 1], [], []>} : vector<16x16xf32>, vector<16x32xf32>, vector<16x32xf32> -> vector<16x32xf32>
    %49 = arith.addf %45, %48 : vector<16x32xf32>
    %50 = arith.addf %49, %0 : vector<16x32xf32>
    %cst_20 = arith.constant dense<0.000000e+00> : vector<16xf32>
    %51 = vector.multi_reduction <add>, %50, %cst_20 [1] : vector<16x32xf32> to vector<16xf32>
    %52 = vector.shape_cast %51 : vector<16xf32> to vector<16x1xf32>
    %cst_21 = arith.constant 3.200000e+01 : f32
    %53 = vector.broadcast %cst_21 : f32 to vector<16x1xf32>
    %54 = arith.divf %52, %53 : vector<16x1xf32>
    %55 = vector.broadcast %54 : vector<16x1xf32> to vector<16x32xf32>
    %56 = arith.subf %50, %55 : vector<16x32xf32>
    %57 = arith.mulf %56, %56 : vector<16x32xf32>
    %cst_22 = arith.constant dense<0.000000e+00> : vector<16xf32>
    %58 = vector.multi_reduction <add>, %57, %cst_22 [1] : vector<16x32xf32> to vector<16xf32>
    %59 = vector.shape_cast %58 : vector<16xf32> to vector<16x1xf32>
    %cst_23 = arith.constant 0.0322580636 : f32
    %60 = vector.broadcast %cst_23 : f32 to vector<16x1xf32>
    %61 = arith.mulf %59, %60 : vector<16x1xf32>
    %62 = math.rsqrt %61 : vector<16x1xf32>
    %63 = vector.broadcast %62 : vector<16x1xf32> to vector<16x32xf32>
    %64 = arith.mulf %56, %63 : vector<16x32xf32>
    %c64 = arith.constant 64 : index
    %c0_24 = arith.constant 0 : index
    %65 = vector.load %arg2[%c64, %c0_24] : memref<1000x128xf32, #tpu.memory_space<vmem>>, vector<32x64xf32>
    %c96 = arith.constant 96 : index
    %c0_25 = arith.constant 0 : index
    %66 = vector.load %arg2[%c96, %c0_25] : memref<1000x128xf32, #tpu.memory_space<vmem>>, vector<1x64xf32>
    %c104 = arith.constant 104 : index
    %c0_26 = arith.constant 0 : index
    %67 = vector.load %arg2[%c104, %c0_26] : memref<1000x128xf32, #tpu.memory_space<vmem>>, vector<64x32xf32>
    %c168 = arith.constant 168 : index
    %c0_27 = arith.constant 0 : index
    %68 = vector.load %arg2[%c168, %c0_27] : memref<1000x128xf32, #tpu.memory_space<vmem>>, vector<1x32xf32>
    %cst_28 = arith.constant dense<0.000000e+00> : vector<16x64xf32>
    %69 = tpu.matmul %64, %65, %cst_28 {dimension_numbers = #tpu.dot_dimension_numbers<[1], [0], [0], [1], [0, 0, 1, 1], [], []>} : vector<16x32xf32>, vector<32x64xf32>, vector<16x64xf32> -> vector<16x64xf32>
    %70 = vector.broadcast %66 : vector<1x64xf32> to vector<16x64xf32>
    %71 = arith.addf %69, %70 : vector<16x64xf32>
    %cst_29 = arith.constant 0.000000e+00 : f32
    %72 = vector.broadcast %cst_29 : f32 to vector<16x64xf32>
    %73 = arith.maximumf %71, %72 : vector<16x64xf32>
    %cst_30 = arith.constant dense<0.000000e+00> : vector<16x32xf32>
    %74 = tpu.matmul %73, %67, %cst_30 {dimension_numbers = #tpu.dot_dimension_numbers<[1], [0], [0], [1], [0, 0, 1, 1], [], []>} : vector<16x64xf32>, vector<64x32xf32>, vector<16x32xf32> -> vector<16x32xf32>
    %75 = vector.broadcast %68 : vector<1x32xf32> to vector<16x32xf32>
    %76 = arith.addf %74, %75 : vector<16x32xf32>
    %77 = arith.addf %76, %64 : vector<16x32xf32>
    %cst_31 = arith.constant dense<0.000000e+00> : vector<16xf32>
    %78 = vector.multi_reduction <add>, %77, %cst_31 [1] : vector<16x32xf32> to vector<16xf32>
    %79 = vector.shape_cast %78 : vector<16xf32> to vector<16x1xf32>
    %cst_32 = arith.constant 3.200000e+01 : f32
    %80 = vector.broadcast %cst_32 : f32 to vector<16x1xf32>
    %81 = arith.divf %79, %80 : vector<16x1xf32>
    %82 = vector.broadcast %81 : vector<16x1xf32> to vector<16x32xf32>
    %83 = arith.subf %77, %82 : vector<16x32xf32>
    %84 = arith.mulf %83, %83 : vector<16x32xf32>
    %cst_33 = arith.constant dense<0.000000e+00> : vector<16xf32>
    %85 = vector.multi_reduction <add>, %84, %cst_33 [1] : vector<16x32xf32> to vector<16xf32>
    %86 = vector.shape_cast %85 : vector<16xf32> to vector<16x1xf32>
    %cst_34 = arith.constant 0.0322580636 : f32
    %87 = vector.broadcast %cst_34 : f32 to vector<16x1xf32>
    %88 = arith.mulf %86, %87 : vector<16x1xf32>
    %89 = math.rsqrt %88 : vector<16x1xf32>
    %90 = vector.broadcast %89 : vector<16x1xf32> to vector<16x32xf32>
    %91 = arith.mulf %83, %90 : vector<16x32xf32>
    %c176 = arith.constant 176 : index
    %c0_35 = arith.constant 0 : index
    %92 = vector.load %arg2[%c176, %c0_35] : memref<1000x128xf32, #tpu.memory_space<vmem>>, vector<32x64xf32>
    %c208 = arith.constant 208 : index
    %c0_36 = arith.constant 0 : index
    %93 = vector.load %arg2[%c208, %c0_36] : memref<1000x128xf32, #tpu.memory_space<vmem>>, vector<32x128xf32>
    %cst_37 = arith.constant dense<0.000000e+00> : vector<16x64xf32>
    %94 = tpu.matmul %91, %92, %cst_37 {dimension_numbers = #tpu.dot_dimension_numbers<[1], [0], [0], [1], [0, 0, 1, 1], [], []>} : vector<16x32xf32>, vector<32x64xf32>, vector<16x64xf32> -> vector<16x64xf32>
    %cst_38 = arith.constant dense<0.000000e+00> : vector<16x128xf32>
    %95 = tpu.matmul %91, %93, %cst_38 {dimension_numbers = #tpu.dot_dimension_numbers<[1], [0], [0], [1], [0, 0, 1, 1], [], []>} : vector<16x32xf32>, vector<32x128xf32>, vector<16x128xf32> -> vector<16x128xf32>
    %96 = vector.extract_strided_slice %94 {offsets = [0, 0], sizes = [16, 32], strides = [1, 1]} : vector<16x64xf32> to vector<16x32xf32>
    %97 = vector.extract_strided_slice %94 {offsets = [0, 32], sizes = [16, 32], strides = [1, 1]} : vector<16x64xf32> to vector<16x32xf32>
    %98 = vector.extract_strided_slice %96 {offsets = [0, 0], sizes = [16, 8], strides = [1, 1]} : vector<16x32xf32> to vector<16x8xf32>
    %99 = vector.extract_strided_slice %97 {offsets = [0, 0], sizes = [16, 8], strides = [1, 1]} : vector<16x32xf32> to vector<16x8xf32>
    %cst_39 = arith.constant dense<0.000000e+00> : vector<16x16xf32>
    %100 = tpu.matmul %98, %99, %cst_39 {dimension_numbers = #tpu.dot_dimension_numbers<[1], [1], [0], [0], [0, 0, 1, 0], [], []>} : vector<16x8xf32>, vector<16x8xf32>, vector<16x16xf32> -> vector<16x16xf32>
    %101 = vector.extract_strided_slice %96 {offsets = [0, 8], sizes = [16, 8], strides = [1, 1]} : vector<16x32xf32> to vector<16x8xf32>
    %102 = vector.extract_strided_slice %97 {offsets = [0, 8], sizes = [16, 8], strides = [1, 1]} : vector<16x32xf32> to vector<16x8xf32>
    %cst_40 = arith.constant dense<0.000000e+00> : vector<16x16xf32>
    %103 = tpu.matmul %101, %102, %cst_40 {dimension_numbers = #tpu.dot_dimension_numbers<[1], [1], [0], [0], [0, 0, 1, 0], [], []>} : vector<16x8xf32>, vector<16x8xf32>, vector<16x16xf32> -> vector<16x16xf32>
    %104 = vector.extract_strided_slice %96 {offsets = [0, 16], sizes = [16, 8], strides = [1, 1]} : vector<16x32xf32> to vector<16x8xf32>
    %105 = vector.extract_strided_slice %97 {offsets = [0, 16], sizes = [16, 8], strides = [1, 1]} : vector<16x32xf32> to vector<16x8xf32>
    %cst_41 = arith.constant dense<0.000000e+00> : vector<16x16xf32>
    %106 = tpu.matmul %104, %105, %cst_41 {dimension_numbers = #tpu.dot_dimension_numbers<[1], [1], [0], [0], [0, 0, 1, 0], [], []>} : vector<16x8xf32>, vector<16x8xf32>, vector<16x16xf32> -> vector<16x16xf32>
    %107 = vector.extract_strided_slice %96 {offsets = [0, 24], sizes = [16, 8], strides = [1, 1]} : vector<16x32xf32> to vector<16x8xf32>
    %108 = vector.extract_strided_slice %97 {offsets = [0, 24], sizes = [16, 8], strides = [1, 1]} : vector<16x32xf32> to vector<16x8xf32>
    %cst_42 = arith.constant dense<0.000000e+00> : vector<16x16xf32>
    %109 = tpu.matmul %107, %108, %cst_42 {dimension_numbers = #tpu.dot_dimension_numbers<[1], [1], [0], [0], [0, 0, 1, 0], [], []>} : vector<16x8xf32>, vector<16x8xf32>, vector<16x16xf32> -> vector<16x16xf32>
    %110 = tpu.concatenate %100, %103, %106, %109 in 1 : vector<16x16xf32>, vector<16x16xf32>, vector<16x16xf32>, vector<16x16xf32> -> vector<16x64xf32>
    %111 = arith.addf %110, %2 : vector<16x64xf32>
    %cst_43 = arith.constant dense<0xFF800000> : vector<64xf32>
    %112 = vector.multi_reduction <maximumf>, %111, %cst_43 [0] : vector<16x64xf32> to vector<64xf32>
    %113 = vector.shape_cast %112 : vector<64xf32> to vector<1x64xf32>
    %114 = vector.broadcast %113 : vector<1x64xf32> to vector<16x64xf32>
    %115 = arith.subf %111, %114 : vector<16x64xf32>
    %116 = math.exp %115 : vector<16x64xf32>
    %cst_44 = arith.constant dense<0.000000e+00> : vector<64xf32>
    %117 = vector.multi_reduction <add>, %116, %cst_44 [0] : vector<16x64xf32> to vector<64xf32>
    %118 = vector.shape_cast %117 : vector<64xf32> to vector<1x64xf32>
    %119 = tpu.reciprocal %118 {approx = true} : vector<1x64xf32> -> vector<1x64xf32>
    %120 = vector.broadcast %119 : vector<1x64xf32> to vector<16x64xf32>
    %121 = arith.mulf %116, %120 : vector<16x64xf32>
    %122 = vector.extract_strided_slice %121 {offsets = [0, 0], sizes = [16, 16], strides = [1, 1]} : vector<16x64xf32> to vector<16x16xf32>
    %123 = vector.extract_strided_slice %95 {offsets = [0, 0], sizes = [16, 32], strides = [1, 1]} : vector<16x128xf32> to vector<16x32xf32>
    %cst_45 = arith.constant dense<0.000000e+00> : vector<16x32xf32>
    %124 = tpu.matmul %122, %123, %cst_45 {dimension_numbers = #tpu.dot_dimension_numbers<[1], [0], [0], [1], [0, 0, 1, 1], [], []>} : vector<16x16xf32>, vector<16x32xf32>, vector<16x32xf32> -> vector<16x32xf32>
    %125 = vector.extract_strided_slice %121 {offsets = [0, 16], sizes = [16, 16], strides = [1, 1]} : vector<16x64xf32> to vector<16x16xf32>
    %126 = vector.extract_strided_slice %95 {offsets = [0, 32], sizes = [16, 32], strides = [1, 1]} : vector<16x128xf32> to vector<16x32xf32>
    %cst_46 = arith.constant dense<0.000000e+00> : vector<16x32xf32>
    %127 = tpu.matmul %125, %126, %cst_46 {dimension_numbers = #tpu.dot_dimension_numbers<[1], [0], [0], [1], [0, 0, 1, 1], [], []>} : vector<16x16xf32>, vector<16x32xf32>, vector<16x32xf32> -> vector<16x32xf32>
    %128 = arith.addf %124, %127 : vector<16x32xf32>
    %129 = vector.extract_strided_slice %121 {offsets = [0, 32], sizes = [16, 16], strides = [1, 1]} : vector<16x64xf32> to vector<16x16xf32>
    %130 = vector.extract_strided_slice %95 {offsets = [0, 64], sizes = [16, 32], strides = [1, 1]} : vector<16x128xf32> to vector<16x32xf32>
    %cst_47 = arith.constant dense<0.000000e+00> : vector<16x32xf32>
    %131 = tpu.matmul %129, %130, %cst_47 {dimension_numbers = #tpu.dot_dimension_numbers<[1], [0], [0], [1], [0, 0, 1, 1], [], []>} : vector<16x16xf32>, vector<16x32xf32>, vector<16x32xf32> -> vector<16x32xf32>
    %132 = arith.addf %128, %131 : vector<16x32xf32>
    %133 = vector.extract_strided_slice %121 {offsets = [0, 48], sizes = [16, 16], strides = [1, 1]} : vector<16x64xf32> to vector<16x16xf32>
    %134 = vector.extract_strided_slice %95 {offsets = [0, 96], sizes = [16, 32], strides = [1, 1]} : vector<16x128xf32> to vector<16x32xf32>
    %cst_48 = arith.constant dense<0.000000e+00> : vector<16x32xf32>
    %135 = tpu.matmul %133, %134, %cst_48 {dimension_numbers = #tpu.dot_dimension_numbers<[1], [0], [0], [1], [0, 0, 1, 1], [], []>} : vector<16x16xf32>, vector<16x32xf32>, vector<16x32xf32> -> vector<16x32xf32>
    %136 = arith.addf %132, %135 : vector<16x32xf32>
    %137 = arith.addf %136, %91 : vector<16x32xf32>
    %cst_49 = arith.constant dense<0.000000e+00> : vector<16xf32>
    %138 = vector.multi_reduction <add>, %137, %cst_49 [1] : vector<16x32xf32> to vector<16xf32>
    %139 = vector.shape_cast %138 : vector<16xf32> to vector<16x1xf32>
    %cst_50 = arith.constant 3.200000e+01 : f32
    %140 = vector.broadcast %cst_50 : f32 to vector<16x1xf32>
    %141 = arith.divf %139, %140 : vector<16x1xf32>
    %142 = vector.broadcast %141 : vector<16x1xf32> to vector<16x32xf32>
    %143 = arith.subf %137, %142 : vector<16x32xf32>
    %144 = arith.mulf %143, %143 : vector<16x32xf32>
    %cst_51 = arith.constant dense<0.000000e+00> : vector<16xf32>
    %145 = vector.multi_reduction <add>, %144, %cst_51 [1] : vector<16x32xf32> to vector<16xf32>
    %146 = vector.shape_cast %145 : vector<16xf32> to vector<16x1xf32>
    %cst_52 = arith.constant 0.0322580636 : f32
    %147 = vector.broadcast %cst_52 : f32 to vector<16x1xf32>
    %148 = arith.mulf %146, %147 : vector<16x1xf32>
    %149 = math.rsqrt %148 : vector<16x1xf32>
    %150 = vector.broadcast %149 : vector<16x1xf32> to vector<16x32xf32>
    %151 = arith.mulf %143, %150 : vector<16x32xf32>
    %c240 = arith.constant 240 : index
    %c0_53 = arith.constant 0 : index
    %152 = vector.load %arg2[%c240, %c0_53] : memref<1000x128xf32, #tpu.memory_space<vmem>>, vector<32x64xf32>
    %c272 = arith.constant 272 : index
    %c0_54 = arith.constant 0 : index
    %153 = vector.load %arg2[%c272, %c0_54] : memref<1000x128xf32, #tpu.memory_space<vmem>>, vector<1x64xf32>
    %c280 = arith.constant 280 : index
    %c0_55 = arith.constant 0 : index
    %154 = vector.load %arg2[%c280, %c0_55] : memref<1000x128xf32, #tpu.memory_space<vmem>>, vector<64x32xf32>
    %c344 = arith.constant 344 : index
    %c0_56 = arith.constant 0 : index
    %155 = vector.load %arg2[%c344, %c0_56] : memref<1000x128xf32, #tpu.memory_space<vmem>>, vector<1x32xf32>
    %cst_57 = arith.constant dense<0.000000e+00> : vector<16x64xf32>
    %156 = tpu.matmul %151, %152, %cst_57 {dimension_numbers = #tpu.dot_dimension_numbers<[1], [0], [0], [1], [0, 0, 1, 1], [], []>} : vector<16x32xf32>, vector<32x64xf32>, vector<16x64xf32> -> vector<16x64xf32>
    %157 = vector.broadcast %153 : vector<1x64xf32> to vector<16x64xf32>
    %158 = arith.addf %156, %157 : vector<16x64xf32>
    %cst_58 = arith.constant 0.000000e+00 : f32
    %159 = vector.broadcast %cst_58 : f32 to vector<16x64xf32>
    %160 = arith.maximumf %158, %159 : vector<16x64xf32>
    %cst_59 = arith.constant dense<0.000000e+00> : vector<16x32xf32>
    %161 = tpu.matmul %160, %154, %cst_59 {dimension_numbers = #tpu.dot_dimension_numbers<[1], [0], [0], [1], [0, 0, 1, 1], [], []>} : vector<16x64xf32>, vector<64x32xf32>, vector<16x32xf32> -> vector<16x32xf32>
    %162 = vector.broadcast %155 : vector<1x32xf32> to vector<16x32xf32>
    %163 = arith.addf %161, %162 : vector<16x32xf32>
    %164 = arith.addf %163, %151 : vector<16x32xf32>
    %cst_60 = arith.constant dense<0.000000e+00> : vector<16xf32>
    %165 = vector.multi_reduction <add>, %164, %cst_60 [1] : vector<16x32xf32> to vector<16xf32>
    %166 = vector.shape_cast %165 : vector<16xf32> to vector<16x1xf32>
    %cst_61 = arith.constant 3.200000e+01 : f32
    %167 = vector.broadcast %cst_61 : f32 to vector<16x1xf32>
    %168 = arith.divf %166, %167 : vector<16x1xf32>
    %169 = vector.broadcast %168 : vector<16x1xf32> to vector<16x32xf32>
    %170 = arith.subf %164, %169 : vector<16x32xf32>
    %171 = arith.mulf %170, %170 : vector<16x32xf32>
    %cst_62 = arith.constant dense<0.000000e+00> : vector<16xf32>
    %172 = vector.multi_reduction <add>, %171, %cst_62 [1] : vector<16x32xf32> to vector<16xf32>
    %173 = vector.shape_cast %172 : vector<16xf32> to vector<16x1xf32>
    %cst_63 = arith.constant 0.0322580636 : f32
    %174 = vector.broadcast %cst_63 : f32 to vector<16x1xf32>
    %175 = arith.mulf %173, %174 : vector<16x1xf32>
    %176 = math.rsqrt %175 : vector<16x1xf32>
    %177 = vector.broadcast %176 : vector<16x1xf32> to vector<16x32xf32>
    %178 = arith.mulf %170, %177 : vector<16x32xf32>
    %c352 = arith.constant 352 : index
    %c0_64 = arith.constant 0 : index
    %179 = vector.load %arg2[%c352, %c0_64] : memref<1000x128xf32, #tpu.memory_space<vmem>>, vector<32x64xf32>
    %c384 = arith.constant 384 : index
    %c0_65 = arith.constant 0 : index
    %180 = vector.load %arg2[%c384, %c0_65] : memref<1000x128xf32, #tpu.memory_space<vmem>>, vector<32x128xf32>
    %cst_66 = arith.constant dense<0.000000e+00> : vector<18x64xf32>
    %181 = tpu.matmul %1, %179, %cst_66 {dimension_numbers = #tpu.dot_dimension_numbers<[1], [0], [0], [1], [0, 0, 1, 1], [], []>} : vector<18x32xf32>, vector<32x64xf32>, vector<18x64xf32> -> vector<18x64xf32>
    %cst_67 = arith.constant dense<0.000000e+00> : vector<18x128xf32>
    %182 = tpu.matmul %1, %180, %cst_67 {dimension_numbers = #tpu.dot_dimension_numbers<[1], [0], [0], [1], [0, 0, 1, 1], [], []>} : vector<18x32xf32>, vector<32x128xf32>, vector<18x128xf32> -> vector<18x128xf32>
    %183 = vector.extract_strided_slice %181 {offsets = [0, 0], sizes = [18, 32], strides = [1, 1]} : vector<18x64xf32> to vector<18x32xf32>
    %184 = vector.extract_strided_slice %181 {offsets = [0, 32], sizes = [18, 32], strides = [1, 1]} : vector<18x64xf32> to vector<18x32xf32>
    %185 = vector.extract_strided_slice %183 {offsets = [0, 0], sizes = [18, 8], strides = [1, 1]} : vector<18x32xf32> to vector<18x8xf32>
    %186 = vector.extract_strided_slice %184 {offsets = [0, 0], sizes = [18, 8], strides = [1, 1]} : vector<18x32xf32> to vector<18x8xf32>
    %cst_68 = arith.constant dense<0.000000e+00> : vector<18x18xf32>
    %187 = tpu.matmul %185, %186, %cst_68 {dimension_numbers = #tpu.dot_dimension_numbers<[1], [1], [0], [0], [0, 0, 1, 0], [], []>} : vector<18x8xf32>, vector<18x8xf32>, vector<18x18xf32> -> vector<18x18xf32>
    %188 = vector.extract_strided_slice %183 {offsets = [0, 8], sizes = [18, 8], strides = [1, 1]} : vector<18x32xf32> to vector<18x8xf32>
    %189 = vector.extract_strided_slice %184 {offsets = [0, 8], sizes = [18, 8], strides = [1, 1]} : vector<18x32xf32> to vector<18x8xf32>
    %cst_69 = arith.constant dense<0.000000e+00> : vector<18x18xf32>
    %190 = tpu.matmul %188, %189, %cst_69 {dimension_numbers = #tpu.dot_dimension_numbers<[1], [1], [0], [0], [0, 0, 1, 0], [], []>} : vector<18x8xf32>, vector<18x8xf32>, vector<18x18xf32> -> vector<18x18xf32>
    %191 = vector.extract_strided_slice %183 {offsets = [0, 16], sizes = [18, 8], strides = [1, 1]} : vector<18x32xf32> to vector<18x8xf32>
    %192 = vector.extract_strided_slice %184 {offsets = [0, 16], sizes = [18, 8], strides = [1, 1]} : vector<18x32xf32> to vector<18x8xf32>
    %cst_70 = arith.constant dense<0.000000e+00> : vector<18x18xf32>
    %193 = tpu.matmul %191, %192, %cst_70 {dimension_numbers = #tpu.dot_dimension_numbers<[1], [1], [0], [0], [0, 0, 1, 0], [], []>} : vector<18x8xf32>, vector<18x8xf32>, vector<18x18xf32> -> vector<18x18xf32>
    %194 = vector.extract_strided_slice %183 {offsets = [0, 24], sizes = [18, 8], strides = [1, 1]} : vector<18x32xf32> to vector<18x8xf32>
    %195 = vector.extract_strided_slice %184 {offsets = [0, 24], sizes = [18, 8], strides = [1, 1]} : vector<18x32xf32> to vector<18x8xf32>
    %cst_71 = arith.constant dense<0.000000e+00> : vector<18x18xf32>
    %196 = tpu.matmul %194, %195, %cst_71 {dimension_numbers = #tpu.dot_dimension_numbers<[1], [1], [0], [0], [0, 0, 1, 0], [], []>} : vector<18x8xf32>, vector<18x8xf32>, vector<18x18xf32> -> vector<18x18xf32>
    %197 = tpu.concatenate %187, %190, %193, %196 in 1 : vector<18x18xf32>, vector<18x18xf32>, vector<18x18xf32>, vector<18x18xf32> -> vector<18x72xf32>
    %198 = arith.addf %197, %3 : vector<18x72xf32>
    %cst_72 = arith.constant dense<0xFF800000> : vector<72xf32>
    %199 = vector.multi_reduction <maximumf>, %198, %cst_72 [0] : vector<18x72xf32> to vector<72xf32>
    %200 = vector.shape_cast %199 : vector<72xf32> to vector<1x72xf32>
    %201 = vector.broadcast %200 : vector<1x72xf32> to vector<18x72xf32>
    %202 = arith.subf %198, %201 : vector<18x72xf32>
    %203 = math.exp %202 : vector<18x72xf32>
    %cst_73 = arith.constant dense<0.000000e+00> : vector<72xf32>
    %204 = vector.multi_reduction <add>, %203, %cst_73 [0] : vector<18x72xf32> to vector<72xf32>
    %205 = vector.shape_cast %204 : vector<72xf32> to vector<1x72xf32>
    %206 = tpu.reciprocal %205 {approx = true} : vector<1x72xf32> -> vector<1x72xf32>
    %207 = vector.broadcast %206 : vector<1x72xf32> to vector<18x72xf32>
    %208 = arith.mulf %203, %207 : vector<18x72xf32>
    %209 = vector.extract_strided_slice %208 {offsets = [0, 0], sizes = [18, 18], strides = [1, 1]} : vector<18x72xf32> to vector<18x18xf32>
    %210 = vector.extract_strided_slice %182 {offsets = [0, 0], sizes = [18, 32], strides = [1, 1]} : vector<18x128xf32> to vector<18x32xf32>
    %cst_74 = arith.constant dense<0.000000e+00> : vector<18x32xf32>
    %211 = tpu.matmul %209, %210, %cst_74 {dimension_numbers = #tpu.dot_dimension_numbers<[1], [0], [0], [1], [0, 0, 1, 1], [], []>} : vector<18x18xf32>, vector<18x32xf32>, vector<18x32xf32> -> vector<18x32xf32>
    %212 = vector.extract_strided_slice %208 {offsets = [0, 18], sizes = [18, 18], strides = [1, 1]} : vector<18x72xf32> to vector<18x18xf32>
    %213 = vector.extract_strided_slice %182 {offsets = [0, 32], sizes = [18, 32], strides = [1, 1]} : vector<18x128xf32> to vector<18x32xf32>
    %cst_75 = arith.constant dense<0.000000e+00> : vector<18x32xf32>
    %214 = tpu.matmul %212, %213, %cst_75 {dimension_numbers = #tpu.dot_dimension_numbers<[1], [0], [0], [1], [0, 0, 1, 1], [], []>} : vector<18x18xf32>, vector<18x32xf32>, vector<18x32xf32> -> vector<18x32xf32>
    %215 = arith.addf %211, %214 : vector<18x32xf32>
    %216 = vector.extract_strided_slice %208 {offsets = [0, 36], sizes = [18, 18], strides = [1, 1]} : vector<18x72xf32> to vector<18x18xf32>
    %217 = vector.extract_strided_slice %182 {offsets = [0, 64], sizes = [18, 32], strides = [1, 1]} : vector<18x128xf32> to vector<18x32xf32>
    %cst_76 = arith.constant dense<0.000000e+00> : vector<18x32xf32>
    %218 = tpu.matmul %216, %217, %cst_76 {dimension_numbers = #tpu.dot_dimension_numbers<[1], [0], [0], [1], [0, 0, 1, 1], [], []>} : vector<18x18xf32>, vector<18x32xf32>, vector<18x32xf32> -> vector<18x32xf32>
    %219 = arith.addf %215, %218 : vector<18x32xf32>
    %220 = vector.extract_strided_slice %208 {offsets = [0, 54], sizes = [18, 18], strides = [1, 1]} : vector<18x72xf32> to vector<18x18xf32>
    %221 = vector.extract_strided_slice %182 {offsets = [0, 96], sizes = [18, 32], strides = [1, 1]} : vector<18x128xf32> to vector<18x32xf32>
    %cst_77 = arith.constant dense<0.000000e+00> : vector<18x32xf32>
    %222 = tpu.matmul %220, %221, %cst_77 {dimension_numbers = #tpu.dot_dimension_numbers<[1], [0], [0], [1], [0, 0, 1, 1], [], []>} : vector<18x18xf32>, vector<18x32xf32>, vector<18x32xf32> -> vector<18x32xf32>
    %223 = arith.addf %219, %222 : vector<18x32xf32>
    %224 = arith.addf %223, %1 : vector<18x32xf32>
    %cst_78 = arith.constant dense<0.000000e+00> : vector<18xf32>
    %225 = vector.multi_reduction <add>, %224, %cst_78 [1] : vector<18x32xf32> to vector<18xf32>
    %226 = vector.shape_cast %225 : vector<18xf32> to vector<18x1xf32>
    %cst_79 = arith.constant 3.200000e+01 : f32
    %227 = vector.broadcast %cst_79 : f32 to vector<18x1xf32>
    %228 = arith.divf %226, %227 : vector<18x1xf32>
    %229 = vector.broadcast %228 : vector<18x1xf32> to vector<18x32xf32>
    %230 = arith.subf %224, %229 : vector<18x32xf32>
    %231 = arith.mulf %230, %230 : vector<18x32xf32>
    %cst_80 = arith.constant dense<0.000000e+00> : vector<18xf32>
    %232 = vector.multi_reduction <add>, %231, %cst_80 [1] : vector<18x32xf32> to vector<18xf32>
    %233 = vector.shape_cast %232 : vector<18xf32> to vector<18x1xf32>
    %cst_81 = arith.constant 0.0322580636 : f32
    %234 = vector.broadcast %cst_81 : f32 to vector<18x1xf32>
    %235 = arith.mulf %233, %234 : vector<18x1xf32>
    %236 = math.rsqrt %235 : vector<18x1xf32>
    %237 = vector.broadcast %236 : vector<18x1xf32> to vector<18x32xf32>
    %238 = arith.mulf %230, %237 : vector<18x32xf32>
    %c416 = arith.constant 416 : index
    %c0_82 = arith.constant 0 : index
    %239 = vector.load %arg2[%c416, %c0_82] : memref<1000x128xf32, #tpu.memory_space<vmem>>, vector<32x32xf32>
    %c448 = arith.constant 448 : index
    %c0_83 = arith.constant 0 : index
    %240 = vector.load %arg2[%c448, %c0_83] : memref<1000x128xf32, #tpu.memory_space<vmem>>, vector<32x32xf32>
    %c480 = arith.constant 480 : index
    %c0_84 = arith.constant 0 : index
    %241 = vector.load %arg2[%c480, %c0_84] : memref<1000x128xf32, #tpu.memory_space<vmem>>, vector<32x128xf32>
    %cst_85 = arith.constant dense<0.000000e+00> : vector<18x32xf32>
    %242 = tpu.matmul %238, %239, %cst_85 {dimension_numbers = #tpu.dot_dimension_numbers<[1], [0], [0], [1], [0, 0, 1, 1], [], []>} : vector<18x32xf32>, vector<32x32xf32>, vector<18x32xf32> -> vector<18x32xf32>
    %cst_86 = arith.constant dense<0.000000e+00> : vector<16x32xf32>
    %243 = tpu.matmul %178, %240, %cst_86 {dimension_numbers = #tpu.dot_dimension_numbers<[1], [0], [0], [1], [0, 0, 1, 1], [], []>} : vector<16x32xf32>, vector<32x32xf32>, vector<16x32xf32> -> vector<16x32xf32>
    %cst_87 = arith.constant dense<0.000000e+00> : vector<16x128xf32>
    %244 = tpu.matmul %178, %241, %cst_87 {dimension_numbers = #tpu.dot_dimension_numbers<[1], [0], [0], [1], [0, 0, 1, 1], [], []>} : vector<16x32xf32>, vector<32x128xf32>, vector<16x128xf32> -> vector<16x128xf32>
    %245 = vector.extract_strided_slice %242 {offsets = [0, 0], sizes = [18, 8], strides = [1, 1]} : vector<18x32xf32> to vector<18x8xf32>
    %246 = vector.extract_strided_slice %243 {offsets = [0, 0], sizes = [16, 8], strides = [1, 1]} : vector<16x32xf32> to vector<16x8xf32>
    %cst_88 = arith.constant dense<0.000000e+00> : vector<18x16xf32>
    %247 = tpu.matmul %245, %246, %cst_88 {dimension_numbers = #tpu.dot_dimension_numbers<[1], [1], [0], [0], [0, 0, 1, 0], [], []>} : vector<18x8xf32>, vector<16x8xf32>, vector<18x16xf32> -> vector<18x16xf32>
    %248 = vector.extract_strided_slice %242 {offsets = [0, 8], sizes = [18, 8], strides = [1, 1]} : vector<18x32xf32> to vector<18x8xf32>
    %249 = vector.extract_strided_slice %243 {offsets = [0, 8], sizes = [16, 8], strides = [1, 1]} : vector<16x32xf32> to vector<16x8xf32>
    %cst_89 = arith.constant dense<0.000000e+00> : vector<18x16xf32>
    %250 = tpu.matmul %248, %249, %cst_89 {dimension_numbers = #tpu.dot_dimension_numbers<[1], [1], [0], [0], [0, 0, 1, 0], [], []>} : vector<18x8xf32>, vector<16x8xf32>, vector<18x16xf32> -> vector<18x16xf32>
    %251 = vector.extract_strided_slice %242 {offsets = [0, 16], sizes = [18, 8], strides = [1, 1]} : vector<18x32xf32> to vector<18x8xf32>
    %252 = vector.extract_strided_slice %243 {offsets = [0, 16], sizes = [16, 8], strides = [1, 1]} : vector<16x32xf32> to vector<16x8xf32>
    %cst_90 = arith.constant dense<0.000000e+00> : vector<18x16xf32>
    %253 = tpu.matmul %251, %252, %cst_90 {dimension_numbers = #tpu.dot_dimension_numbers<[1], [1], [0], [0], [0, 0, 1, 0], [], []>} : vector<18x8xf32>, vector<16x8xf32>, vector<18x16xf32> -> vector<18x16xf32>
    %254 = vector.extract_strided_slice %242 {offsets = [0, 24], sizes = [18, 8], strides = [1, 1]} : vector<18x32xf32> to vector<18x8xf32>
    %255 = vector.extract_strided_slice %243 {offsets = [0, 24], sizes = [16, 8], strides = [1, 1]} : vector<16x32xf32> to vector<16x8xf32>
    %cst_91 = arith.constant dense<0.000000e+00> : vector<18x16xf32>
    %256 = tpu.matmul %254, %255, %cst_91 {dimension_numbers = #tpu.dot_dimension_numbers<[1], [1], [0], [0], [0, 0, 1, 0], [], []>} : vector<18x8xf32>, vector<16x8xf32>, vector<18x16xf32> -> vector<18x16xf32>
    %257 = tpu.concatenate %247, %250, %253, %256 in 1 : vector<18x16xf32>, vector<18x16xf32>, vector<18x16xf32>, vector<18x16xf32> -> vector<18x64xf32>
    %258 = arith.addf %257, %4 : vector<18x64xf32>
    %cst_92 = arith.constant dense<0xFF800000> : vector<64xf32>
    %259 = vector.multi_reduction <maximumf>, %258, %cst_92 [0] : vector<18x64xf32> to vector<64xf32>
    %260 = vector.shape_cast %259 : vector<64xf32> to vector<1x64xf32>
    %261 = vector.broadcast %260 : vector<1x64xf32> to vector<18x64xf32>
    %262 = arith.subf %258, %261 : vector<18x64xf32>
    %263 = math.exp %262 : vector<18x64xf32>
    %cst_93 = arith.constant dense<0.000000e+00> : vector<64xf32>
    %264 = vector.multi_reduction <add>, %263, %cst_93 [0] : vector<18x64xf32> to vector<64xf32>
    %265 = vector.shape_cast %264 : vector<64xf32> to vector<1x64xf32>
    %266 = tpu.reciprocal %265 {approx = true} : vector<1x64xf32> -> vector<1x64xf32>
    %267 = vector.broadcast %266 : vector<1x64xf32> to vector<18x64xf32>
    %268 = arith.mulf %263, %267 : vector<18x64xf32>
    %269 = vector.extract_strided_slice %268 {offsets = [0, 0], sizes = [18, 16], strides = [1, 1]} : vector<18x64xf32> to vector<18x16xf32>
    %270 = vector.extract_strided_slice %244 {offsets = [0, 0], sizes = [16, 32], strides = [1, 1]} : vector<16x128xf32> to vector<16x32xf32>
    %cst_94 = arith.constant dense<0.000000e+00> : vector<18x32xf32>
    %271 = tpu.matmul %269, %270, %cst_94 {dimension_numbers = #tpu.dot_dimension_numbers<[1], [0], [0], [1], [0, 0, 1, 1], [], []>} : vector<18x16xf32>, vector<16x32xf32>, vector<18x32xf32> -> vector<18x32xf32>
    %272 = vector.extract_strided_slice %268 {offsets = [0, 16], sizes = [18, 16], strides = [1, 1]} : vector<18x64xf32> to vector<18x16xf32>
    %273 = vector.extract_strided_slice %244 {offsets = [0, 32], sizes = [16, 32], strides = [1, 1]} : vector<16x128xf32> to vector<16x32xf32>
    %cst_95 = arith.constant dense<0.000000e+00> : vector<18x32xf32>
    %274 = tpu.matmul %272, %273, %cst_95 {dimension_numbers = #tpu.dot_dimension_numbers<[1], [0], [0], [1], [0, 0, 1, 1], [], []>} : vector<18x16xf32>, vector<16x32xf32>, vector<18x32xf32> -> vector<18x32xf32>
    %275 = arith.addf %271, %274 : vector<18x32xf32>
    %276 = vector.extract_strided_slice %268 {offsets = [0, 32], sizes = [18, 16], strides = [1, 1]} : vector<18x64xf32> to vector<18x16xf32>
    %277 = vector.extract_strided_slice %244 {offsets = [0, 64], sizes = [16, 32], strides = [1, 1]} : vector<16x128xf32> to vector<16x32xf32>
    %cst_96 = arith.constant dense<0.000000e+00> : vector<18x32xf32>
    %278 = tpu.matmul %276, %277, %cst_96 {dimension_numbers = #tpu.dot_dimension_numbers<[1], [0], [0], [1], [0, 0, 1, 1], [], []>} : vector<18x16xf32>, vector<16x32xf32>, vector<18x32xf32> -> vector<18x32xf32>
    %279 = arith.addf %275, %278 : vector<18x32xf32>
    %280 = vector.extract_strided_slice %268 {offsets = [0, 48], sizes = [18, 16], strides = [1, 1]} : vector<18x64xf32> to vector<18x16xf32>
    %281 = vector.extract_strided_slice %244 {offsets = [0, 96], sizes = [16, 32], strides = [1, 1]} : vector<16x128xf32> to vector<16x32xf32>
    %cst_97 = arith.constant dense<0.000000e+00> : vector<18x32xf32>
    %282 = tpu.matmul %280, %281, %cst_97 {dimension_numbers = #tpu.dot_dimension_numbers<[1], [0], [0], [1], [0, 0, 1, 1], [], []>} : vector<18x16xf32>, vector<16x32xf32>, vector<18x32xf32> -> vector<18x32xf32>
    %283 = arith.addf %279, %282 : vector<18x32xf32>
    %284 = arith.addf %283, %238 : vector<18x32xf32>
    %cst_98 = arith.constant dense<0.000000e+00> : vector<18xf32>
    %285 = vector.multi_reduction <add>, %284, %cst_98 [1] : vector<18x32xf32> to vector<18xf32>
    %286 = vector.shape_cast %285 : vector<18xf32> to vector<18x1xf32>
    %cst_99 = arith.constant 3.200000e+01 : f32
    %287 = vector.broadcast %cst_99 : f32 to vector<18x1xf32>
    %288 = arith.divf %286, %287 : vector<18x1xf32>
    %289 = vector.broadcast %288 : vector<18x1xf32> to vector<18x32xf32>
    %290 = arith.subf %284, %289 : vector<18x32xf32>
    %291 = arith.mulf %290, %290 : vector<18x32xf32>
    %cst_100 = arith.constant dense<0.000000e+00> : vector<18xf32>
    %292 = vector.multi_reduction <add>, %291, %cst_100 [1] : vector<18x32xf32> to vector<18xf32>
    %293 = vector.shape_cast %292 : vector<18xf32> to vector<18x1xf32>
    %cst_101 = arith.constant 0.0322580636 : f32
    %294 = vector.broadcast %cst_101 : f32 to vector<18x1xf32>
    %295 = arith.mulf %293, %294 : vector<18x1xf32>
    %296 = math.rsqrt %295 : vector<18x1xf32>
    %297 = vector.broadcast %296 : vector<18x1xf32> to vector<18x32xf32>
    %298 = arith.mulf %290, %297 : vector<18x32xf32>
    %c512 = arith.constant 512 : index
    %c0_102 = arith.constant 0 : index
    %299 = vector.load %arg2[%c512, %c0_102] : memref<1000x128xf32, #tpu.memory_space<vmem>>, vector<32x64xf32>
    %c544 = arith.constant 544 : index
    %c0_103 = arith.constant 0 : index
    %300 = vector.load %arg2[%c544, %c0_103] : memref<1000x128xf32, #tpu.memory_space<vmem>>, vector<1x64xf32>
    %c552 = arith.constant 552 : index
    %c0_104 = arith.constant 0 : index
    %301 = vector.load %arg2[%c552, %c0_104] : memref<1000x128xf32, #tpu.memory_space<vmem>>, vector<64x32xf32>
    %c616 = arith.constant 616 : index
    %c0_105 = arith.constant 0 : index
    %302 = vector.load %arg2[%c616, %c0_105] : memref<1000x128xf32, #tpu.memory_space<vmem>>, vector<1x32xf32>
    %cst_106 = arith.constant dense<0.000000e+00> : vector<18x64xf32>
    %303 = tpu.matmul %298, %299, %cst_106 {dimension_numbers = #tpu.dot_dimension_numbers<[1], [0], [0], [1], [0, 0, 1, 1], [], []>} : vector<18x32xf32>, vector<32x64xf32>, vector<18x64xf32> -> vector<18x64xf32>
    %304 = vector.broadcast %300 : vector<1x64xf32> to vector<18x64xf32>
    %305 = arith.addf %303, %304 : vector<18x64xf32>
    %cst_107 = arith.constant 0.000000e+00 : f32
    %306 = vector.broadcast %cst_107 : f32 to vector<18x64xf32>
    %307 = arith.maximumf %305, %306 : vector<18x64xf32>
    %cst_108 = arith.constant dense<0.000000e+00> : vector<18x32xf32>
    %308 = tpu.matmul %307, %301, %cst_108 {dimension_numbers = #tpu.dot_dimension_numbers<[1], [0], [0], [1], [0, 0, 1, 1], [], []>} : vector<18x64xf32>, vector<64x32xf32>, vector<18x32xf32> -> vector<18x32xf32>
    %309 = vector.broadcast %302 : vector<1x32xf32> to vector<18x32xf32>
    %310 = arith.addf %308, %309 : vector<18x32xf32>
    %311 = arith.addf %310, %298 : vector<18x32xf32>
    %cst_109 = arith.constant dense<0.000000e+00> : vector<18xf32>
    %312 = vector.multi_reduction <add>, %311, %cst_109 [1] : vector<18x32xf32> to vector<18xf32>
    %313 = vector.shape_cast %312 : vector<18xf32> to vector<18x1xf32>
    %cst_110 = arith.constant 3.200000e+01 : f32
    %314 = vector.broadcast %cst_110 : f32 to vector<18x1xf32>
    %315 = arith.divf %313, %314 : vector<18x1xf32>
    %316 = vector.broadcast %315 : vector<18x1xf32> to vector<18x32xf32>
    %317 = arith.subf %311, %316 : vector<18x32xf32>
    %318 = arith.mulf %317, %317 : vector<18x32xf32>
    %cst_111 = arith.constant dense<0.000000e+00> : vector<18xf32>
    %319 = vector.multi_reduction <add>, %318, %cst_111 [1] : vector<18x32xf32> to vector<18xf32>
    %320 = vector.shape_cast %319 : vector<18xf32> to vector<18x1xf32>
    %cst_112 = arith.constant 0.0322580636 : f32
    %321 = vector.broadcast %cst_112 : f32 to vector<18x1xf32>
    %322 = arith.mulf %320, %321 : vector<18x1xf32>
    %323 = math.rsqrt %322 : vector<18x1xf32>
    %324 = vector.broadcast %323 : vector<18x1xf32> to vector<18x32xf32>
    %325 = arith.mulf %317, %324 : vector<18x32xf32>
    %c624 = arith.constant 624 : index
    %c0_113 = arith.constant 0 : index
    %326 = vector.load %arg2[%c624, %c0_113] : memref<1000x128xf32, #tpu.memory_space<vmem>>, vector<32x64xf32>
    %c656 = arith.constant 656 : index
    %c0_114 = arith.constant 0 : index
    %327 = vector.load %arg2[%c656, %c0_114] : memref<1000x128xf32, #tpu.memory_space<vmem>>, vector<32x128xf32>
    %cst_115 = arith.constant dense<0.000000e+00> : vector<18x64xf32>
    %328 = tpu.matmul %325, %326, %cst_115 {dimension_numbers = #tpu.dot_dimension_numbers<[1], [0], [0], [1], [0, 0, 1, 1], [], []>} : vector<18x32xf32>, vector<32x64xf32>, vector<18x64xf32> -> vector<18x64xf32>
    %cst_116 = arith.constant dense<0.000000e+00> : vector<18x128xf32>
    %329 = tpu.matmul %325, %327, %cst_116 {dimension_numbers = #tpu.dot_dimension_numbers<[1], [0], [0], [1], [0, 0, 1, 1], [], []>} : vector<18x32xf32>, vector<32x128xf32>, vector<18x128xf32> -> vector<18x128xf32>
    %330 = vector.extract_strided_slice %328 {offsets = [0, 0], sizes = [18, 32], strides = [1, 1]} : vector<18x64xf32> to vector<18x32xf32>
    %331 = vector.extract_strided_slice %328 {offsets = [0, 32], sizes = [18, 32], strides = [1, 1]} : vector<18x64xf32> to vector<18x32xf32>
    %332 = vector.extract_strided_slice %330 {offsets = [0, 0], sizes = [18, 8], strides = [1, 1]} : vector<18x32xf32> to vector<18x8xf32>
    %333 = vector.extract_strided_slice %331 {offsets = [0, 0], sizes = [18, 8], strides = [1, 1]} : vector<18x32xf32> to vector<18x8xf32>
    %cst_117 = arith.constant dense<0.000000e+00> : vector<18x18xf32>
    %334 = tpu.matmul %332, %333, %cst_117 {dimension_numbers = #tpu.dot_dimension_numbers<[1], [1], [0], [0], [0, 0, 1, 0], [], []>} : vector<18x8xf32>, vector<18x8xf32>, vector<18x18xf32> -> vector<18x18xf32>
    %335 = vector.extract_strided_slice %330 {offsets = [0, 8], sizes = [18, 8], strides = [1, 1]} : vector<18x32xf32> to vector<18x8xf32>
    %336 = vector.extract_strided_slice %331 {offsets = [0, 8], sizes = [18, 8], strides = [1, 1]} : vector<18x32xf32> to vector<18x8xf32>
    %cst_118 = arith.constant dense<0.000000e+00> : vector<18x18xf32>
    %337 = tpu.matmul %335, %336, %cst_118 {dimension_numbers = #tpu.dot_dimension_numbers<[1], [1], [0], [0], [0, 0, 1, 0], [], []>} : vector<18x8xf32>, vector<18x8xf32>, vector<18x18xf32> -> vector<18x18xf32>
    %338 = vector.extract_strided_slice %330 {offsets = [0, 16], sizes = [18, 8], strides = [1, 1]} : vector<18x32xf32> to vector<18x8xf32>
    %339 = vector.extract_strided_slice %331 {offsets = [0, 16], sizes = [18, 8], strides = [1, 1]} : vector<18x32xf32> to vector<18x8xf32>
    %cst_119 = arith.constant dense<0.000000e+00> : vector<18x18xf32>
    %340 = tpu.matmul %338, %339, %cst_119 {dimension_numbers = #tpu.dot_dimension_numbers<[1], [1], [0], [0], [0, 0, 1, 0], [], []>} : vector<18x8xf32>, vector<18x8xf32>, vector<18x18xf32> -> vector<18x18xf32>
    %341 = vector.extract_strided_slice %330 {offsets = [0, 24], sizes = [18, 8], strides = [1, 1]} : vector<18x32xf32> to vector<18x8xf32>
    %342 = vector.extract_strided_slice %331 {offsets = [0, 24], sizes = [18, 8], strides = [1, 1]} : vector<18x32xf32> to vector<18x8xf32>
    %cst_120 = arith.constant dense<0.000000e+00> : vector<18x18xf32>
    %343 = tpu.matmul %341, %342, %cst_120 {dimension_numbers = #tpu.dot_dimension_numbers<[1], [1], [0], [0], [0, 0, 1, 0], [], []>} : vector<18x8xf32>, vector<18x8xf32>, vector<18x18xf32> -> vector<18x18xf32>
    %344 = tpu.concatenate %334, %337, %340, %343 in 1 : vector<18x18xf32>, vector<18x18xf32>, vector<18x18xf32>, vector<18x18xf32> -> vector<18x72xf32>
    %345 = arith.addf %344, %3 : vector<18x72xf32>
    %cst_121 = arith.constant dense<0xFF800000> : vector<72xf32>
    %346 = vector.multi_reduction <maximumf>, %345, %cst_121 [0] : vector<18x72xf32> to vector<72xf32>
    %347 = vector.shape_cast %346 : vector<72xf32> to vector<1x72xf32>
    %348 = vector.broadcast %347 : vector<1x72xf32> to vector<18x72xf32>
    %349 = arith.subf %345, %348 : vector<18x72xf32>
    %350 = math.exp %349 : vector<18x72xf32>
    %cst_122 = arith.constant dense<0.000000e+00> : vector<72xf32>
    %351 = vector.multi_reduction <add>, %350, %cst_122 [0] : vector<18x72xf32> to vector<72xf32>
    %352 = vector.shape_cast %351 : vector<72xf32> to vector<1x72xf32>
    %353 = tpu.reciprocal %352 {approx = true} : vector<1x72xf32> -> vector<1x72xf32>
    %354 = vector.broadcast %353 : vector<1x72xf32> to vector<18x72xf32>
    %355 = arith.mulf %350, %354 : vector<18x72xf32>
    %356 = vector.extract_strided_slice %355 {offsets = [0, 0], sizes = [18, 18], strides = [1, 1]} : vector<18x72xf32> to vector<18x18xf32>
    %357 = vector.extract_strided_slice %329 {offsets = [0, 0], sizes = [18, 32], strides = [1, 1]} : vector<18x128xf32> to vector<18x32xf32>
    %cst_123 = arith.constant dense<0.000000e+00> : vector<18x32xf32>
    %358 = tpu.matmul %356, %357, %cst_123 {dimension_numbers = #tpu.dot_dimension_numbers<[1], [0], [0], [1], [0, 0, 1, 1], [], []>} : vector<18x18xf32>, vector<18x32xf32>, vector<18x32xf32> -> vector<18x32xf32>
    %359 = vector.extract_strided_slice %355 {offsets = [0, 18], sizes = [18, 18], strides = [1, 1]} : vector<18x72xf32> to vector<18x18xf32>
    %360 = vector.extract_strided_slice %329 {offsets = [0, 32], sizes = [18, 32], strides = [1, 1]} : vector<18x128xf32> to vector<18x32xf32>
    %cst_124 = arith.constant dense<0.000000e+00> : vector<18x32xf32>
    %361 = tpu.matmul %359, %360, %cst_124 {dimension_numbers = #tpu.dot_dimension_numbers<[1], [0], [0], [1], [0, 0, 1, 1], [], []>} : vector<18x18xf32>, vector<18x32xf32>, vector<18x32xf32> -> vector<18x32xf32>
    %362 = arith.addf %358, %361 : vector<18x32xf32>
    %363 = vector.extract_strided_slice %355 {offsets = [0, 36], sizes = [18, 18], strides = [1, 1]} : vector<18x72xf32> to vector<18x18xf32>
    %364 = vector.extract_strided_slice %329 {offsets = [0, 64], sizes = [18, 32], strides = [1, 1]} : vector<18x128xf32> to vector<18x32xf32>
    %cst_125 = arith.constant dense<0.000000e+00> : vector<18x32xf32>
    %365 = tpu.matmul %363, %364, %cst_125 {dimension_numbers = #tpu.dot_dimension_numbers<[1], [0], [0], [1], [0, 0, 1, 1], [], []>} : vector<18x18xf32>, vector<18x32xf32>, vector<18x32xf32> -> vector<18x32xf32>
    %366 = arith.addf %362, %365 : vector<18x32xf32>
    %367 = vector.extract_strided_slice %355 {offsets = [0, 54], sizes = [18, 18], strides = [1, 1]} : vector<18x72xf32> to vector<18x18xf32>
    %368 = vector.extract_strided_slice %329 {offsets = [0, 96], sizes = [18, 32], strides = [1, 1]} : vector<18x128xf32> to vector<18x32xf32>
    %cst_126 = arith.constant dense<0.000000e+00> : vector<18x32xf32>
    %369 = tpu.matmul %367, %368, %cst_126 {dimension_numbers = #tpu.dot_dimension_numbers<[1], [0], [0], [1], [0, 0, 1, 1], [], []>} : vector<18x18xf32>, vector<18x32xf32>, vector<18x32xf32> -> vector<18x32xf32>
    %370 = arith.addf %366, %369 : vector<18x32xf32>
    %371 = arith.addf %370, %325 : vector<18x32xf32>
    %cst_127 = arith.constant dense<0.000000e+00> : vector<18xf32>
    %372 = vector.multi_reduction <add>, %371, %cst_127 [1] : vector<18x32xf32> to vector<18xf32>
    %373 = vector.shape_cast %372 : vector<18xf32> to vector<18x1xf32>
    %cst_128 = arith.constant 3.200000e+01 : f32
    %374 = vector.broadcast %cst_128 : f32 to vector<18x1xf32>
    %375 = arith.divf %373, %374 : vector<18x1xf32>
    %376 = vector.broadcast %375 : vector<18x1xf32> to vector<18x32xf32>
    %377 = arith.subf %371, %376 : vector<18x32xf32>
    %378 = arith.mulf %377, %377 : vector<18x32xf32>
    %cst_129 = arith.constant dense<0.000000e+00> : vector<18xf32>
    %379 = vector.multi_reduction <add>, %378, %cst_129 [1] : vector<18x32xf32> to vector<18xf32>
    %380 = vector.shape_cast %379 : vector<18xf32> to vector<18x1xf32>
    %cst_130 = arith.constant 0.0322580636 : f32
    %381 = vector.broadcast %cst_130 : f32 to vector<18x1xf32>
    %382 = arith.mulf %380, %381 : vector<18x1xf32>
    %383 = math.rsqrt %382 : vector<18x1xf32>
    %384 = vector.broadcast %383 : vector<18x1xf32> to vector<18x32xf32>
    %385 = arith.mulf %377, %384 : vector<18x32xf32>
    %c688 = arith.constant 688 : index
    %c0_131 = arith.constant 0 : index
    %386 = vector.load %arg2[%c688, %c0_131] : memref<1000x128xf32, #tpu.memory_space<vmem>>, vector<32x32xf32>
    %c720 = arith.constant 720 : index
    %c0_132 = arith.constant 0 : index
    %387 = vector.load %arg2[%c720, %c0_132] : memref<1000x128xf32, #tpu.memory_space<vmem>>, vector<32x32xf32>
    %c752 = arith.constant 752 : index
    %c0_133 = arith.constant 0 : index
    %388 = vector.load %arg2[%c752, %c0_133] : memref<1000x128xf32, #tpu.memory_space<vmem>>, vector<32x128xf32>
    %cst_134 = arith.constant dense<0.000000e+00> : vector<18x32xf32>
    %389 = tpu.matmul %385, %386, %cst_134 {dimension_numbers = #tpu.dot_dimension_numbers<[1], [0], [0], [1], [0, 0, 1, 1], [], []>} : vector<18x32xf32>, vector<32x32xf32>, vector<18x32xf32> -> vector<18x32xf32>
    %cst_135 = arith.constant dense<0.000000e+00> : vector<16x32xf32>
    %390 = tpu.matmul %178, %387, %cst_135 {dimension_numbers = #tpu.dot_dimension_numbers<[1], [0], [0], [1], [0, 0, 1, 1], [], []>} : vector<16x32xf32>, vector<32x32xf32>, vector<16x32xf32> -> vector<16x32xf32>
    %cst_136 = arith.constant dense<0.000000e+00> : vector<16x128xf32>
    %391 = tpu.matmul %178, %388, %cst_136 {dimension_numbers = #tpu.dot_dimension_numbers<[1], [0], [0], [1], [0, 0, 1, 1], [], []>} : vector<16x32xf32>, vector<32x128xf32>, vector<16x128xf32> -> vector<16x128xf32>
    %392 = vector.extract_strided_slice %389 {offsets = [0, 0], sizes = [18, 8], strides = [1, 1]} : vector<18x32xf32> to vector<18x8xf32>
    %393 = vector.extract_strided_slice %390 {offsets = [0, 0], sizes = [16, 8], strides = [1, 1]} : vector<16x32xf32> to vector<16x8xf32>
    %cst_137 = arith.constant dense<0.000000e+00> : vector<18x16xf32>
    %394 = tpu.matmul %392, %393, %cst_137 {dimension_numbers = #tpu.dot_dimension_numbers<[1], [1], [0], [0], [0, 0, 1, 0], [], []>} : vector<18x8xf32>, vector<16x8xf32>, vector<18x16xf32> -> vector<18x16xf32>
    %395 = vector.extract_strided_slice %389 {offsets = [0, 8], sizes = [18, 8], strides = [1, 1]} : vector<18x32xf32> to vector<18x8xf32>
    %396 = vector.extract_strided_slice %390 {offsets = [0, 8], sizes = [16, 8], strides = [1, 1]} : vector<16x32xf32> to vector<16x8xf32>
    %cst_138 = arith.constant dense<0.000000e+00> : vector<18x16xf32>
    %397 = tpu.matmul %395, %396, %cst_138 {dimension_numbers = #tpu.dot_dimension_numbers<[1], [1], [0], [0], [0, 0, 1, 0], [], []>} : vector<18x8xf32>, vector<16x8xf32>, vector<18x16xf32> -> vector<18x16xf32>
    %398 = vector.extract_strided_slice %389 {offsets = [0, 16], sizes = [18, 8], strides = [1, 1]} : vector<18x32xf32> to vector<18x8xf32>
    %399 = vector.extract_strided_slice %390 {offsets = [0, 16], sizes = [16, 8], strides = [1, 1]} : vector<16x32xf32> to vector<16x8xf32>
    %cst_139 = arith.constant dense<0.000000e+00> : vector<18x16xf32>
    %400 = tpu.matmul %398, %399, %cst_139 {dimension_numbers = #tpu.dot_dimension_numbers<[1], [1], [0], [0], [0, 0, 1, 0], [], []>} : vector<18x8xf32>, vector<16x8xf32>, vector<18x16xf32> -> vector<18x16xf32>
    %401 = vector.extract_strided_slice %389 {offsets = [0, 24], sizes = [18, 8], strides = [1, 1]} : vector<18x32xf32> to vector<18x8xf32>
    %402 = vector.extract_strided_slice %390 {offsets = [0, 24], sizes = [16, 8], strides = [1, 1]} : vector<16x32xf32> to vector<16x8xf32>
    %cst_140 = arith.constant dense<0.000000e+00> : vector<18x16xf32>
    %403 = tpu.matmul %401, %402, %cst_140 {dimension_numbers = #tpu.dot_dimension_numbers<[1], [1], [0], [0], [0, 0, 1, 0], [], []>} : vector<18x8xf32>, vector<16x8xf32>, vector<18x16xf32> -> vector<18x16xf32>
    %404 = tpu.concatenate %394, %397, %400, %403 in 1 : vector<18x16xf32>, vector<18x16xf32>, vector<18x16xf32>, vector<18x16xf32> -> vector<18x64xf32>
    %405 = arith.addf %404, %4 : vector<18x64xf32>
    %cst_141 = arith.constant dense<0xFF800000> : vector<64xf32>
    %406 = vector.multi_reduction <maximumf>, %405, %cst_141 [0] : vector<18x64xf32> to vector<64xf32>
    %407 = vector.shape_cast %406 : vector<64xf32> to vector<1x64xf32>
    %408 = vector.broadcast %407 : vector<1x64xf32> to vector<18x64xf32>
    %409 = arith.subf %405, %408 : vector<18x64xf32>
    %410 = math.exp %409 : vector<18x64xf32>
    %cst_142 = arith.constant dense<0.000000e+00> : vector<64xf32>
    %411 = vector.multi_reduction <add>, %410, %cst_142 [0] : vector<18x64xf32> to vector<64xf32>
    %412 = vector.shape_cast %411 : vector<64xf32> to vector<1x64xf32>
    %413 = tpu.reciprocal %412 {approx = true} : vector<1x64xf32> -> vector<1x64xf32>
    %414 = vector.broadcast %413 : vector<1x64xf32> to vector<18x64xf32>
    %415 = arith.mulf %410, %414 : vector<18x64xf32>
    %416 = vector.extract_strided_slice %415 {offsets = [0, 0], sizes = [18, 16], strides = [1, 1]} : vector<18x64xf32> to vector<18x16xf32>
    %417 = vector.extract_strided_slice %391 {offsets = [0, 0], sizes = [16, 32], strides = [1, 1]} : vector<16x128xf32> to vector<16x32xf32>
    %cst_143 = arith.constant dense<0.000000e+00> : vector<18x32xf32>
    %418 = tpu.matmul %416, %417, %cst_143 {dimension_numbers = #tpu.dot_dimension_numbers<[1], [0], [0], [1], [0, 0, 1, 1], [], []>} : vector<18x16xf32>, vector<16x32xf32>, vector<18x32xf32> -> vector<18x32xf32>
    %419 = vector.extract_strided_slice %415 {offsets = [0, 16], sizes = [18, 16], strides = [1, 1]} : vector<18x64xf32> to vector<18x16xf32>
    %420 = vector.extract_strided_slice %391 {offsets = [0, 32], sizes = [16, 32], strides = [1, 1]} : vector<16x128xf32> to vector<16x32xf32>
    %cst_144 = arith.constant dense<0.000000e+00> : vector<18x32xf32>
    %421 = tpu.matmul %419, %420, %cst_144 {dimension_numbers = #tpu.dot_dimension_numbers<[1], [0], [0], [1], [0, 0, 1, 1], [], []>} : vector<18x16xf32>, vector<16x32xf32>, vector<18x32xf32> -> vector<18x32xf32>
    %422 = arith.addf %418, %421 : vector<18x32xf32>
    %423 = vector.extract_strided_slice %415 {offsets = [0, 32], sizes = [18, 16], strides = [1, 1]} : vector<18x64xf32> to vector<18x16xf32>
    %424 = vector.extract_strided_slice %391 {offsets = [0, 64], sizes = [16, 32], strides = [1, 1]} : vector<16x128xf32> to vector<16x32xf32>
    %cst_145 = arith.constant dense<0.000000e+00> : vector<18x32xf32>
    %425 = tpu.matmul %423, %424, %cst_145 {dimension_numbers = #tpu.dot_dimension_numbers<[1], [0], [0], [1], [0, 0, 1, 1], [], []>} : vector<18x16xf32>, vector<16x32xf32>, vector<18x32xf32> -> vector<18x32xf32>
    %426 = arith.addf %422, %425 : vector<18x32xf32>
    %427 = vector.extract_strided_slice %415 {offsets = [0, 48], sizes = [18, 16], strides = [1, 1]} : vector<18x64xf32> to vector<18x16xf32>
    %428 = vector.extract_strided_slice %391 {offsets = [0, 96], sizes = [16, 32], strides = [1, 1]} : vector<16x128xf32> to vector<16x32xf32>
    %cst_146 = arith.constant dense<0.000000e+00> : vector<18x32xf32>
    %429 = tpu.matmul %427, %428, %cst_146 {dimension_numbers = #tpu.dot_dimension_numbers<[1], [0], [0], [1], [0, 0, 1, 1], [], []>} : vector<18x16xf32>, vector<16x32xf32>, vector<18x32xf32> -> vector<18x32xf32>
    %430 = arith.addf %426, %429 : vector<18x32xf32>
    %431 = arith.addf %430, %385 : vector<18x32xf32>
    %cst_147 = arith.constant dense<0.000000e+00> : vector<18xf32>
    %432 = vector.multi_reduction <add>, %431, %cst_147 [1] : vector<18x32xf32> to vector<18xf32>
    %433 = vector.shape_cast %432 : vector<18xf32> to vector<18x1xf32>
    %cst_148 = arith.constant 3.200000e+01 : f32
    %434 = vector.broadcast %cst_148 : f32 to vector<18x1xf32>
    %435 = arith.divf %433, %434 : vector<18x1xf32>
    %436 = vector.broadcast %435 : vector<18x1xf32> to vector<18x32xf32>
    %437 = arith.subf %431, %436 : vector<18x32xf32>
    %438 = arith.mulf %437, %437 : vector<18x32xf32>
    %cst_149 = arith.constant dense<0.000000e+00> : vector<18xf32>
    %439 = vector.multi_reduction <add>, %438, %cst_149 [1] : vector<18x32xf32> to vector<18xf32>
    %440 = vector.shape_cast %439 : vector<18xf32> to vector<18x1xf32>
    %cst_150 = arith.constant 0.0322580636 : f32
    %441 = vector.broadcast %cst_150 : f32 to vector<18x1xf32>
    %442 = arith.mulf %440, %441 : vector<18x1xf32>
    %443 = math.rsqrt %442 : vector<18x1xf32>
    %444 = vector.broadcast %443 : vector<18x1xf32> to vector<18x32xf32>
    %445 = arith.mulf %437, %444 : vector<18x32xf32>
    %c784 = arith.constant 784 : index
    %c0_151 = arith.constant 0 : index
    %446 = vector.load %arg2[%c784, %c0_151] : memref<1000x128xf32, #tpu.memory_space<vmem>>, vector<32x64xf32>
    %c816 = arith.constant 816 : index
    %c0_152 = arith.constant 0 : index
    %447 = vector.load %arg2[%c816, %c0_152] : memref<1000x128xf32, #tpu.memory_space<vmem>>, vector<1x64xf32>
    %c824 = arith.constant 824 : index
    %c0_153 = arith.constant 0 : index
    %448 = vector.load %arg2[%c824, %c0_153] : memref<1000x128xf32, #tpu.memory_space<vmem>>, vector<64x32xf32>
    %c888 = arith.constant 888 : index
    %c0_154 = arith.constant 0 : index
    %449 = vector.load %arg2[%c888, %c0_154] : memref<1000x128xf32, #tpu.memory_space<vmem>>, vector<1x32xf32>
    %cst_155 = arith.constant dense<0.000000e+00> : vector<18x64xf32>
    %450 = tpu.matmul %445, %446, %cst_155 {dimension_numbers = #tpu.dot_dimension_numbers<[1], [0], [0], [1], [0, 0, 1, 1], [], []>} : vector<18x32xf32>, vector<32x64xf32>, vector<18x64xf32> -> vector<18x64xf32>
    %451 = vector.broadcast %447 : vector<1x64xf32> to vector<18x64xf32>
    %452 = arith.addf %450, %451 : vector<18x64xf32>
    %cst_156 = arith.constant 0.000000e+00 : f32
    %453 = vector.broadcast %cst_156 : f32 to vector<18x64xf32>
    %454 = arith.maximumf %452, %453 : vector<18x64xf32>
    %cst_157 = arith.constant dense<0.000000e+00> : vector<18x32xf32>
    %455 = tpu.matmul %454, %448, %cst_157 {dimension_numbers = #tpu.dot_dimension_numbers<[1], [0], [0], [1], [0, 0, 1, 1], [], []>} : vector<18x64xf32>, vector<64x32xf32>, vector<18x32xf32> -> vector<18x32xf32>
    %456 = vector.broadcast %449 : vector<1x32xf32> to vector<18x32xf32>
    %457 = arith.addf %455, %456 : vector<18x32xf32>
    %458 = arith.addf %457, %445 : vector<18x32xf32>
    %cst_158 = arith.constant dense<0.000000e+00> : vector<18xf32>
    %459 = vector.multi_reduction <add>, %458, %cst_158 [1] : vector<18x32xf32> to vector<18xf32>
    %460 = vector.shape_cast %459 : vector<18xf32> to vector<18x1xf32>
    %cst_159 = arith.constant 3.200000e+01 : f32
    %461 = vector.broadcast %cst_159 : f32 to vector<18x1xf32>
    %462 = arith.divf %460, %461 : vector<18x1xf32>
    %463 = vector.broadcast %462 : vector<18x1xf32> to vector<18x32xf32>
    %464 = arith.subf %458, %463 : vector<18x32xf32>
    %465 = arith.mulf %464, %464 : vector<18x32xf32>
    %cst_160 = arith.constant dense<0.000000e+00> : vector<18xf32>
    %466 = vector.multi_reduction <add>, %465, %cst_160 [1] : vector<18x32xf32> to vector<18xf32>
    %467 = vector.shape_cast %466 : vector<18xf32> to vector<18x1xf32>
    %cst_161 = arith.constant 0.0322580636 : f32
    %468 = vector.broadcast %cst_161 : f32 to vector<18x1xf32>
    %469 = arith.mulf %467, %468 : vector<18x1xf32>
    %470 = math.rsqrt %469 : vector<18x1xf32>
    %471 = vector.broadcast %470 : vector<18x1xf32> to vector<18x32xf32>
    %472 = arith.mulf %464, %471 : vector<18x32xf32>
    %c896 = arith.constant 896 : index
    %c0_162 = arith.constant 0 : index
    %473 = vector.load %arg2[%c896, %c0_162] : memref<1000x128xf32, #tpu.memory_space<vmem>>, vector<32x128xf32>
    %c928 = arith.constant 928 : index
    %c0_163 = arith.constant 0 : index
    %474 = vector.load %arg2[%c928, %c0_163] : memref<1000x128xf32, #tpu.memory_space<vmem>>, vector<1x128xf32>
    %cst_164 = arith.constant dense<0.000000e+00> : vector<18x128xf32>
    %475 = tpu.matmul %472, %473, %cst_164 {dimension_numbers = #tpu.dot_dimension_numbers<[1], [0], [0], [1], [0, 0, 1, 1], [], []>} : vector<18x32xf32>, vector<32x128xf32>, vector<18x128xf32> -> vector<18x128xf32>
    %476 = vector.broadcast %474 : vector<1x128xf32> to vector<18x128xf32>
    %477 = arith.addf %475, %476 : vector<18x128xf32>
    %cst_165 = arith.constant dense<0xFF800000> : vector<18xf32>
    %478 = vector.multi_reduction <maximumf>, %477, %cst_165 [1] : vector<18x128xf32> to vector<18xf32>
    %479 = vector.shape_cast %478 : vector<18xf32> to vector<18x1xf32>
    %480 = vector.broadcast %479 : vector<18x1xf32> to vector<18x128xf32>
    %481 = arith.subf %477, %480 : vector<18x128xf32>
    %482 = math.exp %481 : vector<18x128xf32>
    %cst_166 = arith.constant dense<0.000000e+00> : vector<18xf32>
    %483 = vector.multi_reduction <add>, %482, %cst_166 [1] : vector<18x128xf32> to vector<18xf32>
    %484 = vector.shape_cast %483 : vector<18xf32> to vector<18x1xf32>
    %485 = vector.broadcast %484 : vector<18x1xf32> to vector<18x128xf32>
    %486 = arith.divf %482, %485 : vector<18x128xf32>
    %c0_167 = arith.constant 0 : index
    %c0_168 = arith.constant 0 : index
    %487 = vector.load %arg3[%c0_167, %c0_168] : memref<18x128xf32, #tpu.memory_space<vmem>>, vector<18x128xf32>
    tpu.vector_store %arg3[%c0_167, %c0_168], %486 {strides = array<i32>} : memref<18x128xf32, #tpu.memory_space<vmem>>, vector<18x128xf32>,
    return
  }
}

</mosaic_0001>

<llo_original>
// kernel: forward.1
$region0: #{forward.1}
  #allocation0 [shape = 'u32[]', space=smem, size = 0x4, offset = 0x4, fixed_abs, tag = 'smem constant byte address 0x4 - core index']
  #allocation1 [shape = 'u32[144,128]{1,0:T(1,128)}', space=vmem, size = 0x12000, scoped, tag = 'internal scratch']
  %s0 = inlined_call_operand.vmem [shape: f32[16,32], index: 0, kind: input, shape index: {}]
  %s1 = inlined_call_operand.vmem [shape: f32[18,32], index: 1, kind: input, shape index: {}]
  %s2 = inlined_call_operand.hbm [shape: f32[1000,128], index: 2, kind: input, shape index: {}]
  %s3 = inlined_call_operand.vmem [shape: f32[18,128], index: 3, kind: output, shape index: {}]
  %s4 = sld [smem:[#allocation0]]
  $region26: #{forward.1} parent=0
    _
  %s6 = ssub.s32 1, %s4
  %s7 = scalar_select 0, %s6, %s4
  $region1: #{forward.1} parent=0
    #allocation2 [shape = 'u8[512000]{0}', space=vmem, size = 0x7d000, scoped, tag = 'input window, operand 2, single buffered']
    #allocation3 [shape = 's32[1]{0}', space=sflag, size = 0x4, scoped, tag = 'scoped memory for forward.1']
    %8 = vsyncpa [#allocation3], 0
    // Predicated region
    $region2: #{forward.1} parent=1 // pred_check
      _
    $region3: #{forward.1} parent=1 // pred_check_branch
      %10 = sbr.rel (0) target = $region5
    $region4: #{forward.1} parent=1 // pred_region
      _
    $region5: #{forward.1} parent=1 // pred_fallthru
      _
    // Predicated region
    $region6: #{forward.1} parent=1 // pred_check
      _
    $region7: #{forward.1} parent=1 // pred_check_branch
      %12 = sbr.rel (0) target = $region9
    $region8: #{forward.1} parent=1 // pred_region
      _
    $region9: #{forward.1} parent=1 // pred_fallthru
      _
    // Predicated region
    $region10: #{forward.1} parent=1 // pred_check
      _
    $region11: #{forward.1} parent=1 // pred_check_branch
      %14 = sbr.rel (0) target = $region13
    $region12: #{forward.1} parent=1 // pred_region
      %s16 = ssub.s32 16000, 16000
      %17 = vsyncadd [#allocation3], %s16
      %s18 = sshll.u32 [#allocation2], 4
      %s19 = int_to_ptr.vmem [resolvable:$true] %s18
      %24 = dma.hbm_to_vmem [thread:$0]  %s2, 16000, %s19, [#allocation3], 128, 128, 8
    $region13: #{forward.1} parent=1 // pred_fallthru
      _
    // Predicated region
    $region14: #{forward.1} parent=1 // pred_check
      _
    $region15: #{forward.1} parent=1 // pred_check_branch
      %26 = sbr.rel (0) target = $region17
    $region16: #{forward.1} parent=1 // pred_region
      %27 = dma.done [#allocation3], 16000
    $region17: #{forward.1} parent=1 // pred_fallthru
      _
    %v28 = vld [vmem:[%s0] sm:$0xff]
    %v29 = vld [vmem:[%s0 + $0x8] sm:$0xff]
    %v30 = vld [vmem:[%s1] sm:$0xff]
    %v31 = vld [vmem:[%s1 + $0x8] sm:$0xff]
    %v32 = vld [vmem:[%s1 + $0x10] sm:$0x3]
    %v33 = vld [vmem:[#allocation2 + $0x3a8] sm:$0xff]
    %v34 = vld [vmem:[#allocation2 + $0x3b0] sm:$0xff]
    %v35 = vld [vmem:[#allocation2 + $0x3b8] sm:$0xff]
    %v36 = vld [vmem:[#allocation2 + $0x3c0] sm:$0xff]
    %v37 = vld [vmem:[#allocation2 + $0x3c8] sm:$0x3]
    %v38 = vld [vmem:[#allocation2 + $0x3d0] sm:$0xff]
    %v39 = vld [vmem:[#allocation2 + $0x3d8] sm:$0xff]
    %v40 = vld [vmem:[#allocation2 + $0x3e0] sm:$0x3]
    %v41 = vld [vmem:[#allocation2] sm:$0xff]
    %v42 = vld [vmem:[#allocation2 + $0x8] sm:$0xff]
    %v43 = vld [vmem:[#allocation2 + $0x10] sm:$0xff]
    %v44 = vld [vmem:[#allocation2 + $0x18] sm:$0xff]
    %v45 = vld [vmem:[#allocation2 + $0x20] sm:$0xff]
    %v46 = vld [vmem:[#allocation2 + $0x28] sm:$0xff]
    %v47 = vld [vmem:[#allocation2 + $0x30] sm:$0xff]
    %v48 = vld [vmem:[#allocation2 + $0x38] sm:$0xff]
    %vm49 = vcmask 261120
    %v51 = vsel %vm49, %v28, 0
    %v54 = vsel %vm49, %v29, 0
    %56 = vmatprep.subr.mxu0 0.0
    %57 = vmatpush1.msra.mxu0 %v41
    %58 = vmatprep.subr.mxu0 0.0
    %59 = vmatpush1.msra.mxu0 %v42
    %60 = vmatprep.subr.mxu0 0.0
    %61 = vmatpush1.msra.mxu0 %v43
    %62 = vmatprep.subr.mxu0 0.0
    %63 = vmatpush1.msra.mxu0 %v44
    %64 = vmatprep.subr.mxu0 0.0
    %65 = vmatpush1.msra.mxu0 0.0
    %66 = vmatprep.subr.mxu0 0.0
    %67 = vmatpush1.msra.mxu0 0.0
    %68 = vmatprep.subr.mxu0 0.0
    %69 = vmatpush1.msra.mxu0 0.0
    %70 = vmatprep.subr.mxu0 0.0
    %71 = vmatpush1.msra.mxu0 0.0
    %72 = vmatprep.subr.mxu0 0.0
    %73 = vmatpush1.msra.mxu0 0.0
    %74 = vmatprep.subr.mxu0 0.0
    %75 = vmatpush1.msra.mxu0 0.0
    %76 = vmatprep.subr.mxu0 0.0
    %77 = vmatpush1.msra.mxu0 0.0
    %78 = vmatprep.subr.mxu0 0.0
    %79 = vmatpush1.msra.mxu0 0.0
    %80 = vmatprep.subr.mxu0 0.0
    %81 = vmatpush1.msra.mxu0 0.0
    %82 = vmatprep.subr.mxu0 0.0
    %83 = vmatpush1.msra.mxu0 0.0
    %84 = vmatprep.subr.mxu0 0.0
    %85 = vmatpush1.msra.mxu0 0.0
    %86 = vmatprep.subr.mxu0 0.0
    %87 = vmatpush1.msra.mxu0 0.0
    %88 = vmatprep.subr.mxu0 0.0
    %89 = vmatpush1.msra.mxu0 0.0
    %90 = vmatprep.subr.mxu0 0.0
    %91 = vmatpush1.msra.mxu0 0.0
    %92 = vmatprep.subr.mxu0 0.0
    %93 = vmatpush1.msra.mxu0 0.0
    %94 = vmatprep.subr.mxu0 0.0
    %95 = vmatpush1.msra.mxu0 0.0
    %96 = vmatprep.subr.mxu0 0.0
    %97 = vmatpush1.msra.mxu0 0.0
    %98 = vmatprep.subr.mxu0 0.0
    %99 = vmatpush1.msra.mxu0 0.0
    %100 = vmatprep.subr.mxu0 0.0
    %101 = vmatpush1.msra.mxu0 0.0
    %102 = vmatprep.subr.mxu0 0.0
    %103 = vmatpush1.msra.mxu0 0.0
    %104 = vmatprep.subr.mxu0 0.0
    %105 = vmatpush1.msra.mxu0 0.0
    %106 = vmatprep.subr.mxu0 0.0
    %107 = vmatpush1.msra.mxu0 0.0
    %108 = vmatprep.subr.mxu0 0.0
    %109 = vmatpush1.msra.mxu0 0.0
    %110 = vmatprep.subr.mxu0 0.0
    %111 = vmatpush1.msra.mxu0 0.0
    %112 = vmatprep.subr.mxu0 0.0
    %113 = vmatpush1.msra.mxu0 0.0
    %114 = vmatprep.subr.mxu0 0.0
    %115 = vmatpush1.msra.mxu0 0.0
    %116 = vmatprep.subr.mxu0 0.0
    %117 = vmatpush1.msra.mxu0 0.0
    %118 = vmatprep.subr.mxu0 0.0
    %119 = vmatpush1.msra.mxu0 0.0
    %120 = vmatprep.mubr.f32.mxu0 0.0
    %121 = vmatmul.mubr.f32.gmra.mrb[0].mxu0 %v51
    %v122 = vpop.f32.mrb[0].mxu0
    %v123 = vadd.f32 0.0, %v122
    %v124 = vpop.f32.mrb[0].mxu0
    %125 = vmatprep.mubr.f32.mxu0 0.0
    %126 = vmatmul.mubr.f32.gmra.mrb[0].mxu0 %v54
    %v127 = vpop.f32.mrb[0].mxu0
    %v128 = vadd.f32 0.0, %v127
    %v129 = vpop.f32.mrb[0].mxu0
    %130 = vdwg.mxu0
    %131 = vmatprep.subr.mxu0 0.0
    %132 = vmatpush1.msra.mxu0 %v45
    %133 = vmatprep.subr.mxu0 0.0
    %134 = vmatpush1.msra.mxu0 %v46
    %135 = vmatprep.subr.mxu0 0.0
    %136 = vmatpush1.msra.mxu0 %v47
    %137 = vmatprep.subr.mxu0 0.0
    %138 = vmatpush1.msra.mxu0 %v48
    %139 = vmatprep.subr.mxu0 0.0
    %140 = vmatpush1.msra.mxu0 0.0
    %141 = vmatprep.subr.mxu0 0.0
    %142 = vmatpush1.msra.mxu0 0.0
    %143 = vmatprep.subr.mxu0 0.0
    %144 = vmatpush1.msra.mxu0 0.0
    %145 = vmatprep.subr.mxu0 0.0
    %146 = vmatpush1.msra.mxu0 0.0
    %147 = vmatprep.subr.mxu0 0.0
    %148 = vmatpush1.msra.mxu0 0.0
    %149 = vmatprep.subr.mxu0 0.0
    %150 = vmatpush1.msra.mxu0 0.0
    %151 = vmatprep.subr.mxu0 0.0
    %152 = vmatpush1.msra.mxu0 0.0
    %153 = vmatprep.subr.mxu0 0.0
    %154 = vmatpush1.msra.mxu0 0.0
    %155 = vmatprep.subr.mxu0 0.0
    %156 = vmatpush1.msra.mxu0 0.0
    %157 = vmatprep.subr.mxu0 0.0
    %158 = vmatpush1.msra.mxu0 0.0
    %159 = vmatprep.subr.mxu0 0.0
    %160 = vmatpush1.msra.mxu0 0.0
    %161 = vmatprep.subr.mxu0 0.0
    %162 = vmatpush1.msra.mxu0 0.0
    %163 = vmatprep.subr.mxu0 0.0
    %164 = vmatpush1.msra.mxu0 0.0
    %165 = vmatprep.subr.mxu0 0.0
    %166 = vmatpush1.msra.mxu0 0.0
    %167 = vmatprep.subr.mxu0 0.0
    %168 = vmatpush1.msra.mxu0 0.0
    %169 = vmatprep.subr.mxu0 0.0
    %170 = vmatpush1.msra.mxu0 0.0
    %171 = vmatprep.subr.mxu0 0.0
    %172 = vmatpush1.msra.mxu0 0.0
    %173 = vmatprep.subr.mxu0 0.0
    %174 = vmatpush1.msra.mxu0 0.0
    %175 = vmatprep.subr.mxu0 0.0
    %176 = vmatpush1.msra.mxu0 0.0
    %177 = vmatprep.subr.mxu0 0.0
    %178 = vmatpush1.msra.mxu0 0.0
    %179 = vmatprep.subr.mxu0 0.0
    %180 = vmatpush1.msra.mxu0 0.0
    %181 = vmatprep.subr.mxu0 0.0
    %182 = vmatpush1.msra.mxu0 0.0
    %183 = vmatprep.subr.mxu0 0.0
    %184 = vmatpush1.msra.mxu0 0.0
    %185 = vmatprep.subr.mxu0 0.0
    %186 = vmatpush1.msra.mxu0 0.0
    %187 = vmatprep.subr.mxu0 0.0
    %188 = vmatpush1.msra.mxu0 0.0
    %189 = vmatprep.subr.mxu0 0.0
    %190 = vmatpush1.msra.mxu0 0.0
    %191 = vmatprep.subr.mxu0 0.0
    %192 = vmatpush1.msra.mxu0 0.0
    %193 = vmatprep.subr.mxu0 0.0
    %194 = vmatpush1.msra.mxu0 0.0
    %195 = vmatprep.mubr.f32.mxu0 0.0
    %196 = vmatmul.mubr.f32.gmra.mrb[0].mxu0 %v51
    %v197 = vpop.f32.mrb[0].mxu0
    %v198 = vadd.f32 0.0, %v197
    %v199 = vpop.f32.mrb[0].mxu0
    %200 = vmatprep.mubr.f32.mxu0 0.0
    %201 = vmatmul.mubr.f32.gmra.mrb[0].mxu0 %v54
    %v202 = vpop.f32.mrb[0].mxu0
    %v203 = vadd.f32 0.0, %v202
    %v204 = vpop.f32.mrb[0].mxu0
    %205 = vdwg.mxu0
    %208 = vrot.lane.b32.xlu0 %v123, 96
    %v209 = vpop.permute.xlu0 %208
    %210 = vrot.lane.b32.xlu0 %v128, 96
    %v211 = vpop.permute.xlu0 %210
    %vm212 = vcmask 64512
    %v213 = vsel %vm212, %v123, 0
    %v215 = vsel %vm212, %v128, 0
    %v217 = vsel %vm212, %v209, 0
    %v219 = vsel %vm212, %v211, 0
    %221 = vmatprep.subr.mxu0 0.0
    %222 = vmatpush1.xpose.msra.mxu0 %v217
    %223 = vmatprep.subr.mxu0 0.0
    %224 = vmatpush1.xpose.msra.mxu0 %v219
    %225 = vmatprep.subr.mxu0 0.0
    %226 = vmatpush1.xpose.msra.mxu0 0.0
    %227 = vmatprep.subr.mxu0 0.0
    %228 = vmatpush1.xpose.msra.mxu0 0.0
    %229 = vmatprep.subr.mxu0 0.0
    %230 = vmatpush1.xpose.msra.mxu0 0.0
    %231 = vmatprep.subr.mxu0 0.0
    %232 = vmatpush1.xpose.msra.mxu0 0.0
    %233 = vmatprep.subr.mxu0 0.0
    %234 = vmatpush1.xpose.msra.mxu0 0.0
    %235 = vmatprep.subr.mxu0 0.0
    %236 = vmatpush1.xpose.msra.mxu0 0.0
    %237 = vmatprep.subr.mxu0 0.0
    %238 = vmatpush1.xpose.msra.mxu0 0.0
    %239 = vmatprep.subr.mxu0 0.0
    %240 = vmatpush1.xpose.msra.mxu0 0.0
    %241 = vmatprep.subr.mxu0 0.0
    %242 = vmatpush1.xpose.msra.mxu0 0.0
    %243 = vmatprep.subr.mxu0 0.0
    %244 = vmatpush1.xpose.msra.mxu0 0.0
    %245 = vmatprep.subr.mxu0 0.0
    %246 = vmatpush1.xpose.msra.mxu0 0.0
    %247 = vmatprep.subr.mxu0 0.0
    %248 = vmatpush1.xpose.msra.mxu0 0.0
    %249 = vmatprep.subr.mxu0 0.0
    %250 = vmatpush1.xpose.msra.mxu0 0.0
    %251 = vmatprep.subr.mxu0 0.0
    %252 = vmatpush1.xpose.msra.mxu0 0.0
    %253 = vmatprep.subr.mxu0 0.0
    %254 = vmatpush1.xpose.msra.mxu0 0.0
    %255 = vmatprep.subr.mxu0 0.0
    %256 = vmatpush1.xpose.msra.mxu0 0.0
    %257 = vmatprep.subr.mxu0 0.0
    %258 = vmatpush1.xpose.msra.mxu0 0.0
    %259 = vmatprep.subr.mxu0 0.0
    %260 = vmatpush1.xpose.msra.mxu0 0.0
    %261 = vmatprep.subr.mxu0 0.0
    %262 = vmatpush1.xpose.msra.mxu0 0.0
    %263 = vmatprep.subr.mxu0 0.0
    %264 = vmatpush1.xpose.msra.mxu0 0.0
    %265 = vmatprep.subr.mxu0 0.0
    %266 = vmatpush1.xpose.msra.mxu0 0.0
    %267 = vmatprep.subr.mxu0 0.0
    %268 = vmatpush1.xpose.msra.mxu0 0.0
    %269 = vmatprep.subr.mxu0 0.0
    %270 = vmatpush1.xpose.msra.mxu0 0.0
    %271 = vmatprep.subr.mxu0 0.0
    %272 = vmatpush1.xpose.msra.mxu0 0.0
    %273 = vmatprep.subr.mxu0 0.0
    %274 = vmatpush1.xpose.msra.mxu0 0.0
    %275 = vmatprep.subr.mxu0 0.0
    %276 = vmatpush1.xpose.msra.mxu0 0.0
    %277 = vmatprep.subr.mxu0 0.0
    %278 = vmatpush1.xpose.msra.mxu0 0.0
    %279 = vmatprep.subr.mxu0 0.0
    %280 = vmatpush1.xpose.msra.mxu0 0.0
    %281 = vmatprep.subr.mxu0 0.0
    %282 = vmatpush1.xpose.msra.mxu0 0.0
    %283 = vmatprep.subr.mxu0 0.0
    %284 = vmatpush1.xpose.msra.mxu0 0.0
    %285 = vmatprep.mubr.f32.mxu0 0.0
    %286 = vmatmul.mubr.f32.gmra.mrb[0].mxu0 %v213
    %v287 = vpop.f32.mrb[0].mxu0
    %v288 = vadd.f32 0.0, %v287
    %v289 = vpop.f32.mrb[0].mxu0
    %290 = vmatprep.mubr.f32.mxu0 0.0
    %291 = vmatmul.mubr.f32.gmra.mrb[0].mxu0 %v215
    %v292 = vpop.f32.mrb[0].mxu0
    %v293 = vadd.f32 0.0, %v292
    %v294 = vpop.f32.mrb[0].mxu0
    %295 = vdwg.mxu0
    %296 = vrot.lane.b32.xlu0 %v123, 120
    %v297 = vpop.permute.xlu0 %296
    %298 = vrot.lane.b32.xlu0 %v128, 120
    %v299 = vpop.permute.xlu0 %298
    %300 = vrot.lane.b32.xlu0 %v123, 88
    %v301 = vpop.permute.xlu0 %300
    %302 = vrot.lane.b32.xlu0 %v128, 88
    %v303 = vpop.permute.xlu0 %302
    %v304 = vsel %vm212, %v297, 0
    %v306 = vsel %vm212, %v299, 0
    %v308 = vsel %vm212, %v301, 0
    %v310 = vsel %vm212, %v303, 0
    %312 = vmatprep.subr.mxu0 0.0
    %313 = vmatpush1.xpose.msra.mxu0 %v308
    %314 = vmatprep.subr.mxu0 0.0
    %315 = vmatpush1.xpose.msra.mxu0 %v310
    %316 = vmatprep.subr.mxu0 0.0
    %317 = vmatpush1.xpose.msra.mxu0 0.0
    %318 = vmatprep.subr.mxu0 0.0
    %319 = vmatpush1.xpose.msra.mxu0 0.0
    %320 = vmatprep.subr.mxu0 0.0
    %321 = vmatpush1.xpose.msra.mxu0 0.0
    %322 = vmatprep.subr.mxu0 0.0
    %323 = vmatpush1.xpose.msra.mxu0 0.0
    %324 = vmatprep.subr.mxu0 0.0
    %325 = vmatpush1.xpose.msra.mxu0 0.0
    %326 = vmatprep.subr.mxu0 0.0
    %327 = vmatpush1.xpose.msra.mxu0 0.0
    %328 = vmatprep.subr.mxu0 0.0
    %329 = vmatpush1.xpose.msra.mxu0 0.0
    %330 = vmatprep.subr.mxu0 0.0
    %331 = vmatpush1.xpose.msra.mxu0 0.0
    %332 = vmatprep.subr.mxu0 0.0
    %333 = vmatpush1.xpose.msra.mxu0 0.0
    %334 = vmatprep.subr.mxu0 0.0
    %335 = vmatpush1.xpose.msra.mxu0 0.0
    %336 = vmatprep.subr.mxu0 0.0
    %337 = vmatpush1.xpose.msra.mxu0 0.0
    %338 = vmatprep.subr.mxu0 0.0
    %339 = vmatpush1.xpose.msra.mxu0 0.0
    %340 = vmatprep.subr.mxu0 0.0
    %341 = vmatpush1.xpose.msra.mxu0 0.0
    %342 = vmatprep.subr.mxu0 0.0
    %343 = vmatpush1.xpose.msra.mxu0 0.0
    %344 = vmatprep.subr.mxu0 0.0
    %345 = vmatpush1.xpose.msra.mxu0 0.0
    %346 = vmatprep.subr.mxu0 0.0
    %347 = vmatpush1.xpose.msra.mxu0 0.0
    %348 = vmatprep.subr.mxu0 0.0
    %349 = vmatpush1.xpose.msra.mxu0 0.0
    %350 = vmatprep.subr.mxu0 0.0
    %351 = vmatpush1.xpose.msra.mxu0 0.0
    %352 = vmatprep.subr.mxu0 0.0
    %353 = vmatpush1.xpose.msra.mxu0 0.0
    %354 = vmatprep.subr.mxu0 0.0
    %355 = vmatpush1.xpose.msra.mxu0 0.0
    %356 = vmatprep.subr.mxu0 0.0
    %357 = vmatpush1.xpose.msra.mxu0 0.0
    %358 = vmatprep.subr.mxu0 0.0
    %359 = vmatpush1.xpose.msra.mxu0 0.0
    %360 = vmatprep.subr.mxu0 0.0
    %361 = vmatpush1.xpose.msra.mxu0 0.0
    %362 = vmatprep.subr.mxu0 0.0
    %363 = vmatpush1.xpose.msra.mxu0 0.0
    %364 = vmatprep.subr.mxu0 0.0
    %365 = vmatpush1.xpose.msra.mxu0 0.0
    %366 = vmatprep.subr.mxu0 0.0
    %367 = vmatpush1.xpose.msra.mxu0 0.0
    %368 = vmatprep.subr.mxu0 0.0
    %369 = vmatpush1.xpose.msra.mxu0 0.0
    %370 = vmatprep.subr.mxu0 0.0
    %371 = vmatpush1.xpose.msra.mxu0 0.0
    %372 = vmatprep.subr.mxu0 0.0
    %373 = vmatpush1.xpose.msra.mxu0 0.0
    %374 = vmatprep.subr.mxu0 0.0
    %375 = vmatpush1.xpose.msra.mxu0 0.0
    %376 = vmatprep.mubr.f32.mxu0 0.0
    %377 = vmatmul.mubr.f32.gmra.mrb[0].mxu0 %v304
    %v378 = vpop.f32.mrb[0].mxu0
    %v379 = vadd.f32 0.0, %v378
    %v380 = vpop.f32.mrb[0].mxu0
    %381 = vmatprep.mubr.f32.mxu0 0.0
    %382 = vmatmul.mubr.f32.gmra.mrb[0].mxu0 %v306
    %v383 = vpop.f32.mrb[0].mxu0
    %v384 = vadd.f32 0.0, %v383
    %v385 = vpop.f32.mrb[0].mxu0
    %386 = vdwg.mxu0
    %387 = vrot.lane.b32.xlu0 %v123, 112
    %v388 = vpop.permute.xlu0 %387
    %389 = vrot.lane.b32.xlu0 %v128, 112
    %v390 = vpop.permute.xlu0 %389
    %391 = vrot.lane.b32.xlu0 %v123, 80
    %v392 = vpop.permute.xlu0 %391
    %393 = vrot.lane.b32.xlu0 %v128, 80
    %v394 = vpop.permute.xlu0 %393
    %v395 = vsel %vm212, %v388, 0
    %v397 = vsel %vm212, %v390, 0
    %v399 = vsel %vm212, %v392, 0
    %v401 = vsel %vm212, %v394, 0
    %403 = vmatprep.subr.mxu0 0.0
    %404 = vmatpush1.xpose.msra.mxu0 %v399
    %405 = vmatprep.subr.mxu0 0.0
    %406 = vmatpush1.xpose.msra.mxu0 %v401
    %407 = vmatprep.subr.mxu0 0.0
    %408 = vmatpush1.xpose.msra.mxu0 0.0
    %409 = vmatprep.subr.mxu0 0.0
    %410 = vmatpush1.xpose.msra.mxu0 0.0
    %411 = vmatprep.subr.mxu0 0.0
    %412 = vmatpush1.xpose.msra.mxu0 0.0
    %413 = vmatprep.subr.mxu0 0.0
    %414 = vmatpush1.xpose.msra.mxu0 0.0
    %415 = vmatprep.subr.mxu0 0.0
    %416 = vmatpush1.xpose.msra.mxu0 0.0
    %417 = vmatprep.subr.mxu0 0.0
    %418 = vmatpush1.xpose.msra.mxu0 0.0
    %419 = vmatprep.subr.mxu0 0.0
    %420 = vmatpush1.xpose.msra.mxu0 0.0
    %421 = vmatprep.subr.mxu0 0.0
    %422 = vmatpush1.xpose.msra.mxu0 0.0
    %423 = vmatprep.subr.mxu0 0.0
    %424 = vmatpush1.xpose.msra.mxu0 0.0
    %425 = vmatprep.subr.mxu0 0.0
    %426 = vmatpush1.xpose.msra.mxu0 0.0
    %427 = vmatprep.subr.mxu0 0.0
    %428 = vmatpush1.xpose.msra.mxu0 0.0
    %429 = vmatprep.subr.mxu0 0.0
    %430 = vmatpush1.xpose.msra.mxu0 0.0
    %431 = vmatprep.subr.mxu0 0.0
    %432 = vmatpush1.xpose.msra.mxu0 0.0
    %433 = vmatprep.subr.mxu0 0.0
    %434 = vmatpush1.xpose.msra.mxu0 0.0
    %435 = vmatprep.subr.mxu0 0.0
    %436 = vmatpush1.xpose.msra.mxu0 0.0
    %437 = vmatprep.subr.mxu0 0.0
    %438 = vmatpush1.xpose.msra.mxu0 0.0
    %439 = vmatprep.subr.mxu0 0.0
    %440 = vmatpush1.xpose.msra.mxu0 0.0
    %441 = vmatprep.subr.mxu0 0.0
    %442 = vmatpush1.xpose.msra.mxu0 0.0
    %443 = vmatprep.subr.mxu0 0.0
    %444 = vmatpush1.xpose.msra.mxu0 0.0
    %445 = vmatprep.subr.mxu0 0.0
    %446 = vmatpush1.xpose.msra.mxu0 0.0
    %447 = vmatprep.subr.mxu0 0.0
    %448 = vmatpush1.xpose.msra.mxu0 0.0
    %449 = vmatprep.subr.mxu0 0.0
    %450 = vmatpush1.xpose.msra.mxu0 0.0
    %451 = vmatprep.subr.mxu0 0.0
    %452 = vmatpush1.xpose.msra.mxu0 0.0
    %453 = vmatprep.subr.mxu0 0.0
    %454 = vmatpush1.xpose.msra.mxu0 0.0
    %455 = vmatprep.subr.mxu0 0.0
    %456 = vmatpush1.xpose.msra.mxu0 0.0
    %457 = vmatprep.subr.mxu0 0.0
    %458 = vmatpush1.xpose.msra.mxu0 0.0
    %459 = vmatprep.subr.mxu0 0.0
    %460 = vmatpush1.xpose.msra.mxu0 0.0
    %461 = vmatprep.subr.mxu0 0.0
    %462 = vmatpush1.xpose.msra.mxu0 0.0
    %463 = vmatprep.subr.mxu0 0.0
    %464 = vmatpush1.xpose.msra.mxu0 0.0
    %465 = vmatprep.subr.mxu0 0.0
    %466 = vmatpush1.xpose.msra.mxu0 0.0
    %467 = vmatprep.mubr.f32.mxu0 0.0
    %468 = vmatmul.mubr.f32.gmra.mrb[0].mxu0 %v395
    %v469 = vpop.f32.mrb[0].mxu0
    %v470 = vadd.f32 0.0, %v469
    %v471 = vpop.f32.mrb[0].mxu0
    %472 = vmatprep.mubr.f32.mxu0 0.0
    %473 = vmatmul.mubr.f32.gmra.mrb[0].mxu0 %v397
    %v474 = vpop.f32.mrb[0].mxu0
    %v475 = vadd.f32 0.0, %v474
    %v476 = vpop.f32.mrb[0].mxu0
    %477 = vdwg.mxu0
    %478 = vrot.lane.b32.xlu0 %v123, 104
    %v479 = vpop.permute.xlu0 %478
    %480 = vrot.lane.b32.xlu0 %v128, 104
    %v481 = vpop.permute.xlu0 %480
    %482 = vrot.lane.b32.xlu0 %v123, 72
    %v483 = vpop.permute.xlu0 %482
    %484 = vrot.lane.b32.xlu0 %v128, 72
    %v485 = vpop.permute.xlu0 %484
    %v486 = vsel %vm212, %v479, 0
    %v488 = vsel %vm212, %v481, 0
    %v490 = vsel %vm212, %v483, 0
    %v492 = vsel %vm212, %v485, 0
    %494 = vmatprep.subr.mxu0 0.0
    %495 = vmatpush1.xpose.msra.mxu0 %v490
    %496 = vmatprep.subr.mxu0 0.0
    %497 = vmatpush1.xpose.msra.mxu0 %v492
    %498 = vmatprep.subr.mxu0 0.0
    %499 = vmatpush1.xpose.msra.mxu0 0.0
    %500 = vmatprep.subr.mxu0 0.0
    %501 = vmatpush1.xpose.msra.mxu0 0.0
    %502 = vmatprep.subr.mxu0 0.0
    %503 = vmatpush1.xpose.msra.mxu0 0.0
    %504 = vmatprep.subr.mxu0 0.0
    %505 = vmatpush1.xpose.msra.mxu0 0.0
    %506 = vmatprep.subr.mxu0 0.0
    %507 = vmatpush1.xpose.msra.mxu0 0.0
    %508 = vmatprep.subr.mxu0 0.0
    %509 = vmatpush1.xpose.msra.mxu0 0.0
    %510 = vmatprep.subr.mxu0 0.0
    %511 = vmatpush1.xpose.msra.mxu0 0.0
    %512 = vmatprep.subr.mxu0 0.0
    %513 = vmatpush1.xpose.msra.mxu0 0.0
    %514 = vmatprep.subr.mxu0 0.0
    %515 = vmatpush1.xpose.msra.mxu0 0.0
    %516 = vmatprep.subr.mxu0 0.0
    %517 = vmatpush1.xpose.msra.mxu0 0.0
    %518 = vmatprep.subr.mxu0 0.0
    %519 = vmatpush1.xpose.msra.mxu0 0.0
    %520 = vmatprep.subr.mxu0 0.0
    %521 = vmatpush1.xpose.msra.mxu0 0.0
    %522 = vmatprep.subr.mxu0 0.0
    %523 = vmatpush1.xpose.msra.mxu0 0.0
    %524 = vmatprep.subr.mxu0 0.0
    %525 = vmatpush1.xpose.msra.mxu0 0.0
    %526 = vmatprep.subr.mxu0 0.0
    %527 = vmatpush1.xpose.msra.mxu0 0.0
    %528 = vmatprep.subr.mxu0 0.0
    %529 = vmatpush1.xpose.msra.mxu0 0.0
    %530 = vmatprep.subr.mxu0 0.0
    %531 = vmatpush1.xpose.msra.mxu0 0.0
    %532 = vmatprep.subr.mxu0 0.0
    %533 = vmatpush1.xpose.msra.mxu0 0.0
    %534 = vmatprep.subr.mxu0 0.0
    %535 = vmatpush1.xpose.msra.mxu0 0.0
    %536 = vmatprep.subr.mxu0 0.0
    %537 = vmatpush1.xpose.msra.mxu0 0.0
    %538 = vmatprep.subr.mxu0 0.0
    %539 = vmatpush1.xpose.msra.mxu0 0.0
    %540 = vmatprep.subr.mxu0 0.0
    %541 = vmatpush1.xpose.msra.mxu0 0.0
    %542 = vmatprep.subr.mxu0 0.0
    %543 = vmatpush1.xpose.msra.mxu0 0.0
    %544 = vmatprep.subr.mxu0 0.0
    %545 = vmatpush1.xpose.msra.mxu0 0.0
    %546 = vmatprep.subr.mxu0 0.0
    %547 = vmatpush1.xpose.msra.mxu0 0.0
    %548 = vmatprep.subr.mxu0 0.0
    %549 = vmatpush1.xpose.msra.mxu0 0.0
    %550 = vmatprep.subr.mxu0 0.0
    %551 = vmatpush1.xpose.msra.mxu0 0.0
    %552 = vmatprep.subr.mxu0 0.0
    %553 = vmatpush1.xpose.msra.mxu0 0.0
    %554 = vmatprep.subr.mxu0 0.0
    %555 = vmatpush1.xpose.msra.mxu0 0.0
    %556 = vmatprep.subr.mxu0 0.0
    %557 = vmatpush1.xpose.msra.mxu0 0.0
    %558 = vmatprep.mubr.f32.mxu0 0.0
    %559 = vmatmul.mubr.f32.gmra.mrb[0].mxu0 %v486
    %v560 = vpop.f32.mrb[0].mxu0
    %v561 = vadd.f32 0.0, %v560
    %v562 = vpop.f32.mrb[0].mxu0
    %563 = vmatprep.mubr.f32.mxu0 0.0
    %564 = vmatmul.mubr.f32.gmra.mrb[0].mxu0 %v488
    %v565 = vpop.f32.mrb[0].mxu0
    %v566 = vadd.f32 0.0, %v565
    %v567 = vpop.f32.mrb[0].mxu0
    %568 = vdwg.mxu0
    %571 = vrot.lane.b32.xlu0 %v379, 16
    %v572 = vpop.permute.xlu0 %571
    %573 = vrot.lane.b32.xlu0 %v384, 16
    %v574 = vpop.permute.xlu0 %573
    %579 = vrot.lane.b32.xlu0 %v470, 32
    %v580 = vpop.permute.xlu0 %579
    %581 = vrot.lane.b32.xlu0 %v475, 32
    %v582 = vpop.permute.xlu0 %581
    %587 = vrot.lane.b32.xlu0 %v561, 48
    %v588 = vpop.permute.xlu0 %587
    %589 = vrot.lane.b32.xlu0 %v566, 48
    %v590 = vpop.permute.xlu0 %589
    %vm593 = vcmask 130048
    %v594 = vsel %vm593, %v288, %v572
    %v595 = vsel %vm593, %v293, %v574
    %v596 = vsel %vm49, %v594, %v580
    %v597 = vsel %vm49, %v595, %v582
    %vm598 = vcmask 392192
    %v599 = vsel %vm598, %v596, %v588
    %v600 = vsel %vm598, %v597, %v590
    %v601 = vadd.f32 %v599, %v33
    %v602 = vadd.f32 %v600, %v34
    %vm603 = vcmask 523264
    %v604 = vsel %vm603, %v601, -inf
    %v605 = vsel %vm603, %v602, -inf
    %v606 = vmax.f32 %v604, %v605
    %v607 = vrot.slane %v606, 4
    %v608 = vmax.f32 %v606, %v607
    %v609 = vrot.slane %v608, 2
    %v610 = vmax.f32 %v608, %v609
    %v611 = vrot.slane %v610, 1
    %v612 = vmax.f32 %v610, %v611
    %v613 = vsub.f32 %v601, %v612
    %v614 = vsub.f32 %v602, %v612
    %v615 = vmul.f32 %v613, 1.442695
    %v616 = vpow.pop %v615
    %v617 = vmul.f32 %v614, 1.442695
    %v618 = vpow.pop %v617
    %v619 = vsel %vm603, %v616, 0.0
    %v620 = vsel %vm603, %v618, 0.0
    %v621 = vadd.f32 %v619, %v620
    %v622 = vrot.slane %v621, 4
    %v623 = vadd.f32 %v621, %v622
    %v624 = vrot.slane %v623, 2
    %v625 = vadd.f32 %v623, %v624
    %v626 = vrot.slane %v625, 1
    %v627 = vadd.f32 %v625, %v626
    %v628 = vrcp.pop %v627
    %v629 = vmul.f32 %v616, %v628
    %v630 = vmul.f32 %v618, %v628
    %633 = vrot.lane.b32.xlu0 %v629, 112
    %v634 = vpop.permute.xlu0 %633
    %635 = vrot.lane.b32.xlu0 %v630, 112
    %v636 = vpop.permute.xlu0 %635
    %639 = vrot.lane.b32.xlu0 %v198, 96
    %v640 = vpop.permute.xlu0 %639
    %641 = vrot.lane.b32.xlu0 %v203, 96
    %v642 = vpop.permute.xlu0 %641
    %v645 = vsel %vm593, %v634, 0
    %v647 = vsel %vm593, %v636, 0
    %649 = vmatprep.subr.mxu0 0.0
    %650 = vmatpush1.msra.mxu0 %v640
    %651 = vmatprep.subr.mxu0 0.0
    %652 = vmatpush1.msra.mxu0 %v642
    %653 = vmatprep.subr.mxu0 0.0
    %654 = vmatpush1.msra.mxu0 0.0
    %655 = vmatprep.subr.mxu0 0.0
    %656 = vmatpush1.msra.mxu0 0.0
    %657 = vmatprep.subr.mxu0 0.0
    %658 = vmatpush1.msra.mxu0 0.0
    %659 = vmatprep.subr.mxu0 0.0
    %660 = vmatpush1.msra.mxu0 0.0
    %661 = vmatprep.subr.mxu0 0.0
    %662 = vmatpush1.msra.mxu0 0.0
    %663 = vmatprep.subr.mxu0 0.0
    %664 = vmatpush1.msra.mxu0 0.0
    %665 = vmatprep.subr.mxu0 0.0
    %666 = vmatpush1.msra.mxu0 0.0
    %667 = vmatprep.subr.mxu0 0.0
    %668 = vmatpush1.msra.mxu0 0.0
    %669 = vmatprep.subr.mxu0 0.0
    %670 = vmatpush1.msra.mxu0 0.0
    %671 = vmatprep.subr.mxu0 0.0
    %672 = vmatpush1.msra.mxu0 0.0
    %673 = vmatprep.subr.mxu0 0.0
    %674 = vmatpush1.msra.mxu0 0.0
    %675 = vmatprep.subr.mxu0 0.0
    %676 = vmatpush1.msra.mxu0 0.0
    %677 = vmatprep.subr.mxu0 0.0
    %678 = vmatpush1.msra.mxu0 0.0
    %679 = vmatprep.subr.mxu0 0.0
    %680 = vmatpush1.msra.mxu0 0.0
    %681 = vmatprep.subr.mxu0 0.0
    %682 = vmatpush1.msra.mxu0 0.0
    %683 = vmatprep.subr.mxu0 0.0
    %684 = vmatpush1.msra.mxu0 0.0
    %685 = vmatprep.subr.mxu0 0.0
    %686 = vmatpush1.msra.mxu0 0.0
    %687 = vmatprep.subr.mxu0 0.0
    %688 = vmatpush1.msra.mxu0 0.0
    %689 = vmatprep.subr.mxu0 0.0
    %690 = vmatpush1.msra.mxu0 0.0
    %691 = vmatprep.subr.mxu0 0.0
    %692 = vmatpush1.msra.mxu0 0.0
    %693 = vmatprep.subr.mxu0 0.0
    %694 = vmatpush1.msra.mxu0 0.0
    %695 = vmatprep.subr.mxu0 0.0
    %696 = vmatpush1.msra.mxu0 0.0
    %697 = vmatprep.subr.mxu0 0.0
    %698 = vmatpush1.msra.mxu0 0.0
    %699 = vmatprep.subr.mxu0 0.0
    %700 = vmatpush1.msra.mxu0 0.0
    %701 = vmatprep.subr.mxu0 0.0
    %702 = vmatpush1.msra.mxu0 0.0
    %703 = vmatprep.subr.mxu0 0.0
    %704 = vmatpush1.msra.mxu0 0.0
    %705 = vmatprep.subr.mxu0 0.0
    %706 = vmatpush1.msra.mxu0 0.0
    %707 = vmatprep.subr.mxu0 0.0
    %708 = vmatpush1.msra.mxu0 0.0
    %709 = vmatprep.subr.mxu0 0.0
    %710 = vmatpush1.msra.mxu0 0.0
    %711 = vmatprep.subr.mxu0 0.0
    %712 = vmatpush1.msra.mxu0 0.0
    %713 = vmatprep.mubr.f32.mxu0 0.0
    %714 = vmatmul.mubr.f32.gmra.mrb[0].mxu0 %v645
    %v715 = vpop.f32.mrb[0].mxu0
    %v716 = vadd.f32 0.0, %v715
    %v717 = vpop.f32.mrb[0].mxu0
    %718 = vmatprep.mubr.f32.mxu0 0.0
    %719 = vmatmul.mubr.f32.gmra.mrb[0].mxu0 %v647
    %v720 = vpop.f32.mrb[0].mxu0
    %v721 = vadd.f32 0.0, %v720
    %v722 = vpop.f32.mrb[0].mxu0
    %723 = vdwg.mxu0
    %v724 = vsel %vm593, %v629, 0
    %v726 = vsel %vm593, %v630, 0
    %728 = vmatprep.subr.mxu0 0.0
    %729 = vmatpush1.msra.mxu0 %v198
    %730 = vmatprep.subr.mxu0 0.0
    %731 = vmatpush1.msra.mxu0 %v203
    %732 = vmatprep.subr.mxu0 0.0
    %733 = vmatpush1.msra.mxu0 0.0
    %734 = vmatprep.subr.mxu0 0.0
    %735 = vmatpush1.msra.mxu0 0.0
    %736 = vmatprep.subr.mxu0 0.0
    %737 = vmatpush1.msra.mxu0 0.0
    %738 = vmatprep.subr.mxu0 0.0
    %739 = vmatpush1.msra.mxu0 0.0
    %740 = vmatprep.subr.mxu0 0.0
    %741 = vmatpush1.msra.mxu0 0.0
    %742 = vmatprep.subr.mxu0 0.0
    %743 = vmatpush1.msra.mxu0 0.0
    %744 = vmatprep.subr.mxu0 0.0
    %745 = vmatpush1.msra.mxu0 0.0
    %746 = vmatprep.subr.mxu0 0.0
    %747 = vmatpush1.msra.mxu0 0.0
    %748 = vmatprep.subr.mxu0 0.0
    %749 = vmatpush1.msra.mxu0 0.0
    %750 = vmatprep.subr.mxu0 0.0
    %751 = vmatpush1.msra.mxu0 0.0
    %752 = vmatprep.subr.mxu0 0.0
    %753 = vmatpush1.msra.mxu0 0.0
    %754 = vmatprep.subr.mxu0 0.0
    %755 = vmatpush1.msra.mxu0 0.0
    %756 = vmatprep.subr.mxu0 0.0
    %757 = vmatpush1.msra.mxu0 0.0
    %758 = vmatprep.subr.mxu0 0.0
    %759 = vmatpush1.msra.mxu0 0.0
    %760 = vmatprep.subr.mxu0 0.0
    %761 = vmatpush1.msra.mxu0 0.0
    %762 = vmatprep.subr.mxu0 0.0
    %763 = vmatpush1.msra.mxu0 0.0
    %764 = vmatprep.subr.mxu0 0.0
    %765 = vmatpush1.msra.mxu0 0.0
    %766 = vmatprep.subr.mxu0 0.0
    %767 = vmatpush1.msra.mxu0 0.0
    %768 = vmatprep.subr.mxu0 0.0
    %769 = vmatpush1.msra.mxu0 0.0
    %770 = vmatprep.subr.mxu0 0.0
    %771 = vmatpush1.msra.mxu0 0.0
    %772 = vmatprep.subr.mxu0 0.0
    %773 = vmatpush1.msra.mxu0 0.0
    %774 = vmatprep.subr.mxu0 0.0
    %775 = vmatpush1.msra.mxu0 0.0
    %776 = vmatprep.subr.mxu0 0.0
    %777 = vmatpush1.msra.mxu0 0.0
    %778 = vmatprep.subr.mxu0 0.0
    %779 = vmatpush1.msra.mxu0 0.0
    %780 = vmatprep.subr.mxu0 0.0
    %781 = vmatpush1.msra.mxu0 0.0
    %782 = vmatprep.subr.mxu0 0.0
    %783 = vmatpush1.msra.mxu0 0.0
    %784 = vmatprep.subr.mxu0 0.0
    %785 = vmatpush1.msra.mxu0 0.0
    %786 = vmatprep.subr.mxu0 0.0
    %787 = vmatpush1.msra.mxu0 0.0
    %788 = vmatprep.subr.mxu0 0.0
    %789 = vmatpush1.msra.mxu0 0.0
    %790 = vmatprep.subr.mxu0 0.0
    %791 = vmatpush1.msra.mxu0 0.0
    %792 = vmatprep.mubr.f32.mxu0 0.0
    %793 = vmatmul.mubr.f32.gmra.mrb[0].mxu0 %v724
    %v794 = vpop.f32.mrb[0].mxu0
    %v795 = vadd.f32 %v716, %v794
    %v796 = vpop.f32.mrb[0].mxu0
    %797 = vmatprep.mubr.f32.mxu0 0.0
    %798 = vmatmul.mubr.f32.gmra.mrb[0].mxu0 %v726
    %v799 = vpop.f32.mrb[0].mxu0
    %v800 = vadd.f32 %v721, %v799
    %v801 = vpop.f32.mrb[0].mxu0
    %802 = vdwg.mxu0
    %803 = vrot.lane.b32.xlu0 %v629, 96
    %v804 = vpop.permute.xlu0 %803
    %805 = vrot.lane.b32.xlu0 %v630, 96
    %v806 = vpop.permute.xlu0 %805
    %807 = vrot.lane.b32.xlu0 %v198, 64
    %v808 = vpop.permute.xlu0 %807
    %809 = vrot.lane.b32.xlu0 %v203, 64
    %v810 = vpop.permute.xlu0 %809
    %v813 = vsel %vm593, %v804, 0
    %v815 = vsel %vm593, %v806, 0
    %817 = vmatprep.subr.mxu0 0.0
    %818 = vmatpush1.msra.mxu0 %v808
    %819 = vmatprep.subr.mxu0 0.0
    %820 = vmatpush1.msra.mxu0 %v810
    %821 = vmatprep.subr.mxu0 0.0
    %822 = vmatpush1.msra.mxu0 0.0
    %823 = vmatprep.subr.mxu0 0.0
    %824 = vmatpush1.msra.mxu0 0.0
    %825 = vmatprep.subr.mxu0 0.0
    %826 = vmatpush1.msra.mxu0 0.0
    %827 = vmatprep.subr.mxu0 0.0
    %828 = vmatpush1.msra.mxu0 0.0
    %829 = vmatprep.subr.mxu0 0.0
    %830 = vmatpush1.msra.mxu0 0.0
    %831 = vmatprep.subr.mxu0 0.0
    %832 = vmatpush1.msra.mxu0 0.0
    %833 = vmatprep.subr.mxu0 0.0
    %834 = vmatpush1.msra.mxu0 0.0
    %835 = vmatprep.subr.mxu0 0.0
    %836 = vmatpush1.msra.mxu0 0.0
    %837 = vmatprep.subr.mxu0 0.0
    %838 = vmatpush1.msra.mxu0 0.0
    %839 = vmatprep.subr.mxu0 0.0
    %840 = vmatpush1.msra.mxu0 0.0
    %841 = vmatprep.subr.mxu0 0.0
    %842 = vmatpush1.msra.mxu0 0.0
    %843 = vmatprep.subr.mxu0 0.0
    %844 = vmatpush1.msra.mxu0 0.0
    %845 = vmatprep.subr.mxu0 0.0
    %846 = vmatpush1.msra.mxu0 0.0
    %847 = vmatprep.subr.mxu0 0.0
    %848 = vmatpush1.msra.mxu0 0.0
    %849 = vmatprep.subr.mxu0 0.0
    %850 = vmatpush1.msra.mxu0 0.0
    %851 = vmatprep.subr.mxu0 0.0
    %852 = vmatpush1.msra.mxu0 0.0
    %853 = vmatprep.subr.mxu0 0.0
    %854 = vmatpush1.msra.mxu0 0.0
    %855 = vmatprep.subr.mxu0 0.0
    %856 = vmatpush1.msra.mxu0 0.0
    %857 = vmatprep.subr.mxu0 0.0
    %858 = vmatpush1.msra.mxu0 0.0
    %859 = vmatprep.subr.mxu0 0.0
    %860 = vmatpush1.msra.mxu0 0.0
    %861 = vmatprep.subr.mxu0 0.0
    %862 = vmatpush1.msra.mxu0 0.0
    %863 = vmatprep.subr.mxu0 0.0
    %864 = vmatpush1.msra.mxu0 0.0
    %865 = vmatprep.subr.mxu0 0.0
    %866 = vmatpush1.msra.mxu0 0.0
    %867 = vmatprep.subr.mxu0 0.0
    %868 = vmatpush1.msra.mxu0 0.0
    %869 = vmatprep.subr.mxu0 0.0
    %870 = vmatpush1.msra.mxu0 0.0
    %871 = vmatprep.subr.mxu0 0.0
    %872 = vmatpush1.msra.mxu0 0.0
    %873 = vmatprep.subr.mxu0 0.0
    %874 = vmatpush1.msra.mxu0 0.0
    %875 = vmatprep.subr.mxu0 0.0
    %876 = vmatpush1.msra.mxu0 0.0
    %877 = vmatprep.subr.mxu0 0.0
    %878 = vmatpush1.msra.mxu0 0.0
    %879 = vmatprep.subr.mxu0 0.0
    %880 = vmatpush1.msra.mxu0 0.0
    %881 = vmatprep.mubr.f32.mxu0 0.0
    %882 = vmatmul.mubr.f32.gmra.mrb[0].mxu0 %v813
    %v883 = vpop.f32.mrb[0].mxu0
    %v884 = vadd.f32 0.0, %v883
    %v885 = vpop.f32.mrb[0].mxu0
    %886 = vmatprep.mubr.f32.mxu0 0.0
    %887 = vmatmul.mubr.f32.gmra.mrb[0].mxu0 %v815
    %v888 = vpop.f32.mrb[0].mxu0
    %v889 = vadd.f32 0.0, %v888
    %v890 = vpop.f32.mrb[0].mxu0
    %891 = vdwg.mxu0
    %v892 = vadd.f32 %v795, %v884
    %v893 = vadd.f32 %v800, %v889
    %894 = vrot.lane.b32.xlu0 %v629, 80
    %v895 = vpop.permute.xlu0 %894
    %896 = vrot.lane.b32.xlu0 %v630, 80
    %v897 = vpop.permute.xlu0 %896
    %898 = vrot.lane.b32.xlu0 %v198, 32
    %v899 = vpop.permute.xlu0 %898
    %900 = vrot.lane.b32.xlu0 %v203, 32
    %v901 = vpop.permute.xlu0 %900
    %v904 = vsel %vm593, %v895, 0
    %v906 = vsel %vm593, %v897, 0
    %908 = vmatprep.subr.mxu0 0.0
    %909 = vmatpush1.msra.mxu0 %v899
    %910 = vmatprep.subr.mxu0 0.0
    %911 = vmatpush1.msra.mxu0 %v901
    %912 = vmatprep.subr.mxu0 0.0
    %913 = vmatpush1.msra.mxu0 0.0
    %914 = vmatprep.subr.mxu0 0.0
    %915 = vmatpush1.msra.mxu0 0.0
    %916 = vmatprep.subr.mxu0 0.0
    %917 = vmatpush1.msra.mxu0 0.0
    %918 = vmatprep.subr.mxu0 0.0
    %919 = vmatpush1.msra.mxu0 0.0
    %920 = vmatprep.subr.mxu0 0.0
    %921 = vmatpush1.msra.mxu0 0.0
    %922 = vmatprep.subr.mxu0 0.0
    %923 = vmatpush1.msra.mxu0 0.0
    %924 = vmatprep.subr.mxu0 0.0
    %925 = vmatpush1.msra.mxu0 0.0
    %926 = vmatprep.subr.mxu0 0.0
    %927 = vmatpush1.msra.mxu0 0.0
    %928 = vmatprep.subr.mxu0 0.0
    %929 = vmatpush1.msra.mxu0 0.0
    %930 = vmatprep.subr.mxu0 0.0
    %931 = vmatpush1.msra.mxu0 0.0
    %932 = vmatprep.subr.mxu0 0.0
    %933 = vmatpush1.msra.mxu0 0.0
    %934 = vmatprep.subr.mxu0 0.0
    %935 = vmatpush1.msra.mxu0 0.0
    %936 = vmatprep.subr.mxu0 0.0
    %937 = vmatpush1.msra.mxu0 0.0
    %938 = vmatprep.subr.mxu0 0.0
    %939 = vmatpush1.msra.mxu0 0.0
    %940 = vmatprep.subr.mxu0 0.0
    %941 = vmatpush1.msra.mxu0 0.0
    %942 = vmatprep.subr.mxu0 0.0
    %943 = vmatpush1.msra.mxu0 0.0
    %944 = vmatprep.subr.mxu0 0.0
    %945 = vmatpush1.msra.mxu0 0.0
    %946 = vmatprep.subr.mxu0 0.0
    %947 = vmatpush1.msra.mxu0 0.0
    %948 = vmatprep.subr.mxu0 0.0
    %949 = vmatpush1.msra.mxu0 0.0
    %950 = vmatprep.subr.mxu0 0.0
    %951 = vmatpush1.msra.mxu0 0.0
    %952 = vmatprep.subr.mxu0 0.0
    %953 = vmatpush1.msra.mxu0 0.0
    %954 = vmatprep.subr.mxu0 0.0
    %955 = vmatpush1.msra.mxu0 0.0
    %956 = vmatprep.subr.mxu0 0.0
    %957 = vmatpush1.msra.mxu0 0.0
    %958 = vmatprep.subr.mxu0 0.0
    %959 = vmatpush1.msra.mxu0 0.0
    %960 = vmatprep.subr.mxu0 0.0
    %961 = vmatpush1.msra.mxu0 0.0
    %962 = vmatprep.subr.mxu0 0.0
    %963 = vmatpush1.msra.mxu0 0.0
    %964 = vmatprep.subr.mxu0 0.0
    %965 = vmatpush1.msra.mxu0 0.0
    %966 = vmatprep.subr.mxu0 0.0
    %967 = vmatpush1.msra.mxu0 0.0
    %968 = vmatprep.subr.mxu0 0.0
    %969 = vmatpush1.msra.mxu0 0.0
    %970 = vmatprep.subr.mxu0 0.0
    %971 = vmatpush1.msra.mxu0 0.0
    %972 = vmatprep.mubr.f32.mxu0 0.0
    %973 = vmatmul.mubr.f32.gmra.mrb[0].mxu0 %v904
    %v974 = vpop.f32.mrb[0].mxu0
    %v975 = vadd.f32 0.0, %v974
    %v976 = vpop.f32.mrb[0].mxu0
    %977 = vmatprep.mubr.f32.mxu0 0.0
    %978 = vmatmul.mubr.f32.gmra.mrb[0].mxu0 %v906
    %v979 = vpop.f32.mrb[0].mxu0
    %v980 = vadd.f32 0.0, %v979
    %v981 = vpop.f32.mrb[0].mxu0
    %982 = vdwg.mxu0
    %v983 = vadd.f32 %v892, %v975
    %v984 = vadd.f32 %v893, %v980
    %v985 = vadd.f32 %v983, %v28
    %v986 = vadd.f32 %v984, %v29
    %v987 = vsel %vm49, %v985, 0.0
    %988 = vadd.xlane.f32.xlu0 %v987
    %v989 = vpop.xlane.xlu0 %988
    %v990 = vsel %vm49, %v986, 0.0
    %991 = vadd.xlane.f32.xlu0 %v990
    %v992 = vpop.xlane.xlu0 %991
    %v993 = vrcp.pop 32.0
    %v994 = vmul.f32 %v989, %v993
    %v995 = vmul.f32 %v992, %v993
    %v996 = vsub.f32 %v985, %v994
    %v997 = vsub.f32 %v986, %v995
    %v998 = vmul.f32 %v996, %v996
    %v999 = vmul.f32 %v997, %v997
    %v1000 = vsel %vm49, %v998, 0.0
    %1001 = vadd.xlane.f32.xlu0 %v1000
    %v1002 = vpop.xlane.xlu0 %1001
    %v1003 = vsel %vm49, %v999, 0.0
    %1004 = vadd.xlane.f32.xlu0 %v1003
    %v1005 = vpop.xlane.xlu0 %1004
    %v1006 = vmul.f32 %v1002, 0.032258064
    %v1007 = vmul.f32 %v1005, 0.032258064
    %v1008 = vrsqrt.pop %v1006
    %v1009 = vrsqrt.pop %v1007
    %v1010 = vmul.f32 %v996, %v1008
    %v1011 = vmul.f32 %v997, %v1009
    %v1012 = vld [vmem:[#allocation2 + $0x40] sm:$0xff]
    %v1013 = vld [vmem:[#allocation2 + $0x48] sm:$0xff]
    %v1014 = vld [vmem:[#allocation2 + $0x50] sm:$0xff]
    %v1015 = vld [vmem:[#allocation2 + $0x58] sm:$0xff]
    %v1016 = vld [vmem:[#allocation2 + $0x60] sm:$0x1]
    %v1017 = vld [vmem:[#allocation2 + $0x68] sm:$0xff]
    %v1018 = vld [vmem:[#allocation2 + $0x70] sm:$0xff]
    %v1019 = vld [vmem:[#allocation2 + $0x78] sm:$0xff]
    %v1020 = vld [vmem:[#allocation2 + $0x80] sm:$0xff]
    %v1021 = vld [vmem:[#allocation2 + $0x88] sm:$0xff]
    %v1022 = vld [vmem:[#allocation2 + $0x90] sm:$0xff]
    %v1023 = vld [vmem:[#allocation2 + $0x98] sm:$0xff]
    %v1024 = vld [vmem:[#allocation2 + $0xa0] sm:$0xff]
    %v1025 = vld [vmem:[#allocation2 + $0xa8] sm:$0x1]
    %v1026 = vlaneseq
    %v1027 = vshrl.u32 %v1026, 7
    %v1028 = vsub.s32 0, %v1027
    %v1029 = vrot.slane %v1016, %v1028
    %v1031 = vsel %vm49, %v1010, 0
    %v1034 = vsel %vm49, %v1011, 0
    %1036 = vmatprep.subr.mxu0 0.0
    %1037 = vmatpush1.msra.mxu0 %v1012
    %1038 = vmatprep.subr.mxu0 0.0
    %1039 = vmatpush1.msra.mxu0 %v1013
    %1040 = vmatprep.subr.mxu0 0.0
    %1041 = vmatpush1.msra.mxu0 %v1014
    %1042 = vmatprep.subr.mxu0 0.0
    %1043 = vmatpush1.msra.mxu0 %v1015
    %1044 = vmatprep.subr.mxu0 0.0
    %1045 = vmatpush1.msra.mxu0 0.0
    %1046 = vmatprep.subr.mxu0 0.0
    %1047 = vmatpush1.msra.mxu0 0.0
    %1048 = vmatprep.subr.mxu0 0.0
    %1049 = vmatpush1.msra.mxu0 0.0
    %1050 = vmatprep.subr.mxu0 0.0
    %1051 = vmatpush1.msra.mxu0 0.0
    %1052 = vmatprep.subr.mxu0 0.0
    %1053 = vmatpush1.msra.mxu0 0.0
    %1054 = vmatprep.subr.mxu0 0.0
    %1055 = vmatpush1.msra.mxu0 0.0
    %1056 = vmatprep.subr.mxu0 0.0
    %1057 = vmatpush1.msra.mxu0 0.0
    %1058 = vmatprep.subr.mxu0 0.0
    %1059 = vmatpush1.msra.mxu0 0.0
    %1060 = vmatprep.subr.mxu0 0.0
    %1061 = vmatpush1.msra.mxu0 0.0
    %1062 = vmatprep.subr.mxu0 0.0
    %1063 = vmatpush1.msra.mxu0 0.0
    %1064 = vmatprep.subr.mxu0 0.0
    %1065 = vmatpush1.msra.mxu0 0.0
    %1066 = vmatprep.subr.mxu0 0.0
    %1067 = vmatpush1.msra.mxu0 0.0
    %1068 = vmatprep.subr.mxu0 0.0
    %1069 = vmatpush1.msra.mxu0 0.0
    %1070 = vmatprep.subr.mxu0 0.0
    %1071 = vmatpush1.msra.mxu0 0.0
    %1072 = vmatprep.subr.mxu0 0.0
    %1073 = vmatpush1.msra.mxu0 0.0
    %1074 = vmatprep.subr.mxu0 0.0
    %1075 = vmatpush1.msra.mxu0 0.0
    %1076 = vmatprep.subr.mxu0 0.0
    %1077 = vmatpush1.msra.mxu0 0.0
    %1078 = vmatprep.subr.mxu0 0.0
    %1079 = vmatpush1.msra.mxu0 0.0
    %1080 = vmatprep.subr.mxu0 0.0
    %1081 = vmatpush1.msra.mxu0 0.0
    %1082 = vmatprep.subr.mxu0 0.0
    %1083 = vmatpush1.msra.mxu0 0.0
    %1084 = vmatprep.subr.mxu0 0.0
    %1085 = vmatpush1.msra.mxu0 0.0
    %1086 = vmatprep.subr.mxu0 0.0
    %1087 = vmatpush1.msra.mxu0 0.0
    %1088 = vmatprep.subr.mxu0 0.0
    %1089 = vmatpush1.msra.mxu0 0.0
    %1090 = vmatprep.subr.mxu0 0.0
    %1091 = vmatpush1.msra.mxu0 0.0
    %1092 = vmatprep.subr.mxu0 0.0
    %1093 = vmatpush1.msra.mxu0 0.0
    %1094 = vmatprep.subr.mxu0 0.0
    %1095 = vmatpush1.msra.mxu0 0.0
    %1096 = vmatprep.subr.mxu0 0.0
    %1097 = vmatpush1.msra.mxu0 0.0
    %1098 = vmatprep.subr.mxu0 0.0
    %1099 = vmatpush1.msra.mxu0 0.0
    %1100 = vmatprep.mubr.f32.mxu0 0.0
    %1101 = vmatmul.mubr.f32.gmra.mrb[0].mxu0 %v1031
    %v1102 = vpop.f32.mrb[0].mxu0
    %v1103 = vadd.f32 %v1029, %v1102
    %v1104 = vpop.f32.mrb[0].mxu0
    %1105 = vmatprep.mubr.f32.mxu0 0.0
    %1106 = vmatmul.mubr.f32.gmra.mrb[0].mxu0 %v1034
    %v1107 = vpop.f32.mrb[0].mxu0
    %v1108 = vadd.f32 %v1029, %v1107
    %v1109 = vpop.f32.mrb[0].mxu0
    %1110 = vdwg.mxu0
    %v1111 = vmax.f32 %v1103, 0.0
    %v1112 = vmax.f32 %v1108, 0.0
    %v1113 = vlaneseq
    %v1114 = vshrl.u32 %v1113, 7
    %v1115 = vsub.s32 0, %v1114
    %v1116 = vrot.slane %v1025, %v1115
    %v1118 = vsel %vm603, %v1111, 0
    %v1121 = vsel %vm603, %v1112, 0
    %1123 = vmatprep.subr.mxu0 0.0
    %1124 = vmatpush1.msra.mxu0 %v1017
    %1125 = vmatprep.subr.mxu0 0.0
    %1126 = vmatpush1.msra.mxu0 %v1018
    %1127 = vmatprep.subr.mxu0 0.0
    %1128 = vmatpush1.msra.mxu0 %v1019
    %1129 = vmatprep.subr.mxu0 0.0
    %1130 = vmatpush1.msra.mxu0 %v1020
    %1131 = vmatprep.subr.mxu0 0.0
    %1132 = vmatpush1.msra.mxu0 %v1021
    %1133 = vmatprep.subr.mxu0 0.0
    %1134 = vmatpush1.msra.mxu0 %v1022
    %1135 = vmatprep.subr.mxu0 0.0
    %1136 = vmatpush1.msra.mxu0 %v1023
    %1137 = vmatprep.subr.mxu0 0.0
    %1138 = vmatpush1.msra.mxu0 %v1024
    %1139 = vmatprep.subr.mxu0 0.0
    %1140 = vmatpush1.msra.mxu0 0.0
    %1141 = vmatprep.subr.mxu0 0.0
    %1142 = vmatpush1.msra.mxu0 0.0
    %1143 = vmatprep.subr.mxu0 0.0
    %1144 = vmatpush1.msra.mxu0 0.0
    %1145 = vmatprep.subr.mxu0 0.0
    %1146 = vmatpush1.msra.mxu0 0.0
    %1147 = vmatprep.subr.mxu0 0.0
    %1148 = vmatpush1.msra.mxu0 0.0
    %1149 = vmatprep.subr.mxu0 0.0
    %1150 = vmatpush1.msra.mxu0 0.0
    %1151 = vmatprep.subr.mxu0 0.0
    %1152 = vmatpush1.msra.mxu0 0.0
    %1153 = vmatprep.subr.mxu0 0.0
    %1154 = vmatpush1.msra.mxu0 0.0
    %1155 = vmatprep.subr.mxu0 0.0
    %1156 = vmatpush1.msra.mxu0 0.0
    %1157 = vmatprep.subr.mxu0 0.0
    %1158 = vmatpush1.msra.mxu0 0.0
    %1159 = vmatprep.subr.mxu0 0.0
    %1160 = vmatpush1.msra.mxu0 0.0
    %1161 = vmatprep.subr.mxu0 0.0
    %1162 = vmatpush1.msra.mxu0 0.0
    %1163 = vmatprep.subr.mxu0 0.0
    %1164 = vmatpush1.msra.mxu0 0.0
    %1165 = vmatprep.subr.mxu0 0.0
    %1166 = vmatpush1.msra.mxu0 0.0
    %1167 = vmatprep.subr.mxu0 0.0
    %1168 = vmatpush1.msra.mxu0 0.0
    %1169 = vmatprep.subr.mxu0 0.0
    %1170 = vmatpush1.msra.mxu0 0.0
    %1171 = vmatprep.subr.mxu0 0.0
    %1172 = vmatpush1.msra.mxu0 0.0
    %1173 = vmatprep.subr.mxu0 0.0
    %1174 = vmatpush1.msra.mxu0 0.0
    %1175 = vmatprep.subr.mxu0 0.0
    %1176 = vmatpush1.msra.mxu0 0.0
    %1177 = vmatprep.subr.mxu0 0.0
    %1178 = vmatpush1.msra.mxu0 0.0
    %1179 = vmatprep.subr.mxu0 0.0
    %1180 = vmatpush1.msra.mxu0 0.0
    %1181 = vmatprep.subr.mxu0 0.0
    %1182 = vmatpush1.msra.mxu0 0.0
    %1183 = vmatprep.subr.mxu0 0.0
    %1184 = vmatpush1.msra.mxu0 0.0
    %1185 = vmatprep.subr.mxu0 0.0
    %1186 = vmatpush1.msra.mxu0 0.0
    %1187 = vmatprep.mubr.f32.mxu0 0.0
    %1188 = vmatmul.mubr.f32.gmra.mrb[0].mxu0 %v1118
    %v1189 = vpop.f32.mrb[0].mxu0
    %v1190 = vadd.f32 %v1116, %v1189
    %v1191 = vpop.f32.mrb[0].mxu0
    %1192 = vmatprep.mubr.f32.mxu0 0.0
    %1193 = vmatmul.mubr.f32.gmra.mrb[0].mxu0 %v1121
    %v1194 = vpop.f32.mrb[0].mxu0
    %v1195 = vadd.f32 %v1116, %v1194
    %v1196 = vpop.f32.mrb[0].mxu0
    %1197 = vdwg.mxu0
    %v1198 = vadd.f32 %v1190, %v1010
    %v1199 = vadd.f32 %v1195, %v1011
    %v1200 = vsel %vm49, %v1198, 0.0
    %1201 = vadd.xlane.f32.xlu0 %v1200
    %v1202 = vpop.xlane.xlu0 %1201
    %v1203 = vsel %vm49, %v1199, 0.0
    %1204 = vadd.xlane.f32.xlu0 %v1203
    %v1205 = vpop.xlane.xlu0 %1204
    %v1206 = vmul.f32 %v1202, %v993
    %v1207 = vmul.f32 %v1205, %v993
    %v1208 = vsub.f32 %v1198, %v1206
    %v1209 = vsub.f32 %v1199, %v1207
    %v1210 = vmul.f32 %v1208, %v1208
    %v1211 = vmul.f32 %v1209, %v1209
    %v1212 = vsel %vm49, %v1210, 0.0
    %1213 = vadd.xlane.f32.xlu0 %v1212
    %v1214 = vpop.xlane.xlu0 %1213
    %v1215 = vsel %vm49, %v1211, 0.0
    %1216 = vadd.xlane.f32.xlu0 %v1215
    %v1217 = vpop.xlane.xlu0 %1216
    %v1218 = vmul.f32 %v1214, 0.032258064
    %v1219 = vmul.f32 %v1217, 0.032258064
    %v1220 = vrsqrt.pop %v1218
    %v1221 = vrsqrt.pop %v1219
    %v1222 = vmul.f32 %v1208, %v1220
    %v1223 = vmul.f32 %v1209, %v1221
    %v1224 = vld [vmem:[#allocation2 + $0xb0] sm:$0xff]
    %v1225 = vld [vmem:[#allocation2 + $0xb8] sm:$0xff]
    %v1226 = vld [vmem:[#allocation2 + $0xc0] sm:$0xff]
    %v1227 = vld [vmem:[#allocation2 + $0xc8] sm:$0xff]
    %v1228 = vld [vmem:[#allocation2 + $0xd0] sm:$0xff]
    %v1229 = vld [vmem:[#allocation2 + $0xd8] sm:$0xff]
    %v1230 = vld [vmem:[#allocation2 + $0xe0] sm:$0xff]
    %v1231 = vld [vmem:[#allocation2 + $0xe8] sm:$0xff]
    %v1233 = vsel %vm49, %v1222, 0
    %v1236 = vsel %vm49, %v1223, 0
    %1238 = vmatprep.subr.mxu0 0.0
    %1239 = vmatpush1.msra.mxu0 %v1224
    %1240 = vmatprep.subr.mxu0 0.0
    %1241 = vmatpush1.msra.mxu0 %v1225
    %1242 = vmatprep.subr.mxu0 0.0
    %1243 = vmatpush1.msra.mxu0 %v1226
    %1244 = vmatprep.subr.mxu0 0.0
    %1245 = vmatpush1.msra.mxu0 %v1227
    %1246 = vmatprep.subr.mxu0 0.0
    %1247 = vmatpush1.msra.mxu0 0.0
    %1248 = vmatprep.subr.mxu0 0.0
    %1249 = vmatpush1.msra.mxu0 0.0
    %1250 = vmatprep.subr.mxu0 0.0
    %1251 = vmatpush1.msra.mxu0 0.0
    %1252 = vmatprep.subr.mxu0 0.0
    %1253 = vmatpush1.msra.mxu0 0.0
    %1254 = vmatprep.subr.mxu0 0.0
    %1255 = vmatpush1.msra.mxu0 0.0
    %1256 = vmatprep.subr.mxu0 0.0
    %1257 = vmatpush1.msra.mxu0 0.0
    %1258 = vmatprep.subr.mxu0 0.0
    %1259 = vmatpush1.msra.mxu0 0.0
    %1260 = vmatprep.subr.mxu0 0.0
    %1261 = vmatpush1.msra.mxu0 0.0
    %1262 = vmatprep.subr.mxu0 0.0
    %1263 = vmatpush1.msra.mxu0 0.0
    %1264 = vmatprep.subr.mxu0 0.0
    %1265 = vmatpush1.msra.mxu0 0.0
    %1266 = vmatprep.subr.mxu0 0.0
    %1267 = vmatpush1.msra.mxu0 0.0
    %1268 = vmatprep.subr.mxu0 0.0
    %1269 = vmatpush1.msra.mxu0 0.0
    %1270 = vmatprep.subr.mxu0 0.0
    %1271 = vmatpush1.msra.mxu0 0.0
    %1272 = vmatprep.subr.mxu0 0.0
    %1273 = vmatpush1.msra.mxu0 0.0
    %1274 = vmatprep.subr.mxu0 0.0
    %1275 = vmatpush1.msra.mxu0 0.0
    %1276 = vmatprep.subr.mxu0 0.0
    %1277 = vmatpush1.msra.mxu0 0.0
    %1278 = vmatprep.subr.mxu0 0.0
    %1279 = vmatpush1.msra.mxu0 0.0
    %1280 = vmatprep.subr.mxu0 0.0
    %1281 = vmatpush1.msra.mxu0 0.0
    %1282 = vmatprep.subr.mxu0 0.0
    %1283 = vmatpush1.msra.mxu0 0.0
    %1284 = vmatprep.subr.mxu0 0.0
    %1285 = vmatpush1.msra.mxu0 0.0
    %1286 = vmatprep.subr.mxu0 0.0
    %1287 = vmatpush1.msra.mxu0 0.0
    %1288 = vmatprep.subr.mxu0 0.0
    %1289 = vmatpush1.msra.mxu0 0.0
    %1290 = vmatprep.subr.mxu0 0.0
    %1291 = vmatpush1.msra.mxu0 0.0
    %1292 = vmatprep.subr.mxu0 0.0
    %1293 = vmatpush1.msra.mxu0 0.0
    %1294 = vmatprep.subr.mxu0 0.0
    %1295 = vmatpush1.msra.mxu0 0.0
    %1296 = vmatprep.subr.mxu0 0.0
    %1297 = vmatpush1.msra.mxu0 0.0
    %1298 = vmatprep.subr.mxu0 0.0
    %1299 = vmatpush1.msra.mxu0 0.0
    %1300 = vmatprep.subr.mxu0 0.0
    %1301 = vmatpush1.msra.mxu0 0.0
    %1302 = vmatprep.mubr.f32.mxu0 0.0
    %1303 = vmatmul.mubr.f32.gmra.mrb[0].mxu0 %v1233
    %v1304 = vpop.f32.mrb[0].mxu0
    %v1305 = vadd.f32 0.0, %v1304
    %v1306 = vpop.f32.mrb[0].mxu0
    %1307 = vmatprep.mubr.f32.mxu0 0.0
    %1308 = vmatmul.mubr.f32.gmra.mrb[0].mxu0 %v1236
    %v1309 = vpop.f32.mrb[0].mxu0
    %v1310 = vadd.f32 0.0, %v1309
    %v1311 = vpop.f32.mrb[0].mxu0
    %1312 = vdwg.mxu0
    %1313 = vmatprep.subr.mxu0 0.0
    %1314 = vmatpush1.msra.mxu0 %v1228
    %1315 = vmatprep.subr.mxu0 0.0
    %1316 = vmatpush1.msra.mxu0 %v1229
    %1317 = vmatprep.subr.mxu0 0.0
    %1318 = vmatpush1.msra.mxu0 %v1230
    %1319 = vmatprep.subr.mxu0 0.0
    %1320 = vmatpush1.msra.mxu0 %v1231
    %1321 = vmatprep.subr.mxu0 0.0
    %1322 = vmatpush1.msra.mxu0 0.0
    %1323 = vmatprep.subr.mxu0 0.0
    %1324 = vmatpush1.msra.mxu0 0.0
    %1325 = vmatprep.subr.mxu0 0.0
    %1326 = vmatpush1.msra.mxu0 0.0
    %1327 = vmatprep.subr.mxu0 0.0
    %1328 = vmatpush1.msra.mxu0 0.0
    %1329 = vmatprep.subr.mxu0 0.0
    %1330 = vmatpush1.msra.mxu0 0.0
    %1331 = vmatprep.subr.mxu0 0.0
    %1332 = vmatpush1.msra.mxu0 0.0
    %1333 = vmatprep.subr.mxu0 0.0
    %1334 = vmatpush1.msra.mxu0 0.0
    %1335 = vmatprep.subr.mxu0 0.0
    %1336 = vmatpush1.msra.mxu0 0.0
    %1337 = vmatprep.subr.mxu0 0.0
    %1338 = vmatpush1.msra.mxu0 0.0
    %1339 = vmatprep.subr.mxu0 0.0
    %1340 = vmatpush1.msra.mxu0 0.0
    %1341 = vmatprep.subr.mxu0 0.0
    %1342 = vmatpush1.msra.mxu0 0.0
    %1343 = vmatprep.subr.mxu0 0.0
    %1344 = vmatpush1.msra.mxu0 0.0
    %1345 = vmatprep.subr.mxu0 0.0
    %1346 = vmatpush1.msra.mxu0 0.0
    %1347 = vmatprep.subr.mxu0 0.0
    %1348 = vmatpush1.msra.mxu0 0.0
    %1349 = vmatprep.subr.mxu0 0.0
    %1350 = vmatpush1.msra.mxu0 0.0
    %1351 = vmatprep.subr.mxu0 0.0
    %1352 = vmatpush1.msra.mxu0 0.0
    %1353 = vmatprep.subr.mxu0 0.0
    %1354 = vmatpush1.msra.mxu0 0.0
    %1355 = vmatprep.subr.mxu0 0.0
    %1356 = vmatpush1.msra.mxu0 0.0
    %1357 = vmatprep.subr.mxu0 0.0
    %1358 = vmatpush1.msra.mxu0 0.0
    %1359 = vmatprep.subr.mxu0 0.0
    %1360 = vmatpush1.msra.mxu0 0.0
    %1361 = vmatprep.subr.mxu0 0.0
    %1362 = vmatpush1.msra.mxu0 0.0
    %1363 = vmatprep.subr.mxu0 0.0
    %1364 = vmatpush1.msra.mxu0 0.0
    %1365 = vmatprep.subr.mxu0 0.0
    %1366 = vmatpush1.msra.mxu0 0.0
    %1367 = vmatprep.subr.mxu0 0.0
    %1368 = vmatpush1.msra.mxu0 0.0
    %1369 = vmatprep.subr.mxu0 0.0
    %1370 = vmatpush1.msra.mxu0 0.0
    %1371 = vmatprep.subr.mxu0 0.0
    %1372 = vmatpush1.msra.mxu0 0.0
    %1373 = vmatprep.subr.mxu0 0.0
    %1374 = vmatpush1.msra.mxu0 0.0
    %1375 = vmatprep.subr.mxu0 0.0
    %1376 = vmatpush1.msra.mxu0 0.0
    %1377 = vmatprep.mubr.f32.mxu0 0.0
    %1378 = vmatmul.mubr.f32.gmra.mrb[0].mxu0 %v1233
    %v1379 = vpop.f32.mrb[0].mxu0
    %v1380 = vadd.f32 0.0, %v1379
    %v1381 = vpop.f32.mrb[0].mxu0
    %1382 = vmatprep.mubr.f32.mxu0 0.0
    %1383 = vmatmul.mubr.f32.gmra.mrb[0].mxu0 %v1236
    %v1384 = vpop.f32.mrb[0].mxu0
    %v1385 = vadd.f32 0.0, %v1384
    %v1386 = vpop.f32.mrb[0].mxu0
    %1387 = vdwg.mxu0
    %1390 = vrot.lane.b32.xlu0 %v1305, 96
    %v1391 = vpop.permute.xlu0 %1390
    %1392 = vrot.lane.b32.xlu0 %v1310, 96
    %v1393 = vpop.permute.xlu0 %1392
    %v1394 = vsel %vm212, %v1305, 0
    %v1396 = vsel %vm212, %v1310, 0
    %v1398 = vsel %vm212, %v1391, 0
    %v1400 = vsel %vm212, %v1393, 0
    %1402 = vmatprep.subr.mxu0 0.0
    %1403 = vmatpush1.xpose.msra.mxu0 %v1398
    %1404 = vmatprep.subr.mxu0 0.0
    %1405 = vmatpush1.xpose.msra.mxu0 %v1400
    %1406 = vmatprep.subr.mxu0 0.0
    %1407 = vmatpush1.xpose.msra.mxu0 0.0
    %1408 = vmatprep.subr.mxu0 0.0
    %1409 = vmatpush1.xpose.msra.mxu0 0.0
    %1410 = vmatprep.subr.mxu0 0.0
    %1411 = vmatpush1.xpose.msra.mxu0 0.0
    %1412 = vmatprep.subr.mxu0 0.0
    %1413 = vmatpush1.xpose.msra.mxu0 0.0
    %1414 = vmatprep.subr.mxu0 0.0
    %1415 = vmatpush1.xpose.msra.mxu0 0.0
    %1416 = vmatprep.subr.mxu0 0.0
    %1417 = vmatpush1.xpose.msra.mxu0 0.0
    %1418 = vmatprep.subr.mxu0 0.0
    %1419 = vmatpush1.xpose.msra.mxu0 0.0
    %1420 = vmatprep.subr.mxu0 0.0
    %1421 = vmatpush1.xpose.msra.mxu0 0.0
    %1422 = vmatprep.subr.mxu0 0.0
    %1423 = vmatpush1.xpose.msra.mxu0 0.0
    %1424 = vmatprep.subr.mxu0 0.0
    %1425 = vmatpush1.xpose.msra.mxu0 0.0
    %1426 = vmatprep.subr.mxu0 0.0
    %1427 = vmatpush1.xpose.msra.mxu0 0.0
    %1428 = vmatprep.subr.mxu0 0.0
    %1429 = vmatpush1.xpose.msra.mxu0 0.0
    %1430 = vmatprep.subr.mxu0 0.0
    %1431 = vmatpush1.xpose.msra.mxu0 0.0
    %1432 = vmatprep.subr.mxu0 0.0
    %1433 = vmatpush1.xpose.msra.mxu0 0.0
    %1434 = vmatprep.subr.mxu0 0.0
    %1435 = vmatpush1.xpose.msra.mxu0 0.0
    %1436 = vmatprep.subr.mxu0 0.0
    %1437 = vmatpush1.xpose.msra.mxu0 0.0
    %1438 = vmatprep.subr.mxu0 0.0
    %1439 = vmatpush1.xpose.msra.mxu0 0.0
    %1440 = vmatprep.subr.mxu0 0.0
    %1441 = vmatpush1.xpose.msra.mxu0 0.0
    %1442 = vmatprep.subr.mxu0 0.0
    %1443 = vmatpush1.xpose.msra.mxu0 0.0
    %1444 = vmatprep.subr.mxu0 0.0
    %1445 = vmatpush1.xpose.msra.mxu0 0.0
    %1446 = vmatprep.subr.mxu0 0.0
    %1447 = vmatpush1.xpose.msra.mxu0 0.0
    %1448 = vmatprep.subr.mxu0 0.0
    %1449 = vmatpush1.xpose.msra.mxu0 0.0
    %1450 = vmatprep.subr.mxu0 0.0
    %1451 = vmatpush1.xpose.msra.mxu0 0.0
    %1452 = vmatprep.subr.mxu0 0.0
    %1453 = vmatpush1.xpose.msra.mxu0 0.0
    %1454 = vmatprep.subr.mxu0 0.0
    %1455 = vmatpush1.xpose.msra.mxu0 0.0
    %1456 = vmatprep.subr.mxu0 0.0
    %1457 = vmatpush1.xpose.msra.mxu0 0.0
    %1458 = vmatprep.subr.mxu0 0.0
    %1459 = vmatpush1.xpose.msra.mxu0 0.0
    %1460 = vmatprep.subr.mxu0 0.0
    %1461 = vmatpush1.xpose.msra.mxu0 0.0
    %1462 = vmatprep.subr.mxu0 0.0
    %1463 = vmatpush1.xpose.msra.mxu0 0.0
    %1464 = vmatprep.subr.mxu0 0.0
    %1465 = vmatpush1.xpose.msra.mxu0 0.0
    %1466 = vmatprep.mubr.f32.mxu0 0.0
    %1467 = vmatmul.mubr.f32.gmra.mrb[0].mxu0 %v1394
    %v1468 = vpop.f32.mrb[0].mxu0
    %v1469 = vadd.f32 0.0, %v1468
    %v1470 = vpop.f32.mrb[0].mxu0
    %1471 = vmatprep.mubr.f32.mxu0 0.0
    %1472 = vmatmul.mubr.f32.gmra.mrb[0].mxu0 %v1396
    %v1473 = vpop.f32.mrb[0].mxu0
    %v1474 = vadd.f32 0.0, %v1473
    %v1475 = vpop.f32.mrb[0].mxu0
    %1476 = vdwg.mxu0
    %1477 = vrot.lane.b32.xlu0 %v1305, 120
    %v1478 = vpop.permute.xlu0 %1477
    %1479 = vrot.lane.b32.xlu0 %v1310, 120
    %v1480 = vpop.permute.xlu0 %1479
    %1481 = vrot.lane.b32.xlu0 %v1305, 88
    %v1482 = vpop.permute.xlu0 %1481
    %1483 = vrot.lane.b32.xlu0 %v1310, 88
    %v1484 = vpop.permute.xlu0 %1483
    %v1485 = vsel %vm212, %v1478, 0
    %v1487 = vsel %vm212, %v1480, 0
    %v1489 = vsel %vm212, %v1482, 0
    %v1491 = vsel %vm212, %v1484, 0
    %1493 = vmatprep.subr.mxu0 0.0
    %1494 = vmatpush1.xpose.msra.mxu0 %v1489
    %1495 = vmatprep.subr.mxu0 0.0
    %1496 = vmatpush1.xpose.msra.mxu0 %v1491
    %1497 = vmatprep.subr.mxu0 0.0
    %1498 = vmatpush1.xpose.msra.mxu0 0.0
    %1499 = vmatprep.subr.mxu0 0.0
    %1500 = vmatpush1.xpose.msra.mxu0 0.0
    %1501 = vmatprep.subr.mxu0 0.0
    %1502 = vmatpush1.xpose.msra.mxu0 0.0
    %1503 = vmatprep.subr.mxu0 0.0
    %1504 = vmatpush1.xpose.msra.mxu0 0.0
    %1505 = vmatprep.subr.mxu0 0.0
    %1506 = vmatpush1.xpose.msra.mxu0 0.0
    %1507 = vmatprep.subr.mxu0 0.0
    %1508 = vmatpush1.xpose.msra.mxu0 0.0
    %1509 = vmatprep.subr.mxu0 0.0
    %1510 = vmatpush1.xpose.msra.mxu0 0.0
    %1511 = vmatprep.subr.mxu0 0.0
    %1512 = vmatpush1.xpose.msra.mxu0 0.0
    %1513 = vmatprep.subr.mxu0 0.0
    %1514 = vmatpush1.xpose.msra.mxu0 0.0
    %1515 = vmatprep.subr.mxu0 0.0
    %1516 = vmatpush1.xpose.msra.mxu0 0.0
    %1517 = vmatprep.subr.mxu0 0.0
    %1518 = vmatpush1.xpose.msra.mxu0 0.0
    %1519 = vmatprep.subr.mxu0 0.0
    %1520 = vmatpush1.xpose.msra.mxu0 0.0
    %1521 = vmatprep.subr.mxu0 0.0
    %1522 = vmatpush1.xpose.msra.mxu0 0.0
    %1523 = vmatprep.subr.mxu0 0.0
    %1524 = vmatpush1.xpose.msra.mxu0 0.0
    %1525 = vmatprep.subr.mxu0 0.0
    %1526 = vmatpush1.xpose.msra.mxu0 0.0
    %1527 = vmatprep.subr.mxu0 0.0
    %1528 = vmatpush1.xpose.msra.mxu0 0.0
    %1529 = vmatprep.subr.mxu0 0.0
    %1530 = vmatpush1.xpose.msra.mxu0 0.0
    %1531 = vmatprep.subr.mxu0 0.0
    %1532 = vmatpush1.xpose.msra.mxu0 0.0
    %1533 = vmatprep.subr.mxu0 0.0
    %1534 = vmatpush1.xpose.msra.mxu0 0.0
    %1535 = vmatprep.subr.mxu0 0.0
    %1536 = vmatpush1.xpose.msra.mxu0 0.0
    %1537 = vmatprep.subr.mxu0 0.0
    %1538 = vmatpush1.xpose.msra.mxu0 0.0
    %1539 = vmatprep.subr.mxu0 0.0
    %1540 = vmatpush1.xpose.msra.mxu0 0.0
    %1541 = vmatprep.subr.mxu0 0.0
    %1542 = vmatpush1.xpose.msra.mxu0 0.0
    %1543 = vmatprep.subr.mxu0 0.0
    %1544 = vmatpush1.xpose.msra.mxu0 0.0
    %1545 = vmatprep.subr.mxu0 0.0
    %1546 = vmatpush1.xpose.msra.mxu0 0.0
    %1547 = vmatprep.subr.mxu0 0.0
    %1548 = vmatpush1.xpose.msra.mxu0 0.0
    %1549 = vmatprep.subr.mxu0 0.0
    %1550 = vmatpush1.xpose.msra.mxu0 0.0
    %1551 = vmatprep.subr.mxu0 0.0
    %1552 = vmatpush1.xpose.msra.mxu0 0.0
    %1553 = vmatprep.subr.mxu0 0.0
    %1554 = vmatpush1.xpose.msra.mxu0 0.0
    %1555 = vmatprep.subr.mxu0 0.0
    %1556 = vmatpush1.xpose.msra.mxu0 0.0
    %1557 = vmatprep.mubr.f32.mxu0 0.0
    %1558 = vmatmul.mubr.f32.gmra.mrb[0].mxu0 %v1485
    %v1559 = vpop.f32.mrb[0].mxu0
    %v1560 = vadd.f32 0.0, %v1559
    %v1561 = vpop.f32.mrb[0].mxu0
    %1562 = vmatprep.mubr.f32.mxu0 0.0
    %1563 = vmatmul.mubr.f32.gmra.mrb[0].mxu0 %v1487
    %v1564 = vpop.f32.mrb[0].mxu0
    %v1565 = vadd.f32 0.0, %v1564
    %v1566 = vpop.f32.mrb[0].mxu0
    %1567 = vdwg.mxu0
    %1568 = vrot.lane.b32.xlu0 %v1305, 112
    %v1569 = vpop.permute.xlu0 %1568
    %1570 = vrot.lane.b32.xlu0 %v1310, 112
    %v1571 = vpop.permute.xlu0 %1570
    %1572 = vrot.lane.b32.xlu0 %v1305, 80
    %v1573 = vpop.permute.xlu0 %1572
    %1574 = vrot.lane.b32.xlu0 %v1310, 80
    %v1575 = vpop.permute.xlu0 %1574
    %v1576 = vsel %vm212, %v1569, 0
    %v1578 = vsel %vm212, %v1571, 0
    %v1580 = vsel %vm212, %v1573, 0
    %v1582 = vsel %vm212, %v1575, 0
    %1584 = vmatprep.subr.mxu0 0.0
    %1585 = vmatpush1.xpose.msra.mxu0 %v1580
    %1586 = vmatprep.subr.mxu0 0.0
    %1587 = vmatpush1.xpose.msra.mxu0 %v1582
    %1588 = vmatprep.subr.mxu0 0.0
    %1589 = vmatpush1.xpose.msra.mxu0 0.0
    %1590 = vmatprep.subr.mxu0 0.0
    %1591 = vmatpush1.xpose.msra.mxu0 0.0
    %1592 = vmatprep.subr.mxu0 0.0
    %1593 = vmatpush1.xpose.msra.mxu0 0.0
    %1594 = vmatprep.subr.mxu0 0.0
    %1595 = vmatpush1.xpose.msra.mxu0 0.0
    %1596 = vmatprep.subr.mxu0 0.0
    %1597 = vmatpush1.xpose.msra.mxu0 0.0
    %1598 = vmatprep.subr.mxu0 0.0
    %1599 = vmatpush1.xpose.msra.mxu0 0.0
    %1600 = vmatprep.subr.mxu0 0.0
    %1601 = vmatpush1.xpose.msra.mxu0 0.0
    %1602 = vmatprep.subr.mxu0 0.0
    %1603 = vmatpush1.xpose.msra.mxu0 0.0
    %1604 = vmatprep.subr.mxu0 0.0
    %1605 = vmatpush1.xpose.msra.mxu0 0.0
    %1606 = vmatprep.subr.mxu0 0.0
    %1607 = vmatpush1.xpose.msra.mxu0 0.0
    %1608 = vmatprep.subr.mxu0 0.0
    %1609 = vmatpush1.xpose.msra.mxu0 0.0
    %1610 = vmatprep.subr.mxu0 0.0
    %1611 = vmatpush1.xpose.msra.mxu0 0.0
    %1612 = vmatprep.subr.mxu0 0.0
    %1613 = vmatpush1.xpose.msra.mxu0 0.0
    %1614 = vmatprep.subr.mxu0 0.0
    %1615 = vmatpush1.xpose.msra.mxu0 0.0
    %1616 = vmatprep.subr.mxu0 0.0
    %1617 = vmatpush1.xpose.msra.mxu0 0.0
    %1618 = vmatprep.subr.mxu0 0.0
    %1619 = vmatpush1.xpose.msra.mxu0 0.0
    %1620 = vmatprep.subr.mxu0 0.0
    %1621 = vmatpush1.xpose.msra.mxu0 0.0
    %1622 = vmatprep.subr.mxu0 0.0
    %1623 = vmatpush1.xpose.msra.mxu0 0.0
    %1624 = vmatprep.subr.mxu0 0.0
    %1625 = vmatpush1.xpose.msra.mxu0 0.0
    %1626 = vmatprep.subr.mxu0 0.0
    %1627 = vmatpush1.xpose.msra.mxu0 0.0
    %1628 = vmatprep.subr.mxu0 0.0
    %1629 = vmatpush1.xpose.msra.mxu0 0.0
    %1630 = vmatprep.subr.mxu0 0.0
    %1631 = vmatpush1.xpose.msra.mxu0 0.0
    %1632 = vmatprep.subr.mxu0 0.0
    %1633 = vmatpush1.xpose.msra.mxu0 0.0
    %1634 = vmatprep.subr.mxu0 0.0
    %1635 = vmatpush1.xpose.msra.mxu0 0.0
    %1636 = vmatprep.subr.mxu0 0.0
    %1637 = vmatpush1.xpose.msra.mxu0 0.0
    %1638 = vmatprep.subr.mxu0 0.0
    %1639 = vmatpush1.xpose.msra.mxu0 0.0
    %1640 = vmatprep.subr.mxu0 0.0
    %1641 = vmatpush1.xpose.msra.mxu0 0.0
    %1642 = vmatprep.subr.mxu0 0.0
    %1643 = vmatpush1.xpose.msra.mxu0 0.0
    %1644 = vmatprep.subr.mxu0 0.0
    %1645 = vmatpush1.xpose.msra.mxu0 0.0
    %1646 = vmatprep.subr.mxu0 0.0
    %1647 = vmatpush1.xpose.msra.mxu0 0.0
    %1648 = vmatprep.mubr.f32.mxu0 0.0
    %1649 = vmatmul.mubr.f32.gmra.mrb[0].mxu0 %v1576
    %v1650 = vpop.f32.mrb[0].mxu0
    %v1651 = vadd.f32 0.0, %v1650
    %v1652 = vpop.f32.mrb[0].mxu0
    %1653 = vmatprep.mubr.f32.mxu0 0.0
    %1654 = vmatmul.mubr.f32.gmra.mrb[0].mxu0 %v1578
    %v1655 = vpop.f32.mrb[0].mxu0
    %v1656 = vadd.f32 0.0, %v1655
    %v1657 = vpop.f32.mrb[0].mxu0
    %1658 = vdwg.mxu0
    %1659 = vrot.lane.b32.xlu0 %v1305, 104
    %v1660 = vpop.permute.xlu0 %1659
    %1661 = vrot.lane.b32.xlu0 %v1310, 104
    %v1662 = vpop.permute.xlu0 %1661
    %1663 = vrot.lane.b32.xlu0 %v1305, 72
    %v1664 = vpop.permute.xlu0 %1663
    %1665 = vrot.lane.b32.xlu0 %v1310, 72
    %v1666 = vpop.permute.xlu0 %1665
    %v1667 = vsel %vm212, %v1660, 0
    %v1669 = vsel %vm212, %v1662, 0
    %v1671 = vsel %vm212, %v1664, 0
    %v1673 = vsel %vm212, %v1666, 0
    %1675 = vmatprep.subr.mxu0 0.0
    %1676 = vmatpush1.xpose.msra.mxu0 %v1671
    %1677 = vmatprep.subr.mxu0 0.0
    %1678 = vmatpush1.xpose.msra.mxu0 %v1673
    %1679 = vmatprep.subr.mxu0 0.0
    %1680 = vmatpush1.xpose.msra.mxu0 0.0
    %1681 = vmatprep.subr.mxu0 0.0
    %1682 = vmatpush1.xpose.msra.mxu0 0.0
    %1683 = vmatprep.subr.mxu0 0.0
    %1684 = vmatpush1.xpose.msra.mxu0 0.0
    %1685 = vmatprep.subr.mxu0 0.0
    %1686 = vmatpush1.xpose.msra.mxu0 0.0
    %1687 = vmatprep.subr.mxu0 0.0
    %1688 = vmatpush1.xpose.msra.mxu0 0.0
    %1689 = vmatprep.subr.mxu0 0.0
    %1690 = vmatpush1.xpose.msra.mxu0 0.0
    %1691 = vmatprep.subr.mxu0 0.0
    %1692 = vmatpush1.xpose.msra.mxu0 0.0
    %1693 = vmatprep.subr.mxu0 0.0
    %1694 = vmatpush1.xpose.msra.mxu0 0.0
    %1695 = vmatprep.subr.mxu0 0.0
    %1696 = vmatpush1.xpose.msra.mxu0 0.0
    %1697 = vmatprep.subr.mxu0 0.0
    %1698 = vmatpush1.xpose.msra.mxu0 0.0
    %1699 = vmatprep.subr.mxu0 0.0
    %1700 = vmatpush1.xpose.msra.mxu0 0.0
    %1701 = vmatprep.subr.mxu0 0.0
    %1702 = vmatpush1.xpose.msra.mxu0 0.0
    %1703 = vmatprep.subr.mxu0 0.0
    %1704 = vmatpush1.xpose.msra.mxu0 0.0
    %1705 = vmatprep.subr.mxu0 0.0
    %1706 = vmatpush1.xpose.msra.mxu0 0.0
    %1707 = vmatprep.subr.mxu0 0.0
    %1708 = vmatpush1.xpose.msra.mxu0 0.0
    %1709 = vmatprep.subr.mxu0 0.0
    %1710 = vmatpush1.xpose.msra.mxu0 0.0
    %1711 = vmatprep.subr.mxu0 0.0
    %1712 = vmatpush1.xpose.msra.mxu0 0.0
    %1713 = vmatprep.subr.mxu0 0.0
    %1714 = vmatpush1.xpose.msra.mxu0 0.0
    %1715 = vmatprep.subr.mxu0 0.0
    %1716 = vmatpush1.xpose.msra.mxu0 0.0
    %1717 = vmatprep.subr.mxu0 0.0
    %1718 = vmatpush1.xpose.msra.mxu0 0.0
    %1719 = vmatprep.subr.mxu0 0.0
    %1720 = vmatpush1.xpose.msra.mxu0 0.0
    %1721 = vmatprep.subr.mxu0 0.0
    %1722 = vmatpush1.xpose.msra.mxu0 0.0
    %1723 = vmatprep.subr.mxu0 0.0
    %1724 = vmatpush1.xpose.msra.mxu0 0.0
    %1725 = vmatprep.subr.mxu0 0.0
    %1726 = vmatpush1.xpose.msra.mxu0 0.0
    %1727 = vmatprep.subr.mxu0 0.0
    %1728 = vmatpush1.xpose.msra.mxu0 0.0
    %1729 = vmatprep.subr.mxu0 0.0
    %1730 = vmatpush1.xpose.msra.mxu0 0.0
    %1731 = vmatprep.subr.mxu0 0.0
    %1732 = vmatpush1.xpose.msra.mxu0 0.0
    %1733 = vmatprep.subr.mxu0 0.0
    %1734 = vmatpush1.xpose.msra.mxu0 0.0
    %1735 = vmatprep.subr.mxu0 0.0
    %1736 = vmatpush1.xpose.msra.mxu0 0.0
    %1737 = vmatprep.subr.mxu0 0.0
    %1738 = vmatpush1.xpose.msra.mxu0 0.0
    %1739 = vmatprep.mubr.f32.mxu0 0.0
    %1740 = vmatmul.mubr.f32.gmra.mrb[0].mxu0 %v1667
    %v1741 = vpop.f32.mrb[0].mxu0
    %v1742 = vadd.f32 0.0, %v1741
    %v1743 = vpop.f32.mrb[0].mxu0
    %1744 = vmatprep.mubr.f32.mxu0 0.0
    %1745 = vmatmul.mubr.f32.gmra.mrb[0].mxu0 %v1669
    %v1746 = vpop.f32.mrb[0].mxu0
    %v1747 = vadd.f32 0.0, %v1746
    %v1748 = vpop.f32.mrb[0].mxu0
    %1749 = vdwg.mxu0
    %1752 = vrot.lane.b32.xlu0 %v1560, 16
    %v1753 = vpop.permute.xlu0 %1752
    %1754 = vrot.lane.b32.xlu0 %v1565, 16
    %v1755 = vpop.permute.xlu0 %1754
    %1760 = vrot.lane.b32.xlu0 %v1651, 32
    %v1761 = vpop.permute.xlu0 %1760
    %1762 = vrot.lane.b32.xlu0 %v1656, 32
    %v1763 = vpop.permute.xlu0 %1762
    %1768 = vrot.lane.b32.xlu0 %v1742, 48
    %v1769 = vpop.permute.xlu0 %1768
    %1770 = vrot.lane.b32.xlu0 %v1747, 48
    %v1771 = vpop.permute.xlu0 %1770
    %v1774 = vsel %vm593, %v1469, %v1753
    %v1775 = vsel %vm593, %v1474, %v1755
    %v1776 = vsel %vm49, %v1774, %v1761
    %v1777 = vsel %vm49, %v1775, %v1763
    %v1778 = vsel %vm598, %v1776, %v1769
    %v1779 = vsel %vm598, %v1777, %v1771
    %v1780 = vadd.f32 %v1778, %v33
    %v1781 = vadd.f32 %v1779, %v34
    %v1782 = vsel %vm603, %v1780, -inf
    %v1783 = vsel %vm603, %v1781, -inf
    %v1784 = vmax.f32 %v1782, %v1783
    %v1785 = vrot.slane %v1784, 4
    %v1786 = vmax.f32 %v1784, %v1785
    %v1787 = vrot.slane %v1786, 2
    %v1788 = vmax.f32 %v1786, %v1787
    %v1789 = vrot.slane %v1788, 1
    %v1790 = vmax.f32 %v1788, %v1789
    %v1791 = vsub.f32 %v1780, %v1790
    %v1792 = vsub.f32 %v1781, %v1790
    %v1793 = vmul.f32 %v1791, 1.442695
    %v1794 = vpow.pop %v1793
    %v1795 = vmul.f32 %v1792, 1.442695
    %v1796 = vpow.pop %v1795
    %v1797 = vsel %vm603, %v1794, 0.0
    %v1798 = vsel %vm603, %v1796, 0.0
    %v1799 = vadd.f32 %v1797, %v1798
    %v1800 = vrot.slane %v1799, 4
    %v1801 = vadd.f32 %v1799, %v1800
    %v1802 = vrot.slane %v1801, 2
    %v1803 = vadd.f32 %v1801, %v1802
    %v1804 = vrot.slane %v1803, 1
    %v1805 = vadd.f32 %v1803, %v1804
    %v1806 = vrcp.pop %v1805
    %v1807 = vmul.f32 %v1794, %v1806
    %v1808 = vmul.f32 %v1796, %v1806
    %1811 = vrot.lane.b32.xlu0 %v1807, 112
    %v1812 = vpop.permute.xlu0 %1811
    %1813 = vrot.lane.b32.xlu0 %v1808, 112
    %v1814 = vpop.permute.xlu0 %1813
    %1817 = vrot.lane.b32.xlu0 %v1380, 96
    %v1818 = vpop.permute.xlu0 %1817
    %1819 = vrot.lane.b32.xlu0 %v1385, 96
    %v1820 = vpop.permute.xlu0 %1819
    %v1823 = vsel %vm593, %v1812, 0
    %v1825 = vsel %vm593, %v1814, 0
    %1827 = vmatprep.subr.mxu0 0.0
    %1828 = vmatpush1.msra.mxu0 %v1818
    %1829 = vmatprep.subr.mxu0 0.0
    %1830 = vmatpush1.msra.mxu0 %v1820
    %1831 = vmatprep.subr.mxu0 0.0
    %1832 = vmatpush1.msra.mxu0 0.0
    %1833 = vmatprep.subr.mxu0 0.0
    %1834 = vmatpush1.msra.mxu0 0.0
    %1835 = vmatprep.subr.mxu0 0.0
    %1836 = vmatpush1.msra.mxu0 0.0
    %1837 = vmatprep.subr.mxu0 0.0
    %1838 = vmatpush1.msra.mxu0 0.0
    %1839 = vmatprep.subr.mxu0 0.0
    %1840 = vmatpush1.msra.mxu0 0.0
    %1841 = vmatprep.subr.mxu0 0.0
    %1842 = vmatpush1.msra.mxu0 0.0
    %1843 = vmatprep.subr.mxu0 0.0
    %1844 = vmatpush1.msra.mxu0 0.0
    %1845 = vmatprep.subr.mxu0 0.0
    %1846 = vmatpush1.msra.mxu0 0.0
    %1847 = vmatprep.subr.mxu0 0.0
    %1848 = vmatpush1.msra.mxu0 0.0
    %1849 = vmatprep.subr.mxu0 0.0
    %1850 = vmatpush1.msra.mxu0 0.0
    %1851 = vmatprep.subr.mxu0 0.0
    %1852 = vmatpush1.msra.mxu0 0.0
    %1853 = vmatprep.subr.mxu0 0.0
    %1854 = vmatpush1.msra.mxu0 0.0
    %1855 = vmatprep.subr.mxu0 0.0
    %1856 = vmatpush1.msra.mxu0 0.0
    %1857 = vmatprep.subr.mxu0 0.0
    %1858 = vmatpush1.msra.mxu0 0.0
    %1859 = vmatprep.subr.mxu0 0.0
    %1860 = vmatpush1.msra.mxu0 0.0
    %1861 = vmatprep.subr.mxu0 0.0
    %1862 = vmatpush1.msra.mxu0 0.0
    %1863 = vmatprep.subr.mxu0 0.0
    %1864 = vmatpush1.msra.mxu0 0.0
    %1865 = vmatprep.subr.mxu0 0.0
    %1866 = vmatpush1.msra.mxu0 0.0
    %1867 = vmatprep.subr.mxu0 0.0
    %1868 = vmatpush1.msra.mxu0 0.0
    %1869 = vmatprep.subr.mxu0 0.0
    %1870 = vmatpush1.msra.mxu0 0.0
    %1871 = vmatprep.subr.mxu0 0.0
    %1872 = vmatpush1.msra.mxu0 0.0
    %1873 = vmatprep.subr.mxu0 0.0
    %1874 = vmatpush1.msra.mxu0 0.0
    %1875 = vmatprep.subr.mxu0 0.0
    %1876 = vmatpush1.msra.mxu0 0.0
    %1877 = vmatprep.subr.mxu0 0.0
    %1878 = vmatpush1.msra.mxu0 0.0
    %1879 = vmatprep.subr.mxu0 0.0
    %1880 = vmatpush1.msra.mxu0 0.0
    %1881 = vmatprep.subr.mxu0 0.0
    %1882 = vmatpush1.msra.mxu0 0.0
    %1883 = vmatprep.subr.mxu0 0.0
    %1884 = vmatpush1.msra.mxu0 0.0
    %1885 = vmatprep.subr.mxu0 0.0
    %1886 = vmatpush1.msra.mxu0 0.0
    %1887 = vmatprep.subr.mxu0 0.0
    %1888 = vmatpush1.msra.mxu0 0.0
    %1889 = vmatprep.subr.mxu0 0.0
    %1890 = vmatpush1.msra.mxu0 0.0
    %1891 = vmatprep.mubr.f32.mxu0 0.0
    %1892 = vmatmul.mubr.f32.gmra.mrb[0].mxu0 %v1823
    %v1893 = vpop.f32.mrb[0].mxu0
    %v1894 = vadd.f32 0.0, %v1893
    %v1895 = vpop.f32.mrb[0].mxu0
    %1896 = vmatprep.mubr.f32.mxu0 0.0
    %1897 = vmatmul.mubr.f32.gmra.mrb[0].mxu0 %v1825
    %v1898 = vpop.f32.mrb[0].mxu0
    %v1899 = vadd.f32 0.0, %v1898
    %v1900 = vpop.f32.mrb[0].mxu0
    %1901 = vdwg.mxu0
    %v1902 = vsel %vm593, %v1807, 0
    %v1904 = vsel %vm593, %v1808, 0
    %1906 = vmatprep.subr.mxu0 0.0
    %1907 = vmatpush1.msra.mxu0 %v1380
    %1908 = vmatprep.subr.mxu0 0.0
    %1909 = vmatpush1.msra.mxu0 %v1385
    %1910 = vmatprep.subr.mxu0 0.0
    %1911 = vmatpush1.msra.mxu0 0.0
    %1912 = vmatprep.subr.mxu0 0.0
    %1913 = vmatpush1.msra.mxu0 0.0
    %1914 = vmatprep.subr.mxu0 0.0
    %1915 = vmatpush1.msra.mxu0 0.0
    %1916 = vmatprep.subr.mxu0 0.0
    %1917 = vmatpush1.msra.mxu0 0.0
    %1918 = vmatprep.subr.mxu0 0.0
    %1919 = vmatpush1.msra.mxu0 0.0
    %1920 = vmatprep.subr.mxu0 0.0
    %1921 = vmatpush1.msra.mxu0 0.0
    %1922 = vmatprep.subr.mxu0 0.0
    %1923 = vmatpush1.msra.mxu0 0.0
    %1924 = vmatprep.subr.mxu0 0.0
    %1925 = vmatpush1.msra.mxu0 0.0
    %1926 = vmatprep.subr.mxu0 0.0
    %1927 = vmatpush1.msra.mxu0 0.0
    %1928 = vmatprep.subr.mxu0 0.0
    %1929 = vmatpush1.msra.mxu0 0.0
    %1930 = vmatprep.subr.mxu0 0.0
    %1931 = vmatpush1.msra.mxu0 0.0
    %1932 = vmatprep.subr.mxu0 0.0
    %1933 = vmatpush1.msra.mxu0 0.0
    %1934 = vmatprep.subr.mxu0 0.0
    %1935 = vmatpush1.msra.mxu0 0.0
    %1936 = vmatprep.subr.mxu0 0.0
    %1937 = vmatpush1.msra.mxu0 0.0
    %1938 = vmatprep.subr.mxu0 0.0
    %1939 = vmatpush1.msra.mxu0 0.0
    %1940 = vmatprep.subr.mxu0 0.0
    %1941 = vmatpush1.msra.mxu0 0.0
    %1942 = vmatprep.subr.mxu0 0.0
    %1943 = vmatpush1.msra.mxu0 0.0
    %1944 = vmatprep.subr.mxu0 0.0
    %1945 = vmatpush1.msra.mxu0 0.0
    %1946 = vmatprep.subr.mxu0 0.0
    %1947 = vmatpush1.msra.mxu0 0.0
    %1948 = vmatprep.subr.mxu0 0.0
    %1949 = vmatpush1.msra.mxu0 0.0
    %1950 = vmatprep.subr.mxu0 0.0
    %1951 = vmatpush1.msra.mxu0 0.0
    %1952 = vmatprep.subr.mxu0 0.0
    %1953 = vmatpush1.msra.mxu0 0.0
    %1954 = vmatprep.subr.mxu0 0.0
    %1955 = vmatpush1.msra.mxu0 0.0
    %1956 = vmatprep.subr.mxu0 0.0
    %1957 = vmatpush1.msra.mxu0 0.0
    %1958 = vmatprep.subr.mxu0 0.0
    %1959 = vmatpush1.msra.mxu0 0.0
    %1960 = vmatprep.subr.mxu0 0.0
    %1961 = vmatpush1.msra.mxu0 0.0
    %1962 = vmatprep.subr.mxu0 0.0
    %1963 = vmatpush1.msra.mxu0 0.0
    %1964 = vmatprep.subr.mxu0 0.0
    %1965 = vmatpush1.msra.mxu0 0.0
    %1966 = vmatprep.subr.mxu0 0.0
    %1967 = vmatpush1.msra.mxu0 0.0
    %1968 = vmatprep.subr.mxu0 0.0
    %1969 = vmatpush1.msra.mxu0 0.0
    %1970 = vmatprep.mubr.f32.mxu0 0.0
    %1971 = vmatmul.mubr.f32.gmra.mrb[0].mxu0 %v1902
    %v1972 = vpop.f32.mrb[0].mxu0
    %v1973 = vadd.f32 %v1894, %v1972
    %v1974 = vpop.f32.mrb[0].mxu0
    %1975 = vmatprep.mubr.f32.mxu0 0.0
    %1976 = vmatmul.mubr.f32.gmra.mrb[0].mxu0 %v1904
    %v1977 = vpop.f32.mrb[0].mxu0
    %v1978 = vadd.f32 %v1899, %v1977
    %v1979 = vpop.f32.mrb[0].mxu0
    %1980 = vdwg.mxu0
    %1981 = vrot.lane.b32.xlu0 %v1807, 96
    %v1982 = vpop.permute.xlu0 %1981
    %1983 = vrot.lane.b32.xlu0 %v1808, 96
    %v1984 = vpop.permute.xlu0 %1983
    %1985 = vrot.lane.b32.xlu0 %v1380, 64
    %v1986 = vpop.permute.xlu0 %1985
    %1987 = vrot.lane.b32.xlu0 %v1385, 64
    %v1988 = vpop.permute.xlu0 %1987
    %v1991 = vsel %vm593, %v1982, 0
    %v1993 = vsel %vm593, %v1984, 0
    %1995 = vmatprep.subr.mxu0 0.0
    %1996 = vmatpush1.msra.mxu0 %v1986
    %1997 = vmatprep.subr.mxu0 0.0
    %1998 = vmatpush1.msra.mxu0 %v1988
    %1999 = vmatprep.subr.mxu0 0.0
    %2000 = vmatpush1.msra.mxu0 0.0
    %2001 = vmatprep.subr.mxu0 0.0
    %2002 = vmatpush1.msra.mxu0 0.0
    %2003 = vmatprep.subr.mxu0 0.0
    %2004 = vmatpush1.msra.mxu0 0.0
    %2005 = vmatprep.subr.mxu0 0.0
    %2006 = vmatpush1.msra.mxu0 0.0
    %2007 = vmatprep.subr.mxu0 0.0
    %2008 = vmatpush1.msra.mxu0 0.0
    %2009 = vmatprep.subr.mxu0 0.0
    %2010 = vmatpush1.msra.mxu0 0.0
    %2011 = vmatprep.subr.mxu0 0.0
    %2012 = vmatpush1.msra.mxu0 0.0
    %2013 = vmatprep.subr.mxu0 0.0
    %2014 = vmatpush1.msra.mxu0 0.0
    %2015 = vmatprep.subr.mxu0 0.0
    %2016 = vmatpush1.msra.mxu0 0.0
    %2017 = vmatprep.subr.mxu0 0.0
    %2018 = vmatpush1.msra.mxu0 0.0
    %2019 = vmatprep.subr.mxu0 0.0
    %2020 = vmatpush1.msra.mxu0 0.0
    %2021 = vmatprep.subr.mxu0 0.0
    %2022 = vmatpush1.msra.mxu0 0.0
    %2023 = vmatprep.subr.mxu0 0.0
    %2024 = vmatpush1.msra.mxu0 0.0
    %2025 = vmatprep.subr.mxu0 0.0
    %2026 = vmatpush1.msra.mxu0 0.0
    %2027 = vmatprep.subr.mxu0 0.0
    %2028 = vmatpush1.msra.mxu0 0.0
    %2029 = vmatprep.subr.mxu0 0.0
    %2030 = vmatpush1.msra.mxu0 0.0
    %2031 = vmatprep.subr.mxu0 0.0
    %2032 = vmatpush1.msra.mxu0 0.0
    %2033 = vmatprep.subr.mxu0 0.0
    %2034 = vmatpush1.msra.mxu0 0.0
    %2035 = vmatprep.subr.mxu0 0.0
    %2036 = vmatpush1.msra.mxu0 0.0
    %2037 = vmatprep.subr.mxu0 0.0
    %2038 = vmatpush1.msra.mxu0 0.0
    %2039 = vmatprep.subr.mxu0 0.0
    %2040 = vmatpush1.msra.mxu0 0.0
    %2041 = vmatprep.subr.mxu0 0.0
    %2042 = vmatpush1.msra.mxu0 0.0
    %2043 = vmatprep.subr.mxu0 0.0
    %2044 = vmatpush1.msra.mxu0 0.0
    %2045 = vmatprep.subr.mxu0 0.0
    %2046 = vmatpush1.msra.mxu0 0.0
    %2047 = vmatprep.subr.mxu0 0.0
    %2048 = vmatpush1.msra.mxu0 0.0
    %2049 = vmatprep.subr.mxu0 0.0
    %2050 = vmatpush1.msra.mxu0 0.0
    %2051 = vmatprep.subr.mxu0 0.0
    %2052 = vmatpush1.msra.mxu0 0.0
    %2053 = vmatprep.subr.mxu0 0.0
    %2054 = vmatpush1.msra.mxu0 0.0
    %2055 = vmatprep.subr.mxu0 0.0
    %2056 = vmatpush1.msra.mxu0 0.0
    %2057 = vmatprep.subr.mxu0 0.0
    %2058 = vmatpush1.msra.mxu0 0.0
    %2059 = vmatprep.mubr.f32.mxu0 0.0
    %2060 = vmatmul.mubr.f32.gmra.mrb[0].mxu0 %v1991
    %v2061 = vpop.f32.mrb[0].mxu0
    %v2062 = vadd.f32 0.0, %v2061
    %v2063 = vpop.f32.mrb[0].mxu0
    %2064 = vmatprep.mubr.f32.mxu0 0.0
    %2065 = vmatmul.mubr.f32.gmra.mrb[0].mxu0 %v1993
    %v2066 = vpop.f32.mrb[0].mxu0
    %v2067 = vadd.f32 0.0, %v2066
    %v2068 = vpop.f32.mrb[0].mxu0
    %2069 = vdwg.mxu0
    %v2070 = vadd.f32 %v1973, %v2062
    %v2071 = vadd.f32 %v1978, %v2067
    %2072 = vrot.lane.b32.xlu0 %v1807, 80
    %v2073 = vpop.permute.xlu0 %2072
    %2074 = vrot.lane.b32.xlu0 %v1808, 80
    %v2075 = vpop.permute.xlu0 %2074
    %2076 = vrot.lane.b32.xlu0 %v1380, 32
    %v2077 = vpop.permute.xlu0 %2076
    %2078 = vrot.lane.b32.xlu0 %v1385, 32
    %v2079 = vpop.permute.xlu0 %2078
    %v2082 = vsel %vm593, %v2073, 0
    %v2084 = vsel %vm593, %v2075, 0
    %2086 = vmatprep.subr.mxu0 0.0
    %2087 = vmatpush1.msra.mxu0 %v2077
    %2088 = vmatprep.subr.mxu0 0.0
    %2089 = vmatpush1.msra.mxu0 %v2079
    %2090 = vmatprep.subr.mxu0 0.0
    %2091 = vmatpush1.msra.mxu0 0.0
    %2092 = vmatprep.subr.mxu0 0.0
    %2093 = vmatpush1.msra.mxu0 0.0
    %2094 = vmatprep.subr.mxu0 0.0
    %2095 = vmatpush1.msra.mxu0 0.0
    %2096 = vmatprep.subr.mxu0 0.0
    %2097 = vmatpush1.msra.mxu0 0.0
    %2098 = vmatprep.subr.mxu0 0.0
    %2099 = vmatpush1.msra.mxu0 0.0
    %2100 = vmatprep.subr.mxu0 0.0
    %2101 = vmatpush1.msra.mxu0 0.0
    %2102 = vmatprep.subr.mxu0 0.0
    %2103 = vmatpush1.msra.mxu0 0.0
    %2104 = vmatprep.subr.mxu0 0.0
    %2105 = vmatpush1.msra.mxu0 0.0
    %2106 = vmatprep.subr.mxu0 0.0
    %2107 = vmatpush1.msra.mxu0 0.0
    %2108 = vmatprep.subr.mxu0 0.0
    %2109 = vmatpush1.msra.mxu0 0.0
    %2110 = vmatprep.subr.mxu0 0.0
    %2111 = vmatpush1.msra.mxu0 0.0
    %2112 = vmatprep.subr.mxu0 0.0
    %2113 = vmatpush1.msra.mxu0 0.0
    %2114 = vmatprep.subr.mxu0 0.0
    %2115 = vmatpush1.msra.mxu0 0.0
    %2116 = vmatprep.subr.mxu0 0.0
    %2117 = vmatpush1.msra.mxu0 0.0
    %2118 = vmatprep.subr.mxu0 0.0
    %2119 = vmatpush1.msra.mxu0 0.0
    %2120 = vmatprep.subr.mxu0 0.0
    %2121 = vmatpush1.msra.mxu0 0.0
    %2122 = vmatprep.subr.mxu0 0.0
    %2123 = vmatpush1.msra.mxu0 0.0
    %2124 = vmatprep.subr.mxu0 0.0
    %2125 = vmatpush1.msra.mxu0 0.0
    %2126 = vmatprep.subr.mxu0 0.0
    %2127 = vmatpush1.msra.mxu0 0.0
    %2128 = vmatprep.subr.mxu0 0.0
    %2129 = vmatpush1.msra.mxu0 0.0
    %2130 = vmatprep.subr.mxu0 0.0
    %2131 = vmatpush1.msra.mxu0 0.0
    %2132 = vmatprep.subr.mxu0 0.0
    %2133 = vmatpush1.msra.mxu0 0.0
    %2134 = vmatprep.subr.mxu0 0.0
    %2135 = vmatpush1.msra.mxu0 0.0
    %2136 = vmatprep.subr.mxu0 0.0
    %2137 = vmatpush1.msra.mxu0 0.0
    %2138 = vmatprep.subr.mxu0 0.0
    %2139 = vmatpush1.msra.mxu0 0.0
    %2140 = vmatprep.subr.mxu0 0.0
    %2141 = vmatpush1.msra.mxu0 0.0
    %2142 = vmatprep.subr.mxu0 0.0
    %2143 = vmatpush1.msra.mxu0 0.0
    %2144 = vmatprep.subr.mxu0 0.0
    %2145 = vmatpush1.msra.mxu0 0.0
    %2146 = vmatprep.subr.mxu0 0.0
    %2147 = vmatpush1.msra.mxu0 0.0
    %2148 = vmatprep.subr.mxu0 0.0
    %2149 = vmatpush1.msra.mxu0 0.0
    %2150 = vmatprep.mubr.f32.mxu0 0.0
    %2151 = vmatmul.mubr.f32.gmra.mrb[0].mxu0 %v2082
    %v2152 = vpop.f32.mrb[0].mxu0
    %v2153 = vadd.f32 0.0, %v2152
    %v2154 = vpop.f32.mrb[0].mxu0
    %2155 = vmatprep.mubr.f32.mxu0 0.0
    %2156 = vmatmul.mubr.f32.gmra.mrb[0].mxu0 %v2084
    %v2157 = vpop.f32.mrb[0].mxu0
    %v2158 = vadd.f32 0.0, %v2157
    %v2159 = vpop.f32.mrb[0].mxu0
    %2160 = vdwg.mxu0
    %v2161 = vadd.f32 %v2070, %v2153
    %v2162 = vadd.f32 %v2071, %v2158
    %v2163 = vadd.f32 %v2161, %v1222
    %v2164 = vadd.f32 %v2162, %v1223
    %v2165 = vsel %vm49, %v2163, 0.0
    %2166 = vadd.xlane.f32.xlu0 %v2165
    %v2167 = vpop.xlane.xlu0 %2166
    %v2168 = vsel %vm49, %v2164, 0.0
    %2169 = vadd.xlane.f32.xlu0 %v2168
    %v2170 = vpop.xlane.xlu0 %2169
    %v2171 = vmul.f32 %v2167, %v993
    %v2172 = vmul.f32 %v2170, %v993
    %v2173 = vsub.f32 %v2163, %v2171
    %v2174 = vsub.f32 %v2164, %v2172
    %v2175 = vmul.f32 %v2173, %v2173
    %v2176 = vmul.f32 %v2174, %v2174
    %v2177 = vsel %vm49, %v2175, 0.0
    %2178 = vadd.xlane.f32.xlu0 %v2177
    %v2179 = vpop.xlane.xlu0 %2178
    %v2180 = vsel %vm49, %v2176, 0.0
    %2181 = vadd.xlane.f32.xlu0 %v2180
    %v2182 = vpop.xlane.xlu0 %2181
    %v2183 = vmul.f32 %v2179, 0.032258064
    %v2184 = vmul.f32 %v2182, 0.032258064
    %v2185 = vrsqrt.pop %v2183
    %v2186 = vrsqrt.pop %v2184
    %v2187 = vmul.f32 %v2173, %v2185
    %v2188 = vmul.f32 %v2174, %v2186
    %v2189 = vld [vmem:[#allocation2 + $0xf0] sm:$0xff]
    %v2190 = vld [vmem:[#allocation2 + $0xf8] sm:$0xff]
    %v2191 = vld [vmem:[#allocation2 + $0x100] sm:$0xff]
    %v2192 = vld [vmem:[#allocation2 + $0x108] sm:$0xff]
    %v2193 = vld [vmem:[#allocation2 + $0x110] sm:$0x1]
    %v2194 = vld [vmem:[#allocation2 + $0x118] sm:$0xff]
    %v2195 = vld [vmem:[#allocation2 + $0x120] sm:$0xff]
    %v2196 = vld [vmem:[#allocation2 + $0x128] sm:$0xff]
    %v2197 = vld [vmem:[#allocation2 + $0x130] sm:$0xff]
    %v2198 = vld [vmem:[#allocation2 + $0x138] sm:$0xff]
    %v2199 = vld [vmem:[#allocation2 + $0x140] sm:$0xff]
    %v2200 = vld [vmem:[#allocation2 + $0x148] sm:$0xff]
    %v2201 = vld [vmem:[#allocation2 + $0x150] sm:$0xff]
    %v2202 = vld [vmem:[#allocation2 + $0x158] sm:$0x1]
    %v2203 = vlaneseq
    %v2204 = vshrl.u32 %v2203, 7
    %v2205 = vsub.s32 0, %v2204
    %v2206 = vrot.slane %v2193, %v2205
    %v2208 = vsel %vm49, %v2187, 0
    %v2211 = vsel %vm49, %v2188, 0
    %2213 = vmatprep.subr.mxu0 0.0
    %2214 = vmatpush1.msra.mxu0 %v2189
    %2215 = vmatprep.subr.mxu0 0.0
    %2216 = vmatpush1.msra.mxu0 %v2190
    %2217 = vmatprep.subr.mxu0 0.0
    %2218 = vmatpush1.msra.mxu0 %v2191
    %2219 = vmatprep.subr.mxu0 0.0
    %2220 = vmatpush1.msra.mxu0 %v2192
    %2221 = vmatprep.subr.mxu0 0.0
    %2222 = vmatpush1.msra.mxu0 0.0
    %2223 = vmatprep.subr.mxu0 0.0
    %2224 = vmatpush1.msra.mxu0 0.0
    %2225 = vmatprep.subr.mxu0 0.0
    %2226 = vmatpush1.msra.mxu0 0.0
    %2227 = vmatprep.subr.mxu0 0.0
    %2228 = vmatpush1.msra.mxu0 0.0
    %2229 = vmatprep.subr.mxu0 0.0
    %2230 = vmatpush1.msra.mxu0 0.0
    %2231 = vmatprep.subr.mxu0 0.0
    %2232 = vmatpush1.msra.mxu0 0.0
    %2233 = vmatprep.subr.mxu0 0.0
    %2234 = vmatpush1.msra.mxu0 0.0
    %2235 = vmatprep.subr.mxu0 0.0
    %2236 = vmatpush1.msra.mxu0 0.0
    %2237 = vmatprep.subr.mxu0 0.0
    %2238 = vmatpush1.msra.mxu0 0.0
    %2239 = vmatprep.subr.mxu0 0.0
    %2240 = vmatpush1.msra.mxu0 0.0
    %2241 = vmatprep.subr.mxu0 0.0
    %2242 = vmatpush1.msra.mxu0 0.0
    %2243 = vmatprep.subr.mxu0 0.0
    %2244 = vmatpush1.msra.mxu0 0.0
    %2245 = vmatprep.subr.mxu0 0.0
    %2246 = vmatpush1.msra.mxu0 0.0
    %2247 = vmatprep.subr.mxu0 0.0
    %2248 = vmatpush1.msra.mxu0 0.0
    %2249 = vmatprep.subr.mxu0 0.0
    %2250 = vmatpush1.msra.mxu0 0.0
    %2251 = vmatprep.subr.mxu0 0.0
    %2252 = vmatpush1.msra.mxu0 0.0
    %2253 = vmatprep.subr.mxu0 0.0
    %2254 = vmatpush1.msra.mxu0 0.0
    %2255 = vmatprep.subr.mxu0 0.0
    %2256 = vmatpush1.msra.mxu0 0.0
    %2257 = vmatprep.subr.mxu0 0.0
    %2258 = vmatpush1.msra.mxu0 0.0
    %2259 = vmatprep.subr.mxu0 0.0
    %2260 = vmatpush1.msra.mxu0 0.0
    %2261 = vmatprep.subr.mxu0 0.0
    %2262 = vmatpush1.msra.mxu0 0.0
    %2263 = vmatprep.subr.mxu0 0.0
    %2264 = vmatpush1.msra.mxu0 0.0
    %2265 = vmatprep.subr.mxu0 0.0
    %2266 = vmatpush1.msra.mxu0 0.0
    %2267 = vmatprep.subr.mxu0 0.0
    %2268 = vmatpush1.msra.mxu0 0.0
    %2269 = vmatprep.subr.mxu0 0.0
    %2270 = vmatpush1.msra.mxu0 0.0
    %2271 = vmatprep.subr.mxu0 0.0
    %2272 = vmatpush1.msra.mxu0 0.0
    %2273 = vmatprep.subr.mxu0 0.0
    %2274 = vmatpush1.msra.mxu0 0.0
    %2275 = vmatprep.subr.mxu0 0.0
    %2276 = vmatpush1.msra.mxu0 0.0
    %2277 = vmatprep.mubr.f32.mxu0 0.0
    %2278 = vmatmul.mubr.f32.gmra.mrb[0].mxu0 %v2208
    %v2279 = vpop.f32.mrb[0].mxu0
    %v2280 = vadd.f32 %v2206, %v2279
    %v2281 = vpop.f32.mrb[0].mxu0
    %2282 = vmatprep.mubr.f32.mxu0 0.0
    %2283 = vmatmul.mubr.f32.gmra.mrb[0].mxu0 %v2211
    %v2284 = vpop.f32.mrb[0].mxu0
    %v2285 = vadd.f32 %v2206, %v2284
    %v2286 = vpop.f32.mrb[0].mxu0
    %2287 = vdwg.mxu0
    %v2288 = vmax.f32 %v2280, 0.0
    %v2289 = vmax.f32 %v2285, 0.0
    %v2290 = vlaneseq
    %v2291 = vshrl.u32 %v2290, 7
    %v2292 = vsub.s32 0, %v2291
    %v2293 = vrot.slane %v2202, %v2292
    %v2295 = vsel %vm603, %v2288, 0
    %v2298 = vsel %vm603, %v2289, 0
    %2300 = vmatprep.subr.mxu0 0.0
    %2301 = vmatpush1.msra.mxu0 %v2194
    %2302 = vmatprep.subr.mxu0 0.0
    %2303 = vmatpush1.msra.mxu0 %v2195
    %2304 = vmatprep.subr.mxu0 0.0
    %2305 = vmatpush1.msra.mxu0 %v2196
    %2306 = vmatprep.subr.mxu0 0.0
    %2307 = vmatpush1.msra.mxu0 %v2197
    %2308 = vmatprep.subr.mxu0 0.0
    %2309 = vmatpush1.msra.mxu0 %v2198
    %2310 = vmatprep.subr.mxu0 0.0
    %2311 = vmatpush1.msra.mxu0 %v2199
    %2312 = vmatprep.subr.mxu0 0.0
    %2313 = vmatpush1.msra.mxu0 %v2200
    %2314 = vmatprep.subr.mxu0 0.0
    %2315 = vmatpush1.msra.mxu0 %v2201
    %2316 = vmatprep.subr.mxu0 0.0
    %2317 = vmatpush1.msra.mxu0 0.0
    %2318 = vmatprep.subr.mxu0 0.0
    %2319 = vmatpush1.msra.mxu0 0.0
    %2320 = vmatprep.subr.mxu0 0.0
    %2321 = vmatpush1.msra.mxu0 0.0
    %2322 = vmatprep.subr.mxu0 0.0
    %2323 = vmatpush1.msra.mxu0 0.0
    %2324 = vmatprep.subr.mxu0 0.0
    %2325 = vmatpush1.msra.mxu0 0.0
    %2326 = vmatprep.subr.mxu0 0.0
    %2327 = vmatpush1.msra.mxu0 0.0
    %2328 = vmatprep.subr.mxu0 0.0
    %2329 = vmatpush1.msra.mxu0 0.0
    %2330 = vmatprep.subr.mxu0 0.0
    %2331 = vmatpush1.msra.mxu0 0.0
    %2332 = vmatprep.subr.mxu0 0.0
    %2333 = vmatpush1.msra.mxu0 0.0
    %2334 = vmatprep.subr.mxu0 0.0
    %2335 = vmatpush1.msra.mxu0 0.0
    %2336 = vmatprep.subr.mxu0 0.0
    %2337 = vmatpush1.msra.mxu0 0.0
    %2338 = vmatprep.subr.mxu0 0.0
    %2339 = vmatpush1.msra.mxu0 0.0
    %2340 = vmatprep.subr.mxu0 0.0
    %2341 = vmatpush1.msra.mxu0 0.0
    %2342 = vmatprep.subr.mxu0 0.0
    %2343 = vmatpush1.msra.mxu0 0.0
    %2344 = vmatprep.subr.mxu0 0.0
    %2345 = vmatpush1.msra.mxu0 0.0
    %2346 = vmatprep.subr.mxu0 0.0
    %2347 = vmatpush1.msra.mxu0 0.0
    %2348 = vmatprep.subr.mxu0 0.0
    %2349 = vmatpush1.msra.mxu0 0.0
    %2350 = vmatprep.subr.mxu0 0.0
    %2351 = vmatpush1.msra.mxu0 0.0
    %2352 = vmatprep.subr.mxu0 0.0
    %2353 = vmatpush1.msra.mxu0 0.0
    %2354 = vmatprep.subr.mxu0 0.0
    %2355 = vmatpush1.msra.mxu0 0.0
    %2356 = vmatprep.subr.mxu0 0.0
    %2357 = vmatpush1.msra.mxu0 0.0
    %2358 = vmatprep.subr.mxu0 0.0
    %2359 = vmatpush1.msra.mxu0 0.0
    %2360 = vmatprep.subr.mxu0 0.0
    %2361 = vmatpush1.msra.mxu0 0.0
    %2362 = vmatprep.subr.mxu0 0.0
    %2363 = vmatpush1.msra.mxu0 0.0
    %2364 = vmatprep.mubr.f32.mxu0 0.0
    %2365 = vmatmul.mubr.f32.gmra.mrb[0].mxu0 %v2295
    %v2366 = vpop.f32.mrb[0].mxu0
    %v2367 = vadd.f32 %v2293, %v2366
    %v2368 = vpop.f32.mrb[0].mxu0
    %2369 = vmatprep.mubr.f32.mxu0 0.0
    %2370 = vmatmul.mubr.f32.gmra.mrb[0].mxu0 %v2298
    %v2371 = vpop.f32.mrb[0].mxu0
    %v2372 = vadd.f32 %v2293, %v2371
    %v2373 = vpop.f32.mrb[0].mxu0
    %2374 = vdwg.mxu0
    %v2375 = vadd.f32 %v2367, %v2187
    %v2376 = vadd.f32 %v2372, %v2188
    %v2377 = vsel %vm49, %v2375, 0.0
    %2378 = vadd.xlane.f32.xlu0 %v2377
    %v2379 = vpop.xlane.xlu0 %2378
    %v2380 = vsel %vm49, %v2376, 0.0
    %2381 = vadd.xlane.f32.xlu0 %v2380
    %v2382 = vpop.xlane.xlu0 %2381
    %v2383 = vmul.f32 %v2379, %v993
    %v2384 = vmul.f32 %v2382, %v993
    %v2385 = vsub.f32 %v2375, %v2383
    %v2386 = vsub.f32 %v2376, %v2384
    %v2387 = vmul.f32 %v2385, %v2385
    %v2388 = vmul.f32 %v2386, %v2386
    %v2389 = vsel %vm49, %v2387, 0.0
    %2390 = vadd.xlane.f32.xlu0 %v2389
    %v2391 = vpop.xlane.xlu0 %2390
    %v2392 = vsel %vm49, %v2388, 0.0
    %2393 = vadd.xlane.f32.xlu0 %v2392
    %v2394 = vpop.xlane.xlu0 %2393
    %v2395 = vmul.f32 %v2391, 0.032258064
    %v2396 = vmul.f32 %v2394, 0.032258064
    %v2397 = vrsqrt.pop %v2395
    %v2398 = vrsqrt.pop %v2396
    %v2399 = vmul.f32 %v2385, %v2397
    %v2400 = vmul.f32 %v2386, %v2398
    %v2401 = vld [vmem:[#allocation2 + $0x160] sm:$0xff]
    %v2402 = vld [vmem:[#allocation2 + $0x168] sm:$0xff]
    %v2403 = vld [vmem:[#allocation2 + $0x170] sm:$0xff]
    %v2404 = vld [vmem:[#allocation2 + $0x178] sm:$0xff]
    %v2405 = vld [vmem:[#allocation2 + $0x180] sm:$0xff]
    %v2406 = vld [vmem:[#allocation2 + $0x188] sm:$0xff]
    %v2407 = vld [vmem:[#allocation2 + $0x190] sm:$0xff]
    %v2408 = vld [vmem:[#allocation2 + $0x198] sm:$0xff]
    %v2410 = vsel %vm49, %v30, 0
    %v2413 = vsel %vm49, %v31, 0
    %v2416 = vsel %vm49, %v32, 0
    %2418 = vmatprep.subr.mxu0 0.0
    %2419 = vmatpush1.msra.mxu0 %v2401
    %2420 = vmatprep.subr.mxu0 0.0
    %2421 = vmatpush1.msra.mxu0 %v2402
    %2422 = vmatprep.subr.mxu0 0.0
    %2423 = vmatpush1.msra.mxu0 %v2403
    %2424 = vmatprep.subr.mxu0 0.0
    %2425 = vmatpush1.msra.mxu0 %v2404
    %2426 = vmatprep.subr.mxu0 0.0
    %2427 = vmatpush1.msra.mxu0 0.0
    %2428 = vmatprep.subr.mxu0 0.0
    %2429 = vmatpush1.msra.mxu0 0.0
    %2430 = vmatprep.subr.mxu0 0.0
    %2431 = vmatpush1.msra.mxu0 0.0
    %2432 = vmatprep.subr.mxu0 0.0
    %2433 = vmatpush1.msra.mxu0 0.0
    %2434 = vmatprep.subr.mxu0 0.0
    %2435 = vmatpush1.msra.mxu0 0.0
    %2436 = vmatprep.subr.mxu0 0.0
    %2437 = vmatpush1.msra.mxu0 0.0
    %2438 = vmatprep.subr.mxu0 0.0
    %2439 = vmatpush1.msra.mxu0 0.0
    %2440 = vmatprep.subr.mxu0 0.0
    %2441 = vmatpush1.msra.mxu0 0.0
    %2442 = vmatprep.subr.mxu0 0.0
    %2443 = vmatpush1.msra.mxu0 0.0
    %2444 = vmatprep.subr.mxu0 0.0
    %2445 = vmatpush1.msra.mxu0 0.0
    %2446 = vmatprep.subr.mxu0 0.0
    %2447 = vmatpush1.msra.mxu0 0.0
    %2448 = vmatprep.subr.mxu0 0.0
    %2449 = vmatpush1.msra.mxu0 0.0
    %2450 = vmatprep.subr.mxu0 0.0
    %2451 = vmatpush1.msra.mxu0 0.0
    %2452 = vmatprep.subr.mxu0 0.0
    %2453 = vmatpush1.msra.mxu0 0.0
    %2454 = vmatprep.subr.mxu0 0.0
    %2455 = vmatpush1.msra.mxu0 0.0
    %2456 = vmatprep.subr.mxu0 0.0
    %2457 = vmatpush1.msra.mxu0 0.0
    %2458 = vmatprep.subr.mxu0 0.0
    %2459 = vmatpush1.msra.mxu0 0.0
    %2460 = vmatprep.subr.mxu0 0.0
    %2461 = vmatpush1.msra.mxu0 0.0
    %2462 = vmatprep.subr.mxu0 0.0
    %2463 = vmatpush1.msra.mxu0 0.0
    %2464 = vmatprep.subr.mxu0 0.0
    %2465 = vmatpush1.msra.mxu0 0.0
    %2466 = vmatprep.subr.mxu0 0.0
    %2467 = vmatpush1.msra.mxu0 0.0
    %2468 = vmatprep.subr.mxu0 0.0
    %2469 = vmatpush1.msra.mxu0 0.0
    %2470 = vmatprep.subr.mxu0 0.0
    %2471 = vmatpush1.msra.mxu0 0.0
    %2472 = vmatprep.subr.mxu0 0.0
    %2473 = vmatpush1.msra.mxu0 0.0
    %2474 = vmatprep.subr.mxu0 0.0
    %2475 = vmatpush1.msra.mxu0 0.0
    %2476 = vmatprep.subr.mxu0 0.0
    %2477 = vmatpush1.msra.mxu0 0.0
    %2478 = vmatprep.subr.mxu0 0.0
    %2479 = vmatpush1.msra.mxu0 0.0
    %2480 = vmatprep.subr.mxu0 0.0
    %2481 = vmatpush1.msra.mxu0 0.0
    %2482 = vmatprep.mubr.f32.mxu0 0.0
    %2483 = vmatmul.mubr.f32.gmra.mrb[0].mxu0 %v2410
    %v2484 = vpop.f32.mrb[0].mxu0
    %v2485 = vadd.f32 0.0, %v2484
    %v2486 = vpop.f32.mrb[0].mxu0
    %2487 = vmatprep.mubr.f32.mxu0 0.0
    %2488 = vmatmul.mubr.f32.gmra.mrb[0].mxu0 %v2413
    %v2489 = vpop.f32.mrb[0].mxu0
    %v2490 = vadd.f32 0.0, %v2489
    %v2491 = vpop.f32.mrb[0].mxu0
    %2492 = vmatprep.mubr.f32.mxu0 0.0
    %2493 = vmatmul.mubr.f32.gmra.mrb[0].mxu0 %v2416
    %v2494 = vpop.f32.mrb[0].mxu0
    %v2495 = vadd.f32 0.0, %v2494
    %v2496 = vpop.f32.mrb[0].mxu0
    %2497 = vdwg.mxu0
    %2498 = vmatprep.subr.mxu0 0.0
    %2499 = vmatpush1.msra.mxu0 %v2405
    %2500 = vmatprep.subr.mxu0 0.0
    %2501 = vmatpush1.msra.mxu0 %v2406
    %2502 = vmatprep.subr.mxu0 0.0
    %2503 = vmatpush1.msra.mxu0 %v2407
    %2504 = vmatprep.subr.mxu0 0.0
    %2505 = vmatpush1.msra.mxu0 %v2408
    %2506 = vmatprep.subr.mxu0 0.0
    %2507 = vmatpush1.msra.mxu0 0.0
    %2508 = vmatprep.subr.mxu0 0.0
    %2509 = vmatpush1.msra.mxu0 0.0
    %2510 = vmatprep.subr.mxu0 0.0
    %2511 = vmatpush1.msra.mxu0 0.0
    %2512 = vmatprep.subr.mxu0 0.0
    %2513 = vmatpush1.msra.mxu0 0.0
    %2514 = vmatprep.subr.mxu0 0.0
    %2515 = vmatpush1.msra.mxu0 0.0
    %2516 = vmatprep.subr.mxu0 0.0
    %2517 = vmatpush1.msra.mxu0 0.0
    %2518 = vmatprep.subr.mxu0 0.0
    %2519 = vmatpush1.msra.mxu0 0.0
    %2520 = vmatprep.subr.mxu0 0.0
    %2521 = vmatpush1.msra.mxu0 0.0
    %2522 = vmatprep.subr.mxu0 0.0
    %2523 = vmatpush1.msra.mxu0 0.0
    %2524 = vmatprep.subr.mxu0 0.0
    %2525 = vmatpush1.msra.mxu0 0.0
    %2526 = vmatprep.subr.mxu0 0.0
    %2527 = vmatpush1.msra.mxu0 0.0
    %2528 = vmatprep.subr.mxu0 0.0
    %2529 = vmatpush1.msra.mxu0 0.0
    %2530 = vmatprep.subr.mxu0 0.0
    %2531 = vmatpush1.msra.mxu0 0.0
    %2532 = vmatprep.subr.mxu0 0.0
    %2533 = vmatpush1.msra.mxu0 0.0
    %2534 = vmatprep.subr.mxu0 0.0
    %2535 = vmatpush1.msra.mxu0 0.0
    %2536 = vmatprep.subr.mxu0 0.0
    %2537 = vmatpush1.msra.mxu0 0.0
    %2538 = vmatprep.subr.mxu0 0.0
    %2539 = vmatpush1.msra.mxu0 0.0
    %2540 = vmatprep.subr.mxu0 0.0
    %2541 = vmatpush1.msra.mxu0 0.0
    %2542 = vmatprep.subr.mxu0 0.0
    %2543 = vmatpush1.msra.mxu0 0.0
    %2544 = vmatprep.subr.mxu0 0.0
    %2545 = vmatpush1.msra.mxu0 0.0
    %2546 = vmatprep.subr.mxu0 0.0
    %2547 = vmatpush1.msra.mxu0 0.0
    %2548 = vmatprep.subr.mxu0 0.0
    %2549 = vmatpush1.msra.mxu0 0.0
    %2550 = vmatprep.subr.mxu0 0.0
    %2551 = vmatpush1.msra.mxu0 0.0
    %2552 = vmatprep.subr.mxu0 0.0
    %2553 = vmatpush1.msra.mxu0 0.0
    %2554 = vmatprep.subr.mxu0 0.0
    %2555 = vmatpush1.msra.mxu0 0.0
    %2556 = vmatprep.subr.mxu0 0.0
    %2557 = vmatpush1.msra.mxu0 0.0
    %2558 = vmatprep.subr.mxu0 0.0
    %2559 = vmatpush1.msra.mxu0 0.0
    %2560 = vmatprep.subr.mxu0 0.0
    %2561 = vmatpush1.msra.mxu0 0.0
    %2562 = vmatprep.mubr.f32.mxu0 0.0
    %2563 = vmatmul.mubr.f32.gmra.mrb[0].mxu0 %v2410
    %v2564 = vpop.f32.mrb[0].mxu0
    %v2565 = vadd.f32 0.0, %v2564
    %v2566 = vpop.f32.mrb[0].mxu0
    %2567 = vmatprep.mubr.f32.mxu0 0.0
    %2568 = vmatmul.mubr.f32.gmra.mrb[0].mxu0 %v2413
    %v2569 = vpop.f32.mrb[0].mxu0
    %v2570 = vadd.f32 0.0, %v2569
    %v2571 = vpop.f32.mrb[0].mxu0
    %2572 = vmatprep.mubr.f32.mxu0 0.0
    %2573 = vmatmul.mubr.f32.gmra.mrb[0].mxu0 %v2416
    %v2574 = vpop.f32.mrb[0].mxu0
    %v2575 = vadd.f32 0.0, %v2574
    %v2576 = vpop.f32.mrb[0].mxu0
    %2577 = vdwg.mxu0
    %2581 = vrot.lane.b32.xlu0 %v2485, 96
    %v2582 = vpop.permute.xlu0 %2581
    %2583 = vrot.lane.b32.xlu0 %v2490, 96
    %v2584 = vpop.permute.xlu0 %2583
    %2585 = vrot.lane.b32.xlu0 %v2495, 96
    %v2586 = vpop.permute.xlu0 %2585
    %v2587 = vsel %vm212, %v2485, 0
    %v2589 = vsel %vm212, %v2490, 0
    %v2591 = vsel %vm212, %v2495, 0
    %v2593 = vsel %vm212, %v2582, 0
    %v2595 = vsel %vm212, %v2584, 0
    %v2597 = vsel %vm212, %v2586, 0
    %2599 = vmatprep.subr.mxu0 0.0
    %2600 = vmatpush1.xpose.msra.mxu0 %v2593
    %2601 = vmatprep.subr.mxu0 0.0
    %2602 = vmatpush1.xpose.msra.mxu0 %v2595
    %2603 = vmatprep.subr.mxu0 0.0
    %2604 = vmatpush1.xpose.msra.mxu0 %v2597
    %2605 = vmatprep.subr.mxu0 0.0
    %2606 = vmatpush1.xpose.msra.mxu0 0.0
    %2607 = vmatprep.subr.mxu0 0.0
    %2608 = vmatpush1.xpose.msra.mxu0 0.0
    %2609 = vmatprep.subr.mxu0 0.0
    %2610 = vmatpush1.xpose.msra.mxu0 0.0
    %2611 = vmatprep.subr.mxu0 0.0
    %2612 = vmatpush1.xpose.msra.mxu0 0.0
    %2613 = vmatprep.subr.mxu0 0.0
    %2614 = vmatpush1.xpose.msra.mxu0 0.0
    %2615 = vmatprep.subr.mxu0 0.0
    %2616 = vmatpush1.xpose.msra.mxu0 0.0
    %2617 = vmatprep.subr.mxu0 0.0
    %2618 = vmatpush1.xpose.msra.mxu0 0.0
    %2619 = vmatprep.subr.mxu0 0.0
    %2620 = vmatpush1.xpose.msra.mxu0 0.0
    %2621 = vmatprep.subr.mxu0 0.0
    %2622 = vmatpush1.xpose.msra.mxu0 0.0
    %2623 = vmatprep.subr.mxu0 0.0
    %2624 = vmatpush1.xpose.msra.mxu0 0.0
    %2625 = vmatprep.subr.mxu0 0.0
    %2626 = vmatpush1.xpose.msra.mxu0 0.0
    %2627 = vmatprep.subr.mxu0 0.0
    %2628 = vmatpush1.xpose.msra.mxu0 0.0
    %2629 = vmatprep.subr.mxu0 0.0
    %2630 = vmatpush1.xpose.msra.mxu0 0.0
    %2631 = vmatprep.subr.mxu0 0.0
    %2632 = vmatpush1.xpose.msra.mxu0 0.0
    %2633 = vmatprep.subr.mxu0 0.0
    %2634 = vmatpush1.xpose.msra.mxu0 0.0
    %2635 = vmatprep.subr.mxu0 0.0
    %2636 = vmatpush1.xpose.msra.mxu0 0.0
    %2637 = vmatprep.subr.mxu0 0.0
    %2638 = vmatpush1.xpose.msra.mxu0 0.0
    %2639 = vmatprep.subr.mxu0 0.0
    %2640 = vmatpush1.xpose.msra.mxu0 0.0
    %2641 = vmatprep.subr.mxu0 0.0
    %2642 = vmatpush1.xpose.msra.mxu0 0.0
    %2643 = vmatprep.subr.mxu0 0.0
    %2644 = vmatpush1.xpose.msra.mxu0 0.0
    %2645 = vmatprep.subr.mxu0 0.0
    %2646 = vmatpush1.xpose.msra.mxu0 0.0
    %2647 = vmatprep.subr.mxu0 0.0
    %2648 = vmatpush1.xpose.msra.mxu0 0.0
    %2649 = vmatprep.subr.mxu0 0.0
    %2650 = vmatpush1.xpose.msra.mxu0 0.0
    %2651 = vmatprep.subr.mxu0 0.0
    %2652 = vmatpush1.xpose.msra.mxu0 0.0
    %2653 = vmatprep.subr.mxu0 0.0
    %2654 = vmatpush1.xpose.msra.mxu0 0.0
    %2655 = vmatprep.subr.mxu0 0.0
    %2656 = vmatpush1.xpose.msra.mxu0 0.0
    %2657 = vmatprep.subr.mxu0 0.0
    %2658 = vmatpush1.xpose.msra.mxu0 0.0
    %2659 = vmatprep.subr.mxu0 0.0
    %2660 = vmatpush1.xpose.msra.mxu0 0.0
    %2661 = vmatprep.subr.mxu0 0.0
    %2662 = vmatpush1.xpose.msra.mxu0 0.0
    %2663 = vmatprep.mubr.f32.mxu0 0.0
    %2664 = vmatmul.mubr.f32.gmra.mrb[0].mxu0 %v2587
    %v2665 = vpop.f32.mrb[0].mxu0
    %v2666 = vadd.f32 0.0, %v2665
    %v2667 = vpop.f32.mrb[0].mxu0
    %2668 = vmatprep.mubr.f32.mxu0 0.0
    %2669 = vmatmul.mubr.f32.gmra.mrb[0].mxu0 %v2589
    %v2670 = vpop.f32.mrb[0].mxu0
    %v2671 = vadd.f32 0.0, %v2670
    %v2672 = vpop.f32.mrb[0].mxu0
    %2673 = vmatprep.mubr.f32.mxu0 0.0
    %2674 = vmatmul.mubr.f32.gmra.mrb[0].mxu0 %v2591
    %v2675 = vpop.f32.mrb[0].mxu0
    %v2676 = vadd.f32 0.0, %v2675
    %v2677 = vpop.f32.mrb[0].mxu0
    %2678 = vdwg.mxu0
    %2679 = vrot.lane.b32.xlu0 %v2485, 120
    %v2680 = vpop.permute.xlu0 %2679
    %2681 = vrot.lane.b32.xlu0 %v2490, 120
    %v2682 = vpop.permute.xlu0 %2681
    %2683 = vrot.lane.b32.xlu0 %v2495, 120
    %v2684 = vpop.permute.xlu0 %2683
    %2685 = vrot.lane.b32.xlu0 %v2485, 88
    %v2686 = vpop.permute.xlu0 %2685
    %2687 = vrot.lane.b32.xlu0 %v2490, 88
    %v2688 = vpop.permute.xlu0 %2687
    %2689 = vrot.lane.b32.xlu0 %v2495, 88
    %v2690 = vpop.permute.xlu0 %2689
    %v2691 = vsel %vm212, %v2680, 0
    %v2693 = vsel %vm212, %v2682, 0
    %v2695 = vsel %vm212, %v2684, 0
    %v2697 = vsel %vm212, %v2686, 0
    %v2699 = vsel %vm212, %v2688, 0
    %v2701 = vsel %vm212, %v2690, 0
    %2703 = vmatprep.subr.mxu0 0.0
    %2704 = vmatpush1.xpose.msra.mxu0 %v2697
    %2705 = vmatprep.subr.mxu0 0.0
    %2706 = vmatpush1.xpose.msra.mxu0 %v2699
    %2707 = vmatprep.subr.mxu0 0.0
    %2708 = vmatpush1.xpose.msra.mxu0 %v2701
    %2709 = vmatprep.subr.mxu0 0.0
    %2710 = vmatpush1.xpose.msra.mxu0 0.0
    %2711 = vmatprep.subr.mxu0 0.0
    %2712 = vmatpush1.xpose.msra.mxu0 0.0
    %2713 = vmatprep.subr.mxu0 0.0
    %2714 = vmatpush1.xpose.msra.mxu0 0.0
    %2715 = vmatprep.subr.mxu0 0.0
    %2716 = vmatpush1.xpose.msra.mxu0 0.0
    %2717 = vmatprep.subr.mxu0 0.0
    %2718 = vmatpush1.xpose.msra.mxu0 0.0
    %2719 = vmatprep.subr.mxu0 0.0
    %2720 = vmatpush1.xpose.msra.mxu0 0.0
    %2721 = vmatprep.subr.mxu0 0.0
    %2722 = vmatpush1.xpose.msra.mxu0 0.0
    %2723 = vmatprep.subr.mxu0 0.0
    %2724 = vmatpush1.xpose.msra.mxu0 0.0
    %2725 = vmatprep.subr.mxu0 0.0
    %2726 = vmatpush1.xpose.msra.mxu0 0.0
    %2727 = vmatprep.subr.mxu0 0.0
    %2728 = vmatpush1.xpose.msra.mxu0 0.0
    %2729 = vmatprep.subr.mxu0 0.0
    %2730 = vmatpush1.xpose.msra.mxu0 0.0
    %2731 = vmatprep.subr.mxu0 0.0
    %2732 = vmatpush1.xpose.msra.mxu0 0.0
    %2733 = vmatprep.subr.mxu0 0.0
    %2734 = vmatpush1.xpose.msra.mxu0 0.0
    %2735 = vmatprep.subr.mxu0 0.0
    %2736 = vmatpush1.xpose.msra.mxu0 0.0
    %2737 = vmatprep.subr.mxu0 0.0
    %2738 = vmatpush1.xpose.msra.mxu0 0.0
    %2739 = vmatprep.subr.mxu0 0.0
    %2740 = vmatpush1.xpose.msra.mxu0 0.0
    %2741 = vmatprep.subr.mxu0 0.0
    %2742 = vmatpush1.xpose.msra.mxu0 0.0
    %2743 = vmatprep.subr.mxu0 0.0
    %2744 = vmatpush1.xpose.msra.mxu0 0.0
    %2745 = vmatprep.subr.mxu0 0.0
    %2746 = vmatpush1.xpose.msra.mxu0 0.0
    %2747 = vmatprep.subr.mxu0 0.0
    %2748 = vmatpush1.xpose.msra.mxu0 0.0
    %2749 = vmatprep.subr.mxu0 0.0
    %2750 = vmatpush1.xpose.msra.mxu0 0.0
    %2751 = vmatprep.subr.mxu0 0.0
    %2752 = vmatpush1.xpose.msra.mxu0 0.0
    %2753 = vmatprep.subr.mxu0 0.0
    %2754 = vmatpush1.xpose.msra.mxu0 0.0
    %2755 = vmatprep.subr.mxu0 0.0
    %2756 = vmatpush1.xpose.msra.mxu0 0.0
    %2757 = vmatprep.subr.mxu0 0.0
    %2758 = vmatpush1.xpose.msra.mxu0 0.0
    %2759 = vmatprep.subr.mxu0 0.0
    %2760 = vmatpush1.xpose.msra.mxu0 0.0
    %2761 = vmatprep.subr.mxu0 0.0
    %2762 = vmatpush1.xpose.msra.mxu0 0.0
    %2763 = vmatprep.subr.mxu0 0.0
    %2764 = vmatpush1.xpose.msra.mxu0 0.0
    %2765 = vmatprep.subr.mxu0 0.0
    %2766 = vmatpush1.xpose.msra.mxu0 0.0
    %2767 = vmatprep.mubr.f32.mxu0 0.0
    %2768 = vmatmul.mubr.f32.gmra.mrb[0].mxu0 %v2691
    %v2769 = vpop.f32.mrb[0].mxu0
    %v2770 = vadd.f32 0.0, %v2769
    %v2771 = vpop.f32.mrb[0].mxu0
    %2772 = vmatprep.mubr.f32.mxu0 0.0
    %2773 = vmatmul.mubr.f32.gmra.mrb[0].mxu0 %v2693
    %v2774 = vpop.f32.mrb[0].mxu0
    %v2775 = vadd.f32 0.0, %v2774
    %v2776 = vpop.f32.mrb[0].mxu0
    %2777 = vmatprep.mubr.f32.mxu0 0.0
    %2778 = vmatmul.mubr.f32.gmra.mrb[0].mxu0 %v2695
    %v2779 = vpop.f32.mrb[0].mxu0
    %v2780 = vadd.f32 0.0, %v2779
    %v2781 = vpop.f32.mrb[0].mxu0
    %2782 = vdwg.mxu0
    %2783 = vrot.lane.b32.xlu0 %v2485, 112
    %v2784 = vpop.permute.xlu0 %2783
    %2785 = vrot.lane.b32.xlu0 %v2490, 112
    %v2786 = vpop.permute.xlu0 %2785
    %2787 = vrot.lane.b32.xlu0 %v2495, 112
    %v2788 = vpop.permute.xlu0 %2787
    %2789 = vrot.lane.b32.xlu0 %v2485, 80
    %v2790 = vpop.permute.xlu0 %2789
    %2791 = vrot.lane.b32.xlu0 %v2490, 80
    %v2792 = vpop.permute.xlu0 %2791
    %2793 = vrot.lane.b32.xlu0 %v2495, 80
    %v2794 = vpop.permute.xlu0 %2793
    %v2795 = vsel %vm212, %v2784, 0
    %v2797 = vsel %vm212, %v2786, 0
    %v2799 = vsel %vm212, %v2788, 0
    %v2801 = vsel %vm212, %v2790, 0
    %v2803 = vsel %vm212, %v2792, 0
    %v2805 = vsel %vm212, %v2794, 0
    %2807 = vmatprep.subr.mxu0 0.0
    %2808 = vmatpush1.xpose.msra.mxu0 %v2801
    %2809 = vmatprep.subr.mxu0 0.0
    %2810 = vmatpush1.xpose.msra.mxu0 %v2803
    %2811 = vmatprep.subr.mxu0 0.0
    %2812 = vmatpush1.xpose.msra.mxu0 %v2805
    %2813 = vmatprep.subr.mxu0 0.0
    %2814 = vmatpush1.xpose.msra.mxu0 0.0
    %2815 = vmatprep.subr.mxu0 0.0
    %2816 = vmatpush1.xpose.msra.mxu0 0.0
    %2817 = vmatprep.subr.mxu0 0.0
    %2818 = vmatpush1.xpose.msra.mxu0 0.0
    %2819 = vmatprep.subr.mxu0 0.0
    %2820 = vmatpush1.xpose.msra.mxu0 0.0
    %2821 = vmatprep.subr.mxu0 0.0
    %2822 = vmatpush1.xpose.msra.mxu0 0.0
    %2823 = vmatprep.subr.mxu0 0.0
    %2824 = vmatpush1.xpose.msra.mxu0 0.0
    %2825 = vmatprep.subr.mxu0 0.0
    %2826 = vmatpush1.xpose.msra.mxu0 0.0
    %2827 = vmatprep.subr.mxu0 0.0
    %2828 = vmatpush1.xpose.msra.mxu0 0.0
    %2829 = vmatprep.subr.mxu0 0.0
    %2830 = vmatpush1.xpose.msra.mxu0 0.0
    %2831 = vmatprep.subr.mxu0 0.0
    %2832 = vmatpush1.xpose.msra.mxu0 0.0
    %2833 = vmatprep.subr.mxu0 0.0
    %2834 = vmatpush1.xpose.msra.mxu0 0.0
    %2835 = vmatprep.subr.mxu0 0.0
    %2836 = vmatpush1.xpose.msra.mxu0 0.0
    %2837 = vmatprep.subr.mxu0 0.0
    %2838 = vmatpush1.xpose.msra.mxu0 0.0
    %2839 = vmatprep.subr.mxu0 0.0
    %2840 = vmatpush1.xpose.msra.mxu0 0.0
    %2841 = vmatprep.subr.mxu0 0.0
    %2842 = vmatpush1.xpose.msra.mxu0 0.0
    %2843 = vmatprep.subr.mxu0 0.0
    %2844 = vmatpush1.xpose.msra.mxu0 0.0
    %2845 = vmatprep.subr.mxu0 0.0
    %2846 = vmatpush1.xpose.msra.mxu0 0.0
    %2847 = vmatprep.subr.mxu0 0.0
    %2848 = vmatpush1.xpose.msra.mxu0 0.0
    %2849 = vmatprep.subr.mxu0 0.0
    %2850 = vmatpush1.xpose.msra.mxu0 0.0
    %2851 = vmatprep.subr.mxu0 0.0
    %2852 = vmatpush1.xpose.msra.mxu0 0.0
    %2853 = vmatprep.subr.mxu0 0.0
    %2854 = vmatpush1.xpose.msra.mxu0 0.0
    %2855 = vmatprep.subr.mxu0 0.0
    %2856 = vmatpush1.xpose.msra.mxu0 0.0
    %2857 = vmatprep.subr.mxu0 0.0
    %2858 = vmatpush1.xpose.msra.mxu0 0.0
    %2859 = vmatprep.subr.mxu0 0.0
    %2860 = vmatpush1.xpose.msra.mxu0 0.0
    %2861 = vmatprep.subr.mxu0 0.0
    %2862 = vmatpush1.xpose.msra.mxu0 0.0
    %2863 = vmatprep.subr.mxu0 0.0
    %2864 = vmatpush1.xpose.msra.mxu0 0.0
    %2865 = vmatprep.subr.mxu0 0.0
    %2866 = vmatpush1.xpose.msra.mxu0 0.0
    %2867 = vmatprep.subr.mxu0 0.0
    %2868 = vmatpush1.xpose.msra.mxu0 0.0
    %2869 = vmatprep.subr.mxu0 0.0
    %2870 = vmatpush1.xpose.msra.mxu0 0.0
    %2871 = vmatprep.mubr.f32.mxu0 0.0
    %2872 = vmatmul.mubr.f32.gmra.mrb[0].mxu0 %v2795
    %v2873 = vpop.f32.mrb[0].mxu0
    %v2874 = vadd.f32 0.0, %v2873
    %v2875 = vpop.f32.mrb[0].mxu0
    %2876 = vmatprep.mubr.f32.mxu0 0.0
    %2877 = vmatmul.mubr.f32.gmra.mrb[0].mxu0 %v2797
    %v2878 = vpop.f32.mrb[0].mxu0
    %v2879 = vadd.f32 0.0, %v2878
    %v2880 = vpop.f32.mrb[0].mxu0
    %2881 = vmatprep.mubr.f32.mxu0 0.0
    %2882 = vmatmul.mubr.f32.gmra.mrb[0].mxu0 %v2799
    %v2883 = vpop.f32.mrb[0].mxu0
    %v2884 = vadd.f32 0.0, %v2883
    %v2885 = vpop.f32.mrb[0].mxu0
    %2886 = vdwg.mxu0
    %2887 = vrot.lane.b32.xlu0 %v2485, 104
    %v2888 = vpop.permute.xlu0 %2887
    %2889 = vrot.lane.b32.xlu0 %v2490, 104
    %v2890 = vpop.permute.xlu0 %2889
    %2891 = vrot.lane.b32.xlu0 %v2495, 104
    %v2892 = vpop.permute.xlu0 %2891
    %2893 = vrot.lane.b32.xlu0 %v2485, 72
    %v2894 = vpop.permute.xlu0 %2893
    %2895 = vrot.lane.b32.xlu0 %v2490, 72
    %v2896 = vpop.permute.xlu0 %2895
    %2897 = vrot.lane.b32.xlu0 %v2495, 72
    %v2898 = vpop.permute.xlu0 %2897
    %v2899 = vsel %vm212, %v2888, 0
    %v2901 = vsel %vm212, %v2890, 0
    %v2903 = vsel %vm212, %v2892, 0
    %v2905 = vsel %vm212, %v2894, 0
    %v2907 = vsel %vm212, %v2896, 0
    %v2909 = vsel %vm212, %v2898, 0
    %2911 = vmatprep.subr.mxu0 0.0
    %2912 = vmatpush1.xpose.msra.mxu0 %v2905
    %2913 = vmatprep.subr.mxu0 0.0
    %2914 = vmatpush1.xpose.msra.mxu0 %v2907
    %2915 = vmatprep.subr.mxu0 0.0
    %2916 = vmatpush1.xpose.msra.mxu0 %v2909
    %2917 = vmatprep.subr.mxu0 0.0
    %2918 = vmatpush1.xpose.msra.mxu0 0.0
    %2919 = vmatprep.subr.mxu0 0.0
    %2920 = vmatpush1.xpose.msra.mxu0 0.0
    %2921 = vmatprep.subr.mxu0 0.0
    %2922 = vmatpush1.xpose.msra.mxu0 0.0
    %2923 = vmatprep.subr.mxu0 0.0
    %2924 = vmatpush1.xpose.msra.mxu0 0.0
    %2925 = vmatprep.subr.mxu0 0.0
    %2926 = vmatpush1.xpose.msra.mxu0 0.0
    %2927 = vmatprep.subr.mxu0 0.0
    %2928 = vmatpush1.xpose.msra.mxu0 0.0
    %2929 = vmatprep.subr.mxu0 0.0
    %2930 = vmatpush1.xpose.msra.mxu0 0.0
    %2931 = vmatprep.subr.mxu0 0.0
    %2932 = vmatpush1.xpose.msra.mxu0 0.0
    %2933 = vmatprep.subr.mxu0 0.0
    %2934 = vmatpush1.xpose.msra.mxu0 0.0
    %2935 = vmatprep.subr.mxu0 0.0
    %2936 = vmatpush1.xpose.msra.mxu0 0.0
    %2937 = vmatprep.subr.mxu0 0.0
    %2938 = vmatpush1.xpose.msra.mxu0 0.0
    %2939 = vmatprep.subr.mxu0 0.0
    %2940 = vmatpush1.xpose.msra.mxu0 0.0
    %2941 = vmatprep.subr.mxu0 0.0
    %2942 = vmatpush1.xpose.msra.mxu0 0.0
    %2943 = vmatprep.subr.mxu0 0.0
    %2944 = vmatpush1.xpose.msra.mxu0 0.0
    %2945 = vmatprep.subr.mxu0 0.0
    %2946 = vmatpush1.xpose.msra.mxu0 0.0
    %2947 = vmatprep.subr.mxu0 0.0
    %2948 = vmatpush1.xpose.msra.mxu0 0.0
    %2949 = vmatprep.subr.mxu0 0.0
    %2950 = vmatpush1.xpose.msra.mxu0 0.0
    %2951 = vmatprep.subr.mxu0 0.0
    %2952 = vmatpush1.xpose.msra.mxu0 0.0
    %2953 = vmatprep.subr.mxu0 0.0
    %2954 = vmatpush1.xpose.msra.mxu0 0.0
    %2955 = vmatprep.subr.mxu0 0.0
    %2956 = vmatpush1.xpose.msra.mxu0 0.0
    %2957 = vmatprep.subr.mxu0 0.0
    %2958 = vmatpush1.xpose.msra.mxu0 0.0
    %2959 = vmatprep.subr.mxu0 0.0
    %2960 = vmatpush1.xpose.msra.mxu0 0.0
    %2961 = vmatprep.subr.mxu0 0.0
    %2962 = vmatpush1.xpose.msra.mxu0 0.0
    %2963 = vmatprep.subr.mxu0 0.0
    %2964 = vmatpush1.xpose.msra.mxu0 0.0
    %2965 = vmatprep.subr.mxu0 0.0
    %2966 = vmatpush1.xpose.msra.mxu0 0.0
    %2967 = vmatprep.subr.mxu0 0.0
    %2968 = vmatpush1.xpose.msra.mxu0 0.0
    %2969 = vmatprep.subr.mxu0 0.0
    %2970 = vmatpush1.xpose.msra.mxu0 0.0
    %2971 = vmatprep.subr.mxu0 0.0
    %2972 = vmatpush1.xpose.msra.mxu0 0.0
    %2973 = vmatprep.subr.mxu0 0.0
    %2974 = vmatpush1.xpose.msra.mxu0 0.0
    %2975 = vmatprep.mubr.f32.mxu0 0.0
    %2976 = vmatmul.mubr.f32.gmra.mrb[0].mxu0 %v2899
    %v2977 = vpop.f32.mrb[0].mxu0
    %v2978 = vadd.f32 0.0, %v2977
    %v2979 = vpop.f32.mrb[0].mxu0
    %2980 = vmatprep.mubr.f32.mxu0 0.0
    %2981 = vmatmul.mubr.f32.gmra.mrb[0].mxu0 %v2901
    %v2982 = vpop.f32.mrb[0].mxu0
    %v2983 = vadd.f32 0.0, %v2982
    %v2984 = vpop.f32.mrb[0].mxu0
    %2985 = vmatprep.mubr.f32.mxu0 0.0
    %2986 = vmatmul.mubr.f32.gmra.mrb[0].mxu0 %v2903
    %v2987 = vpop.f32.mrb[0].mxu0
    %v2988 = vadd.f32 0.0, %v2987
    %v2989 = vpop.f32.mrb[0].mxu0
    %2990 = vdwg.mxu0
    %2994 = vrot.lane.b32.xlu0 %v2770, 18
    %v2995 = vpop.permute.xlu0 %2994
    %2996 = vrot.lane.b32.xlu0 %v2775, 18
    %v2997 = vpop.permute.xlu0 %2996
    %2998 = vrot.lane.b32.xlu0 %v2780, 18
    %v2999 = vpop.permute.xlu0 %2998
    %3006 = vrot.lane.b32.xlu0 %v2874, 36
    %v3007 = vpop.permute.xlu0 %3006
    %3008 = vrot.lane.b32.xlu0 %v2879, 36
    %v3009 = vpop.permute.xlu0 %3008
    %3010 = vrot.lane.b32.xlu0 %v2884, 36
    %v3011 = vpop.permute.xlu0 %3010
    %3018 = vrot.lane.b32.xlu0 %v2978, 54
    %v3019 = vpop.permute.xlu0 %3018
    %3020 = vrot.lane.b32.xlu0 %v2983, 54
    %v3021 = vpop.permute.xlu0 %3020
    %3022 = vrot.lane.b32.xlu0 %v2988, 54
    %v3023 = vpop.permute.xlu0 %3022
    %vm3027 = vcmask 146432
    %v3028 = vsel %vm3027, %v2666, %v2995
    %v3029 = vsel %vm3027, %v2671, %v2997
    %v3030 = vsel %vm3027, %v2676, %v2999
    %vm3031 = vcmask 293888
    %v3032 = vsel %vm3031, %v3028, %v3007
    %v3033 = vsel %vm3031, %v3029, %v3009
    %v3034 = vsel %vm3031, %v3030, %v3011
    %vm3035 = vcmask 441344
    %v3036 = vsel %vm3035, %v3032, %v3019
    %v3037 = vsel %vm3035, %v3033, %v3021
    %v3038 = vsel %vm3035, %v3034, %v3023
    %v3039 = vadd.f32 %v3036, %v35
    %v3040 = vadd.f32 %v3037, %v36
    %v3041 = vadd.f32 %v3038, %v37
    %vm3042 = vcmask 588800
    %v3043 = vsel %vm3042, %v3039, -inf
    %v3044 = vsel %vm3042, %v3040, -inf
    %vm3045 = vcmask 582656
    %v3046 = vsel %vm3045, %v3041, -inf
    %v3047 = vmax.f32 %v3043, %v3044
    %v3048 = vmax.f32 %v3047, %v3046
    %v3049 = vrot.slane %v3048, 4
    %v3050 = vmax.f32 %v3048, %v3049
    %v3051 = vrot.slane %v3050, 2
    %v3052 = vmax.f32 %v3050, %v3051
    %v3053 = vrot.slane %v3052, 1
    %v3054 = vmax.f32 %v3052, %v3053
    %v3055 = vsub.f32 %v3039, %v3054
    %v3056 = vsub.f32 %v3040, %v3054
    %v3057 = vsub.f32 %v3041, %v3054
    %v3058 = vmul.f32 %v3055, 1.442695
    %v3059 = vpow.pop %v3058
    %v3060 = vmul.f32 %v3056, 1.442695
    %v3061 = vpow.pop %v3060
    %v3062 = vmul.f32 %v3057, 1.442695
    %v3063 = vpow.pop %v3062
    %v3064 = vsel %vm3042, %v3059, 0.0
    %v3065 = vsel %vm3042, %v3061, 0.0
    %v3066 = vadd.f32 %v3064, %v3065
    %v3067 = vsel %vm3045, %v3063, 0.0
    %v3068 = vadd.f32 %v3066, %v3067
    %v3069 = vrot.slane %v3068, 4
    %v3070 = vadd.f32 %v3068, %v3069
    %v3071 = vrot.slane %v3070, 2
    %v3072 = vadd.f32 %v3070, %v3071
    %v3073 = vrot.slane %v3072, 1
    %v3074 = vadd.f32 %v3072, %v3073
    %v3075 = vrcp.pop %v3074
    %v3076 = vmul.f32 %v3059, %v3075
    %v3077 = vmul.f32 %v3061, %v3075
    %v3078 = vmul.f32 %v3063, %v3075
    %3082 = vrot.lane.b32.xlu0 %v3076, 110
    %v3083 = vpop.permute.xlu0 %3082
    %3084 = vrot.lane.b32.xlu0 %v3077, 110
    %v3085 = vpop.permute.xlu0 %3084
    %3086 = vrot.lane.b32.xlu0 %v3078, 110
    %v3087 = vpop.permute.xlu0 %3086
    %3091 = vrot.lane.b32.xlu0 %v2565, 96
    %v3092 = vpop.permute.xlu0 %3091
    %3093 = vrot.lane.b32.xlu0 %v2570, 96
    %v3094 = vpop.permute.xlu0 %3093
    %3095 = vrot.lane.b32.xlu0 %v2575, 96
    %v3096 = vpop.permute.xlu0 %3095
    %v3099 = vsel %vm3027, %v3083, 0
    %v3101 = vsel %vm3027, %v3085, 0
    %v3103 = vsel %vm3027, %v3087, 0
    %vm3105 = vcmask 1041408
    %v3106 = vsel %vm3105, %v3096, 0
    %3108 = vmatprep.subr.mxu0 0.0
    %3109 = vmatpush1.msra.mxu0 %v3092
    %3110 = vmatprep.subr.mxu0 0.0
    %3111 = vmatpush1.msra.mxu0 %v3094
    %3112 = vmatprep.subr.mxu0 0.0
    %3113 = vmatpush1.msra.mxu0 %v3106
    %3114 = vmatprep.subr.mxu0 0.0
    %3115 = vmatpush1.msra.mxu0 0.0
    %3116 = vmatprep.subr.mxu0 0.0
    %3117 = vmatpush1.msra.mxu0 0.0
    %3118 = vmatprep.subr.mxu0 0.0
    %3119 = vmatpush1.msra.mxu0 0.0
    %3120 = vmatprep.subr.mxu0 0.0
    %3121 = vmatpush1.msra.mxu0 0.0
    %3122 = vmatprep.subr.mxu0 0.0
    %3123 = vmatpush1.msra.mxu0 0.0
    %3124 = vmatprep.subr.mxu0 0.0
    %3125 = vmatpush1.msra.mxu0 0.0
    %3126 = vmatprep.subr.mxu0 0.0
    %3127 = vmatpush1.msra.mxu0 0.0
    %3128 = vmatprep.subr.mxu0 0.0
    %3129 = vmatpush1.msra.mxu0 0.0
    %3130 = vmatprep.subr.mxu0 0.0
    %3131 = vmatpush1.msra.mxu0 0.0
    %3132 = vmatprep.subr.mxu0 0.0
    %3133 = vmatpush1.msra.mxu0 0.0
    %3134 = vmatprep.subr.mxu0 0.0
    %3135 = vmatpush1.msra.mxu0 0.0
    %3136 = vmatprep.subr.mxu0 0.0
    %3137 = vmatpush1.msra.mxu0 0.0
    %3138 = vmatprep.subr.mxu0 0.0
    %3139 = vmatpush1.msra.mxu0 0.0
    %3140 = vmatprep.subr.mxu0 0.0
    %3141 = vmatpush1.msra.mxu0 0.0
    %3142 = vmatprep.subr.mxu0 0.0
    %3143 = vmatpush1.msra.mxu0 0.0
    %3144 = vmatprep.subr.mxu0 0.0
    %3145 = vmatpush1.msra.mxu0 0.0
    %3146 = vmatprep.subr.mxu0 0.0
    %3147 = vmatpush1.msra.mxu0 0.0
    %3148 = vmatprep.subr.mxu0 0.0
    %3149 = vmatpush1.msra.mxu0 0.0
    %3150 = vmatprep.subr.mxu0 0.0
    %3151 = vmatpush1.msra.mxu0 0.0
    %3152 = vmatprep.subr.mxu0 0.0
    %3153 = vmatpush1.msra.mxu0 0.0
    %3154 = vmatprep.subr.mxu0 0.0
    %3155 = vmatpush1.msra.mxu0 0.0
    %3156 = vmatprep.subr.mxu0 0.0
    %3157 = vmatpush1.msra.mxu0 0.0
    %3158 = vmatprep.subr.mxu0 0.0
    %3159 = vmatpush1.msra.mxu0 0.0
    %3160 = vmatprep.subr.mxu0 0.0
    %3161 = vmatpush1.msra.mxu0 0.0
    %3162 = vmatprep.subr.mxu0 0.0
    %3163 = vmatpush1.msra.mxu0 0.0
    %3164 = vmatprep.subr.mxu0 0.0
    %3165 = vmatpush1.msra.mxu0 0.0
    %3166 = vmatprep.subr.mxu0 0.0
    %3167 = vmatpush1.msra.mxu0 0.0
    %3168 = vmatprep.subr.mxu0 0.0
    %3169 = vmatpush1.msra.mxu0 0.0
    %3170 = vmatprep.subr.mxu0 0.0
    %3171 = vmatpush1.msra.mxu0 0.0
    %3172 = vmatprep.mubr.f32.mxu0 0.0
    %3173 = vmatmul.mubr.f32.gmra.mrb[0].mxu0 %v3099
    %v3174 = vpop.f32.mrb[0].mxu0
    %v3175 = vadd.f32 0.0, %v3174
    %v3176 = vpop.f32.mrb[0].mxu0
    %3177 = vmatprep.mubr.f32.mxu0 0.0
    %3178 = vmatmul.mubr.f32.gmra.mrb[0].mxu0 %v3101
    %v3179 = vpop.f32.mrb[0].mxu0
    %v3180 = vadd.f32 0.0, %v3179
    %v3181 = vpop.f32.mrb[0].mxu0
    %3182 = vmatprep.mubr.f32.mxu0 0.0
    %3183 = vmatmul.mubr.f32.gmra.mrb[0].mxu0 %v3103
    %v3184 = vpop.f32.mrb[0].mxu0
    %v3185 = vadd.f32 0.0, %v3184
    %v3186 = vpop.f32.mrb[0].mxu0
    %3187 = vdwg.mxu0
    %v3188 = vsel %vm3027, %v3076, 0
    %v3190 = vsel %vm3027, %v3077, 0
    %v3192 = vsel %vm3027, %v3078, 0
    %v3194 = vsel %vm3105, %v2575, 0
    %3196 = vmatprep.subr.mxu0 0.0
    %3197 = vmatpush1.msra.mxu0 %v2565
    %3198 = vmatprep.subr.mxu0 0.0
    %3199 = vmatpush1.msra.mxu0 %v2570
    %3200 = vmatprep.subr.mxu0 0.0
    %3201 = vmatpush1.msra.mxu0 %v3194
    %3202 = vmatprep.subr.mxu0 0.0
    %3203 = vmatpush1.msra.mxu0 0.0
    %3204 = vmatprep.subr.mxu0 0.0
    %3205 = vmatpush1.msra.mxu0 0.0
    %3206 = vmatprep.subr.mxu0 0.0
    %3207 = vmatpush1.msra.mxu0 0.0
    %3208 = vmatprep.subr.mxu0 0.0
    %3209 = vmatpush1.msra.mxu0 0.0
    %3210 = vmatprep.subr.mxu0 0.0
    %3211 = vmatpush1.msra.mxu0 0.0
    %3212 = vmatprep.subr.mxu0 0.0
    %3213 = vmatpush1.msra.mxu0 0.0
    %3214 = vmatprep.subr.mxu0 0.0
    %3215 = vmatpush1.msra.mxu0 0.0
    %3216 = vmatprep.subr.mxu0 0.0
    %3217 = vmatpush1.msra.mxu0 0.0
    %3218 = vmatprep.subr.mxu0 0.0
    %3219 = vmatpush1.msra.mxu0 0.0
    %3220 = vmatprep.subr.mxu0 0.0
    %3221 = vmatpush1.msra.mxu0 0.0
    %3222 = vmatprep.subr.mxu0 0.0
    %3223 = vmatpush1.msra.mxu0 0.0
    %3224 = vmatprep.subr.mxu0 0.0
    %3225 = vmatpush1.msra.mxu0 0.0
    %3226 = vmatprep.subr.mxu0 0.0
    %3227 = vmatpush1.msra.mxu0 0.0
    %3228 = vmatprep.subr.mxu0 0.0
    %3229 = vmatpush1.msra.mxu0 0.0
    %3230 = vmatprep.subr.mxu0 0.0
    %3231 = vmatpush1.msra.mxu0 0.0
    %3232 = vmatprep.subr.mxu0 0.0
    %3233 = vmatpush1.msra.mxu0 0.0
    %3234 = vmatprep.subr.mxu0 0.0
    %3235 = vmatpush1.msra.mxu0 0.0
    %3236 = vmatprep.subr.mxu0 0.0
    %3237 = vmatpush1.msra.mxu0 0.0
    %3238 = vmatprep.subr.mxu0 0.0
    %3239 = vmatpush1.msra.mxu0 0.0
    %3240 = vmatprep.subr.mxu0 0.0
    %3241 = vmatpush1.msra.mxu0 0.0
    %3242 = vmatprep.subr.mxu0 0.0
    %3243 = vmatpush1.msra.mxu0 0.0
    %3244 = vmatprep.subr.mxu0 0.0
    %3245 = vmatpush1.msra.mxu0 0.0
    %3246 = vmatprep.subr.mxu0 0.0
    %3247 = vmatpush1.msra.mxu0 0.0
    %3248 = vmatprep.subr.mxu0 0.0
    %3249 = vmatpush1.msra.mxu0 0.0
    %3250 = vmatprep.subr.mxu0 0.0
    %3251 = vmatpush1.msra.mxu0 0.0
    %3252 = vmatprep.subr.mxu0 0.0
    %3253 = vmatpush1.msra.mxu0 0.0
    %3254 = vmatprep.subr.mxu0 0.0
    %3255 = vmatpush1.msra.mxu0 0.0
    %3256 = vmatprep.subr.mxu0 0.0
    %3257 = vmatpush1.msra.mxu0 0.0
    %3258 = vmatprep.subr.mxu0 0.0
    %3259 = vmatpush1.msra.mxu0 0.0
    %3260 = vmatprep.mubr.f32.mxu0 0.0
    %3261 = vmatmul.mubr.f32.gmra.mrb[0].mxu0 %v3188
    %v3262 = vpop.f32.mrb[0].mxu0
    %v3263 = vadd.f32 %v3175, %v3262
    %v3264 = vpop.f32.mrb[0].mxu0
    %3265 = vmatprep.mubr.f32.mxu0 0.0
    %3266 = vmatmul.mubr.f32.gmra.mrb[0].mxu0 %v3190
    %v3267 = vpop.f32.mrb[0].mxu0
    %v3268 = vadd.f32 %v3180, %v3267
    %v3269 = vpop.f32.mrb[0].mxu0
    %3270 = vmatprep.mubr.f32.mxu0 0.0
    %3271 = vmatmul.mubr.f32.gmra.mrb[0].mxu0 %v3192
    %v3272 = vpop.f32.mrb[0].mxu0
    %v3273 = vadd.f32 %v3185, %v3272
    %v3274 = vpop.f32.mrb[0].mxu0
    %3275 = vdwg.mxu0
    %3276 = vrot.lane.b32.xlu0 %v3076, 92
    %v3277 = vpop.permute.xlu0 %3276
    %3278 = vrot.lane.b32.xlu0 %v3077, 92
    %v3279 = vpop.permute.xlu0 %3278
    %3280 = vrot.lane.b32.xlu0 %v3078, 92
    %v3281 = vpop.permute.xlu0 %3280
    %3282 = vrot.lane.b32.xlu0 %v2565, 64
    %v3283 = vpop.permute.xlu0 %3282
    %3284 = vrot.lane.b32.xlu0 %v2570, 64
    %v3285 = vpop.permute.xlu0 %3284
    %3286 = vrot.lane.b32.xlu0 %v2575, 64
    %v3287 = vpop.permute.xlu0 %3286
    %v3290 = vsel %vm3027, %v3277, 0
    %v3292 = vsel %vm3027, %v3279, 0
    %v3294 = vsel %vm3027, %v3281, 0
    %v3296 = vsel %vm3105, %v3287, 0
    %3298 = vmatprep.subr.mxu0 0.0
    %3299 = vmatpush1.msra.mxu0 %v3283
    %3300 = vmatprep.subr.mxu0 0.0
    %3301 = vmatpush1.msra.mxu0 %v3285
    %3302 = vmatprep.subr.mxu0 0.0
    %3303 = vmatpush1.msra.mxu0 %v3296
    %3304 = vmatprep.subr.mxu0 0.0
    %3305 = vmatpush1.msra.mxu0 0.0
    %3306 = vmatprep.subr.mxu0 0.0
    %3307 = vmatpush1.msra.mxu0 0.0
    %3308 = vmatprep.subr.mxu0 0.0
    %3309 = vmatpush1.msra.mxu0 0.0
    %3310 = vmatprep.subr.mxu0 0.0
    %3311 = vmatpush1.msra.mxu0 0.0
    %3312 = vmatprep.subr.mxu0 0.0
    %3313 = vmatpush1.msra.mxu0 0.0
    %3314 = vmatprep.subr.mxu0 0.0
    %3315 = vmatpush1.msra.mxu0 0.0
    %3316 = vmatprep.subr.mxu0 0.0
    %3317 = vmatpush1.msra.mxu0 0.0
    %3318 = vmatprep.subr.mxu0 0.0
    %3319 = vmatpush1.msra.mxu0 0.0
    %3320 = vmatprep.subr.mxu0 0.0
    %3321 = vmatpush1.msra.mxu0 0.0
    %3322 = vmatprep.subr.mxu0 0.0
    %3323 = vmatpush1.msra.mxu0 0.0
    %3324 = vmatprep.subr.mxu0 0.0
    %3325 = vmatpush1.msra.mxu0 0.0
    %3326 = vmatprep.subr.mxu0 0.0
    %3327 = vmatpush1.msra.mxu0 0.0
    %3328 = vmatprep.subr.mxu0 0.0
    %3329 = vmatpush1.msra.mxu0 0.0
    %3330 = vmatprep.subr.mxu0 0.0
    %3331 = vmatpush1.msra.mxu0 0.0
    %3332 = vmatprep.subr.mxu0 0.0
    %3333 = vmatpush1.msra.mxu0 0.0
    %3334 = vmatprep.subr.mxu0 0.0
    %3335 = vmatpush1.msra.mxu0 0.0
    %3336 = vmatprep.subr.mxu0 0.0
    %3337 = vmatpush1.msra.mxu0 0.0
    %3338 = vmatprep.subr.mxu0 0.0
    %3339 = vmatpush1.msra.mxu0 0.0
    %3340 = vmatprep.subr.mxu0 0.0
    %3341 = vmatpush1.msra.mxu0 0.0
    %3342 = vmatprep.subr.mxu0 0.0
    %3343 = vmatpush1.msra.mxu0 0.0
    %3344 = vmatprep.subr.mxu0 0.0
    %3345 = vmatpush1.msra.mxu0 0.0
    %3346 = vmatprep.subr.mxu0 0.0
    %3347 = vmatpush1.msra.mxu0 0.0
    %3348 = vmatprep.subr.mxu0 0.0
    %3349 = vmatpush1.msra.mxu0 0.0
    %3350 = vmatprep.subr.mxu0 0.0
    %3351 = vmatpush1.msra.mxu0 0.0
    %3352 = vmatprep.subr.mxu0 0.0
    %3353 = vmatpush1.msra.mxu0 0.0
    %3354 = vmatprep.subr.mxu0 0.0
    %3355 = vmatpush1.msra.mxu0 0.0
    %3356 = vmatprep.subr.mxu0 0.0
    %3357 = vmatpush1.msra.mxu0 0.0
    %3358 = vmatprep.subr.mxu0 0.0
    %3359 = vmatpush1.msra.mxu0 0.0
    %3360 = vmatprep.subr.mxu0 0.0
    %3361 = vmatpush1.msra.mxu0 0.0
    %3362 = vmatprep.mubr.f32.mxu0 0.0
    %3363 = vmatmul.mubr.f32.gmra.mrb[0].mxu0 %v3290
    %v3364 = vpop.f32.mrb[0].mxu0
    %v3365 = vadd.f32 0.0, %v3364
    %v3366 = vpop.f32.mrb[0].mxu0
    %3367 = vmatprep.mubr.f32.mxu0 0.0
    %3368 = vmatmul.mubr.f32.gmra.mrb[0].mxu0 %v3292
    %v3369 = vpop.f32.mrb[0].mxu0
    %v3370 = vadd.f32 0.0, %v3369
    %v3371 = vpop.f32.mrb[0].mxu0
    %3372 = vmatprep.mubr.f32.mxu0 0.0
    %3373 = vmatmul.mubr.f32.gmra.mrb[0].mxu0 %v3294
    %v3374 = vpop.f32.mrb[0].mxu0
    %v3375 = vadd.f32 0.0, %v3374
    %v3376 = vpop.f32.mrb[0].mxu0
    %3377 = vdwg.mxu0
    %v3378 = vadd.f32 %v3263, %v3365
    %v3379 = vadd.f32 %v3268, %v3370
    %v3380 = vadd.f32 %v3273, %v3375
    %3381 = vrot.lane.b32.xlu0 %v3076, 74
    %v3382 = vpop.permute.xlu0 %3381
    %3383 = vrot.lane.b32.xlu0 %v3077, 74
    %v3384 = vpop.permute.xlu0 %3383
    %3385 = vrot.lane.b32.xlu0 %v3078, 74
    %v3386 = vpop.permute.xlu0 %3385
    %3387 = vrot.lane.b32.xlu0 %v2565, 32
    %v3388 = vpop.permute.xlu0 %3387
    %3389 = vrot.lane.b32.xlu0 %v2570, 32
    %v3390 = vpop.permute.xlu0 %3389
    %3391 = vrot.lane.b32.xlu0 %v2575, 32
    %v3392 = vpop.permute.xlu0 %3391
    %v3395 = vsel %vm3027, %v3382, 0
    %v3397 = vsel %vm3027, %v3384, 0
    %v3399 = vsel %vm3027, %v3386, 0
    %v3401 = vsel %vm3105, %v3392, 0
    %3403 = vmatprep.subr.mxu0 0.0
    %3404 = vmatpush1.msra.mxu0 %v3388
    %3405 = vmatprep.subr.mxu0 0.0
    %3406 = vmatpush1.msra.mxu0 %v3390
    %3407 = vmatprep.subr.mxu0 0.0
    %3408 = vmatpush1.msra.mxu0 %v3401
    %3409 = vmatprep.subr.mxu0 0.0
    %3410 = vmatpush1.msra.mxu0 0.0
    %3411 = vmatprep.subr.mxu0 0.0
    %3412 = vmatpush1.msra.mxu0 0.0
    %3413 = vmatprep.subr.mxu0 0.0
    %3414 = vmatpush1.msra.mxu0 0.0
    %3415 = vmatprep.subr.mxu0 0.0
    %3416 = vmatpush1.msra.mxu0 0.0
    %3417 = vmatprep.subr.mxu0 0.0
    %3418 = vmatpush1.msra.mxu0 0.0
    %3419 = vmatprep.subr.mxu0 0.0
    %3420 = vmatpush1.msra.mxu0 0.0
    %3421 = vmatprep.subr.mxu0 0.0
    %3422 = vmatpush1.msra.mxu0 0.0
    %3423 = vmatprep.subr.mxu0 0.0
    %3424 = vmatpush1.msra.mxu0 0.0
    %3425 = vmatprep.subr.mxu0 0.0
    %3426 = vmatpush1.msra.mxu0 0.0
    %3427 = vmatprep.subr.mxu0 0.0
    %3428 = vmatpush1.msra.mxu0 0.0
    %3429 = vmatprep.subr.mxu0 0.0
    %3430 = vmatpush1.msra.mxu0 0.0
    %3431 = vmatprep.subr.mxu0 0.0
    %3432 = vmatpush1.msra.mxu0 0.0
    %3433 = vmatprep.subr.mxu0 0.0
    %3434 = vmatpush1.msra.mxu0 0.0
    %3435 = vmatprep.subr.mxu0 0.0
    %3436 = vmatpush1.msra.mxu0 0.0
    %3437 = vmatprep.subr.mxu0 0.0
    %3438 = vmatpush1.msra.mxu0 0.0
    %3439 = vmatprep.subr.mxu0 0.0
    %3440 = vmatpush1.msra.mxu0 0.0
    %3441 = vmatprep.subr.mxu0 0.0
    %3442 = vmatpush1.msra.mxu0 0.0
    %3443 = vmatprep.subr.mxu0 0.0
    %3444 = vmatpush1.msra.mxu0 0.0
    %3445 = vmatprep.subr.mxu0 0.0
    %3446 = vmatpush1.msra.mxu0 0.0
    %3447 = vmatprep.subr.mxu0 0.0
    %3448 = vmatpush1.msra.mxu0 0.0
    %3449 = vmatprep.subr.mxu0 0.0
    %3450 = vmatpush1.msra.mxu0 0.0
    %3451 = vmatprep.subr.mxu0 0.0
    %3452 = vmatpush1.msra.mxu0 0.0
    %3453 = vmatprep.subr.mxu0 0.0
    %3454 = vmatpush1.msra.mxu0 0.0
    %3455 = vmatprep.subr.mxu0 0.0
    %3456 = vmatpush1.msra.mxu0 0.0
    %3457 = vmatprep.subr.mxu0 0.0
    %3458 = vmatpush1.msra.mxu0 0.0
    %3459 = vmatprep.subr.mxu0 0.0
    %3460 = vmatpush1.msra.mxu0 0.0
    %3461 = vmatprep.subr.mxu0 0.0
    %3462 = vmatpush1.msra.mxu0 0.0
    %3463 = vmatprep.subr.mxu0 0.0
    %3464 = vmatpush1.msra.mxu0 0.0
    %3465 = vmatprep.subr.mxu0 0.0
    %3466 = vmatpush1.msra.mxu0 0.0
    %3467 = vmatprep.mubr.f32.mxu0 0.0
    %3468 = vmatmul.mubr.f32.gmra.mrb[0].mxu0 %v3395
    %v3469 = vpop.f32.mrb[0].mxu0
    %v3470 = vadd.f32 0.0, %v3469
    %v3471 = vpop.f32.mrb[0].mxu0
    %3472 = vmatprep.mubr.f32.mxu0 0.0
    %3473 = vmatmul.mubr.f32.gmra.mrb[0].mxu0 %v3397
    %v3474 = vpop.f32.mrb[0].mxu0
    %v3475 = vadd.f32 0.0, %v3474
    %v3476 = vpop.f32.mrb[0].mxu0
    %3477 = vmatprep.mubr.f32.mxu0 0.0
    %3478 = vmatmul.mubr.f32.gmra.mrb[0].mxu0 %v3399
    %v3479 = vpop.f32.mrb[0].mxu0
    %v3480 = vadd.f32 0.0, %v3479
    %v3481 = vpop.f32.mrb[0].mxu0
    %3482 = vdwg.mxu0
    %v3483 = vadd.f32 %v3378, %v3470
    %v3484 = vadd.f32 %v3379, %v3475
    %v3485 = vadd.f32 %v3380, %v3480
    %v3486 = vadd.f32 %v3483, %v30
    %v3487 = vadd.f32 %v3484, %v31
    %v3488 = vadd.f32 %v3485, %v32
    %v3489 = vsel %vm49, %v3486, 0.0
    %3490 = vadd.xlane.f32.xlu0 %v3489
    %v3491 = vpop.xlane.xlu0 %3490
    %v3492 = vsel %vm49, %v3487, 0.0
    %3493 = vadd.xlane.f32.xlu0 %v3492
    %v3494 = vpop.xlane.xlu0 %3493
    %vm3495 = vcmask 254976
    %v3496 = vsel %vm3495, %v3488, 0.0
    %3497 = vadd.xlane.f32.xlu0 %v3496
    %v3498 = vpop.xlane.xlu0 %3497
    %v3499 = vmul.f32 %v3491, %v993
    %v3500 = vmul.f32 %v3494, %v993
    %v3501 = vmul.f32 %v3498, %v993
    %v3502 = vsub.f32 %v3486, %v3499
    %v3503 = vsub.f32 %v3487, %v3500
    %v3504 = vsub.f32 %v3488, %v3501
    %v3505 = vmul.f32 %v3502, %v3502
    %v3506 = vmul.f32 %v3503, %v3503
    %v3507 = vmul.f32 %v3504, %v3504
    %v3508 = vsel %vm49, %v3505, 0.0
    %3509 = vadd.xlane.f32.xlu0 %v3508
    %v3510 = vpop.xlane.xlu0 %3509
    %v3511 = vsel %vm49, %v3506, 0.0
    %3512 = vadd.xlane.f32.xlu0 %v3511
    %v3513 = vpop.xlane.xlu0 %3512
    %v3514 = vsel %vm3495, %v3507, 0.0
    %3515 = vadd.xlane.f32.xlu0 %v3514
    %v3516 = vpop.xlane.xlu0 %3515
    %v3517 = vmul.f32 %v3510, 0.032258064
    %v3518 = vmul.f32 %v3513, 0.032258064
    %v3519 = vmul.f32 %v3516, 0.032258064
    %v3520 = vrsqrt.pop %v3517
    %v3521 = vrsqrt.pop %v3518
    %v3522 = vrsqrt.pop %v3519
    %v3523 = vmul.f32 %v3502, %v3520
    %v3524 = vmul.f32 %v3503, %v3521
    %v3525 = vmul.f32 %v3504, %v3522
    %v3526 = vld [vmem:[#allocation2 + $0x1a0] sm:$0xff]
    %v3527 = vld [vmem:[#allocation2 + $0x1a8] sm:$0xff]
    %v3528 = vld [vmem:[#allocation2 + $0x1b0] sm:$0xff]
    %v3529 = vld [vmem:[#allocation2 + $0x1b8] sm:$0xff]
    %v3530 = vld [vmem:[#allocation2 + $0x1c0] sm:$0xff]
    %v3531 = vld [vmem:[#allocation2 + $0x1c8] sm:$0xff]
    %v3532 = vld [vmem:[#allocation2 + $0x1d0] sm:$0xff]
    %v3533 = vld [vmem:[#allocation2 + $0x1d8] sm:$0xff]
    %v3534 = vld [vmem:[#allocation2 + $0x1e0] sm:$0xff]
    %v3535 = vld [vmem:[#allocation2 + $0x1e8] sm:$0xff]
    %v3536 = vld [vmem:[#allocation2 + $0x1f0] sm:$0xff]
    %v3537 = vld [vmem:[#allocation2 + $0x1f8] sm:$0xff]
    %v3539 = vsel %vm49, %v3523, 0
    %v3542 = vsel %vm49, %v3524, 0
    %v3545 = vsel %vm49, %v3525, 0
    %3547 = vmatprep.subr.mxu0 0.0
    %3548 = vmatpush1.msra.mxu0 %v3526
    %3549 = vmatprep.subr.mxu0 0.0
    %3550 = vmatpush1.msra.mxu0 %v3527
    %3551 = vmatprep.subr.mxu0 0.0
    %3552 = vmatpush1.msra.mxu0 %v3528
    %3553 = vmatprep.subr.mxu0 0.0
    %3554 = vmatpush1.msra.mxu0 %v3529
    %3555 = vmatprep.subr.mxu0 0.0
    %3556 = vmatpush1.msra.mxu0 0.0
    %3557 = vmatprep.subr.mxu0 0.0
    %3558 = vmatpush1.msra.mxu0 0.0
    %3559 = vmatprep.subr.mxu0 0.0
    %3560 = vmatpush1.msra.mxu0 0.0
    %3561 = vmatprep.subr.mxu0 0.0
    %3562 = vmatpush1.msra.mxu0 0.0
    %3563 = vmatprep.subr.mxu0 0.0
    %3564 = vmatpush1.msra.mxu0 0.0
    %3565 = vmatprep.subr.mxu0 0.0
    %3566 = vmatpush1.msra.mxu0 0.0
    %3567 = vmatprep.subr.mxu0 0.0
    %3568 = vmatpush1.msra.mxu0 0.0
    %3569 = vmatprep.subr.mxu0 0.0
    %3570 = vmatpush1.msra.mxu0 0.0
    %3571 = vmatprep.subr.mxu0 0.0
    %3572 = vmatpush1.msra.mxu0 0.0
    %3573 = vmatprep.subr.mxu0 0.0
    %3574 = vmatpush1.msra.mxu0 0.0
    %3575 = vmatprep.subr.mxu0 0.0
    %3576 = vmatpush1.msra.mxu0 0.0
    %3577 = vmatprep.subr.mxu0 0.0
    %3578 = vmatpush1.msra.mxu0 0.0
    %3579 = vmatprep.subr.mxu0 0.0
    %3580 = vmatpush1.msra.mxu0 0.0
    %3581 = vmatprep.subr.mxu0 0.0
    %3582 = vmatpush1.msra.mxu0 0.0
    %3583 = vmatprep.subr.mxu0 0.0
    %3584 = vmatpush1.msra.mxu0 0.0
    %3585 = vmatprep.subr.mxu0 0.0
    %3586 = vmatpush1.msra.mxu0 0.0
    %3587 = vmatprep.subr.mxu0 0.0
    %3588 = vmatpush1.msra.mxu0 0.0
    %3589 = vmatprep.subr.mxu0 0.0
    %3590 = vmatpush1.msra.mxu0 0.0
    %3591 = vmatprep.subr.mxu0 0.0
    %3592 = vmatpush1.msra.mxu0 0.0
    %3593 = vmatprep.subr.mxu0 0.0
    %3594 = vmatpush1.msra.mxu0 0.0
    %3595 = vmatprep.subr.mxu0 0.0
    %3596 = vmatpush1.msra.mxu0 0.0
    %3597 = vmatprep.subr.mxu0 0.0
    %3598 = vmatpush1.msra.mxu0 0.0
    %3599 = vmatprep.subr.mxu0 0.0
    %3600 = vmatpush1.msra.mxu0 0.0
    %3601 = vmatprep.subr.mxu0 0.0
    %3602 = vmatpush1.msra.mxu0 0.0
    %3603 = vmatprep.subr.mxu0 0.0
    %3604 = vmatpush1.msra.mxu0 0.0
    %3605 = vmatprep.subr.mxu0 0.0
    %3606 = vmatpush1.msra.mxu0 0.0
    %3607 = vmatprep.subr.mxu0 0.0
    %3608 = vmatpush1.msra.mxu0 0.0
    %3609 = vmatprep.subr.mxu0 0.0
    %3610 = vmatpush1.msra.mxu0 0.0
    %3611 = vmatprep.mubr.f32.mxu0 0.0
    %3612 = vmatmul.mubr.f32.gmra.mrb[0].mxu0 %v3539
    %v3613 = vpop.f32.mrb[0].mxu0
    %v3614 = vadd.f32 0.0, %v3613
    %v3615 = vpop.f32.mrb[0].mxu0
    %3616 = vmatprep.mubr.f32.mxu0 0.0
    %3617 = vmatmul.mubr.f32.gmra.mrb[0].mxu0 %v3542
    %v3618 = vpop.f32.mrb[0].mxu0
    %v3619 = vadd.f32 0.0, %v3618
    %v3620 = vpop.f32.mrb[0].mxu0
    %3621 = vmatprep.mubr.f32.mxu0 0.0
    %3622 = vmatmul.mubr.f32.gmra.mrb[0].mxu0 %v3545
    %v3623 = vpop.f32.mrb[0].mxu0
    %v3624 = vadd.f32 0.0, %v3623
    %v3625 = vpop.f32.mrb[0].mxu0
    %3626 = vdwg.mxu0
    %v3628 = vsel %vm49, %v2399, 0
    %v3631 = vsel %vm49, %v2400, 0
    %3633 = vmatprep.subr.mxu0 0.0
    %3634 = vmatpush1.msra.mxu0 %v3530
    %3635 = vmatprep.subr.mxu0 0.0
    %3636 = vmatpush1.msra.mxu0 %v3531
    %3637 = vmatprep.subr.mxu0 0.0
    %3638 = vmatpush1.msra.mxu0 %v3532
    %3639 = vmatprep.subr.mxu0 0.0
    %3640 = vmatpush1.msra.mxu0 %v3533
    %3641 = vmatprep.subr.mxu0 0.0
    %3642 = vmatpush1.msra.mxu0 0.0
    %3643 = vmatprep.subr.mxu0 0.0
    %3644 = vmatpush1.msra.mxu0 0.0
    %3645 = vmatprep.subr.mxu0 0.0
    %3646 = vmatpush1.msra.mxu0 0.0
    %3647 = vmatprep.subr.mxu0 0.0
    %3648 = vmatpush1.msra.mxu0 0.0
    %3649 = vmatprep.subr.mxu0 0.0
    %3650 = vmatpush1.msra.mxu0 0.0
    %3651 = vmatprep.subr.mxu0 0.0
    %3652 = vmatpush1.msra.mxu0 0.0
    %3653 = vmatprep.subr.mxu0 0.0
    %3654 = vmatpush1.msra.mxu0 0.0
    %3655 = vmatprep.subr.mxu0 0.0
    %3656 = vmatpush1.msra.mxu0 0.0
    %3657 = vmatprep.subr.mxu0 0.0
    %3658 = vmatpush1.msra.mxu0 0.0
    %3659 = vmatprep.subr.mxu0 0.0
    %3660 = vmatpush1.msra.mxu0 0.0
    %3661 = vmatprep.subr.mxu0 0.0
    %3662 = vmatpush1.msra.mxu0 0.0
    %3663 = vmatprep.subr.mxu0 0.0
    %3664 = vmatpush1.msra.mxu0 0.0
    %3665 = vmatprep.subr.mxu0 0.0
    %3666 = vmatpush1.msra.mxu0 0.0
    %3667 = vmatprep.subr.mxu0 0.0
    %3668 = vmatpush1.msra.mxu0 0.0
    %3669 = vmatprep.subr.mxu0 0.0
    %3670 = vmatpush1.msra.mxu0 0.0
    %3671 = vmatprep.subr.mxu0 0.0
    %3672 = vmatpush1.msra.mxu0 0.0
    %3673 = vmatprep.subr.mxu0 0.0
    %3674 = vmatpush1.msra.mxu0 0.0
    %3675 = vmatprep.subr.mxu0 0.0
    %3676 = vmatpush1.msra.mxu0 0.0
    %3677 = vmatprep.subr.mxu0 0.0
    %3678 = vmatpush1.msra.mxu0 0.0
    %3679 = vmatprep.subr.mxu0 0.0
    %3680 = vmatpush1.msra.mxu0 0.0
    %3681 = vmatprep.subr.mxu0 0.0
    %3682 = vmatpush1.msra.mxu0 0.0
    %3683 = vmatprep.subr.mxu0 0.0
    %3684 = vmatpush1.msra.mxu0 0.0
    %3685 = vmatprep.subr.mxu0 0.0
    %3686 = vmatpush1.msra.mxu0 0.0
    %3687 = vmatprep.subr.mxu0 0.0
    %3688 = vmatpush1.msra.mxu0 0.0
    %3689 = vmatprep.subr.mxu0 0.0
    %3690 = vmatpush1.msra.mxu0 0.0
    %3691 = vmatprep.subr.mxu0 0.0
    %3692 = vmatpush1.msra.mxu0 0.0
    %3693 = vmatprep.subr.mxu0 0.0
    %3694 = vmatpush1.msra.mxu0 0.0
    %3695 = vmatprep.subr.mxu0 0.0
    %3696 = vmatpush1.msra.mxu0 0.0
    %3697 = vmatprep.mubr.f32.mxu0 0.0
    %3698 = vmatmul.mubr.f32.gmra.mrb[0].mxu0 %v3628
    %v3699 = vpop.f32.mrb[0].mxu0
    %v3700 = vadd.f32 0.0, %v3699
    %v3701 = vpop.f32.mrb[0].mxu0
    %3702 = vmatprep.mubr.f32.mxu0 0.0
    %3703 = vmatmul.mubr.f32.gmra.mrb[0].mxu0 %v3631
    %v3704 = vpop.f32.mrb[0].mxu0
    %v3705 = vadd.f32 0.0, %v3704
    %v3706 = vpop.f32.mrb[0].mxu0
    %3707 = vdwg.mxu0
    %3708 = vmatprep.subr.mxu0 0.0
    %3709 = vmatpush1.msra.mxu0 %v3534
    %3710 = vmatprep.subr.mxu0 0.0
    %3711 = vmatpush1.msra.mxu0 %v3535
    %3712 = vmatprep.subr.mxu0 0.0
    %3713 = vmatpush1.msra.mxu0 %v3536
    %3714 = vmatprep.subr.mxu0 0.0
    %3715 = vmatpush1.msra.mxu0 %v3537
    %3716 = vmatprep.subr.mxu0 0.0
    %3717 = vmatpush1.msra.mxu0 0.0
    %3718 = vmatprep.subr.mxu0 0.0
    %3719 = vmatpush1.msra.mxu0 0.0
    %3720 = vmatprep.subr.mxu0 0.0
    %3721 = vmatpush1.msra.mxu0 0.0
    %3722 = vmatprep.subr.mxu0 0.0
    %3723 = vmatpush1.msra.mxu0 0.0
    %3724 = vmatprep.subr.mxu0 0.0
    %3725 = vmatpush1.msra.mxu0 0.0
    %3726 = vmatprep.subr.mxu0 0.0
    %3727 = vmatpush1.msra.mxu0 0.0
    %3728 = vmatprep.subr.mxu0 0.0
    %3729 = vmatpush1.msra.mxu0 0.0
    %3730 = vmatprep.subr.mxu0 0.0
    %3731 = vmatpush1.msra.mxu0 0.0
    %3732 = vmatprep.subr.mxu0 0.0
    %3733 = vmatpush1.msra.mxu0 0.0
    %3734 = vmatprep.subr.mxu0 0.0
    %3735 = vmatpush1.msra.mxu0 0.0
    %3736 = vmatprep.subr.mxu0 0.0
    %3737 = vmatpush1.msra.mxu0 0.0
    %3738 = vmatprep.subr.mxu0 0.0
    %3739 = vmatpush1.msra.mxu0 0.0
    %3740 = vmatprep.subr.mxu0 0.0
    %3741 = vmatpush1.msra.mxu0 0.0
    %3742 = vmatprep.subr.mxu0 0.0
    %3743 = vmatpush1.msra.mxu0 0.0
    %3744 = vmatprep.subr.mxu0 0.0
    %3745 = vmatpush1.msra.mxu0 0.0
    %3746 = vmatprep.subr.mxu0 0.0
    %3747 = vmatpush1.msra.mxu0 0.0
    %3748 = vmatprep.subr.mxu0 0.0
    %3749 = vmatpush1.msra.mxu0 0.0
    %3750 = vmatprep.subr.mxu0 0.0
    %3751 = vmatpush1.msra.mxu0 0.0
    %3752 = vmatprep.subr.mxu0 0.0
    %3753 = vmatpush1.msra.mxu0 0.0
    %3754 = vmatprep.subr.mxu0 0.0
    %3755 = vmatpush1.msra.mxu0 0.0
    %3756 = vmatprep.subr.mxu0 0.0
    %3757 = vmatpush1.msra.mxu0 0.0
    %3758 = vmatprep.subr.mxu0 0.0
    %3759 = vmatpush1.msra.mxu0 0.0
    %3760 = vmatprep.subr.mxu0 0.0
    %3761 = vmatpush1.msra.mxu0 0.0
    %3762 = vmatprep.subr.mxu0 0.0
    %3763 = vmatpush1.msra.mxu0 0.0
    %3764 = vmatprep.subr.mxu0 0.0
    %3765 = vmatpush1.msra.mxu0 0.0
    %3766 = vmatprep.subr.mxu0 0.0
    %3767 = vmatpush1.msra.mxu0 0.0
    %3768 = vmatprep.subr.mxu0 0.0
    %3769 = vmatpush1.msra.mxu0 0.0
    %3770 = vmatprep.subr.mxu0 0.0
    %3771 = vmatpush1.msra.mxu0 0.0
    %3772 = vmatprep.mubr.f32.mxu0 0.0
    %3773 = vmatmul.mubr.f32.gmra.mrb[0].mxu0 %v3628
    %v3774 = vpop.f32.mrb[0].mxu0
    %v3775 = vadd.f32 0.0, %v3774
    %v3776 = vpop.f32.mrb[0].mxu0
    %3777 = vmatprep.mubr.f32.mxu0 0.0
    %3778 = vmatmul.mubr.f32.gmra.mrb[0].mxu0 %v3631
    %v3779 = vpop.f32.mrb[0].mxu0
    %v3780 = vadd.f32 0.0, %v3779
    %v3781 = vpop.f32.mrb[0].mxu0
    %3782 = vdwg.mxu0
    %v3784 = vsel %vm212, %v3614, 0
    %v3787 = vsel %vm212, %v3619, 0
    %v3790 = vsel %vm212, %v3624, 0
    %v3793 = vsel %vm212, %v3700, 0
    %v3796 = vsel %vm212, %v3705, 0
    %3798 = vmatprep.subr.mxu0 0.0
    %3799 = vmatpush1.xpose.msra.mxu0 %v3793
    %3800 = vmatprep.subr.mxu0 0.0
    %3801 = vmatpush1.xpose.msra.mxu0 %v3796
    %3802 = vmatprep.subr.mxu0 0.0
    %3803 = vmatpush1.xpose.msra.mxu0 0.0
    %3804 = vmatprep.subr.mxu0 0.0
    %3805 = vmatpush1.xpose.msra.mxu0 0.0
    %3806 = vmatprep.subr.mxu0 0.0
    %3807 = vmatpush1.xpose.msra.mxu0 0.0
    %3808 = vmatprep.subr.mxu0 0.0
    %3809 = vmatpush1.xpose.msra.mxu0 0.0
    %3810 = vmatprep.subr.mxu0 0.0
    %3811 = vmatpush1.xpose.msra.mxu0 0.0
    %3812 = vmatprep.subr.mxu0 0.0
    %3813 = vmatpush1.xpose.msra.mxu0 0.0
    %3814 = vmatprep.subr.mxu0 0.0
    %3815 = vmatpush1.xpose.msra.mxu0 0.0
    %3816 = vmatprep.subr.mxu0 0.0
    %3817 = vmatpush1.xpose.msra.mxu0 0.0
    %3818 = vmatprep.subr.mxu0 0.0
    %3819 = vmatpush1.xpose.msra.mxu0 0.0
    %3820 = vmatprep.subr.mxu0 0.0
    %3821 = vmatpush1.xpose.msra.mxu0 0.0
    %3822 = vmatprep.subr.mxu0 0.0
    %3823 = vmatpush1.xpose.msra.mxu0 0.0
    %3824 = vmatprep.subr.mxu0 0.0
    %3825 = vmatpush1.xpose.msra.mxu0 0.0
    %3826 = vmatprep.subr.mxu0 0.0
    %3827 = vmatpush1.xpose.msra.mxu0 0.0
    %3828 = vmatprep.subr.mxu0 0.0
    %3829 = vmatpush1.xpose.msra.mxu0 0.0
    %3830 = vmatprep.subr.mxu0 0.0
    %3831 = vmatpush1.xpose.msra.mxu0 0.0
    %3832 = vmatprep.subr.mxu0 0.0
    %3833 = vmatpush1.xpose.msra.mxu0 0.0
    %3834 = vmatprep.subr.mxu0 0.0
    %3835 = vmatpush1.xpose.msra.mxu0 0.0
    %3836 = vmatprep.subr.mxu0 0.0
    %3837 = vmatpush1.xpose.msra.mxu0 0.0
    %3838 = vmatprep.subr.mxu0 0.0
    %3839 = vmatpush1.xpose.msra.mxu0 0.0
    %3840 = vmatprep.subr.mxu0 0.0
    %3841 = vmatpush1.xpose.msra.mxu0 0.0
    %3842 = vmatprep.subr.mxu0 0.0
    %3843 = vmatpush1.xpose.msra.mxu0 0.0
    %3844 = vmatprep.subr.mxu0 0.0
    %3845 = vmatpush1.xpose.msra.mxu0 0.0
    %3846 = vmatprep.subr.mxu0 0.0
    %3847 = vmatpush1.xpose.msra.mxu0 0.0
    %3848 = vmatprep.subr.mxu0 0.0
    %3849 = vmatpush1.xpose.msra.mxu0 0.0
    %3850 = vmatprep.subr.mxu0 0.0
    %3851 = vmatpush1.xpose.msra.mxu0 0.0
    %3852 = vmatprep.subr.mxu0 0.0
    %3853 = vmatpush1.xpose.msra.mxu0 0.0
    %3854 = vmatprep.subr.mxu0 0.0
    %3855 = vmatpush1.xpose.msra.mxu0 0.0
    %3856 = vmatprep.subr.mxu0 0.0
    %3857 = vmatpush1.xpose.msra.mxu0 0.0
    %3858 = vmatprep.subr.mxu0 0.0
    %3859 = vmatpush1.xpose.msra.mxu0 0.0
    %3860 = vmatprep.subr.mxu0 0.0
    %3861 = vmatpush1.xpose.msra.mxu0 0.0
    %3862 = vmatprep.mubr.f32.mxu0 0.0
    %3863 = vmatmul.mubr.f32.gmra.mrb[0].mxu0 %v3784
    %v3864 = vpop.f32.mrb[0].mxu0
    %v3865 = vadd.f32 0.0, %v3864
    %v3866 = vpop.f32.mrb[0].mxu0
    %3867 = vmatprep.mubr.f32.mxu0 0.0
    %3868 = vmatmul.mubr.f32.gmra.mrb[0].mxu0 %v3787
    %v3869 = vpop.f32.mrb[0].mxu0
    %v3870 = vadd.f32 0.0, %v3869
    %v3871 = vpop.f32.mrb[0].mxu0
    %3872 = vmatprep.mubr.f32.mxu0 0.0
    %3873 = vmatmul.mubr.f32.gmra.mrb[0].mxu0 %v3790
    %v3874 = vpop.f32.mrb[0].mxu0
    %v3875 = vadd.f32 0.0, %v3874
    %v3876 = vpop.f32.mrb[0].mxu0
    %3877 = vdwg.mxu0
    %3878 = vrot.lane.b32.xlu0 %v3614, 120
    %v3879 = vpop.permute.xlu0 %3878
    %3880 = vrot.lane.b32.xlu0 %v3619, 120
    %v3881 = vpop.permute.xlu0 %3880
    %3882 = vrot.lane.b32.xlu0 %v3624, 120
    %v3883 = vpop.permute.xlu0 %3882
    %3884 = vrot.lane.b32.xlu0 %v3700, 120
    %v3885 = vpop.permute.xlu0 %3884
    %3886 = vrot.lane.b32.xlu0 %v3705, 120
    %v3887 = vpop.permute.xlu0 %3886
    %v3888 = vsel %vm212, %v3879, 0
    %v3890 = vsel %vm212, %v3881, 0
    %v3892 = vsel %vm212, %v3883, 0
    %v3894 = vsel %vm212, %v3885, 0
    %v3896 = vsel %vm212, %v3887, 0
    %3898 = vmatprep.subr.mxu0 0.0
    %3899 = vmatpush1.xpose.msra.mxu0 %v3894
    %3900 = vmatprep.subr.mxu0 0.0
    %3901 = vmatpush1.xpose.msra.mxu0 %v3896
    %3902 = vmatprep.subr.mxu0 0.0
    %3903 = vmatpush1.xpose.msra.mxu0 0.0
    %3904 = vmatprep.subr.mxu0 0.0
    %3905 = vmatpush1.xpose.msra.mxu0 0.0
    %3906 = vmatprep.subr.mxu0 0.0
    %3907 = vmatpush1.xpose.msra.mxu0 0.0
    %3908 = vmatprep.subr.mxu0 0.0
    %3909 = vmatpush1.xpose.msra.mxu0 0.0
    %3910 = vmatprep.subr.mxu0 0.0
    %3911 = vmatpush1.xpose.msra.mxu0 0.0
    %3912 = vmatprep.subr.mxu0 0.0
    %3913 = vmatpush1.xpose.msra.mxu0 0.0
    %3914 = vmatprep.subr.mxu0 0.0
    %3915 = vmatpush1.xpose.msra.mxu0 0.0
    %3916 = vmatprep.subr.mxu0 0.0
    %3917 = vmatpush1.xpose.msra.mxu0 0.0
    %3918 = vmatprep.subr.mxu0 0.0
    %3919 = vmatpush1.xpose.msra.mxu0 0.0
    %3920 = vmatprep.subr.mxu0 0.0
    %3921 = vmatpush1.xpose.msra.mxu0 0.0
    %3922 = vmatprep.subr.mxu0 0.0
    %3923 = vmatpush1.xpose.msra.mxu0 0.0
    %3924 = vmatprep.subr.mxu0 0.0
    %3925 = vmatpush1.xpose.msra.mxu0 0.0
    %3926 = vmatprep.subr.mxu0 0.0
    %3927 = vmatpush1.xpose.msra.mxu0 0.0
    %3928 = vmatprep.subr.mxu0 0.0
    %3929 = vmatpush1.xpose.msra.mxu0 0.0
    %3930 = vmatprep.subr.mxu0 0.0
    %3931 = vmatpush1.xpose.msra.mxu0 0.0
    %3932 = vmatprep.subr.mxu0 0.0
    %3933 = vmatpush1.xpose.msra.mxu0 0.0
    %3934 = vmatprep.subr.mxu0 0.0
    %3935 = vmatpush1.xpose.msra.mxu0 0.0
    %3936 = vmatprep.subr.mxu0 0.0
    %3937 = vmatpush1.xpose.msra.mxu0 0.0
    %3938 = vmatprep.subr.mxu0 0.0
    %3939 = vmatpush1.xpose.msra.mxu0 0.0
    %3940 = vmatprep.subr.mxu0 0.0
    %3941 = vmatpush1.xpose.msra.mxu0 0.0
    %3942 = vmatprep.subr.mxu0 0.0
    %3943 = vmatpush1.xpose.msra.mxu0 0.0
    %3944 = vmatprep.subr.mxu0 0.0
    %3945 = vmatpush1.xpose.msra.mxu0 0.0
    %3946 = vmatprep.subr.mxu0 0.0
    %3947 = vmatpush1.xpose.msra.mxu0 0.0
    %3948 = vmatprep.subr.mxu0 0.0
    %3949 = vmatpush1.xpose.msra.mxu0 0.0
    %3950 = vmatprep.subr.mxu0 0.0
    %3951 = vmatpush1.xpose.msra.mxu0 0.0
    %3952 = vmatprep.subr.mxu0 0.0
    %3953 = vmatpush1.xpose.msra.mxu0 0.0
    %3954 = vmatprep.subr.mxu0 0.0
    %3955 = vmatpush1.xpose.msra.mxu0 0.0
    %3956 = vmatprep.subr.mxu0 0.0
    %3957 = vmatpush1.xpose.msra.mxu0 0.0
    %3958 = vmatprep.subr.mxu0 0.0
    %3959 = vmatpush1.xpose.msra.mxu0 0.0
    %3960 = vmatprep.subr.mxu0 0.0
    %3961 = vmatpush1.xpose.msra.mxu0 0.0
    %3962 = vmatprep.mubr.f32.mxu0 0.0
    %3963 = vmatmul.mubr.f32.gmra.mrb[0].mxu0 %v3888
    %v3964 = vpop.f32.mrb[0].mxu0
    %v3965 = vadd.f32 0.0, %v3964
    %v3966 = vpop.f32.mrb[0].mxu0
    %3967 = vmatprep.mubr.f32.mxu0 0.0
    %3968 = vmatmul.mubr.f32.gmra.mrb[0].mxu0 %v3890
    %v3969 = vpop.f32.mrb[0].mxu0
    %v3970 = vadd.f32 0.0, %v3969
    %v3971 = vpop.f32.mrb[0].mxu0
    %3972 = vmatprep.mubr.f32.mxu0 0.0
    %3973 = vmatmul.mubr.f32.gmra.mrb[0].mxu0 %v3892
    %v3974 = vpop.f32.mrb[0].mxu0
    %v3975 = vadd.f32 0.0, %v3974
    %v3976 = vpop.f32.mrb[0].mxu0
    %3977 = vdwg.mxu0
    %3978 = vrot.lane.b32.xlu0 %v3614, 112
    %v3979 = vpop.permute.xlu0 %3978
    %3980 = vrot.lane.b32.xlu0 %v3619, 112
    %v3981 = vpop.permute.xlu0 %3980
    %3982 = vrot.lane.b32.xlu0 %v3624, 112
    %v3983 = vpop.permute.xlu0 %3982
    %3984 = vrot.lane.b32.xlu0 %v3700, 112
    %v3985 = vpop.permute.xlu0 %3984
    %3986 = vrot.lane.b32.xlu0 %v3705, 112
    %v3987 = vpop.permute.xlu0 %3986
    %v3988 = vsel %vm212, %v3979, 0
    %v3990 = vsel %vm212, %v3981, 0
    %v3992 = vsel %vm212, %v3983, 0
    %v3994 = vsel %vm212, %v3985, 0
    %v3996 = vsel %vm212, %v3987, 0
    %3998 = vmatprep.subr.mxu0 0.0
    %3999 = vmatpush1.xpose.msra.mxu0 %v3994
    %4000 = vmatprep.subr.mxu0 0.0
    %4001 = vmatpush1.xpose.msra.mxu0 %v3996
    %4002 = vmatprep.subr.mxu0 0.0
    %4003 = vmatpush1.xpose.msra.mxu0 0.0
    %4004 = vmatprep.subr.mxu0 0.0
    %4005 = vmatpush1.xpose.msra.mxu0 0.0
    %4006 = vmatprep.subr.mxu0 0.0
    %4007 = vmatpush1.xpose.msra.mxu0 0.0
    %4008 = vmatprep.subr.mxu0 0.0
    %4009 = vmatpush1.xpose.msra.mxu0 0.0
    %4010 = vmatprep.subr.mxu0 0.0
    %4011 = vmatpush1.xpose.msra.mxu0 0.0
    %4012 = vmatprep.subr.mxu0 0.0
    %4013 = vmatpush1.xpose.msra.mxu0 0.0
    %4014 = vmatprep.subr.mxu0 0.0
    %4015 = vmatpush1.xpose.msra.mxu0 0.0
    %4016 = vmatprep.subr.mxu0 0.0
    %4017 = vmatpush1.xpose.msra.mxu0 0.0
    %4018 = vmatprep.subr.mxu0 0.0
    %4019 = vmatpush1.xpose.msra.mxu0 0.0
    %4020 = vmatprep.subr.mxu0 0.0
    %4021 = vmatpush1.xpose.msra.mxu0 0.0
    %4022 = vmatprep.subr.mxu0 0.0
    %4023 = vmatpush1.xpose.msra.mxu0 0.0
    %4024 = vmatprep.subr.mxu0 0.0
    %4025 = vmatpush1.xpose.msra.mxu0 0.0
    %4026 = vmatprep.subr.mxu0 0.0
    %4027 = vmatpush1.xpose.msra.mxu0 0.0
    %4028 = vmatprep.subr.mxu0 0.0
    %4029 = vmatpush1.xpose.msra.mxu0 0.0
    %4030 = vmatprep.subr.mxu0 0.0
    %4031 = vmatpush1.xpose.msra.mxu0 0.0
    %4032 = vmatprep.subr.mxu0 0.0
    %4033 = vmatpush1.xpose.msra.mxu0 0.0
    %4034 = vmatprep.subr.mxu0 0.0
    %4035 = vmatpush1.xpose.msra.mxu0 0.0
    %4036 = vmatprep.subr.mxu0 0.0
    %4037 = vmatpush1.xpose.msra.mxu0 0.0
    %4038 = vmatprep.subr.mxu0 0.0
    %4039 = vmatpush1.xpose.msra.mxu0 0.0
    %4040 = vmatprep.subr.mxu0 0.0
    %4041 = vmatpush1.xpose.msra.mxu0 0.0
    %4042 = vmatprep.subr.mxu0 0.0
    %4043 = vmatpush1.xpose.msra.mxu0 0.0
    %4044 = vmatprep.subr.mxu0 0.0
    %4045 = vmatpush1.xpose.msra.mxu0 0.0
    %4046 = vmatprep.subr.mxu0 0.0
    %4047 = vmatpush1.xpose.msra.mxu0 0.0
    %4048 = vmatprep.subr.mxu0 0.0
    %4049 = vmatpush1.xpose.msra.mxu0 0.0
    %4050 = vmatprep.subr.mxu0 0.0
    %4051 = vmatpush1.xpose.msra.mxu0 0.0
    %4052 = vmatprep.subr.mxu0 0.0
    %4053 = vmatpush1.xpose.msra.mxu0 0.0
    %4054 = vmatprep.subr.mxu0 0.0
    %4055 = vmatpush1.xpose.msra.mxu0 0.0
    %4056 = vmatprep.subr.mxu0 0.0
    %4057 = vmatpush1.xpose.msra.mxu0 0.0
    %4058 = vmatprep.subr.mxu0 0.0
    %4059 = vmatpush1.xpose.msra.mxu0 0.0
    %4060 = vmatprep.subr.mxu0 0.0
    %4061 = vmatpush1.xpose.msra.mxu0 0.0
    %4062 = vmatprep.mubr.f32.mxu0 0.0
    %4063 = vmatmul.mubr.f32.gmra.mrb[0].mxu0 %v3988
    %v4064 = vpop.f32.mrb[0].mxu0
    %v4065 = vadd.f32 0.0, %v4064
    %v4066 = vpop.f32.mrb[0].mxu0
    %4067 = vmatprep.mubr.f32.mxu0 0.0
    %4068 = vmatmul.mubr.f32.gmra.mrb[0].mxu0 %v3990
    %v4069 = vpop.f32.mrb[0].mxu0
    %v4070 = vadd.f32 0.0, %v4069
    %v4071 = vpop.f32.mrb[0].mxu0
    %4072 = vmatprep.mubr.f32.mxu0 0.0
    %4073 = vmatmul.mubr.f32.gmra.mrb[0].mxu0 %v3992
    %v4074 = vpop.f32.mrb[0].mxu0
    %v4075 = vadd.f32 0.0, %v4074
    %v4076 = vpop.f32.mrb[0].mxu0
    %4077 = vdwg.mxu0
    %4078 = vrot.lane.b32.xlu0 %v3614, 104
    %v4079 = vpop.permute.xlu0 %4078
    %4080 = vrot.lane.b32.xlu0 %v3619, 104
    %v4081 = vpop.permute.xlu0 %4080
    %4082 = vrot.lane.b32.xlu0 %v3624, 104
    %v4083 = vpop.permute.xlu0 %4082
    %4084 = vrot.lane.b32.xlu0 %v3700, 104
    %v4085 = vpop.permute.xlu0 %4084
    %4086 = vrot.lane.b32.xlu0 %v3705, 104
    %v4087 = vpop.permute.xlu0 %4086
    %v4088 = vsel %vm212, %v4079, 0
    %v4090 = vsel %vm212, %v4081, 0
    %v4092 = vsel %vm212, %v4083, 0
    %v4094 = vsel %vm212, %v4085, 0
    %v4096 = vsel %vm212, %v4087, 0
    %4098 = vmatprep.subr.mxu0 0.0
    %4099 = vmatpush1.xpose.msra.mxu0 %v4094
    %4100 = vmatprep.subr.mxu0 0.0
    %4101 = vmatpush1.xpose.msra.mxu0 %v4096
    %4102 = vmatprep.subr.mxu0 0.0
    %4103 = vmatpush1.xpose.msra.mxu0 0.0
    %4104 = vmatprep.subr.mxu0 0.0
    %4105 = vmatpush1.xpose.msra.mxu0 0.0
    %4106 = vmatprep.subr.mxu0 0.0
    %4107 = vmatpush1.xpose.msra.mxu0 0.0
    %4108 = vmatprep.subr.mxu0 0.0
    %4109 = vmatpush1.xpose.msra.mxu0 0.0
    %4110 = vmatprep.subr.mxu0 0.0
    %4111 = vmatpush1.xpose.msra.mxu0 0.0
    %4112 = vmatprep.subr.mxu0 0.0
    %4113 = vmatpush1.xpose.msra.mxu0 0.0
    %4114 = vmatprep.subr.mxu0 0.0
    %4115 = vmatpush1.xpose.msra.mxu0 0.0
    %4116 = vmatprep.subr.mxu0 0.0
    %4117 = vmatpush1.xpose.msra.mxu0 0.0
    %4118 = vmatprep.subr.mxu0 0.0
    %4119 = vmatpush1.xpose.msra.mxu0 0.0
    %4120 = vmatprep.subr.mxu0 0.0
    %4121 = vmatpush1.xpose.msra.mxu0 0.0
    %4122 = vmatprep.subr.mxu0 0.0
    %4123 = vmatpush1.xpose.msra.mxu0 0.0
    %4124 = vmatprep.subr.mxu0 0.0
    %4125 = vmatpush1.xpose.msra.mxu0 0.0
    %4126 = vmatprep.subr.mxu0 0.0
    %4127 = vmatpush1.xpose.msra.mxu0 0.0
    %4128 = vmatprep.subr.mxu0 0.0
    %4129 = vmatpush1.xpose.msra.mxu0 0.0
    %4130 = vmatprep.subr.mxu0 0.0
    %4131 = vmatpush1.xpose.msra.mxu0 0.0
    %4132 = vmatprep.subr.mxu0 0.0
    %4133 = vmatpush1.xpose.msra.mxu0 0.0
    %4134 = vmatprep.subr.mxu0 0.0
    %4135 = vmatpush1.xpose.msra.mxu0 0.0
    %4136 = vmatprep.subr.mxu0 0.0
    %4137 = vmatpush1.xpose.msra.mxu0 0.0
    %4138 = vmatprep.subr.mxu0 0.0
    %4139 = vmatpush1.xpose.msra.mxu0 0.0
    %4140 = vmatprep.subr.mxu0 0.0
    %4141 = vmatpush1.xpose.msra.mxu0 0.0
    %4142 = vmatprep.subr.mxu0 0.0
    %4143 = vmatpush1.xpose.msra.mxu0 0.0
    %4144 = vmatprep.subr.mxu0 0.0
    %4145 = vmatpush1.xpose.msra.mxu0 0.0
    %4146 = vmatprep.subr.mxu0 0.0
    %4147 = vmatpush1.xpose.msra.mxu0 0.0
    %4148 = vmatprep.subr.mxu0 0.0
    %4149 = vmatpush1.xpose.msra.mxu0 0.0
    %4150 = vmatprep.subr.mxu0 0.0
    %4151 = vmatpush1.xpose.msra.mxu0 0.0
    %4152 = vmatprep.subr.mxu0 0.0
    %4153 = vmatpush1.xpose.msra.mxu0 0.0
    %4154 = vmatprep.subr.mxu0 0.0
    %4155 = vmatpush1.xpose.msra.mxu0 0.0
    %4156 = vmatprep.subr.mxu0 0.0
    %4157 = vmatpush1.xpose.msra.mxu0 0.0
    %4158 = vmatprep.subr.mxu0 0.0
    %4159 = vmatpush1.xpose.msra.mxu0 0.0
    %4160 = vmatprep.subr.mxu0 0.0
    %4161 = vmatpush1.xpose.msra.mxu0 0.0
    %4162 = vmatprep.mubr.f32.mxu0 0.0
    %4163 = vmatmul.mubr.f32.gmra.mrb[0].mxu0 %v4088
    %v4164 = vpop.f32.mrb[0].mxu0
    %v4165 = vadd.f32 0.0, %v4164
    %v4166 = vpop.f32.mrb[0].mxu0
    %4167 = vmatprep.mubr.f32.mxu0 0.0
    %4168 = vmatmul.mubr.f32.gmra.mrb[0].mxu0 %v4090
    %v4169 = vpop.f32.mrb[0].mxu0
    %v4170 = vadd.f32 0.0, %v4169
    %v4171 = vpop.f32.mrb[0].mxu0
    %4172 = vmatprep.mubr.f32.mxu0 0.0
    %4173 = vmatmul.mubr.f32.gmra.mrb[0].mxu0 %v4092
    %v4174 = vpop.f32.mrb[0].mxu0
    %v4175 = vadd.f32 0.0, %v4174
    %v4176 = vpop.f32.mrb[0].mxu0
    %4177 = vdwg.mxu0
    %4181 = vrot.lane.b32.xlu0 %v3965, 16
    %v4182 = vpop.permute.xlu0 %4181
    %4183 = vrot.lane.b32.xlu0 %v3970, 16
    %v4184 = vpop.permute.xlu0 %4183
    %4185 = vrot.lane.b32.xlu0 %v3975, 16
    %v4186 = vpop.permute.xlu0 %4185
    %4193 = vrot.lane.b32.xlu0 %v4065, 32
    %v4194 = vpop.permute.xlu0 %4193
    %4195 = vrot.lane.b32.xlu0 %v4070, 32
    %v4196 = vpop.permute.xlu0 %4195
    %4197 = vrot.lane.b32.xlu0 %v4075, 32
    %v4198 = vpop.permute.xlu0 %4197
    %4205 = vrot.lane.b32.xlu0 %v4165, 48
    %v4206 = vpop.permute.xlu0 %4205
    %4207 = vrot.lane.b32.xlu0 %v4170, 48
    %v4208 = vpop.permute.xlu0 %4207
    %4209 = vrot.lane.b32.xlu0 %v4175, 48
    %v4210 = vpop.permute.xlu0 %4209
    %v4214 = vsel %vm593, %v3865, %v4182
    %v4215 = vsel %vm593, %v3870, %v4184
    %v4216 = vsel %vm593, %v3875, %v4186
    %v4217 = vsel %vm49, %v4214, %v4194
    %v4218 = vsel %vm49, %v4215, %v4196
    %v4219 = vsel %vm49, %v4216, %v4198
    %v4220 = vsel %vm598, %v4217, %v4206
    %v4221 = vsel %vm598, %v4218, %v4208
    %v4222 = vsel %vm598, %v4219, %v4210
    %v4223 = vadd.f32 %v4220, %v38
    %v4224 = vadd.f32 %v4221, %v39
    %v4225 = vadd.f32 %v4222, %v40
    %v4226 = vsel %vm603, %v4223, -inf
    %v4227 = vsel %vm603, %v4224, -inf
    %vm4228 = vcmask 517120
    %v4229 = vsel %vm4228, %v4225, -inf
    %v4230 = vmax.f32 %v4226, %v4227
    %v4231 = vmax.f32 %v4230, %v4229
    %v4232 = vrot.slane %v4231, 4
    %v4233 = vmax.f32 %v4231, %v4232
    %v4234 = vrot.slane %v4233, 2
    %v4235 = vmax.f32 %v4233, %v4234
    %v4236 = vrot.slane %v4235, 1
    %v4237 = vmax.f32 %v4235, %v4236
    %v4238 = vsub.f32 %v4223, %v4237
    %v4239 = vsub.f32 %v4224, %v4237
    %v4240 = vsub.f32 %v4225, %v4237
    %v4241 = vmul.f32 %v4238, 1.442695
    %v4242 = vpow.pop %v4241
    %v4243 = vmul.f32 %v4239, 1.442695
    %v4244 = vpow.pop %v4243
    %v4245 = vmul.f32 %v4240, 1.442695
    %v4246 = vpow.pop %v4245
    %v4247 = vsel %vm603, %v4242, 0.0
    %v4248 = vsel %vm603, %v4244, 0.0
    %v4249 = vadd.f32 %v4247, %v4248
    %v4250 = vsel %vm4228, %v4246, 0.0
    %v4251 = vadd.f32 %v4249, %v4250
    %v4252 = vrot.slane %v4251, 4
    %v4253 = vadd.f32 %v4251, %v4252
    %v4254 = vrot.slane %v4253, 2
    %v4255 = vadd.f32 %v4253, %v4254
    %v4256 = vrot.slane %v4255, 1
    %v4257 = vadd.f32 %v4255, %v4256
    %v4258 = vrcp.pop %v4257
    %v4259 = vmul.f32 %v4242, %v4258
    %v4260 = vmul.f32 %v4244, %v4258
    %v4261 = vmul.f32 %v4246, %v4258
    %4265 = vrot.lane.b32.xlu0 %v4259, 112
    %v4266 = vpop.permute.xlu0 %4265
    %4267 = vrot.lane.b32.xlu0 %v4260, 112
    %v4268 = vpop.permute.xlu0 %4267
    %4269 = vrot.lane.b32.xlu0 %v4261, 112
    %v4270 = vpop.permute.xlu0 %4269
    %4273 = vrot.lane.b32.xlu0 %v3775, 96
    %v4274 = vpop.permute.xlu0 %4273
    %4275 = vrot.lane.b32.xlu0 %v3780, 96
    %v4276 = vpop.permute.xlu0 %4275
    %v4279 = vsel %vm593, %v4266, 0
    %v4281 = vsel %vm593, %v4268, 0
    %v4283 = vsel %vm593, %v4270, 0
    %4285 = vmatprep.subr.mxu0 0.0
    %4286 = vmatpush1.msra.mxu0 %v4274
    %4287 = vmatprep.subr.mxu0 0.0
    %4288 = vmatpush1.msra.mxu0 %v4276
    %4289 = vmatprep.subr.mxu0 0.0
    %4290 = vmatpush1.msra.mxu0 0.0
    %4291 = vmatprep.subr.mxu0 0.0
    %4292 = vmatpush1.msra.mxu0 0.0
    %4293 = vmatprep.subr.mxu0 0.0
    %4294 = vmatpush1.msra.mxu0 0.0
    %4295 = vmatprep.subr.mxu0 0.0
    %4296 = vmatpush1.msra.mxu0 0.0
    %4297 = vmatprep.subr.mxu0 0.0
    %4298 = vmatpush1.msra.mxu0 0.0
    %4299 = vmatprep.subr.mxu0 0.0
    %4300 = vmatpush1.msra.mxu0 0.0
    %4301 = vmatprep.subr.mxu0 0.0
    %4302 = vmatpush1.msra.mxu0 0.0
    %4303 = vmatprep.subr.mxu0 0.0
    %4304 = vmatpush1.msra.mxu0 0.0
    %4305 = vmatprep.subr.mxu0 0.0
    %4306 = vmatpush1.msra.mxu0 0.0
    %4307 = vmatprep.subr.mxu0 0.0
    %4308 = vmatpush1.msra.mxu0 0.0
    %4309 = vmatprep.subr.mxu0 0.0
    %4310 = vmatpush1.msra.mxu0 0.0
    %4311 = vmatprep.subr.mxu0 0.0
    %4312 = vmatpush1.msra.mxu0 0.0
    %4313 = vmatprep.subr.mxu0 0.0
    %4314 = vmatpush1.msra.mxu0 0.0
    %4315 = vmatprep.subr.mxu0 0.0
    %4316 = vmatpush1.msra.mxu0 0.0
    %4317 = vmatprep.subr.mxu0 0.0
    %4318 = vmatpush1.msra.mxu0 0.0
    %4319 = vmatprep.subr.mxu0 0.0
    %4320 = vmatpush1.msra.mxu0 0.0
    %4321 = vmatprep.subr.mxu0 0.0
    %4322 = vmatpush1.msra.mxu0 0.0
    %4323 = vmatprep.subr.mxu0 0.0
    %4324 = vmatpush1.msra.mxu0 0.0
    %4325 = vmatprep.subr.mxu0 0.0
    %4326 = vmatpush1.msra.mxu0 0.0
    %4327 = vmatprep.subr.mxu0 0.0
    %4328 = vmatpush1.msra.mxu0 0.0
    %4329 = vmatprep.subr.mxu0 0.0
    %4330 = vmatpush1.msra.mxu0 0.0
    %4331 = vmatprep.subr.mxu0 0.0
    %4332 = vmatpush1.msra.mxu0 0.0
    %4333 = vmatprep.subr.mxu0 0.0
    %4334 = vmatpush1.msra.mxu0 0.0
    %4335 = vmatprep.subr.mxu0 0.0
    %4336 = vmatpush1.msra.mxu0 0.0
    %4337 = vmatprep.subr.mxu0 0.0
    %4338 = vmatpush1.msra.mxu0 0.0
    %4339 = vmatprep.subr.mxu0 0.0
    %4340 = vmatpush1.msra.mxu0 0.0
    %4341 = vmatprep.subr.mxu0 0.0
    %4342 = vmatpush1.msra.mxu0 0.0
    %4343 = vmatprep.subr.mxu0 0.0
    %4344 = vmatpush1.msra.mxu0 0.0
    %4345 = vmatprep.subr.mxu0 0.0
    %4346 = vmatpush1.msra.mxu0 0.0
    %4347 = vmatprep.subr.mxu0 0.0
    %4348 = vmatpush1.msra.mxu0 0.0
    %4349 = vmatprep.mubr.f32.mxu0 0.0
    %4350 = vmatmul.mubr.f32.gmra.mrb[0].mxu0 %v4279
    %v4351 = vpop.f32.mrb[0].mxu0
    %v4352 = vadd.f32 0.0, %v4351
    %v4353 = vpop.f32.mrb[0].mxu0
    %4354 = vmatprep.mubr.f32.mxu0 0.0
    %4355 = vmatmul.mubr.f32.gmra.mrb[0].mxu0 %v4281
    %v4356 = vpop.f32.mrb[0].mxu0
    %v4357 = vadd.f32 0.0, %v4356
    %v4358 = vpop.f32.mrb[0].mxu0
    %4359 = vmatprep.mubr.f32.mxu0 0.0
    %4360 = vmatmul.mubr.f32.gmra.mrb[0].mxu0 %v4283
    %v4361 = vpop.f32.mrb[0].mxu0
    %v4362 = vadd.f32 0.0, %v4361
    %v4363 = vpop.f32.mrb[0].mxu0
    %4364 = vdwg.mxu0
    %v4365 = vsel %vm593, %v4259, 0
    %v4367 = vsel %vm593, %v4260, 0
    %v4369 = vsel %vm593, %v4261, 0
    %4371 = vmatprep.subr.mxu0 0.0
    %4372 = vmatpush1.msra.mxu0 %v3775
    %4373 = vmatprep.subr.mxu0 0.0
    %4374 = vmatpush1.msra.mxu0 %v3780
    %4375 = vmatprep.subr.mxu0 0.0
    %4376 = vmatpush1.msra.mxu0 0.0
    %4377 = vmatprep.subr.mxu0 0.0
    %4378 = vmatpush1.msra.mxu0 0.0
    %4379 = vmatprep.subr.mxu0 0.0
    %4380 = vmatpush1.msra.mxu0 0.0
    %4381 = vmatprep.subr.mxu0 0.0
    %4382 = vmatpush1.msra.mxu0 0.0
    %4383 = vmatprep.subr.mxu0 0.0
    %4384 = vmatpush1.msra.mxu0 0.0
    %4385 = vmatprep.subr.mxu0 0.0
    %4386 = vmatpush1.msra.mxu0 0.0
    %4387 = vmatprep.subr.mxu0 0.0
    %4388 = vmatpush1.msra.mxu0 0.0
    %4389 = vmatprep.subr.mxu0 0.0
    %4390 = vmatpush1.msra.mxu0 0.0
    %4391 = vmatprep.subr.mxu0 0.0
    %4392 = vmatpush1.msra.mxu0 0.0
    %4393 = vmatprep.subr.mxu0 0.0
    %4394 = vmatpush1.msra.mxu0 0.0
    %4395 = vmatprep.subr.mxu0 0.0
    %4396 = vmatpush1.msra.mxu0 0.0
    %4397 = vmatprep.subr.mxu0 0.0
    %4398 = vmatpush1.msra.mxu0 0.0
    %4399 = vmatprep.subr.mxu0 0.0
    %4400 = vmatpush1.msra.mxu0 0.0
    %4401 = vmatprep.subr.mxu0 0.0
    %4402 = vmatpush1.msra.mxu0 0.0
    %4403 = vmatprep.subr.mxu0 0.0
    %4404 = vmatpush1.msra.mxu0 0.0
    %4405 = vmatprep.subr.mxu0 0.0
    %4406 = vmatpush1.msra.mxu0 0.0
    %4407 = vmatprep.subr.mxu0 0.0
    %4408 = vmatpush1.msra.mxu0 0.0
    %4409 = vmatprep.subr.mxu0 0.0
    %4410 = vmatpush1.msra.mxu0 0.0
    %4411 = vmatprep.subr.mxu0 0.0
    %4412 = vmatpush1.msra.mxu0 0.0
    %4413 = vmatprep.subr.mxu0 0.0
    %4414 = vmatpush1.msra.mxu0 0.0
    %4415 = vmatprep.subr.mxu0 0.0
    %4416 = vmatpush1.msra.mxu0 0.0
    %4417 = vmatprep.subr.mxu0 0.0
    %4418 = vmatpush1.msra.mxu0 0.0
    %4419 = vmatprep.subr.mxu0 0.0
    %4420 = vmatpush1.msra.mxu0 0.0
    %4421 = vmatprep.subr.mxu0 0.0
    %4422 = vmatpush1.msra.mxu0 0.0
    %4423 = vmatprep.subr.mxu0 0.0
    %4424 = vmatpush1.msra.mxu0 0.0
    %4425 = vmatprep.subr.mxu0 0.0
    %4426 = vmatpush1.msra.mxu0 0.0
    %4427 = vmatprep.subr.mxu0 0.0
    %4428 = vmatpush1.msra.mxu0 0.0
    %4429 = vmatprep.subr.mxu0 0.0
    %4430 = vmatpush1.msra.mxu0 0.0
    %4431 = vmatprep.subr.mxu0 0.0
    %4432 = vmatpush1.msra.mxu0 0.0
    %4433 = vmatprep.subr.mxu0 0.0
    %4434 = vmatpush1.msra.mxu0 0.0
    %4435 = vmatprep.mubr.f32.mxu0 0.0
    %4436 = vmatmul.mubr.f32.gmra.mrb[0].mxu0 %v4365
    %v4437 = vpop.f32.mrb[0].mxu0
    %v4438 = vadd.f32 %v4352, %v4437
    %v4439 = vpop.f32.mrb[0].mxu0
    %4440 = vmatprep.mubr.f32.mxu0 0.0
    %4441 = vmatmul.mubr.f32.gmra.mrb[0].mxu0 %v4367
    %v4442 = vpop.f32.mrb[0].mxu0
    %v4443 = vadd.f32 %v4357, %v4442
    %v4444 = vpop.f32.mrb[0].mxu0
    %4445 = vmatprep.mubr.f32.mxu0 0.0
    %4446 = vmatmul.mubr.f32.gmra.mrb[0].mxu0 %v4369
    %v4447 = vpop.f32.mrb[0].mxu0
    %v4448 = vadd.f32 %v4362, %v4447
    %v4449 = vpop.f32.mrb[0].mxu0
    %4450 = vdwg.mxu0
    %4451 = vrot.lane.b32.xlu0 %v4259, 96
    %v4452 = vpop.permute.xlu0 %4451
    %4453 = vrot.lane.b32.xlu0 %v4260, 96
    %v4454 = vpop.permute.xlu0 %4453
    %4455 = vrot.lane.b32.xlu0 %v4261, 96
    %v4456 = vpop.permute.xlu0 %4455
    %4457 = vrot.lane.b32.xlu0 %v3775, 64
    %v4458 = vpop.permute.xlu0 %4457
    %4459 = vrot.lane.b32.xlu0 %v3780, 64
    %v4460 = vpop.permute.xlu0 %4459
    %v4463 = vsel %vm593, %v4452, 0
    %v4465 = vsel %vm593, %v4454, 0
    %v4467 = vsel %vm593, %v4456, 0
    %4469 = vmatprep.subr.mxu0 0.0
    %4470 = vmatpush1.msra.mxu0 %v4458
    %4471 = vmatprep.subr.mxu0 0.0
    %4472 = vmatpush1.msra.mxu0 %v4460
    %4473 = vmatprep.subr.mxu0 0.0
    %4474 = vmatpush1.msra.mxu0 0.0
    %4475 = vmatprep.subr.mxu0 0.0
    %4476 = vmatpush1.msra.mxu0 0.0
    %4477 = vmatprep.subr.mxu0 0.0
    %4478 = vmatpush1.msra.mxu0 0.0
    %4479 = vmatprep.subr.mxu0 0.0
    %4480 = vmatpush1.msra.mxu0 0.0
    %4481 = vmatprep.subr.mxu0 0.0
    %4482 = vmatpush1.msra.mxu0 0.0
    %4483 = vmatprep.subr.mxu0 0.0
    %4484 = vmatpush1.msra.mxu0 0.0
    %4485 = vmatprep.subr.mxu0 0.0
    %4486 = vmatpush1.msra.mxu0 0.0
    %4487 = vmatprep.subr.mxu0 0.0
    %4488 = vmatpush1.msra.mxu0 0.0
    %4489 = vmatprep.subr.mxu0 0.0
    %4490 = vmatpush1.msra.mxu0 0.0
    %4491 = vmatprep.subr.mxu0 0.0
    %4492 = vmatpush1.msra.mxu0 0.0
    %4493 = vmatprep.subr.mxu0 0.0
    %4494 = vmatpush1.msra.mxu0 0.0
    %4495 = vmatprep.subr.mxu0 0.0
    %4496 = vmatpush1.msra.mxu0 0.0
    %4497 = vmatprep.subr.mxu0 0.0
    %4498 = vmatpush1.msra.mxu0 0.0
    %4499 = vmatprep.subr.mxu0 0.0
    %4500 = vmatpush1.msra.mxu0 0.0
    %4501 = vmatprep.subr.mxu0 0.0
    %4502 = vmatpush1.msra.mxu0 0.0
    %4503 = vmatprep.subr.mxu0 0.0
    %4504 = vmatpush1.msra.mxu0 0.0
    %4505 = vmatprep.subr.mxu0 0.0
    %4506 = vmatpush1.msra.mxu0 0.0
    %4507 = vmatprep.subr.mxu0 0.0
    %4508 = vmatpush1.msra.mxu0 0.0
    %4509 = vmatprep.subr.mxu0 0.0
    %4510 = vmatpush1.msra.mxu0 0.0
    %4511 = vmatprep.subr.mxu0 0.0
    %4512 = vmatpush1.msra.mxu0 0.0
    %4513 = vmatprep.subr.mxu0 0.0
    %4514 = vmatpush1.msra.mxu0 0.0
    %4515 = vmatprep.subr.mxu0 0.0
    %4516 = vmatpush1.msra.mxu0 0.0
    %4517 = vmatprep.subr.mxu0 0.0
    %4518 = vmatpush1.msra.mxu0 0.0
    %4519 = vmatprep.subr.mxu0 0.0
    %4520 = vmatpush1.msra.mxu0 0.0
    %4521 = vmatprep.subr.mxu0 0.0
    %4522 = vmatpush1.msra.mxu0 0.0
    %4523 = vmatprep.subr.mxu0 0.0
    %4524 = vmatpush1.msra.mxu0 0.0
    %4525 = vmatprep.subr.mxu0 0.0
    %4526 = vmatpush1.msra.mxu0 0.0
    %4527 = vmatprep.subr.mxu0 0.0
    %4528 = vmatpush1.msra.mxu0 0.0
    %4529 = vmatprep.subr.mxu0 0.0
    %4530 = vmatpush1.msra.mxu0 0.0
    %4531 = vmatprep.subr.mxu0 0.0
    %4532 = vmatpush1.msra.mxu0 0.0
    %4533 = vmatprep.mubr.f32.mxu0 0.0
    %4534 = vmatmul.mubr.f32.gmra.mrb[0].mxu0 %v4463
    %v4535 = vpop.f32.mrb[0].mxu0
    %v4536 = vadd.f32 0.0, %v4535
    %v4537 = vpop.f32.mrb[0].mxu0
    %4538 = vmatprep.mubr.f32.mxu0 0.0
    %4539 = vmatmul.mubr.f32.gmra.mrb[0].mxu0 %v4465
    %v4540 = vpop.f32.mrb[0].mxu0
    %v4541 = vadd.f32 0.0, %v4540
    %v4542 = vpop.f32.mrb[0].mxu0
    %4543 = vmatprep.mubr.f32.mxu0 0.0
    %4544 = vmatmul.mubr.f32.gmra.mrb[0].mxu0 %v4467
    %v4545 = vpop.f32.mrb[0].mxu0
    %v4546 = vadd.f32 0.0, %v4545
    %v4547 = vpop.f32.mrb[0].mxu0
    %4548 = vdwg.mxu0
    %v4549 = vadd.f32 %v4438, %v4536
    %v4550 = vadd.f32 %v4443, %v4541
    %v4551 = vadd.f32 %v4448, %v4546
    %4552 = vrot.lane.b32.xlu0 %v4259, 80
    %v4553 = vpop.permute.xlu0 %4552
    %4554 = vrot.lane.b32.xlu0 %v4260, 80
    %v4555 = vpop.permute.xlu0 %4554
    %4556 = vrot.lane.b32.xlu0 %v4261, 80
    %v4557 = vpop.permute.xlu0 %4556
    %4558 = vrot.lane.b32.xlu0 %v3775, 32
    %v4559 = vpop.permute.xlu0 %4558
    %4560 = vrot.lane.b32.xlu0 %v3780, 32
    %v4561 = vpop.permute.xlu0 %4560
    %v4564 = vsel %vm593, %v4553, 0
    %v4566 = vsel %vm593, %v4555, 0
    %v4568 = vsel %vm593, %v4557, 0
    %4570 = vmatprep.subr.mxu0 0.0
    %4571 = vmatpush1.msra.mxu0 %v4559
    %4572 = vmatprep.subr.mxu0 0.0
    %4573 = vmatpush1.msra.mxu0 %v4561
    %4574 = vmatprep.subr.mxu0 0.0
    %4575 = vmatpush1.msra.mxu0 0.0
    %4576 = vmatprep.subr.mxu0 0.0
    %4577 = vmatpush1.msra.mxu0 0.0
    %4578 = vmatprep.subr.mxu0 0.0
    %4579 = vmatpush1.msra.mxu0 0.0
    %4580 = vmatprep.subr.mxu0 0.0
    %4581 = vmatpush1.msra.mxu0 0.0
    %4582 = vmatprep.subr.mxu0 0.0
    %4583 = vmatpush1.msra.mxu0 0.0
    %4584 = vmatprep.subr.mxu0 0.0
    %4585 = vmatpush1.msra.mxu0 0.0
    %4586 = vmatprep.subr.mxu0 0.0
    %4587 = vmatpush1.msra.mxu0 0.0
    %4588 = vmatprep.subr.mxu0 0.0
    %4589 = vmatpush1.msra.mxu0 0.0
    %4590 = vmatprep.subr.mxu0 0.0
    %4591 = vmatpush1.msra.mxu0 0.0
    %4592 = vmatprep.subr.mxu0 0.0
    %4593 = vmatpush1.msra.mxu0 0.0
    %4594 = vmatprep.subr.mxu0 0.0
    %4595 = vmatpush1.msra.mxu0 0.0
    %4596 = vmatprep.subr.mxu0 0.0
    %4597 = vmatpush1.msra.mxu0 0.0
    %4598 = vmatprep.subr.mxu0 0.0
    %4599 = vmatpush1.msra.mxu0 0.0
    %4600 = vmatprep.subr.mxu0 0.0
    %4601 = vmatpush1.msra.mxu0 0.0
    %4602 = vmatprep.subr.mxu0 0.0
    %4603 = vmatpush1.msra.mxu0 0.0
    %4604 = vmatprep.subr.mxu0 0.0
    %4605 = vmatpush1.msra.mxu0 0.0
    %4606 = vmatprep.subr.mxu0 0.0
    %4607 = vmatpush1.msra.mxu0 0.0
    %4608 = vmatprep.subr.mxu0 0.0
    %4609 = vmatpush1.msra.mxu0 0.0
    %4610 = vmatprep.subr.mxu0 0.0
    %4611 = vmatpush1.msra.mxu0 0.0
    %4612 = vmatprep.subr.mxu0 0.0
    %4613 = vmatpush1.msra.mxu0 0.0
    %4614 = vmatprep.subr.mxu0 0.0
    %4615 = vmatpush1.msra.mxu0 0.0
    %4616 = vmatprep.subr.mxu0 0.0
    %4617 = vmatpush1.msra.mxu0 0.0
    %4618 = vmatprep.subr.mxu0 0.0
    %4619 = vmatpush1.msra.mxu0 0.0
    %4620 = vmatprep.subr.mxu0 0.0
    %4621 = vmatpush1.msra.mxu0 0.0
    %4622 = vmatprep.subr.mxu0 0.0
    %4623 = vmatpush1.msra.mxu0 0.0
    %4624 = vmatprep.subr.mxu0 0.0
    %4625 = vmatpush1.msra.mxu0 0.0
    %4626 = vmatprep.subr.mxu0 0.0
    %4627 = vmatpush1.msra.mxu0 0.0
    %4628 = vmatprep.subr.mxu0 0.0
    %4629 = vmatpush1.msra.mxu0 0.0
    %4630 = vmatprep.subr.mxu0 0.0
    %4631 = vmatpush1.msra.mxu0 0.0
    %4632 = vmatprep.subr.mxu0 0.0
    %4633 = vmatpush1.msra.mxu0 0.0
    %4634 = vmatprep.mubr.f32.mxu0 0.0
    %4635 = vmatmul.mubr.f32.gmra.mrb[0].mxu0 %v4564
    %v4636 = vpop.f32.mrb[0].mxu0
    %v4637 = vadd.f32 0.0, %v4636
    %v4638 = vpop.f32.mrb[0].mxu0
    %4639 = vmatprep.mubr.f32.mxu0 0.0
    %4640 = vmatmul.mubr.f32.gmra.mrb[0].mxu0 %v4566
    %v4641 = vpop.f32.mrb[0].mxu0
    %v4642 = vadd.f32 0.0, %v4641
    %v4643 = vpop.f32.mrb[0].mxu0
    %4644 = vmatprep.mubr.f32.mxu0 0.0
    %4645 = vmatmul.mubr.f32.gmra.mrb[0].mxu0 %v4568
    %v4646 = vpop.f32.mrb[0].mxu0
    %v4647 = vadd.f32 0.0, %v4646
    %v4648 = vpop.f32.mrb[0].mxu0
    %4649 = vdwg.mxu0
    %v4650 = vadd.f32 %v4549, %v4637
    %v4651 = vadd.f32 %v4550, %v4642
    %v4652 = vadd.f32 %v4551, %v4647
    %v4653 = vadd.f32 %v4650, %v3523
    %v4654 = vadd.f32 %v4651, %v3524
    %v4655 = vadd.f32 %v4652, %v3525
    %v4656 = vsel %vm49, %v4653, 0.0
    %4657 = vadd.xlane.f32.xlu0 %v4656
    %v4658 = vpop.xlane.xlu0 %4657
    %v4659 = vsel %vm49, %v4654, 0.0
    %4660 = vadd.xlane.f32.xlu0 %v4659
    %v4661 = vpop.xlane.xlu0 %4660
    %v4662 = vsel %vm3495, %v4655, 0.0
    %4663 = vadd.xlane.f32.xlu0 %v4662
    %v4664 = vpop.xlane.xlu0 %4663
    %v4665 = vmul.f32 %v4658, %v993
    %v4666 = vmul.f32 %v4661, %v993
    %v4667 = vmul.f32 %v4664, %v993
    %v4668 = vsub.f32 %v4653, %v4665
    %v4669 = vsub.f32 %v4654, %v4666
    %v4670 = vsub.f32 %v4655, %v4667
    %v4671 = vmul.f32 %v4668, %v4668
    %v4672 = vmul.f32 %v4669, %v4669
    %v4673 = vmul.f32 %v4670, %v4670
    %v4674 = vsel %vm49, %v4671, 0.0
    %4675 = vadd.xlane.f32.xlu0 %v4674
    %v4676 = vpop.xlane.xlu0 %4675
    %v4677 = vsel %vm49, %v4672, 0.0
    %4678 = vadd.xlane.f32.xlu0 %v4677
    %v4679 = vpop.xlane.xlu0 %4678
    %v4680 = vsel %vm3495, %v4673, 0.0
    %4681 = vadd.xlane.f32.xlu0 %v4680
    %v4682 = vpop.xlane.xlu0 %4681
    %v4683 = vmul.f32 %v4676, 0.032258064
    %v4684 = vmul.f32 %v4679, 0.032258064
    %v4685 = vmul.f32 %v4682, 0.032258064
    %v4686 = vrsqrt.pop %v4683
    %v4687 = vrsqrt.pop %v4684
    %v4688 = vrsqrt.pop %v4685
    %v4689 = vmul.f32 %v4668, %v4686
    %v4690 = vmul.f32 %v4669, %v4687
    %v4691 = vmul.f32 %v4670, %v4688
    %v4692 = vld [vmem:[#allocation2 + $0x200] sm:$0xff]
    %v4693 = vld [vmem:[#allocation2 + $0x208] sm:$0xff]
    %v4694 = vld [vmem:[#allocation2 + $0x210] sm:$0xff]
    %v4695 = vld [vmem:[#allocation2 + $0x218] sm:$0xff]
    %v4696 = vld [vmem:[#allocation2 + $0x220] sm:$0x1]
    %v4697 = vld [vmem:[#allocation2 + $0x228] sm:$0xff]
    %v4698 = vld [vmem:[#allocation2 + $0x230] sm:$0xff]
    %v4699 = vld [vmem:[#allocation2 + $0x238] sm:$0xff]
    %v4700 = vld [vmem:[#allocation2 + $0x240] sm:$0xff]
    %v4701 = vld [vmem:[#allocation2 + $0x248] sm:$0xff]
    %v4702 = vld [vmem:[#allocation2 + $0x250] sm:$0xff]
    %v4703 = vld [vmem:[#allocation2 + $0x258] sm:$0xff]
    %v4704 = vld [vmem:[#allocation2 + $0x260] sm:$0xff]
    %v4705 = vld [vmem:[#allocation2 + $0x268] sm:$0x1]
    %v4706 = vlaneseq
    %v4707 = vshrl.u32 %v4706, 7
    %v4708 = vsub.s32 0, %v4707
    %v4709 = vrot.slane %v4696, %v4708
    %v4711 = vsel %vm49, %v4689, 0
    %v4714 = vsel %vm49, %v4690, 0
    %v4717 = vsel %vm49, %v4691, 0
    %4719 = vmatprep.subr.mxu0 0.0
    %4720 = vmatpush1.msra.mxu0 %v4692
    %4721 = vmatprep.subr.mxu0 0.0
    %4722 = vmatpush1.msra.mxu0 %v4693
    %4723 = vmatprep.subr.mxu0 0.0
    %4724 = vmatpush1.msra.mxu0 %v4694
    %4725 = vmatprep.subr.mxu0 0.0
    %4726 = vmatpush1.msra.mxu0 %v4695
    %4727 = vmatprep.subr.mxu0 0.0
    %4728 = vmatpush1.msra.mxu0 0.0
    %4729 = vmatprep.subr.mxu0 0.0
    %4730 = vmatpush1.msra.mxu0 0.0
    %4731 = vmatprep.subr.mxu0 0.0
    %4732 = vmatpush1.msra.mxu0 0.0
    %4733 = vmatprep.subr.mxu0 0.0
    %4734 = vmatpush1.msra.mxu0 0.0
    %4735 = vmatprep.subr.mxu0 0.0
    %4736 = vmatpush1.msra.mxu0 0.0
    %4737 = vmatprep.subr.mxu0 0.0
    %4738 = vmatpush1.msra.mxu0 0.0
    %4739 = vmatprep.subr.mxu0 0.0
    %4740 = vmatpush1.msra.mxu0 0.0
    %4741 = vmatprep.subr.mxu0 0.0
    %4742 = vmatpush1.msra.mxu0 0.0
    %4743 = vmatprep.subr.mxu0 0.0
    %4744 = vmatpush1.msra.mxu0 0.0
    %4745 = vmatprep.subr.mxu0 0.0
    %4746 = vmatpush1.msra.mxu0 0.0
    %4747 = vmatprep.subr.mxu0 0.0
    %4748 = vmatpush1.msra.mxu0 0.0
    %4749 = vmatprep.subr.mxu0 0.0
    %4750 = vmatpush1.msra.mxu0 0.0
    %4751 = vmatprep.subr.mxu0 0.0
    %4752 = vmatpush1.msra.mxu0 0.0
    %4753 = vmatprep.subr.mxu0 0.0
    %4754 = vmatpush1.msra.mxu0 0.0
    %4755 = vmatprep.subr.mxu0 0.0
    %4756 = vmatpush1.msra.mxu0 0.0
    %4757 = vmatprep.subr.mxu0 0.0
    %4758 = vmatpush1.msra.mxu0 0.0
    %4759 = vmatprep.subr.mxu0 0.0
    %4760 = vmatpush1.msra.mxu0 0.0
    %4761 = vmatprep.subr.mxu0 0.0
    %4762 = vmatpush1.msra.mxu0 0.0
    %4763 = vmatprep.subr.mxu0 0.0
    %4764 = vmatpush1.msra.mxu0 0.0
    %4765 = vmatprep.subr.mxu0 0.0
    %4766 = vmatpush1.msra.mxu0 0.0
    %4767 = vmatprep.subr.mxu0 0.0
    %4768 = vmatpush1.msra.mxu0 0.0
    %4769 = vmatprep.subr.mxu0 0.0
    %4770 = vmatpush1.msra.mxu0 0.0
    %4771 = vmatprep.subr.mxu0 0.0
    %4772 = vmatpush1.msra.mxu0 0.0
    %4773 = vmatprep.subr.mxu0 0.0
    %4774 = vmatpush1.msra.mxu0 0.0
    %4775 = vmatprep.subr.mxu0 0.0
    %4776 = vmatpush1.msra.mxu0 0.0
    %4777 = vmatprep.subr.mxu0 0.0
    %4778 = vmatpush1.msra.mxu0 0.0
    %4779 = vmatprep.subr.mxu0 0.0
    %4780 = vmatpush1.msra.mxu0 0.0
    %4781 = vmatprep.subr.mxu0 0.0
    %4782 = vmatpush1.msra.mxu0 0.0
    %4783 = vmatprep.mubr.f32.mxu0 0.0
    %4784 = vmatmul.mubr.f32.gmra.mrb[0].mxu0 %v4711
    %v4785 = vpop.f32.mrb[0].mxu0
    %v4786 = vadd.f32 %v4709, %v4785
    %v4787 = vpop.f32.mrb[0].mxu0
    %4788 = vmatprep.mubr.f32.mxu0 0.0
    %4789 = vmatmul.mubr.f32.gmra.mrb[0].mxu0 %v4714
    %v4790 = vpop.f32.mrb[0].mxu0
    %v4791 = vadd.f32 %v4709, %v4790
    %v4792 = vpop.f32.mrb[0].mxu0
    %4793 = vmatprep.mubr.f32.mxu0 0.0
    %4794 = vmatmul.mubr.f32.gmra.mrb[0].mxu0 %v4717
    %v4795 = vpop.f32.mrb[0].mxu0
    %v4796 = vadd.f32 %v4709, %v4795
    %v4797 = vpop.f32.mrb[0].mxu0
    %4798 = vdwg.mxu0
    %v4799 = vmax.f32 %v4786, 0.0
    %v4800 = vmax.f32 %v4791, 0.0
    %v4801 = vmax.f32 %v4796, 0.0
    %v4802 = vlaneseq
    %v4803 = vshrl.u32 %v4802, 7
    %v4804 = vsub.s32 0, %v4803
    %v4805 = vrot.slane %v4705, %v4804
    %v4807 = vsel %vm603, %v4799, 0
    %v4810 = vsel %vm603, %v4800, 0
    %v4813 = vsel %vm603, %v4801, 0
    %4815 = vmatprep.subr.mxu0 0.0
    %4816 = vmatpush1.msra.mxu0 %v4697
    %4817 = vmatprep.subr.mxu0 0.0
    %4818 = vmatpush1.msra.mxu0 %v4698
    %4819 = vmatprep.subr.mxu0 0.0
    %4820 = vmatpush1.msra.mxu0 %v4699
    %4821 = vmatprep.subr.mxu0 0.0
    %4822 = vmatpush1.msra.mxu0 %v4700
    %4823 = vmatprep.subr.mxu0 0.0
    %4824 = vmatpush1.msra.mxu0 %v4701
    %4825 = vmatprep.subr.mxu0 0.0
    %4826 = vmatpush1.msra.mxu0 %v4702
    %4827 = vmatprep.subr.mxu0 0.0
    %4828 = vmatpush1.msra.mxu0 %v4703
    %4829 = vmatprep.subr.mxu0 0.0
    %4830 = vmatpush1.msra.mxu0 %v4704
    %4831 = vmatprep.subr.mxu0 0.0
    %4832 = vmatpush1.msra.mxu0 0.0
    %4833 = vmatprep.subr.mxu0 0.0
    %4834 = vmatpush1.msra.mxu0 0.0
    %4835 = vmatprep.subr.mxu0 0.0
    %4836 = vmatpush1.msra.mxu0 0.0
    %4837 = vmatprep.subr.mxu0 0.0
    %4838 = vmatpush1.msra.mxu0 0.0
    %4839 = vmatprep.subr.mxu0 0.0
    %4840 = vmatpush1.msra.mxu0 0.0
    %4841 = vmatprep.subr.mxu0 0.0
    %4842 = vmatpush1.msra.mxu0 0.0
    %4843 = vmatprep.subr.mxu0 0.0
    %4844 = vmatpush1.msra.mxu0 0.0
    %4845 = vmatprep.subr.mxu0 0.0
    %4846 = vmatpush1.msra.mxu0 0.0
    %4847 = vmatprep.subr.mxu0 0.0
    %4848 = vmatpush1.msra.mxu0 0.0
    %4849 = vmatprep.subr.mxu0 0.0
    %4850 = vmatpush1.msra.mxu0 0.0
    %4851 = vmatprep.subr.mxu0 0.0
    %4852 = vmatpush1.msra.mxu0 0.0
    %4853 = vmatprep.subr.mxu0 0.0
    %4854 = vmatpush1.msra.mxu0 0.0
    %4855 = vmatprep.subr.mxu0 0.0
    %4856 = vmatpush1.msra.mxu0 0.0
    %4857 = vmatprep.subr.mxu0 0.0
    %4858 = vmatpush1.msra.mxu0 0.0
    %4859 = vmatprep.subr.mxu0 0.0
    %4860 = vmatpush1.msra.mxu0 0.0
    %4861 = vmatprep.subr.mxu0 0.0
    %4862 = vmatpush1.msra.mxu0 0.0
    %4863 = vmatprep.subr.mxu0 0.0
    %4864 = vmatpush1.msra.mxu0 0.0
    %4865 = vmatprep.subr.mxu0 0.0
    %4866 = vmatpush1.msra.mxu0 0.0
    %4867 = vmatprep.subr.mxu0 0.0
    %4868 = vmatpush1.msra.mxu0 0.0
    %4869 = vmatprep.subr.mxu0 0.0
    %4870 = vmatpush1.msra.mxu0 0.0
    %4871 = vmatprep.subr.mxu0 0.0
    %4872 = vmatpush1.msra.mxu0 0.0
    %4873 = vmatprep.subr.mxu0 0.0
    %4874 = vmatpush1.msra.mxu0 0.0
    %4875 = vmatprep.subr.mxu0 0.0
    %4876 = vmatpush1.msra.mxu0 0.0
    %4877 = vmatprep.subr.mxu0 0.0
    %4878 = vmatpush1.msra.mxu0 0.0
    %4879 = vmatprep.mubr.f32.mxu0 0.0
    %4880 = vmatmul.mubr.f32.gmra.mrb[0].mxu0 %v4807
    %v4881 = vpop.f32.mrb[0].mxu0
    %v4882 = vadd.f32 %v4805, %v4881
    %v4883 = vpop.f32.mrb[0].mxu0
    %4884 = vmatprep.mubr.f32.mxu0 0.0
    %4885 = vmatmul.mubr.f32.gmra.mrb[0].mxu0 %v4810
    %v4886 = vpop.f32.mrb[0].mxu0
    %v4887 = vadd.f32 %v4805, %v4886
    %v4888 = vpop.f32.mrb[0].mxu0
    %4889 = vmatprep.mubr.f32.mxu0 0.0
    %4890 = vmatmul.mubr.f32.gmra.mrb[0].mxu0 %v4813
    %v4891 = vpop.f32.mrb[0].mxu0
    %v4892 = vadd.f32 %v4805, %v4891
    %v4893 = vpop.f32.mrb[0].mxu0
    %4894 = vdwg.mxu0
    %v4895 = vadd.f32 %v4882, %v4689
    %v4896 = vadd.f32 %v4887, %v4690
    %v4897 = vadd.f32 %v4892, %v4691
    %v4898 = vsel %vm49, %v4895, 0.0
    %4899 = vadd.xlane.f32.xlu0 %v4898
    %v4900 = vpop.xlane.xlu0 %4899
    %v4901 = vsel %vm49, %v4896, 0.0
    %4902 = vadd.xlane.f32.xlu0 %v4901
    %v4903 = vpop.xlane.xlu0 %4902
    %v4904 = vsel %vm3495, %v4897, 0.0
    %4905 = vadd.xlane.f32.xlu0 %v4904
    %v4906 = vpop.xlane.xlu0 %4905
    %v4907 = vmul.f32 %v4900, %v993
    %v4908 = vmul.f32 %v4903, %v993
    %v4909 = vmul.f32 %v4906, %v993
    %v4910 = vsub.f32 %v4895, %v4907
    %v4911 = vsub.f32 %v4896, %v4908
    %v4912 = vsub.f32 %v4897, %v4909
    %v4913 = vmul.f32 %v4910, %v4910
    %v4914 = vmul.f32 %v4911, %v4911
    %v4915 = vmul.f32 %v4912, %v4912
    %v4916 = vsel %vm49, %v4913, 0.0
    %4917 = vadd.xlane.f32.xlu0 %v4916
    %v4918 = vpop.xlane.xlu0 %4917
    %v4919 = vsel %vm49, %v4914, 0.0
    %4920 = vadd.xlane.f32.xlu0 %v4919
    %v4921 = vpop.xlane.xlu0 %4920
    %v4922 = vsel %vm3495, %v4915, 0.0
    %4923 = vadd.xlane.f32.xlu0 %v4922
    %v4924 = vpop.xlane.xlu0 %4923
    %v4925 = vmul.f32 %v4918, 0.032258064
    %v4926 = vmul.f32 %v4921, 0.032258064
    %v4927 = vmul.f32 %v4924, 0.032258064
    %v4928 = vrsqrt.pop %v4925
    %v4929 = vrsqrt.pop %v4926
    %v4930 = vrsqrt.pop %v4927
    %v4931 = vmul.f32 %v4910, %v4928
    %v4932 = vmul.f32 %v4911, %v4929
    %v4933 = vmul.f32 %v4912, %v4930
    %v4934 = vld [vmem:[#allocation2 + $0x270] sm:$0xff]
    %v4935 = vld [vmem:[#allocation2 + $0x278] sm:$0xff]
    %v4936 = vld [vmem:[#allocation2 + $0x280] sm:$0xff]
    %v4937 = vld [vmem:[#allocation2 + $0x288] sm:$0xff]
    %v4938 = vld [vmem:[#allocation2 + $0x290] sm:$0xff]
    %v4939 = vld [vmem:[#allocation2 + $0x298] sm:$0xff]
    %v4940 = vld [vmem:[#allocation2 + $0x2a0] sm:$0xff]
    %v4941 = vld [vmem:[#allocation2 + $0x2a8] sm:$0xff]
    %v4943 = vsel %vm49, %v4931, 0
    %v4946 = vsel %vm49, %v4932, 0
    %v4949 = vsel %vm49, %v4933, 0
    %4951 = vmatprep.subr.mxu0 0.0
    %4952 = vmatpush1.msra.mxu0 %v4934
    %4953 = vmatprep.subr.mxu0 0.0
    %4954 = vmatpush1.msra.mxu0 %v4935
    %4955 = vmatprep.subr.mxu0 0.0
    %4956 = vmatpush1.msra.mxu0 %v4936
    %4957 = vmatprep.subr.mxu0 0.0
    %4958 = vmatpush1.msra.mxu0 %v4937
    %4959 = vmatprep.subr.mxu0 0.0
    %4960 = vmatpush1.msra.mxu0 0.0
    %4961 = vmatprep.subr.mxu0 0.0
    %4962 = vmatpush1.msra.mxu0 0.0
    %4963 = vmatprep.subr.mxu0 0.0
    %4964 = vmatpush1.msra.mxu0 0.0
    %4965 = vmatprep.subr.mxu0 0.0
    %4966 = vmatpush1.msra.mxu0 0.0
    %4967 = vmatprep.subr.mxu0 0.0
    %4968 = vmatpush1.msra.mxu0 0.0
    %4969 = vmatprep.subr.mxu0 0.0
    %4970 = vmatpush1.msra.mxu0 0.0
    %4971 = vmatprep.subr.mxu0 0.0
    %4972 = vmatpush1.msra.mxu0 0.0
    %4973 = vmatprep.subr.mxu0 0.0
    %4974 = vmatpush1.msra.mxu0 0.0
    %4975 = vmatprep.subr.mxu0 0.0
    %4976 = vmatpush1.msra.mxu0 0.0
    %4977 = vmatprep.subr.mxu0 0.0
    %4978 = vmatpush1.msra.mxu0 0.0
    %4979 = vmatprep.subr.mxu0 0.0
    %4980 = vmatpush1.msra.mxu0 0.0
    %4981 = vmatprep.subr.mxu0 0.0
    %4982 = vmatpush1.msra.mxu0 0.0
    %4983 = vmatprep.subr.mxu0 0.0
    %4984 = vmatpush1.msra.mxu0 0.0
    %4985 = vmatprep.subr.mxu0 0.0
    %4986 = vmatpush1.msra.mxu0 0.0
    %4987 = vmatprep.subr.mxu0 0.0
    %4988 = vmatpush1.msra.mxu0 0.0
    %4989 = vmatprep.subr.mxu0 0.0
    %4990 = vmatpush1.msra.mxu0 0.0
    %4991 = vmatprep.subr.mxu0 0.0
    %4992 = vmatpush1.msra.mxu0 0.0
    %4993 = vmatprep.subr.mxu0 0.0
    %4994 = vmatpush1.msra.mxu0 0.0
    %4995 = vmatprep.subr.mxu0 0.0
    %4996 = vmatpush1.msra.mxu0 0.0
    %4997 = vmatprep.subr.mxu0 0.0
    %4998 = vmatpush1.msra.mxu0 0.0
    %4999 = vmatprep.subr.mxu0 0.0
    %5000 = vmatpush1.msra.mxu0 0.0
    %5001 = vmatprep.subr.mxu0 0.0
    %5002 = vmatpush1.msra.mxu0 0.0
    %5003 = vmatprep.subr.mxu0 0.0
    %5004 = vmatpush1.msra.mxu0 0.0
    %5005 = vmatprep.subr.mxu0 0.0
    %5006 = vmatpush1.msra.mxu0 0.0
    %5007 = vmatprep.subr.mxu0 0.0
    %5008 = vmatpush1.msra.mxu0 0.0
    %5009 = vmatprep.subr.mxu0 0.0
    %5010 = vmatpush1.msra.mxu0 0.0
    %5011 = vmatprep.subr.mxu0 0.0
    %5012 = vmatpush1.msra.mxu0 0.0
    %5013 = vmatprep.subr.mxu0 0.0
    %5014 = vmatpush1.msra.mxu0 0.0
    %5015 = vmatprep.mubr.f32.mxu0 0.0
    %5016 = vmatmul.mubr.f32.gmra.mrb[0].mxu0 %v4943
    %v5017 = vpop.f32.mrb[0].mxu0
    %v5018 = vadd.f32 0.0, %v5017
    %v5019 = vpop.f32.mrb[0].mxu0
    %5020 = vmatprep.mubr.f32.mxu0 0.0
    %5021 = vmatmul.mubr.f32.gmra.mrb[0].mxu0 %v4946
    %v5022 = vpop.f32.mrb[0].mxu0
    %v5023 = vadd.f32 0.0, %v5022
    %v5024 = vpop.f32.mrb[0].mxu0
    %5025 = vmatprep.mubr.f32.mxu0 0.0
    %5026 = vmatmul.mubr.f32.gmra.mrb[0].mxu0 %v4949
    %v5027 = vpop.f32.mrb[0].mxu0
    %v5028 = vadd.f32 0.0, %v5027
    %v5029 = vpop.f32.mrb[0].mxu0
    %5030 = vdwg.mxu0
    %5031 = vmatprep.subr.mxu0 0.0
    %5032 = vmatpush1.msra.mxu0 %v4938
    %5033 = vmatprep.subr.mxu0 0.0
    %5034 = vmatpush1.msra.mxu0 %v4939
    %5035 = vmatprep.subr.mxu0 0.0
    %5036 = vmatpush1.msra.mxu0 %v4940
    %5037 = vmatprep.subr.mxu0 0.0
    %5038 = vmatpush1.msra.mxu0 %v4941
    %5039 = vmatprep.subr.mxu0 0.0
    %5040 = vmatpush1.msra.mxu0 0.0
    %5041 = vmatprep.subr.mxu0 0.0
    %5042 = vmatpush1.msra.mxu0 0.0
    %5043 = vmatprep.subr.mxu0 0.0
    %5044 = vmatpush1.msra.mxu0 0.0
    %5045 = vmatprep.subr.mxu0 0.0
    %5046 = vmatpush1.msra.mxu0 0.0
    %5047 = vmatprep.subr.mxu0 0.0
    %5048 = vmatpush1.msra.mxu0 0.0
    %5049 = vmatprep.subr.mxu0 0.0
    %5050 = vmatpush1.msra.mxu0 0.0
    %5051 = vmatprep.subr.mxu0 0.0
    %5052 = vmatpush1.msra.mxu0 0.0
    %5053 = vmatprep.subr.mxu0 0.0
    %5054 = vmatpush1.msra.mxu0 0.0
    %5055 = vmatprep.subr.mxu0 0.0
    %5056 = vmatpush1.msra.mxu0 0.0
    %5057 = vmatprep.subr.mxu0 0.0
    %5058 = vmatpush1.msra.mxu0 0.0
    %5059 = vmatprep.subr.mxu0 0.0
    %5060 = vmatpush1.msra.mxu0 0.0
    %5061 = vmatprep.subr.mxu0 0.0
    %5062 = vmatpush1.msra.mxu0 0.0
    %5063 = vmatprep.subr.mxu0 0.0
    %5064 = vmatpush1.msra.mxu0 0.0
    %5065 = vmatprep.subr.mxu0 0.0
    %5066 = vmatpush1.msra.mxu0 0.0
    %5067 = vmatprep.subr.mxu0 0.0
    %5068 = vmatpush1.msra.mxu0 0.0
    %5069 = vmatprep.subr.mxu0 0.0
    %5070 = vmatpush1.msra.mxu0 0.0
    %5071 = vmatprep.subr.mxu0 0.0
    %5072 = vmatpush1.msra.mxu0 0.0
    %5073 = vmatprep.subr.mxu0 0.0
    %5074 = vmatpush1.msra.mxu0 0.0
    %5075 = vmatprep.subr.mxu0 0.0
    %5076 = vmatpush1.msra.mxu0 0.0
    %5077 = vmatprep.subr.mxu0 0.0
    %5078 = vmatpush1.msra.mxu0 0.0
    %5079 = vmatprep.subr.mxu0 0.0
    %5080 = vmatpush1.msra.mxu0 0.0
    %5081 = vmatprep.subr.mxu0 0.0
    %5082 = vmatpush1.msra.mxu0 0.0
    %5083 = vmatprep.subr.mxu0 0.0
    %5084 = vmatpush1.msra.mxu0 0.0
    %5085 = vmatprep.subr.mxu0 0.0
    %5086 = vmatpush1.msra.mxu0 0.0
    %5087 = vmatprep.subr.mxu0 0.0
    %5088 = vmatpush1.msra.mxu0 0.0
    %5089 = vmatprep.subr.mxu0 0.0
    %5090 = vmatpush1.msra.mxu0 0.0
    %5091 = vmatprep.subr.mxu0 0.0
    %5092 = vmatpush1.msra.mxu0 0.0
    %5093 = vmatprep.subr.mxu0 0.0
    %5094 = vmatpush1.msra.mxu0 0.0
    %5095 = vmatprep.mubr.f32.mxu0 0.0
    %5096 = vmatmul.mubr.f32.gmra.mrb[0].mxu0 %v4943
    %v5097 = vpop.f32.mrb[0].mxu0
    %v5098 = vadd.f32 0.0, %v5097
    %v5099 = vpop.f32.mrb[0].mxu0
    %5100 = vmatprep.mubr.f32.mxu0 0.0
    %5101 = vmatmul.mubr.f32.gmra.mrb[0].mxu0 %v4946
    %v5102 = vpop.f32.mrb[0].mxu0
    %v5103 = vadd.f32 0.0, %v5102
    %v5104 = vpop.f32.mrb[0].mxu0
    %5105 = vmatprep.mubr.f32.mxu0 0.0
    %5106 = vmatmul.mubr.f32.gmra.mrb[0].mxu0 %v4949
    %v5107 = vpop.f32.mrb[0].mxu0
    %v5108 = vadd.f32 0.0, %v5107
    %v5109 = vpop.f32.mrb[0].mxu0
    %5110 = vdwg.mxu0
    %5114 = vrot.lane.b32.xlu0 %v5018, 96
    %v5115 = vpop.permute.xlu0 %5114
    %5116 = vrot.lane.b32.xlu0 %v5023, 96
    %v5117 = vpop.permute.xlu0 %5116
    %5118 = vrot.lane.b32.xlu0 %v5028, 96
    %v5119 = vpop.permute.xlu0 %5118
    %v5120 = vsel %vm212, %v5018, 0
    %v5122 = vsel %vm212, %v5023, 0
    %v5124 = vsel %vm212, %v5028, 0
    %v5126 = vsel %vm212, %v5115, 0
    %v5128 = vsel %vm212, %v5117, 0
    %v5130 = vsel %vm212, %v5119, 0
    %5132 = vmatprep.subr.mxu0 0.0
    %5133 = vmatpush1.xpose.msra.mxu0 %v5126
    %5134 = vmatprep.subr.mxu0 0.0
    %5135 = vmatpush1.xpose.msra.mxu0 %v5128
    %5136 = vmatprep.subr.mxu0 0.0
    %5137 = vmatpush1.xpose.msra.mxu0 %v5130
    %5138 = vmatprep.subr.mxu0 0.0
    %5139 = vmatpush1.xpose.msra.mxu0 0.0
    %5140 = vmatprep.subr.mxu0 0.0
    %5141 = vmatpush1.xpose.msra.mxu0 0.0
    %5142 = vmatprep.subr.mxu0 0.0
    %5143 = vmatpush1.xpose.msra.mxu0 0.0
    %5144 = vmatprep.subr.mxu0 0.0
    %5145 = vmatpush1.xpose.msra.mxu0 0.0
    %5146 = vmatprep.subr.mxu0 0.0
    %5147 = vmatpush1.xpose.msra.mxu0 0.0
    %5148 = vmatprep.subr.mxu0 0.0
    %5149 = vmatpush1.xpose.msra.mxu0 0.0
    %5150 = vmatprep.subr.mxu0 0.0
    %5151 = vmatpush1.xpose.msra.mxu0 0.0
    %5152 = vmatprep.subr.mxu0 0.0
    %5153 = vmatpush1.xpose.msra.mxu0 0.0
    %5154 = vmatprep.subr.mxu0 0.0
    %5155 = vmatpush1.xpose.msra.mxu0 0.0
    %5156 = vmatprep.subr.mxu0 0.0
    %5157 = vmatpush1.xpose.msra.mxu0 0.0
    %5158 = vmatprep.subr.mxu0 0.0
    %5159 = vmatpush1.xpose.msra.mxu0 0.0
    %5160 = vmatprep.subr.mxu0 0.0
    %5161 = vmatpush1.xpose.msra.mxu0 0.0
    %5162 = vmatprep.subr.mxu0 0.0
    %5163 = vmatpush1.xpose.msra.mxu0 0.0
    %5164 = vmatprep.subr.mxu0 0.0
    %5165 = vmatpush1.xpose.msra.mxu0 0.0
    %5166 = vmatprep.subr.mxu0 0.0
    %5167 = vmatpush1.xpose.msra.mxu0 0.0
    %5168 = vmatprep.subr.mxu0 0.0
    %5169 = vmatpush1.xpose.msra.mxu0 0.0
    %5170 = vmatprep.subr.mxu0 0.0
    %5171 = vmatpush1.xpose.msra.mxu0 0.0
    %5172 = vmatprep.subr.mxu0 0.0
    %5173 = vmatpush1.xpose.msra.mxu0 0.0
    %5174 = vmatprep.subr.mxu0 0.0
    %5175 = vmatpush1.xpose.msra.mxu0 0.0
    %5176 = vmatprep.subr.mxu0 0.0
    %5177 = vmatpush1.xpose.msra.mxu0 0.0
    %5178 = vmatprep.subr.mxu0 0.0
    %5179 = vmatpush1.xpose.msra.mxu0 0.0
    %5180 = vmatprep.subr.mxu0 0.0
    %5181 = vmatpush1.xpose.msra.mxu0 0.0
    %5182 = vmatprep.subr.mxu0 0.0
    %5183 = vmatpush1.xpose.msra.mxu0 0.0
    %5184 = vmatprep.subr.mxu0 0.0
    %5185 = vmatpush1.xpose.msra.mxu0 0.0
    %5186 = vmatprep.subr.mxu0 0.0
    %5187 = vmatpush1.xpose.msra.mxu0 0.0
    %5188 = vmatprep.subr.mxu0 0.0
    %5189 = vmatpush1.xpose.msra.mxu0 0.0
    %5190 = vmatprep.subr.mxu0 0.0
    %5191 = vmatpush1.xpose.msra.mxu0 0.0
    %5192 = vmatprep.subr.mxu0 0.0
    %5193 = vmatpush1.xpose.msra.mxu0 0.0
    %5194 = vmatprep.subr.mxu0 0.0
    %5195 = vmatpush1.xpose.msra.mxu0 0.0
    %5196 = vmatprep.mubr.f32.mxu0 0.0
    %5197 = vmatmul.mubr.f32.gmra.mrb[0].mxu0 %v5120
    %v5198 = vpop.f32.mrb[0].mxu0
    %v5199 = vadd.f32 0.0, %v5198
    %v5200 = vpop.f32.mrb[0].mxu0
    %5201 = vmatprep.mubr.f32.mxu0 0.0
    %5202 = vmatmul.mubr.f32.gmra.mrb[0].mxu0 %v5122
    %v5203 = vpop.f32.mrb[0].mxu0
    %v5204 = vadd.f32 0.0, %v5203
    %v5205 = vpop.f32.mrb[0].mxu0
    %5206 = vmatprep.mubr.f32.mxu0 0.0
    %5207 = vmatmul.mubr.f32.gmra.mrb[0].mxu0 %v5124
    %v5208 = vpop.f32.mrb[0].mxu0
    %v5209 = vadd.f32 0.0, %v5208
    %v5210 = vpop.f32.mrb[0].mxu0
    %5211 = vdwg.mxu0
    %5212 = vrot.lane.b32.xlu0 %v5018, 120
    %v5213 = vpop.permute.xlu0 %5212
    %5214 = vrot.lane.b32.xlu0 %v5023, 120
    %v5215 = vpop.permute.xlu0 %5214
    %5216 = vrot.lane.b32.xlu0 %v5028, 120
    %v5217 = vpop.permute.xlu0 %5216
    %5218 = vrot.lane.b32.xlu0 %v5018, 88
    %v5219 = vpop.permute.xlu0 %5218
    %5220 = vrot.lane.b32.xlu0 %v5023, 88
    %v5221 = vpop.permute.xlu0 %5220
    %5222 = vrot.lane.b32.xlu0 %v5028, 88
    %v5223 = vpop.permute.xlu0 %5222
    %v5224 = vsel %vm212, %v5213, 0
    %v5226 = vsel %vm212, %v5215, 0
    %v5228 = vsel %vm212, %v5217, 0
    %v5230 = vsel %vm212, %v5219, 0
    %v5232 = vsel %vm212, %v5221, 0
    %v5234 = vsel %vm212, %v5223, 0
    %5236 = vmatprep.subr.mxu0 0.0
    %5237 = vmatpush1.xpose.msra.mxu0 %v5230
    %5238 = vmatprep.subr.mxu0 0.0
    %5239 = vmatpush1.xpose.msra.mxu0 %v5232
    %5240 = vmatprep.subr.mxu0 0.0
    %5241 = vmatpush1.xpose.msra.mxu0 %v5234
    %5242 = vmatprep.subr.mxu0 0.0
    %5243 = vmatpush1.xpose.msra.mxu0 0.0
    %5244 = vmatprep.subr.mxu0 0.0
    %5245 = vmatpush1.xpose.msra.mxu0 0.0
    %5246 = vmatprep.subr.mxu0 0.0
    %5247 = vmatpush1.xpose.msra.mxu0 0.0
    %5248 = vmatprep.subr.mxu0 0.0
    %5249 = vmatpush1.xpose.msra.mxu0 0.0
    %5250 = vmatprep.subr.mxu0 0.0
    %5251 = vmatpush1.xpose.msra.mxu0 0.0
    %5252 = vmatprep.subr.mxu0 0.0
    %5253 = vmatpush1.xpose.msra.mxu0 0.0
    %5254 = vmatprep.subr.mxu0 0.0
    %5255 = vmatpush1.xpose.msra.mxu0 0.0
    %5256 = vmatprep.subr.mxu0 0.0
    %5257 = vmatpush1.xpose.msra.mxu0 0.0
    %5258 = vmatprep.subr.mxu0 0.0
    %5259 = vmatpush1.xpose.msra.mxu0 0.0
    %5260 = vmatprep.subr.mxu0 0.0
    %5261 = vmatpush1.xpose.msra.mxu0 0.0
    %5262 = vmatprep.subr.mxu0 0.0
    %5263 = vmatpush1.xpose.msra.mxu0 0.0
    %5264 = vmatprep.subr.mxu0 0.0
    %5265 = vmatpush1.xpose.msra.mxu0 0.0
    %5266 = vmatprep.subr.mxu0 0.0
    %5267 = vmatpush1.xpose.msra.mxu0 0.0
    %5268 = vmatprep.subr.mxu0 0.0
    %5269 = vmatpush1.xpose.msra.mxu0 0.0
    %5270 = vmatprep.subr.mxu0 0.0
    %5271 = vmatpush1.xpose.msra.mxu0 0.0
    %5272 = vmatprep.subr.mxu0 0.0
    %5273 = vmatpush1.xpose.msra.mxu0 0.0
    %5274 = vmatprep.subr.mxu0 0.0
    %5275 = vmatpush1.xpose.msra.mxu0 0.0
    %5276 = vmatprep.subr.mxu0 0.0
    %5277 = vmatpush1.xpose.msra.mxu0 0.0
    %5278 = vmatprep.subr.mxu0 0.0
    %5279 = vmatpush1.xpose.msra.mxu0 0.0
    %5280 = vmatprep.subr.mxu0 0.0
    %5281 = vmatpush1.xpose.msra.mxu0 0.0
    %5282 = vmatprep.subr.mxu0 0.0
    %5283 = vmatpush1.xpose.msra.mxu0 0.0
    %5284 = vmatprep.subr.mxu0 0.0
    %5285 = vmatpush1.xpose.msra.mxu0 0.0
    %5286 = vmatprep.subr.mxu0 0.0
    %5287 = vmatpush1.xpose.msra.mxu0 0.0
    %5288 = vmatprep.subr.mxu0 0.0
    %5289 = vmatpush1.xpose.msra.mxu0 0.0
    %5290 = vmatprep.subr.mxu0 0.0
    %5291 = vmatpush1.xpose.msra.mxu0 0.0
    %5292 = vmatprep.subr.mxu0 0.0
    %5293 = vmatpush1.xpose.msra.mxu0 0.0
    %5294 = vmatprep.subr.mxu0 0.0
    %5295 = vmatpush1.xpose.msra.mxu0 0.0
    %5296 = vmatprep.subr.mxu0 0.0
    %5297 = vmatpush1.xpose.msra.mxu0 0.0
    %5298 = vmatprep.subr.mxu0 0.0
    %5299 = vmatpush1.xpose.msra.mxu0 0.0
    %5300 = vmatprep.mubr.f32.mxu0 0.0
    %5301 = vmatmul.mubr.f32.gmra.mrb[0].mxu0 %v5224
    %v5302 = vpop.f32.mrb[0].mxu0
    %v5303 = vadd.f32 0.0, %v5302
    %v5304 = vpop.f32.mrb[0].mxu0
    %5305 = vmatprep.mubr.f32.mxu0 0.0
    %5306 = vmatmul.mubr.f32.gmra.mrb[0].mxu0 %v5226
    %v5307 = vpop.f32.mrb[0].mxu0
    %v5308 = vadd.f32 0.0, %v5307
    %v5309 = vpop.f32.mrb[0].mxu0
    %5310 = vmatprep.mubr.f32.mxu0 0.0
    %5311 = vmatmul.mubr.f32.gmra.mrb[0].mxu0 %v5228
    %v5312 = vpop.f32.mrb[0].mxu0
    %v5313 = vadd.f32 0.0, %v5312
    %v5314 = vpop.f32.mrb[0].mxu0
    %5315 = vdwg.mxu0
    %5316 = vrot.lane.b32.xlu0 %v5018, 112
    %v5317 = vpop.permute.xlu0 %5316
    %5318 = vrot.lane.b32.xlu0 %v5023, 112
    %v5319 = vpop.permute.xlu0 %5318
    %5320 = vrot.lane.b32.xlu0 %v5028, 112
    %v5321 = vpop.permute.xlu0 %5320
    %5322 = vrot.lane.b32.xlu0 %v5018, 80
    %v5323 = vpop.permute.xlu0 %5322
    %5324 = vrot.lane.b32.xlu0 %v5023, 80
    %v5325 = vpop.permute.xlu0 %5324
    %5326 = vrot.lane.b32.xlu0 %v5028, 80
    %v5327 = vpop.permute.xlu0 %5326
    %v5328 = vsel %vm212, %v5317, 0
    %v5330 = vsel %vm212, %v5319, 0
    %v5332 = vsel %vm212, %v5321, 0
    %v5334 = vsel %vm212, %v5323, 0
    %v5336 = vsel %vm212, %v5325, 0
    %v5338 = vsel %vm212, %v5327, 0
    %5340 = vmatprep.subr.mxu0 0.0
    %5341 = vmatpush1.xpose.msra.mxu0 %v5334
    %5342 = vmatprep.subr.mxu0 0.0
    %5343 = vmatpush1.xpose.msra.mxu0 %v5336
    %5344 = vmatprep.subr.mxu0 0.0
    %5345 = vmatpush1.xpose.msra.mxu0 %v5338
    %5346 = vmatprep.subr.mxu0 0.0
    %5347 = vmatpush1.xpose.msra.mxu0 0.0
    %5348 = vmatprep.subr.mxu0 0.0
    %5349 = vmatpush1.xpose.msra.mxu0 0.0
    %5350 = vmatprep.subr.mxu0 0.0
    %5351 = vmatpush1.xpose.msra.mxu0 0.0
    %5352 = vmatprep.subr.mxu0 0.0
    %5353 = vmatpush1.xpose.msra.mxu0 0.0
    %5354 = vmatprep.subr.mxu0 0.0
    %5355 = vmatpush1.xpose.msra.mxu0 0.0
    %5356 = vmatprep.subr.mxu0 0.0
    %5357 = vmatpush1.xpose.msra.mxu0 0.0
    %5358 = vmatprep.subr.mxu0 0.0
    %5359 = vmatpush1.xpose.msra.mxu0 0.0
    %5360 = vmatprep.subr.mxu0 0.0
    %5361 = vmatpush1.xpose.msra.mxu0 0.0
    %5362 = vmatprep.subr.mxu0 0.0
    %5363 = vmatpush1.xpose.msra.mxu0 0.0
    %5364 = vmatprep.subr.mxu0 0.0
    %5365 = vmatpush1.xpose.msra.mxu0 0.0
    %5366 = vmatprep.subr.mxu0 0.0
    %5367 = vmatpush1.xpose.msra.mxu0 0.0
    %5368 = vmatprep.subr.mxu0 0.0
    %5369 = vmatpush1.xpose.msra.mxu0 0.0
    %5370 = vmatprep.subr.mxu0 0.0
    %5371 = vmatpush1.xpose.msra.mxu0 0.0
    %5372 = vmatprep.subr.mxu0 0.0
    %5373 = vmatpush1.xpose.msra.mxu0 0.0
    %5374 = vmatprep.subr.mxu0 0.0
    %5375 = vmatpush1.xpose.msra.mxu0 0.0
    %5376 = vmatprep.subr.mxu0 0.0
    %5377 = vmatpush1.xpose.msra.mxu0 0.0
    %5378 = vmatprep.subr.mxu0 0.0
    %5379 = vmatpush1.xpose.msra.mxu0 0.0
    %5380 = vmatprep.subr.mxu0 0.0
    %5381 = vmatpush1.xpose.msra.mxu0 0.0
    %5382 = vmatprep.subr.mxu0 0.0
    %5383 = vmatpush1.xpose.msra.mxu0 0.0
    %5384 = vmatprep.subr.mxu0 0.0
    %5385 = vmatpush1.xpose.msra.mxu0 0.0
    %5386 = vmatprep.subr.mxu0 0.0
    %5387 = vmatpush1.xpose.msra.mxu0 0.0
    %5388 = vmatprep.subr.mxu0 0.0
    %5389 = vmatpush1.xpose.msra.mxu0 0.0
    %5390 = vmatprep.subr.mxu0 0.0
    %5391 = vmatpush1.xpose.msra.mxu0 0.0
    %5392 = vmatprep.subr.mxu0 0.0
    %5393 = vmatpush1.xpose.msra.mxu0 0.0
    %5394 = vmatprep.subr.mxu0 0.0
    %5395 = vmatpush1.xpose.msra.mxu0 0.0
    %5396 = vmatprep.subr.mxu0 0.0
    %5397 = vmatpush1.xpose.msra.mxu0 0.0
    %5398 = vmatprep.subr.mxu0 0.0
    %5399 = vmatpush1.xpose.msra.mxu0 0.0
    %5400 = vmatprep.subr.mxu0 0.0
    %5401 = vmatpush1.xpose.msra.mxu0 0.0
    %5402 = vmatprep.subr.mxu0 0.0
    %5403 = vmatpush1.xpose.msra.mxu0 0.0
    %5404 = vmatprep.mubr.f32.mxu0 0.0
    %5405 = vmatmul.mubr.f32.gmra.mrb[0].mxu0 %v5328
    %v5406 = vpop.f32.mrb[0].mxu0
    %v5407 = vadd.f32 0.0, %v5406
    %v5408 = vpop.f32.mrb[0].mxu0
    %5409 = vmatprep.mubr.f32.mxu0 0.0
    %5410 = vmatmul.mubr.f32.gmra.mrb[0].mxu0 %v5330
    %v5411 = vpop.f32.mrb[0].mxu0
    %v5412 = vadd.f32 0.0, %v5411
    %v5413 = vpop.f32.mrb[0].mxu0
    %5414 = vmatprep.mubr.f32.mxu0 0.0
    %5415 = vmatmul.mubr.f32.gmra.mrb[0].mxu0 %v5332
    %v5416 = vpop.f32.mrb[0].mxu0
    %v5417 = vadd.f32 0.0, %v5416
    %v5418 = vpop.f32.mrb[0].mxu0
    %5419 = vdwg.mxu0
    %5420 = vrot.lane.b32.xlu0 %v5018, 104
    %v5421 = vpop.permute.xlu0 %5420
    %5422 = vrot.lane.b32.xlu0 %v5023, 104
    %v5423 = vpop.permute.xlu0 %5422
    %5424 = vrot.lane.b32.xlu0 %v5028, 104
    %v5425 = vpop.permute.xlu0 %5424
    %5426 = vrot.lane.b32.xlu0 %v5018, 72
    %v5427 = vpop.permute.xlu0 %5426
    %5428 = vrot.lane.b32.xlu0 %v5023, 72
    %v5429 = vpop.permute.xlu0 %5428
    %5430 = vrot.lane.b32.xlu0 %v5028, 72
    %v5431 = vpop.permute.xlu0 %5430
    %v5432 = vsel %vm212, %v5421, 0
    %v5434 = vsel %vm212, %v5423, 0
    %v5436 = vsel %vm212, %v5425, 0
    %v5438 = vsel %vm212, %v5427, 0
    %v5440 = vsel %vm212, %v5429, 0
    %v5442 = vsel %vm212, %v5431, 0
    %5444 = vmatprep.subr.mxu0 0.0
    %5445 = vmatpush1.xpose.msra.mxu0 %v5438
    %5446 = vmatprep.subr.mxu0 0.0
    %5447 = vmatpush1.xpose.msra.mxu0 %v5440
    %5448 = vmatprep.subr.mxu0 0.0
    %5449 = vmatpush1.xpose.msra.mxu0 %v5442
    %5450 = vmatprep.subr.mxu0 0.0
    %5451 = vmatpush1.xpose.msra.mxu0 0.0
    %5452 = vmatprep.subr.mxu0 0.0
    %5453 = vmatpush1.xpose.msra.mxu0 0.0
    %5454 = vmatprep.subr.mxu0 0.0
    %5455 = vmatpush1.xpose.msra.mxu0 0.0
    %5456 = vmatprep.subr.mxu0 0.0
    %5457 = vmatpush1.xpose.msra.mxu0 0.0
    %5458 = vmatprep.subr.mxu0 0.0
    %5459 = vmatpush1.xpose.msra.mxu0 0.0
    %5460 = vmatprep.subr.mxu0 0.0
    %5461 = vmatpush1.xpose.msra.mxu0 0.0
    %5462 = vmatprep.subr.mxu0 0.0
    %5463 = vmatpush1.xpose.msra.mxu0 0.0
    %5464 = vmatprep.subr.mxu0 0.0
    %5465 = vmatpush1.xpose.msra.mxu0 0.0
    %5466 = vmatprep.subr.mxu0 0.0
    %5467 = vmatpush1.xpose.msra.mxu0 0.0
    %5468 = vmatprep.subr.mxu0 0.0
    %5469 = vmatpush1.xpose.msra.mxu0 0.0
    %5470 = vmatprep.subr.mxu0 0.0
    %5471 = vmatpush1.xpose.msra.mxu0 0.0
    %5472 = vmatprep.subr.mxu0 0.0
    %5473 = vmatpush1.xpose.msra.mxu0 0.0
    %5474 = vmatprep.subr.mxu0 0.0
    %5475 = vmatpush1.xpose.msra.mxu0 0.0
    %5476 = vmatprep.subr.mxu0 0.0
    %5477 = vmatpush1.xpose.msra.mxu0 0.0
    %5478 = vmatprep.subr.mxu0 0.0
    %5479 = vmatpush1.xpose.msra.mxu0 0.0
    %5480 = vmatprep.subr.mxu0 0.0
    %5481 = vmatpush1.xpose.msra.mxu0 0.0
    %5482 = vmatprep.subr.mxu0 0.0
    %5483 = vmatpush1.xpose.msra.mxu0 0.0
    %5484 = vmatprep.subr.mxu0 0.0
    %5485 = vmatpush1.xpose.msra.mxu0 0.0
    %5486 = vmatprep.subr.mxu0 0.0
    %5487 = vmatpush1.xpose.msra.mxu0 0.0
    %5488 = vmatprep.subr.mxu0 0.0
    %5489 = vmatpush1.xpose.msra.mxu0 0.0
    %5490 = vmatprep.subr.mxu0 0.0
    %5491 = vmatpush1.xpose.msra.mxu0 0.0
    %5492 = vmatprep.subr.mxu0 0.0
    %5493 = vmatpush1.xpose.msra.mxu0 0.0
    %5494 = vmatprep.subr.mxu0 0.0
    %5495 = vmatpush1.xpose.msra.mxu0 0.0
    %5496 = vmatprep.subr.mxu0 0.0
    %5497 = vmatpush1.xpose.msra.mxu0 0.0
    %5498 = vmatprep.subr.mxu0 0.0
    %5499 = vmatpush1.xpose.msra.mxu0 0.0
    %5500 = vmatprep.subr.mxu0 0.0
    %5501 = vmatpush1.xpose.msra.mxu0 0.0
    %5502 = vmatprep.subr.mxu0 0.0
    %5503 = vmatpush1.xpose.msra.mxu0 0.0
    %5504 = vmatprep.subr.mxu0 0.0
    %5505 = vmatpush1.xpose.msra.mxu0 0.0
    %5506 = vmatprep.subr.mxu0 0.0
    %5507 = vmatpush1.xpose.msra.mxu0 0.0
    %5508 = vmatprep.mubr.f32.mxu0 0.0
    %5509 = vmatmul.mubr.f32.gmra.mrb[0].mxu0 %v5432
    %v5510 = vpop.f32.mrb[0].mxu0
    %v5511 = vadd.f32 0.0, %v5510
    %v5512 = vpop.f32.mrb[0].mxu0
    %5513 = vmatprep.mubr.f32.mxu0 0.0
    %5514 = vmatmul.mubr.f32.gmra.mrb[0].mxu0 %v5434
    %v5515 = vpop.f32.mrb[0].mxu0
    %v5516 = vadd.f32 0.0, %v5515
    %v5517 = vpop.f32.mrb[0].mxu0
    %5518 = vmatprep.mubr.f32.mxu0 0.0
    %5519 = vmatmul.mubr.f32.gmra.mrb[0].mxu0 %v5436
    %v5520 = vpop.f32.mrb[0].mxu0
    %v5521 = vadd.f32 0.0, %v5520
    %v5522 = vpop.f32.mrb[0].mxu0
    %5523 = vdwg.mxu0
    %5527 = vrot.lane.b32.xlu0 %v5303, 18
    %v5528 = vpop.permute.xlu0 %5527
    %5529 = vrot.lane.b32.xlu0 %v5308, 18
    %v5530 = vpop.permute.xlu0 %5529
    %5531 = vrot.lane.b32.xlu0 %v5313, 18
    %v5532 = vpop.permute.xlu0 %5531
    %5539 = vrot.lane.b32.xlu0 %v5407, 36
    %v5540 = vpop.permute.xlu0 %5539
    %5541 = vrot.lane.b32.xlu0 %v5412, 36
    %v5542 = vpop.permute.xlu0 %5541
    %5543 = vrot.lane.b32.xlu0 %v5417, 36
    %v5544 = vpop.permute.xlu0 %5543
    %5551 = vrot.lane.b32.xlu0 %v5511, 54
    %v5552 = vpop.permute.xlu0 %5551
    %5553 = vrot.lane.b32.xlu0 %v5516, 54
    %v5554 = vpop.permute.xlu0 %5553
    %5555 = vrot.lane.b32.xlu0 %v5521, 54
    %v5556 = vpop.permute.xlu0 %5555
    %v5560 = vsel %vm3027, %v5199, %v5528
    %v5561 = vsel %vm3027, %v5204, %v5530
    %v5562 = vsel %vm3027, %v5209, %v5532
    %v5563 = vsel %vm3031, %v5560, %v5540
    %v5564 = vsel %vm3031, %v5561, %v5542
    %v5565 = vsel %vm3031, %v5562, %v5544
    %v5566 = vsel %vm3035, %v5563, %v5552
    %v5567 = vsel %vm3035, %v5564, %v5554
    %v5568 = vsel %vm3035, %v5565, %v5556
    %v5569 = vadd.f32 %v5566, %v35
    %v5570 = vadd.f32 %v5567, %v36
    %v5571 = vadd.f32 %v5568, %v37
    %v5572 = vsel %vm3042, %v5569, -inf
    %v5573 = vsel %vm3042, %v5570, -inf
    %v5574 = vsel %vm3045, %v5571, -inf
    %v5575 = vmax.f32 %v5572, %v5573
    %v5576 = vmax.f32 %v5575, %v5574
    %v5577 = vrot.slane %v5576, 4
    %v5578 = vmax.f32 %v5576, %v5577
    %v5579 = vrot.slane %v5578, 2
    %v5580 = vmax.f32 %v5578, %v5579
    %v5581 = vrot.slane %v5580, 1
    %v5582 = vmax.f32 %v5580, %v5581
    %v5583 = vsub.f32 %v5569, %v5582
    %v5584 = vsub.f32 %v5570, %v5582
    %v5585 = vsub.f32 %v5571, %v5582
    %v5586 = vmul.f32 %v5583, 1.442695
    %v5587 = vpow.pop %v5586
    %v5588 = vmul.f32 %v5584, 1.442695
    %v5589 = vpow.pop %v5588
    %v5590 = vmul.f32 %v5585, 1.442695
    %v5591 = vpow.pop %v5590
    %v5592 = vsel %vm3042, %v5587, 0.0
    %v5593 = vsel %vm3042, %v5589, 0.0
    %v5594 = vadd.f32 %v5592, %v5593
    %v5595 = vsel %vm3045, %v5591, 0.0
    %v5596 = vadd.f32 %v5594, %v5595
    %v5597 = vrot.slane %v5596, 4
    %v5598 = vadd.f32 %v5596, %v5597
    %v5599 = vrot.slane %v5598, 2
    %v5600 = vadd.f32 %v5598, %v5599
    %v5601 = vrot.slane %v5600, 1
    %v5602 = vadd.f32 %v5600, %v5601
    %v5603 = vrcp.pop %v5602
    %v5604 = vmul.f32 %v5587, %v5603
    %v5605 = vmul.f32 %v5589, %v5603
    %v5606 = vmul.f32 %v5591, %v5603
    %5610 = vrot.lane.b32.xlu0 %v5604, 110
    %v5611 = vpop.permute.xlu0 %5610
    %5612 = vrot.lane.b32.xlu0 %v5605, 110
    %v5613 = vpop.permute.xlu0 %5612
    %5614 = vrot.lane.b32.xlu0 %v5606, 110
    %v5615 = vpop.permute.xlu0 %5614
    %5619 = vrot.lane.b32.xlu0 %v5098, 96
    %v5620 = vpop.permute.xlu0 %5619
    %5621 = vrot.lane.b32.xlu0 %v5103, 96
    %v5622 = vpop.permute.xlu0 %5621
    %5623 = vrot.lane.b32.xlu0 %v5108, 96
    %v5624 = vpop.permute.xlu0 %5623
    %v5627 = vsel %vm3027, %v5611, 0
    %v5629 = vsel %vm3027, %v5613, 0
    %v5631 = vsel %vm3027, %v5615, 0
    %v5633 = vsel %vm3105, %v5624, 0
    %5635 = vmatprep.subr.mxu0 0.0
    %5636 = vmatpush1.msra.mxu0 %v5620
    %5637 = vmatprep.subr.mxu0 0.0
    %5638 = vmatpush1.msra.mxu0 %v5622
    %5639 = vmatprep.subr.mxu0 0.0
    %5640 = vmatpush1.msra.mxu0 %v5633
    %5641 = vmatprep.subr.mxu0 0.0
    %5642 = vmatpush1.msra.mxu0 0.0
    %5643 = vmatprep.subr.mxu0 0.0
    %5644 = vmatpush1.msra.mxu0 0.0
    %5645 = vmatprep.subr.mxu0 0.0
    %5646 = vmatpush1.msra.mxu0 0.0
    %5647 = vmatprep.subr.mxu0 0.0
    %5648 = vmatpush1.msra.mxu0 0.0
    %5649 = vmatprep.subr.mxu0 0.0
    %5650 = vmatpush1.msra.mxu0 0.0
    %5651 = vmatprep.subr.mxu0 0.0
    %5652 = vmatpush1.msra.mxu0 0.0
    %5653 = vmatprep.subr.mxu0 0.0
    %5654 = vmatpush1.msra.mxu0 0.0
    %5655 = vmatprep.subr.mxu0 0.0
    %5656 = vmatpush1.msra.mxu0 0.0
    %5657 = vmatprep.subr.mxu0 0.0
    %5658 = vmatpush1.msra.mxu0 0.0
    %5659 = vmatprep.subr.mxu0 0.0
    %5660 = vmatpush1.msra.mxu0 0.0
    %5661 = vmatprep.subr.mxu0 0.0
    %5662 = vmatpush1.msra.mxu0 0.0
    %5663 = vmatprep.subr.mxu0 0.0
    %5664 = vmatpush1.msra.mxu0 0.0
    %5665 = vmatprep.subr.mxu0 0.0
    %5666 = vmatpush1.msra.mxu0 0.0
    %5667 = vmatprep.subr.mxu0 0.0
    %5668 = vmatpush1.msra.mxu0 0.0
    %5669 = vmatprep.subr.mxu0 0.0
    %5670 = vmatpush1.msra.mxu0 0.0
    %5671 = vmatprep.subr.mxu0 0.0
    %5672 = vmatpush1.msra.mxu0 0.0
    %5673 = vmatprep.subr.mxu0 0.0
    %5674 = vmatpush1.msra.mxu0 0.0
    %5675 = vmatprep.subr.mxu0 0.0
    %5676 = vmatpush1.msra.mxu0 0.0
    %5677 = vmatprep.subr.mxu0 0.0
    %5678 = vmatpush1.msra.mxu0 0.0
    %5679 = vmatprep.subr.mxu0 0.0
    %5680 = vmatpush1.msra.mxu0 0.0
    %5681 = vmatprep.subr.mxu0 0.0
    %5682 = vmatpush1.msra.mxu0 0.0
    %5683 = vmatprep.subr.mxu0 0.0
    %5684 = vmatpush1.msra.mxu0 0.0
    %5685 = vmatprep.subr.mxu0 0.0
    %5686 = vmatpush1.msra.mxu0 0.0
    %5687 = vmatprep.subr.mxu0 0.0
    %5688 = vmatpush1.msra.mxu0 0.0
    %5689 = vmatprep.subr.mxu0 0.0
    %5690 = vmatpush1.msra.mxu0 0.0
    %5691 = vmatprep.subr.mxu0 0.0
    %5692 = vmatpush1.msra.mxu0 0.0
    %5693 = vmatprep.subr.mxu0 0.0
    %5694 = vmatpush1.msra.mxu0 0.0
    %5695 = vmatprep.subr.mxu0 0.0
    %5696 = vmatpush1.msra.mxu0 0.0
    %5697 = vmatprep.subr.mxu0 0.0
    %5698 = vmatpush1.msra.mxu0 0.0
    %5699 = vmatprep.mubr.f32.mxu0 0.0
    %5700 = vmatmul.mubr.f32.gmra.mrb[0].mxu0 %v5627
    %v5701 = vpop.f32.mrb[0].mxu0
    %v5702 = vadd.f32 0.0, %v5701
    %v5703 = vpop.f32.mrb[0].mxu0
    %5704 = vmatprep.mubr.f32.mxu0 0.0
    %5705 = vmatmul.mubr.f32.gmra.mrb[0].mxu0 %v5629
    %v5706 = vpop.f32.mrb[0].mxu0
    %v5707 = vadd.f32 0.0, %v5706
    %v5708 = vpop.f32.mrb[0].mxu0
    %5709 = vmatprep.mubr.f32.mxu0 0.0
    %5710 = vmatmul.mubr.f32.gmra.mrb[0].mxu0 %v5631
    %v5711 = vpop.f32.mrb[0].mxu0
    %v5712 = vadd.f32 0.0, %v5711
    %v5713 = vpop.f32.mrb[0].mxu0
    %5714 = vdwg.mxu0
    %v5715 = vsel %vm3027, %v5604, 0
    %v5717 = vsel %vm3027, %v5605, 0
    %v5719 = vsel %vm3027, %v5606, 0
    %v5721 = vsel %vm3105, %v5108, 0
    %5723 = vmatprep.subr.mxu0 0.0
    %5724 = vmatpush1.msra.mxu0 %v5098
    %5725 = vmatprep.subr.mxu0 0.0
    %5726 = vmatpush1.msra.mxu0 %v5103
    %5727 = vmatprep.subr.mxu0 0.0
    %5728 = vmatpush1.msra.mxu0 %v5721
    %5729 = vmatprep.subr.mxu0 0.0
    %5730 = vmatpush1.msra.mxu0 0.0
    %5731 = vmatprep.subr.mxu0 0.0
    %5732 = vmatpush1.msra.mxu0 0.0
    %5733 = vmatprep.subr.mxu0 0.0
    %5734 = vmatpush1.msra.mxu0 0.0
    %5735 = vmatprep.subr.mxu0 0.0
    %5736 = vmatpush1.msra.mxu0 0.0
    %5737 = vmatprep.subr.mxu0 0.0
    %5738 = vmatpush1.msra.mxu0 0.0
    %5739 = vmatprep.subr.mxu0 0.0
    %5740 = vmatpush1.msra.mxu0 0.0
    %5741 = vmatprep.subr.mxu0 0.0
    %5742 = vmatpush1.msra.mxu0 0.0
    %5743 = vmatprep.subr.mxu0 0.0
    %5744 = vmatpush1.msra.mxu0 0.0
    %5745 = vmatprep.subr.mxu0 0.0
    %5746 = vmatpush1.msra.mxu0 0.0
    %5747 = vmatprep.subr.mxu0 0.0
    %5748 = vmatpush1.msra.mxu0 0.0
    %5749 = vmatprep.subr.mxu0 0.0
    %5750 = vmatpush1.msra.mxu0 0.0
    %5751 = vmatprep.subr.mxu0 0.0
    %5752 = vmatpush1.msra.mxu0 0.0
    %5753 = vmatprep.subr.mxu0 0.0
    %5754 = vmatpush1.msra.mxu0 0.0
    %5755 = vmatprep.subr.mxu0 0.0
    %5756 = vmatpush1.msra.mxu0 0.0
    %5757 = vmatprep.subr.mxu0 0.0
    %5758 = vmatpush1.msra.mxu0 0.0
    %5759 = vmatprep.subr.mxu0 0.0
    %5760 = vmatpush1.msra.mxu0 0.0
    %5761 = vmatprep.subr.mxu0 0.0
    %5762 = vmatpush1.msra.mxu0 0.0
    %5763 = vmatprep.subr.mxu0 0.0
    %5764 = vmatpush1.msra.mxu0 0.0
    %5765 = vmatprep.subr.mxu0 0.0
    %5766 = vmatpush1.msra.mxu0 0.0
    %5767 = vmatprep.subr.mxu0 0.0
    %5768 = vmatpush1.msra.mxu0 0.0
    %5769 = vmatprep.subr.mxu0 0.0
    %5770 = vmatpush1.msra.mxu0 0.0
    %5771 = vmatprep.subr.mxu0 0.0
    %5772 = vmatpush1.msra.mxu0 0.0
    %5773 = vmatprep.subr.mxu0 0.0
    %5774 = vmatpush1.msra.mxu0 0.0
    %5775 = vmatprep.subr.mxu0 0.0
    %5776 = vmatpush1.msra.mxu0 0.0
    %5777 = vmatprep.subr.mxu0 0.0
    %5778 = vmatpush1.msra.mxu0 0.0
    %5779 = vmatprep.subr.mxu0 0.0
    %5780 = vmatpush1.msra.mxu0 0.0
    %5781 = vmatprep.subr.mxu0 0.0
    %5782 = vmatpush1.msra.mxu0 0.0
    %5783 = vmatprep.subr.mxu0 0.0
    %5784 = vmatpush1.msra.mxu0 0.0
    %5785 = vmatprep.subr.mxu0 0.0
    %5786 = vmatpush1.msra.mxu0 0.0
    %5787 = vmatprep.mubr.f32.mxu0 0.0
    %5788 = vmatmul.mubr.f32.gmra.mrb[0].mxu0 %v5715
    %v5789 = vpop.f32.mrb[0].mxu0
    %v5790 = vadd.f32 %v5702, %v5789
    %v5791 = vpop.f32.mrb[0].mxu0
    %5792 = vmatprep.mubr.f32.mxu0 0.0
    %5793 = vmatmul.mubr.f32.gmra.mrb[0].mxu0 %v5717
    %v5794 = vpop.f32.mrb[0].mxu0
    %v5795 = vadd.f32 %v5707, %v5794
    %v5796 = vpop.f32.mrb[0].mxu0
    %5797 = vmatprep.mubr.f32.mxu0 0.0
    %5798 = vmatmul.mubr.f32.gmra.mrb[0].mxu0 %v5719
    %v5799 = vpop.f32.mrb[0].mxu0
    %v5800 = vadd.f32 %v5712, %v5799
    %v5801 = vpop.f32.mrb[0].mxu0
    %5802 = vdwg.mxu0
    %5803 = vrot.lane.b32.xlu0 %v5604, 92
    %v5804 = vpop.permute.xlu0 %5803
    %5805 = vrot.lane.b32.xlu0 %v5605, 92
    %v5806 = vpop.permute.xlu0 %5805
    %5807 = vrot.lane.b32.xlu0 %v5606, 92
    %v5808 = vpop.permute.xlu0 %5807
    %5809 = vrot.lane.b32.xlu0 %v5098, 64
    %v5810 = vpop.permute.xlu0 %5809
    %5811 = vrot.lane.b32.xlu0 %v5103, 64
    %v5812 = vpop.permute.xlu0 %5811
    %5813 = vrot.lane.b32.xlu0 %v5108, 64
    %v5814 = vpop.permute.xlu0 %5813
    %v5817 = vsel %vm3027, %v5804, 0
    %v5819 = vsel %vm3027, %v5806, 0
    %v5821 = vsel %vm3027, %v5808, 0
    %v5823 = vsel %vm3105, %v5814, 0
    %5825 = vmatprep.subr.mxu0 0.0
    %5826 = vmatpush1.msra.mxu0 %v5810
    %5827 = vmatprep.subr.mxu0 0.0
    %5828 = vmatpush1.msra.mxu0 %v5812
    %5829 = vmatprep.subr.mxu0 0.0
    %5830 = vmatpush1.msra.mxu0 %v5823
    %5831 = vmatprep.subr.mxu0 0.0
    %5832 = vmatpush1.msra.mxu0 0.0
    %5833 = vmatprep.subr.mxu0 0.0
    %5834 = vmatpush1.msra.mxu0 0.0
    %5835 = vmatprep.subr.mxu0 0.0
    %5836 = vmatpush1.msra.mxu0 0.0
    %5837 = vmatprep.subr.mxu0 0.0
    %5838 = vmatpush1.msra.mxu0 0.0
    %5839 = vmatprep.subr.mxu0 0.0
    %5840 = vmatpush1.msra.mxu0 0.0
    %5841 = vmatprep.subr.mxu0 0.0
    %5842 = vmatpush1.msra.mxu0 0.0
    %5843 = vmatprep.subr.mxu0 0.0
    %5844 = vmatpush1.msra.mxu0 0.0
    %5845 = vmatprep.subr.mxu0 0.0
    %5846 = vmatpush1.msra.mxu0 0.0
    %5847 = vmatprep.subr.mxu0 0.0
    %5848 = vmatpush1.msra.mxu0 0.0
    %5849 = vmatprep.subr.mxu0 0.0
    %5850 = vmatpush1.msra.mxu0 0.0
    %5851 = vmatprep.subr.mxu0 0.0
    %5852 = vmatpush1.msra.mxu0 0.0
    %5853 = vmatprep.subr.mxu0 0.0
    %5854 = vmatpush1.msra.mxu0 0.0
    %5855 = vmatprep.subr.mxu0 0.0
    %5856 = vmatpush1.msra.mxu0 0.0
    %5857 = vmatprep.subr.mxu0 0.0
    %5858 = vmatpush1.msra.mxu0 0.0
    %5859 = vmatprep.subr.mxu0 0.0
    %5860 = vmatpush1.msra.mxu0 0.0
    %5861 = vmatprep.subr.mxu0 0.0
    %5862 = vmatpush1.msra.mxu0 0.0
    %5863 = vmatprep.subr.mxu0 0.0
    %5864 = vmatpush1.msra.mxu0 0.0
    %5865 = vmatprep.subr.mxu0 0.0
    %5866 = vmatpush1.msra.mxu0 0.0
    %5867 = vmatprep.subr.mxu0 0.0
    %5868 = vmatpush1.msra.mxu0 0.0
    %5869 = vmatprep.subr.mxu0 0.0
    %5870 = vmatpush1.msra.mxu0 0.0
    %5871 = vmatprep.subr.mxu0 0.0
    %5872 = vmatpush1.msra.mxu0 0.0
    %5873 = vmatprep.subr.mxu0 0.0
    %5874 = vmatpush1.msra.mxu0 0.0
    %5875 = vmatprep.subr.mxu0 0.0
    %5876 = vmatpush1.msra.mxu0 0.0
    %5877 = vmatprep.subr.mxu0 0.0
    %5878 = vmatpush1.msra.mxu0 0.0
    %5879 = vmatprep.subr.mxu0 0.0
    %5880 = vmatpush1.msra.mxu0 0.0
    %5881 = vmatprep.subr.mxu0 0.0
    %5882 = vmatpush1.msra.mxu0 0.0
    %5883 = vmatprep.subr.mxu0 0.0
    %5884 = vmatpush1.msra.mxu0 0.0
    %5885 = vmatprep.subr.mxu0 0.0
    %5886 = vmatpush1.msra.mxu0 0.0
    %5887 = vmatprep.subr.mxu0 0.0
    %5888 = vmatpush1.msra.mxu0 0.0
    %5889 = vmatprep.mubr.f32.mxu0 0.0
    %5890 = vmatmul.mubr.f32.gmra.mrb[0].mxu0 %v5817
    %v5891 = vpop.f32.mrb[0].mxu0
    %v5892 = vadd.f32 0.0, %v5891
    %v5893 = vpop.f32.mrb[0].mxu0
    %5894 = vmatprep.mubr.f32.mxu0 0.0
    %5895 = vmatmul.mubr.f32.gmra.mrb[0].mxu0 %v5819
    %v5896 = vpop.f32.mrb[0].mxu0
    %v5897 = vadd.f32 0.0, %v5896
    %v5898 = vpop.f32.mrb[0].mxu0
    %5899 = vmatprep.mubr.f32.mxu0 0.0
    %5900 = vmatmul.mubr.f32.gmra.mrb[0].mxu0 %v5821
    %v5901 = vpop.f32.mrb[0].mxu0
    %v5902 = vadd.f32 0.0, %v5901
    %v5903 = vpop.f32.mrb[0].mxu0
    %5904 = vdwg.mxu0
    %v5905 = vadd.f32 %v5790, %v5892
    %v5906 = vadd.f32 %v5795, %v5897
    %v5907 = vadd.f32 %v5800, %v5902
    %5908 = vrot.lane.b32.xlu0 %v5604, 74
    %v5909 = vpop.permute.xlu0 %5908
    %5910 = vrot.lane.b32.xlu0 %v5605, 74
    %v5911 = vpop.permute.xlu0 %5910
    %5912 = vrot.lane.b32.xlu0 %v5606, 74
    %v5913 = vpop.permute.xlu0 %5912
    %5914 = vrot.lane.b32.xlu0 %v5098, 32
    %v5915 = vpop.permute.xlu0 %5914
    %5916 = vrot.lane.b32.xlu0 %v5103, 32
    %v5917 = vpop.permute.xlu0 %5916
    %5918 = vrot.lane.b32.xlu0 %v5108, 32
    %v5919 = vpop.permute.xlu0 %5918
    %v5922 = vsel %vm3027, %v5909, 0
    %v5924 = vsel %vm3027, %v5911, 0
    %v5926 = vsel %vm3027, %v5913, 0
    %v5928 = vsel %vm3105, %v5919, 0
    %5930 = vmatprep.subr.mxu0 0.0
    %5931 = vmatpush1.msra.mxu0 %v5915
    %5932 = vmatprep.subr.mxu0 0.0
    %5933 = vmatpush1.msra.mxu0 %v5917
    %5934 = vmatprep.subr.mxu0 0.0
    %5935 = vmatpush1.msra.mxu0 %v5928
    %5936 = vmatprep.subr.mxu0 0.0
    %5937 = vmatpush1.msra.mxu0 0.0
    %5938 = vmatprep.subr.mxu0 0.0
    %5939 = vmatpush1.msra.mxu0 0.0
    %5940 = vmatprep.subr.mxu0 0.0
    %5941 = vmatpush1.msra.mxu0 0.0
    %5942 = vmatprep.subr.mxu0 0.0
    %5943 = vmatpush1.msra.mxu0 0.0
    %5944 = vmatprep.subr.mxu0 0.0
    %5945 = vmatpush1.msra.mxu0 0.0
    %5946 = vmatprep.subr.mxu0 0.0
    %5947 = vmatpush1.msra.mxu0 0.0
    %5948 = vmatprep.subr.mxu0 0.0
    %5949 = vmatpush1.msra.mxu0 0.0
    %5950 = vmatprep.subr.mxu0 0.0
    %5951 = vmatpush1.msra.mxu0 0.0
    %5952 = vmatprep.subr.mxu0 0.0
    %5953 = vmatpush1.msra.mxu0 0.0
    %5954 = vmatprep.subr.mxu0 0.0
    %5955 = vmatpush1.msra.mxu0 0.0
    %5956 = vmatprep.subr.mxu0 0.0
    %5957 = vmatpush1.msra.mxu0 0.0
    %5958 = vmatprep.subr.mxu0 0.0
    %5959 = vmatpush1.msra.mxu0 0.0
    %5960 = vmatprep.subr.mxu0 0.0
    %5961 = vmatpush1.msra.mxu0 0.0
    %5962 = vmatprep.subr.mxu0 0.0
    %5963 = vmatpush1.msra.mxu0 0.0
    %5964 = vmatprep.subr.mxu0 0.0
    %5965 = vmatpush1.msra.mxu0 0.0
    %5966 = vmatprep.subr.mxu0 0.0
    %5967 = vmatpush1.msra.mxu0 0.0
    %5968 = vmatprep.subr.mxu0 0.0
    %5969 = vmatpush1.msra.mxu0 0.0
    %5970 = vmatprep.subr.mxu0 0.0
    %5971 = vmatpush1.msra.mxu0 0.0
    %5972 = vmatprep.subr.mxu0 0.0
    %5973 = vmatpush1.msra.mxu0 0.0
    %5974 = vmatprep.subr.mxu0 0.0
    %5975 = vmatpush1.msra.mxu0 0.0
    %5976 = vmatprep.subr.mxu0 0.0
    %5977 = vmatpush1.msra.mxu0 0.0
    %5978 = vmatprep.subr.mxu0 0.0
    %5979 = vmatpush1.msra.mxu0 0.0
    %5980 = vmatprep.subr.mxu0 0.0
    %5981 = vmatpush1.msra.mxu0 0.0
    %5982 = vmatprep.subr.mxu0 0.0
    %5983 = vmatpush1.msra.mxu0 0.0
    %5984 = vmatprep.subr.mxu0 0.0
    %5985 = vmatpush1.msra.mxu0 0.0
    %5986 = vmatprep.subr.mxu0 0.0
    %5987 = vmatpush1.msra.mxu0 0.0
    %5988 = vmatprep.subr.mxu0 0.0
    %5989 = vmatpush1.msra.mxu0 0.0
    %5990 = vmatprep.subr.mxu0 0.0
    %5991 = vmatpush1.msra.mxu0 0.0
    %5992 = vmatprep.subr.mxu0 0.0
    %5993 = vmatpush1.msra.mxu0 0.0
    %5994 = vmatprep.mubr.f32.mxu0 0.0
    %5995 = vmatmul.mubr.f32.gmra.mrb[0].mxu0 %v5922
    %v5996 = vpop.f32.mrb[0].mxu0
    %v5997 = vadd.f32 0.0, %v5996
    %v5998 = vpop.f32.mrb[0].mxu0
    %5999 = vmatprep.mubr.f32.mxu0 0.0
    %6000 = vmatmul.mubr.f32.gmra.mrb[0].mxu0 %v5924
    %v6001 = vpop.f32.mrb[0].mxu0
    %v6002 = vadd.f32 0.0, %v6001
    %v6003 = vpop.f32.mrb[0].mxu0
    %6004 = vmatprep.mubr.f32.mxu0 0.0
    %6005 = vmatmul.mubr.f32.gmra.mrb[0].mxu0 %v5926
    %v6006 = vpop.f32.mrb[0].mxu0
    %v6007 = vadd.f32 0.0, %v6006
    %v6008 = vpop.f32.mrb[0].mxu0
    %6009 = vdwg.mxu0
    %v6010 = vadd.f32 %v5905, %v5997
    %v6011 = vadd.f32 %v5906, %v6002
    %v6012 = vadd.f32 %v5907, %v6007
    %v6013 = vadd.f32 %v6010, %v4931
    %v6014 = vadd.f32 %v6011, %v4932
    %v6015 = vadd.f32 %v6012, %v4933
    %v6016 = vsel %vm49, %v6013, 0.0
    %6017 = vadd.xlane.f32.xlu0 %v6016
    %v6018 = vpop.xlane.xlu0 %6017
    %v6019 = vsel %vm49, %v6014, 0.0
    %6020 = vadd.xlane.f32.xlu0 %v6019
    %v6021 = vpop.xlane.xlu0 %6020
    %v6022 = vsel %vm3495, %v6015, 0.0
    %6023 = vadd.xlane.f32.xlu0 %v6022
    %v6024 = vpop.xlane.xlu0 %6023
    %v6025 = vmul.f32 %v6018, %v993
    %v6026 = vmul.f32 %v6021, %v993
    %v6027 = vmul.f32 %v6024, %v993
    %v6028 = vsub.f32 %v6013, %v6025
    %v6029 = vsub.f32 %v6014, %v6026
    %v6030 = vsub.f32 %v6015, %v6027
    %v6031 = vmul.f32 %v6028, %v6028
    %v6032 = vmul.f32 %v6029, %v6029
    %v6033 = vmul.f32 %v6030, %v6030
    %v6034 = vsel %vm49, %v6031, 0.0
    %6035 = vadd.xlane.f32.xlu0 %v6034
    %v6036 = vpop.xlane.xlu0 %6035
    %v6037 = vsel %vm49, %v6032, 0.0
    %6038 = vadd.xlane.f32.xlu0 %v6037
    %v6039 = vpop.xlane.xlu0 %6038
    %v6040 = vsel %vm3495, %v6033, 0.0
    %6041 = vadd.xlane.f32.xlu0 %v6040
    %v6042 = vpop.xlane.xlu0 %6041
    %v6043 = vmul.f32 %v6036, 0.032258064
    %v6044 = vmul.f32 %v6039, 0.032258064
    %v6045 = vmul.f32 %v6042, 0.032258064
    %v6046 = vrsqrt.pop %v6043
    %v6047 = vrsqrt.pop %v6044
    %v6048 = vrsqrt.pop %v6045
    %v6049 = vmul.f32 %v6028, %v6046
    %v6050 = vmul.f32 %v6029, %v6047
    %v6051 = vmul.f32 %v6030, %v6048
    %v6052 = vld [vmem:[#allocation2 + $0x2b0] sm:$0xff]
    %v6053 = vld [vmem:[#allocation2 + $0x2b8] sm:$0xff]
    %v6054 = vld [vmem:[#allocation2 + $0x2c0] sm:$0xff]
    %v6055 = vld [vmem:[#allocation2 + $0x2c8] sm:$0xff]
    %v6056 = vld [vmem:[#allocation2 + $0x2d0] sm:$0xff]
    %v6057 = vld [vmem:[#allocation2 + $0x2d8] sm:$0xff]
    %v6058 = vld [vmem:[#allocation2 + $0x2e0] sm:$0xff]
    %v6059 = vld [vmem:[#allocation2 + $0x2e8] sm:$0xff]
    %v6060 = vld [vmem:[#allocation2 + $0x2f0] sm:$0xff]
    %v6061 = vld [vmem:[#allocation2 + $0x2f8] sm:$0xff]
    %v6062 = vld [vmem:[#allocation2 + $0x300] sm:$0xff]
    %v6063 = vld [vmem:[#allocation2 + $0x308] sm:$0xff]
    %v6065 = vsel %vm49, %v6049, 0
    %v6068 = vsel %vm49, %v6050, 0
    %v6071 = vsel %vm49, %v6051, 0
    %6073 = vmatprep.subr.mxu0 0.0
    %6074 = vmatpush1.msra.mxu0 %v6052
    %6075 = vmatprep.subr.mxu0 0.0
    %6076 = vmatpush1.msra.mxu0 %v6053
    %6077 = vmatprep.subr.mxu0 0.0
    %6078 = vmatpush1.msra.mxu0 %v6054
    %6079 = vmatprep.subr.mxu0 0.0
    %6080 = vmatpush1.msra.mxu0 %v6055
    %6081 = vmatprep.subr.mxu0 0.0
    %6082 = vmatpush1.msra.mxu0 0.0
    %6083 = vmatprep.subr.mxu0 0.0
    %6084 = vmatpush1.msra.mxu0 0.0
    %6085 = vmatprep.subr.mxu0 0.0
    %6086 = vmatpush1.msra.mxu0 0.0
    %6087 = vmatprep.subr.mxu0 0.0
    %6088 = vmatpush1.msra.mxu0 0.0
    %6089 = vmatprep.subr.mxu0 0.0
    %6090 = vmatpush1.msra.mxu0 0.0
    %6091 = vmatprep.subr.mxu0 0.0
    %6092 = vmatpush1.msra.mxu0 0.0
    %6093 = vmatprep.subr.mxu0 0.0
    %6094 = vmatpush1.msra.mxu0 0.0
    %6095 = vmatprep.subr.mxu0 0.0
    %6096 = vmatpush1.msra.mxu0 0.0
    %6097 = vmatprep.subr.mxu0 0.0
    %6098 = vmatpush1.msra.mxu0 0.0
    %6099 = vmatprep.subr.mxu0 0.0
    %6100 = vmatpush1.msra.mxu0 0.0
    %6101 = vmatprep.subr.mxu0 0.0
    %6102 = vmatpush1.msra.mxu0 0.0
    %6103 = vmatprep.subr.mxu0 0.0
    %6104 = vmatpush1.msra.mxu0 0.0
    %6105 = vmatprep.subr.mxu0 0.0
    %6106 = vmatpush1.msra.mxu0 0.0
    %6107 = vmatprep.subr.mxu0 0.0
    %6108 = vmatpush1.msra.mxu0 0.0
    %6109 = vmatprep.subr.mxu0 0.0
    %6110 = vmatpush1.msra.mxu0 0.0
    %6111 = vmatprep.subr.mxu0 0.0
    %6112 = vmatpush1.msra.mxu0 0.0
    %6113 = vmatprep.subr.mxu0 0.0
    %6114 = vmatpush1.msra.mxu0 0.0
    %6115 = vmatprep.subr.mxu0 0.0
    %6116 = vmatpush1.msra.mxu0 0.0
    %6117 = vmatprep.subr.mxu0 0.0
    %6118 = vmatpush1.msra.mxu0 0.0
    %6119 = vmatprep.subr.mxu0 0.0
    %6120 = vmatpush1.msra.mxu0 0.0
    %6121 = vmatprep.subr.mxu0 0.0
    %6122 = vmatpush1.msra.mxu0 0.0
    %6123 = vmatprep.subr.mxu0 0.0
    %6124 = vmatpush1.msra.mxu0 0.0
    %6125 = vmatprep.subr.mxu0 0.0
    %6126 = vmatpush1.msra.mxu0 0.0
    %6127 = vmatprep.subr.mxu0 0.0
    %6128 = vmatpush1.msra.mxu0 0.0
    %6129 = vmatprep.subr.mxu0 0.0
    %6130 = vmatpush1.msra.mxu0 0.0
    %6131 = vmatprep.subr.mxu0 0.0
    %6132 = vmatpush1.msra.mxu0 0.0
    %6133 = vmatprep.subr.mxu0 0.0
    %6134 = vmatpush1.msra.mxu0 0.0
    %6135 = vmatprep.subr.mxu0 0.0
    %6136 = vmatpush1.msra.mxu0 0.0
    %6137 = vmatprep.mubr.f32.mxu0 0.0
    %6138 = vmatmul.mubr.f32.gmra.mrb[0].mxu0 %v6065
    %v6139 = vpop.f32.mrb[0].mxu0
    %v6140 = vadd.f32 0.0, %v6139
    %v6141 = vpop.f32.mrb[0].mxu0
    %6142 = vmatprep.mubr.f32.mxu0 0.0
    %6143 = vmatmul.mubr.f32.gmra.mrb[0].mxu0 %v6068
    %v6144 = vpop.f32.mrb[0].mxu0
    %v6145 = vadd.f32 0.0, %v6144
    %v6146 = vpop.f32.mrb[0].mxu0
    %6147 = vmatprep.mubr.f32.mxu0 0.0
    %6148 = vmatmul.mubr.f32.gmra.mrb[0].mxu0 %v6071
    %v6149 = vpop.f32.mrb[0].mxu0
    %v6150 = vadd.f32 0.0, %v6149
    %v6151 = vpop.f32.mrb[0].mxu0
    %6152 = vdwg.mxu0
    %6153 = vmatprep.subr.mxu0 0.0
    %6154 = vmatpush1.msra.mxu0 %v6056
    %6155 = vmatprep.subr.mxu0 0.0
    %6156 = vmatpush1.msra.mxu0 %v6057
    %6157 = vmatprep.subr.mxu0 0.0
    %6158 = vmatpush1.msra.mxu0 %v6058
    %6159 = vmatprep.subr.mxu0 0.0
    %6160 = vmatpush1.msra.mxu0 %v6059
    %6161 = vmatprep.subr.mxu0 0.0
    %6162 = vmatpush1.msra.mxu0 0.0
    %6163 = vmatprep.subr.mxu0 0.0
    %6164 = vmatpush1.msra.mxu0 0.0
    %6165 = vmatprep.subr.mxu0 0.0
    %6166 = vmatpush1.msra.mxu0 0.0
    %6167 = vmatprep.subr.mxu0 0.0
    %6168 = vmatpush1.msra.mxu0 0.0
    %6169 = vmatprep.subr.mxu0 0.0
    %6170 = vmatpush1.msra.mxu0 0.0
    %6171 = vmatprep.subr.mxu0 0.0
    %6172 = vmatpush1.msra.mxu0 0.0
    %6173 = vmatprep.subr.mxu0 0.0
    %6174 = vmatpush1.msra.mxu0 0.0
    %6175 = vmatprep.subr.mxu0 0.0
    %6176 = vmatpush1.msra.mxu0 0.0
    %6177 = vmatprep.subr.mxu0 0.0
    %6178 = vmatpush1.msra.mxu0 0.0
    %6179 = vmatprep.subr.mxu0 0.0
    %6180 = vmatpush1.msra.mxu0 0.0
    %6181 = vmatprep.subr.mxu0 0.0
    %6182 = vmatpush1.msra.mxu0 0.0
    %6183 = vmatprep.subr.mxu0 0.0
    %6184 = vmatpush1.msra.mxu0 0.0
    %6185 = vmatprep.subr.mxu0 0.0
    %6186 = vmatpush1.msra.mxu0 0.0
    %6187 = vmatprep.subr.mxu0 0.0
    %6188 = vmatpush1.msra.mxu0 0.0
    %6189 = vmatprep.subr.mxu0 0.0
    %6190 = vmatpush1.msra.mxu0 0.0
    %6191 = vmatprep.subr.mxu0 0.0
    %6192 = vmatpush1.msra.mxu0 0.0
    %6193 = vmatprep.subr.mxu0 0.0
    %6194 = vmatpush1.msra.mxu0 0.0
    %6195 = vmatprep.subr.mxu0 0.0
    %6196 = vmatpush1.msra.mxu0 0.0
    %6197 = vmatprep.subr.mxu0 0.0
    %6198 = vmatpush1.msra.mxu0 0.0
    %6199 = vmatprep.subr.mxu0 0.0
    %6200 = vmatpush1.msra.mxu0 0.0
    %6201 = vmatprep.subr.mxu0 0.0
    %6202 = vmatpush1.msra.mxu0 0.0
    %6203 = vmatprep.subr.mxu0 0.0
    %6204 = vmatpush1.msra.mxu0 0.0
    %6205 = vmatprep.subr.mxu0 0.0
    %6206 = vmatpush1.msra.mxu0 0.0
    %6207 = vmatprep.subr.mxu0 0.0
    %6208 = vmatpush1.msra.mxu0 0.0
    %6209 = vmatprep.subr.mxu0 0.0
    %6210 = vmatpush1.msra.mxu0 0.0
    %6211 = vmatprep.subr.mxu0 0.0
    %6212 = vmatpush1.msra.mxu0 0.0
    %6213 = vmatprep.subr.mxu0 0.0
    %6214 = vmatpush1.msra.mxu0 0.0
    %6215 = vmatprep.subr.mxu0 0.0
    %6216 = vmatpush1.msra.mxu0 0.0
    %6217 = vmatprep.mubr.f32.mxu0 0.0
    %6218 = vmatmul.mubr.f32.gmra.mrb[0].mxu0 %v3628
    %v6219 = vpop.f32.mrb[0].mxu0
    %v6220 = vadd.f32 0.0, %v6219
    %v6221 = vpop.f32.mrb[0].mxu0
    %6222 = vmatprep.mubr.f32.mxu0 0.0
    %6223 = vmatmul.mubr.f32.gmra.mrb[0].mxu0 %v3631
    %v6224 = vpop.f32.mrb[0].mxu0
    %v6225 = vadd.f32 0.0, %v6224
    %v6226 = vpop.f32.mrb[0].mxu0
    %6227 = vdwg.mxu0
    %6228 = vmatprep.subr.mxu0 0.0
    %6229 = vmatpush1.msra.mxu0 %v6060
    %6230 = vmatprep.subr.mxu0 0.0
    %6231 = vmatpush1.msra.mxu0 %v6061
    %6232 = vmatprep.subr.mxu0 0.0
    %6233 = vmatpush1.msra.mxu0 %v6062
    %6234 = vmatprep.subr.mxu0 0.0
    %6235 = vmatpush1.msra.mxu0 %v6063
    %6236 = vmatprep.subr.mxu0 0.0
    %6237 = vmatpush1.msra.mxu0 0.0
    %6238 = vmatprep.subr.mxu0 0.0
    %6239 = vmatpush1.msra.mxu0 0.0
    %6240 = vmatprep.subr.mxu0 0.0
    %6241 = vmatpush1.msra.mxu0 0.0
    %6242 = vmatprep.subr.mxu0 0.0
    %6243 = vmatpush1.msra.mxu0 0.0
    %6244 = vmatprep.subr.mxu0 0.0
    %6245 = vmatpush1.msra.mxu0 0.0
    %6246 = vmatprep.subr.mxu0 0.0
    %6247 = vmatpush1.msra.mxu0 0.0
    %6248 = vmatprep.subr.mxu0 0.0
    %6249 = vmatpush1.msra.mxu0 0.0
    %6250 = vmatprep.subr.mxu0 0.0
    %6251 = vmatpush1.msra.mxu0 0.0
    %6252 = vmatprep.subr.mxu0 0.0
    %6253 = vmatpush1.msra.mxu0 0.0
    %6254 = vmatprep.subr.mxu0 0.0
    %6255 = vmatpush1.msra.mxu0 0.0
    %6256 = vmatprep.subr.mxu0 0.0
    %6257 = vmatpush1.msra.mxu0 0.0
    %6258 = vmatprep.subr.mxu0 0.0
    %6259 = vmatpush1.msra.mxu0 0.0
    %6260 = vmatprep.subr.mxu0 0.0
    %6261 = vmatpush1.msra.mxu0 0.0
    %6262 = vmatprep.subr.mxu0 0.0
    %6263 = vmatpush1.msra.mxu0 0.0
    %6264 = vmatprep.subr.mxu0 0.0
    %6265 = vmatpush1.msra.mxu0 0.0
    %6266 = vmatprep.subr.mxu0 0.0
    %6267 = vmatpush1.msra.mxu0 0.0
    %6268 = vmatprep.subr.mxu0 0.0
    %6269 = vmatpush1.msra.mxu0 0.0
    %6270 = vmatprep.subr.mxu0 0.0
    %6271 = vmatpush1.msra.mxu0 0.0
    %6272 = vmatprep.subr.mxu0 0.0
    %6273 = vmatpush1.msra.mxu0 0.0
    %6274 = vmatprep.subr.mxu0 0.0
    %6275 = vmatpush1.msra.mxu0 0.0
    %6276 = vmatprep.subr.mxu0 0.0
    %6277 = vmatpush1.msra.mxu0 0.0
    %6278 = vmatprep.subr.mxu0 0.0
    %6279 = vmatpush1.msra.mxu0 0.0
    %6280 = vmatprep.subr.mxu0 0.0
    %6281 = vmatpush1.msra.mxu0 0.0
    %6282 = vmatprep.subr.mxu0 0.0
    %6283 = vmatpush1.msra.mxu0 0.0
    %6284 = vmatprep.subr.mxu0 0.0
    %6285 = vmatpush1.msra.mxu0 0.0
    %6286 = vmatprep.subr.mxu0 0.0
    %6287 = vmatpush1.msra.mxu0 0.0
    %6288 = vmatprep.subr.mxu0 0.0
    %6289 = vmatpush1.msra.mxu0 0.0
    %6290 = vmatprep.subr.mxu0 0.0
    %6291 = vmatpush1.msra.mxu0 0.0
    %6292 = vmatprep.mubr.f32.mxu0 0.0
    %6293 = vmatmul.mubr.f32.gmra.mrb[0].mxu0 %v3628
    %v6294 = vpop.f32.mrb[0].mxu0
    %v6295 = vadd.f32 0.0, %v6294
    %v6296 = vpop.f32.mrb[0].mxu0
    %6297 = vmatprep.mubr.f32.mxu0 0.0
    %6298 = vmatmul.mubr.f32.gmra.mrb[0].mxu0 %v3631
    %v6299 = vpop.f32.mrb[0].mxu0
    %v6300 = vadd.f32 0.0, %v6299
    %v6301 = vpop.f32.mrb[0].mxu0
    %6302 = vdwg.mxu0
    %v6304 = vsel %vm212, %v6140, 0
    %v6307 = vsel %vm212, %v6145, 0
    %v6310 = vsel %vm212, %v6150, 0
    %v6313 = vsel %vm212, %v6220, 0
    %v6316 = vsel %vm212, %v6225, 0
    %6318 = vmatprep.subr.mxu0 0.0
    %6319 = vmatpush1.xpose.msra.mxu0 %v6313
    %6320 = vmatprep.subr.mxu0 0.0
    %6321 = vmatpush1.xpose.msra.mxu0 %v6316
    %6322 = vmatprep.subr.mxu0 0.0
    %6323 = vmatpush1.xpose.msra.mxu0 0.0
    %6324 = vmatprep.subr.mxu0 0.0
    %6325 = vmatpush1.xpose.msra.mxu0 0.0
    %6326 = vmatprep.subr.mxu0 0.0
    %6327 = vmatpush1.xpose.msra.mxu0 0.0
    %6328 = vmatprep.subr.mxu0 0.0
    %6329 = vmatpush1.xpose.msra.mxu0 0.0
    %6330 = vmatprep.subr.mxu0 0.0
    %6331 = vmatpush1.xpose.msra.mxu0 0.0
    %6332 = vmatprep.subr.mxu0 0.0
    %6333 = vmatpush1.xpose.msra.mxu0 0.0
    %6334 = vmatprep.subr.mxu0 0.0
    %6335 = vmatpush1.xpose.msra.mxu0 0.0
    %6336 = vmatprep.subr.mxu0 0.0
    %6337 = vmatpush1.xpose.msra.mxu0 0.0
    %6338 = vmatprep.subr.mxu0 0.0
    %6339 = vmatpush1.xpose.msra.mxu0 0.0
    %6340 = vmatprep.subr.mxu0 0.0
    %6341 = vmatpush1.xpose.msra.mxu0 0.0
    %6342 = vmatprep.subr.mxu0 0.0
    %6343 = vmatpush1.xpose.msra.mxu0 0.0
    %6344 = vmatprep.subr.mxu0 0.0
    %6345 = vmatpush1.xpose.msra.mxu0 0.0
    %6346 = vmatprep.subr.mxu0 0.0
    %6347 = vmatpush1.xpose.msra.mxu0 0.0
    %6348 = vmatprep.subr.mxu0 0.0
    %6349 = vmatpush1.xpose.msra.mxu0 0.0
    %6350 = vmatprep.subr.mxu0 0.0
    %6351 = vmatpush1.xpose.msra.mxu0 0.0
    %6352 = vmatprep.subr.mxu0 0.0
    %6353 = vmatpush1.xpose.msra.mxu0 0.0
    %6354 = vmatprep.subr.mxu0 0.0
    %6355 = vmatpush1.xpose.msra.mxu0 0.0
    %6356 = vmatprep.subr.mxu0 0.0
    %6357 = vmatpush1.xpose.msra.mxu0 0.0
    %6358 = vmatprep.subr.mxu0 0.0
    %6359 = vmatpush1.xpose.msra.mxu0 0.0
    %6360 = vmatprep.subr.mxu0 0.0
    %6361 = vmatpush1.xpose.msra.mxu0 0.0
    %6362 = vmatprep.subr.mxu0 0.0
    %6363 = vmatpush1.xpose.msra.mxu0 0.0
    %6364 = vmatprep.subr.mxu0 0.0
    %6365 = vmatpush1.xpose.msra.mxu0 0.0
    %6366 = vmatprep.subr.mxu0 0.0
    %6367 = vmatpush1.xpose.msra.mxu0 0.0
    %6368 = vmatprep.subr.mxu0 0.0
    %6369 = vmatpush1.xpose.msra.mxu0 0.0
    %6370 = vmatprep.subr.mxu0 0.0
    %6371 = vmatpush1.xpose.msra.mxu0 0.0
    %6372 = vmatprep.subr.mxu0 0.0
    %6373 = vmatpush1.xpose.msra.mxu0 0.0
    %6374 = vmatprep.subr.mxu0 0.0
    %6375 = vmatpush1.xpose.msra.mxu0 0.0
    %6376 = vmatprep.subr.mxu0 0.0
    %6377 = vmatpush1.xpose.msra.mxu0 0.0
    %6378 = vmatprep.subr.mxu0 0.0
    %6379 = vmatpush1.xpose.msra.mxu0 0.0
    %6380 = vmatprep.subr.mxu0 0.0
    %6381 = vmatpush1.xpose.msra.mxu0 0.0
    %6382 = vmatprep.mubr.f32.mxu0 0.0
    %6383 = vmatmul.mubr.f32.gmra.mrb[0].mxu0 %v6304
    %v6384 = vpop.f32.mrb[0].mxu0
    %v6385 = vadd.f32 0.0, %v6384
    %v6386 = vpop.f32.mrb[0].mxu0
    %6387 = vmatprep.mubr.f32.mxu0 0.0
    %6388 = vmatmul.mubr.f32.gmra.mrb[0].mxu0 %v6307
    %v6389 = vpop.f32.mrb[0].mxu0
    %v6390 = vadd.f32 0.0, %v6389
    %v6391 = vpop.f32.mrb[0].mxu0
    %6392 = vmatprep.mubr.f32.mxu0 0.0
    %6393 = vmatmul.mubr.f32.gmra.mrb[0].mxu0 %v6310
    %v6394 = vpop.f32.mrb[0].mxu0
    %v6395 = vadd.f32 0.0, %v6394
    %v6396 = vpop.f32.mrb[0].mxu0
    %6397 = vdwg.mxu0
    %6398 = vrot.lane.b32.xlu0 %v6140, 120
    %v6399 = vpop.permute.xlu0 %6398
    %6400 = vrot.lane.b32.xlu0 %v6145, 120
    %v6401 = vpop.permute.xlu0 %6400
    %6402 = vrot.lane.b32.xlu0 %v6150, 120
    %v6403 = vpop.permute.xlu0 %6402
    %6404 = vrot.lane.b32.xlu0 %v6220, 120
    %v6405 = vpop.permute.xlu0 %6404
    %6406 = vrot.lane.b32.xlu0 %v6225, 120
    %v6407 = vpop.permute.xlu0 %6406
    %v6408 = vsel %vm212, %v6399, 0
    %v6410 = vsel %vm212, %v6401, 0
    %v6412 = vsel %vm212, %v6403, 0
    %v6414 = vsel %vm212, %v6405, 0
    %v6416 = vsel %vm212, %v6407, 0
    %6418 = vmatprep.subr.mxu0 0.0
    %6419 = vmatpush1.xpose.msra.mxu0 %v6414
    %6420 = vmatprep.subr.mxu0 0.0
    %6421 = vmatpush1.xpose.msra.mxu0 %v6416
    %6422 = vmatprep.subr.mxu0 0.0
    %6423 = vmatpush1.xpose.msra.mxu0 0.0
    %6424 = vmatprep.subr.mxu0 0.0
    %6425 = vmatpush1.xpose.msra.mxu0 0.0
    %6426 = vmatprep.subr.mxu0 0.0
    %6427 = vmatpush1.xpose.msra.mxu0 0.0
    %6428 = vmatprep.subr.mxu0 0.0
    %6429 = vmatpush1.xpose.msra.mxu0 0.0
    %6430 = vmatprep.subr.mxu0 0.0
    %6431 = vmatpush1.xpose.msra.mxu0 0.0
    %6432 = vmatprep.subr.mxu0 0.0
    %6433 = vmatpush1.xpose.msra.mxu0 0.0
    %6434 = vmatprep.subr.mxu0 0.0
    %6435 = vmatpush1.xpose.msra.mxu0 0.0
    %6436 = vmatprep.subr.mxu0 0.0
    %6437 = vmatpush1.xpose.msra.mxu0 0.0
    %6438 = vmatprep.subr.mxu0 0.0
    %6439 = vmatpush1.xpose.msra.mxu0 0.0
    %6440 = vmatprep.subr.mxu0 0.0
    %6441 = vmatpush1.xpose.msra.mxu0 0.0
    %6442 = vmatprep.subr.mxu0 0.0
    %6443 = vmatpush1.xpose.msra.mxu0 0.0
    %6444 = vmatprep.subr.mxu0 0.0
    %6445 = vmatpush1.xpose.msra.mxu0 0.0
    %6446 = vmatprep.subr.mxu0 0.0
    %6447 = vmatpush1.xpose.msra.mxu0 0.0
    %6448 = vmatprep.subr.mxu0 0.0
    %6449 = vmatpush1.xpose.msra.mxu0 0.0
    %6450 = vmatprep.subr.mxu0 0.0
    %6451 = vmatpush1.xpose.msra.mxu0 0.0
    %6452 = vmatprep.subr.mxu0 0.0
    %6453 = vmatpush1.xpose.msra.mxu0 0.0
    %6454 = vmatprep.subr.mxu0 0.0
    %6455 = vmatpush1.xpose.msra.mxu0 0.0
    %6456 = vmatprep.subr.mxu0 0.0
    %6457 = vmatpush1.xpose.msra.mxu0 0.0
    %6458 = vmatprep.subr.mxu0 0.0
    %6459 = vmatpush1.xpose.msra.mxu0 0.0
    %6460 = vmatprep.subr.mxu0 0.0
    %6461 = vmatpush1.xpose.msra.mxu0 0.0
    %6462 = vmatprep.subr.mxu0 0.0
    %6463 = vmatpush1.xpose.msra.mxu0 0.0
    %6464 = vmatprep.subr.mxu0 0.0
    %6465 = vmatpush1.xpose.msra.mxu0 0.0
    %6466 = vmatprep.subr.mxu0 0.0
    %6467 = vmatpush1.xpose.msra.mxu0 0.0
    %6468 = vmatprep.subr.mxu0 0.0
    %6469 = vmatpush1.xpose.msra.mxu0 0.0
    %6470 = vmatprep.subr.mxu0 0.0
    %6471 = vmatpush1.xpose.msra.mxu0 0.0
    %6472 = vmatprep.subr.mxu0 0.0
    %6473 = vmatpush1.xpose.msra.mxu0 0.0
    %6474 = vmatprep.subr.mxu0 0.0
    %6475 = vmatpush1.xpose.msra.mxu0 0.0
    %6476 = vmatprep.subr.mxu0 0.0
    %6477 = vmatpush1.xpose.msra.mxu0 0.0
    %6478 = vmatprep.subr.mxu0 0.0
    %6479 = vmatpush1.xpose.msra.mxu0 0.0
    %6480 = vmatprep.subr.mxu0 0.0
    %6481 = vmatpush1.xpose.msra.mxu0 0.0
    %6482 = vmatprep.mubr.f32.mxu0 0.0
    %6483 = vmatmul.mubr.f32.gmra.mrb[0].mxu0 %v6408
    %v6484 = vpop.f32.mrb[0].mxu0
    %v6485 = vadd.f32 0.0, %v6484
    %v6486 = vpop.f32.mrb[0].mxu0
    %6487 = vmatprep.mubr.f32.mxu0 0.0
    %6488 = vmatmul.mubr.f32.gmra.mrb[0].mxu0 %v6410
    %v6489 = vpop.f32.mrb[0].mxu0
    %v6490 = vadd.f32 0.0, %v6489
    %v6491 = vpop.f32.mrb[0].mxu0
    %6492 = vmatprep.mubr.f32.mxu0 0.0
    %6493 = vmatmul.mubr.f32.gmra.mrb[0].mxu0 %v6412
    %v6494 = vpop.f32.mrb[0].mxu0
    %v6495 = vadd.f32 0.0, %v6494
    %v6496 = vpop.f32.mrb[0].mxu0
    %6497 = vdwg.mxu0
    %6498 = vrot.lane.b32.xlu0 %v6140, 112
    %v6499 = vpop.permute.xlu0 %6498
    %6500 = vrot.lane.b32.xlu0 %v6145, 112
    %v6501 = vpop.permute.xlu0 %6500
    %6502 = vrot.lane.b32.xlu0 %v6150, 112
    %v6503 = vpop.permute.xlu0 %6502
    %6504 = vrot.lane.b32.xlu0 %v6220, 112
    %v6505 = vpop.permute.xlu0 %6504
    %6506 = vrot.lane.b32.xlu0 %v6225, 112
    %v6507 = vpop.permute.xlu0 %6506
    %v6508 = vsel %vm212, %v6499, 0
    %v6510 = vsel %vm212, %v6501, 0
    %v6512 = vsel %vm212, %v6503, 0
    %v6514 = vsel %vm212, %v6505, 0
    %v6516 = vsel %vm212, %v6507, 0
    %6518 = vmatprep.subr.mxu0 0.0
    %6519 = vmatpush1.xpose.msra.mxu0 %v6514
    %6520 = vmatprep.subr.mxu0 0.0
    %6521 = vmatpush1.xpose.msra.mxu0 %v6516
    %6522 = vmatprep.subr.mxu0 0.0
    %6523 = vmatpush1.xpose.msra.mxu0 0.0
    %6524 = vmatprep.subr.mxu0 0.0
    %6525 = vmatpush1.xpose.msra.mxu0 0.0
    %6526 = vmatprep.subr.mxu0 0.0
    %6527 = vmatpush1.xpose.msra.mxu0 0.0
    %6528 = vmatprep.subr.mxu0 0.0
    %6529 = vmatpush1.xpose.msra.mxu0 0.0
    %6530 = vmatprep.subr.mxu0 0.0
    %6531 = vmatpush1.xpose.msra.mxu0 0.0
    %6532 = vmatprep.subr.mxu0 0.0
    %6533 = vmatpush1.xpose.msra.mxu0 0.0
    %6534 = vmatprep.subr.mxu0 0.0
    %6535 = vmatpush1.xpose.msra.mxu0 0.0
    %6536 = vmatprep.subr.mxu0 0.0
    %6537 = vmatpush1.xpose.msra.mxu0 0.0
    %6538 = vmatprep.subr.mxu0 0.0
    %6539 = vmatpush1.xpose.msra.mxu0 0.0
    %6540 = vmatprep.subr.mxu0 0.0
    %6541 = vmatpush1.xpose.msra.mxu0 0.0
    %6542 = vmatprep.subr.mxu0 0.0
    %6543 = vmatpush1.xpose.msra.mxu0 0.0
    %6544 = vmatprep.subr.mxu0 0.0
    %6545 = vmatpush1.xpose.msra.mxu0 0.0
    %6546 = vmatprep.subr.mxu0 0.0
    %6547 = vmatpush1.xpose.msra.mxu0 0.0
    %6548 = vmatprep.subr.mxu0 0.0
    %6549 = vmatpush1.xpose.msra.mxu0 0.0
    %6550 = vmatprep.subr.mxu0 0.0
    %6551 = vmatpush1.xpose.msra.mxu0 0.0
    %6552 = vmatprep.subr.mxu0 0.0
    %6553 = vmatpush1.xpose.msra.mxu0 0.0
    %6554 = vmatprep.subr.mxu0 0.0
    %6555 = vmatpush1.xpose.msra.mxu0 0.0
    %6556 = vmatprep.subr.mxu0 0.0
    %6557 = vmatpush1.xpose.msra.mxu0 0.0
    %6558 = vmatprep.subr.mxu0 0.0
    %6559 = vmatpush1.xpose.msra.mxu0 0.0
    %6560 = vmatprep.subr.mxu0 0.0
    %6561 = vmatpush1.xpose.msra.mxu0 0.0
    %6562 = vmatprep.subr.mxu0 0.0
    %6563 = vmatpush1.xpose.msra.mxu0 0.0
    %6564 = vmatprep.subr.mxu0 0.0
    %6565 = vmatpush1.xpose.msra.mxu0 0.0
    %6566 = vmatprep.subr.mxu0 0.0
    %6567 = vmatpush1.xpose.msra.mxu0 0.0
    %6568 = vmatprep.subr.mxu0 0.0
    %6569 = vmatpush1.xpose.msra.mxu0 0.0
    %6570 = vmatprep.subr.mxu0 0.0
    %6571 = vmatpush1.xpose.msra.mxu0 0.0
    %6572 = vmatprep.subr.mxu0 0.0
    %6573 = vmatpush1.xpose.msra.mxu0 0.0
    %6574 = vmatprep.subr.mxu0 0.0
    %6575 = vmatpush1.xpose.msra.mxu0 0.0
    %6576 = vmatprep.subr.mxu0 0.0
    %6577 = vmatpush1.xpose.msra.mxu0 0.0
    %6578 = vmatprep.subr.mxu0 0.0
    %6579 = vmatpush1.xpose.msra.mxu0 0.0
    %6580 = vmatprep.subr.mxu0 0.0
    %6581 = vmatpush1.xpose.msra.mxu0 0.0
    %6582 = vmatprep.mubr.f32.mxu0 0.0
    %6583 = vmatmul.mubr.f32.gmra.mrb[0].mxu0 %v6508
    %v6584 = vpop.f32.mrb[0].mxu0
    %v6585 = vadd.f32 0.0, %v6584
    %v6586 = vpop.f32.mrb[0].mxu0
    %6587 = vmatprep.mubr.f32.mxu0 0.0
    %6588 = vmatmul.mubr.f32.gmra.mrb[0].mxu0 %v6510
    %v6589 = vpop.f32.mrb[0].mxu0
    %v6590 = vadd.f32 0.0, %v6589
    %v6591 = vpop.f32.mrb[0].mxu0
    %6592 = vmatprep.mubr.f32.mxu0 0.0
    %6593 = vmatmul.mubr.f32.gmra.mrb[0].mxu0 %v6512
    %v6594 = vpop.f32.mrb[0].mxu0
    %v6595 = vadd.f32 0.0, %v6594
    %v6596 = vpop.f32.mrb[0].mxu0
    %6597 = vdwg.mxu0
    %6598 = vrot.lane.b32.xlu0 %v6140, 104
    %v6599 = vpop.permute.xlu0 %6598
    %6600 = vrot.lane.b32.xlu0 %v6145, 104
    %v6601 = vpop.permute.xlu0 %6600
    %6602 = vrot.lane.b32.xlu0 %v6150, 104
    %v6603 = vpop.permute.xlu0 %6602
    %6604 = vrot.lane.b32.xlu0 %v6220, 104
    %v6605 = vpop.permute.xlu0 %6604
    %6606 = vrot.lane.b32.xlu0 %v6225, 104
    %v6607 = vpop.permute.xlu0 %6606
    %v6608 = vsel %vm212, %v6599, 0
    %v6610 = vsel %vm212, %v6601, 0
    %v6612 = vsel %vm212, %v6603, 0
    %v6614 = vsel %vm212, %v6605, 0
    %v6616 = vsel %vm212, %v6607, 0
    %6618 = vmatprep.subr.mxu0 0.0
    %6619 = vmatpush1.xpose.msra.mxu0 %v6614
    %6620 = vmatprep.subr.mxu0 0.0
    %6621 = vmatpush1.xpose.msra.mxu0 %v6616
    %6622 = vmatprep.subr.mxu0 0.0
    %6623 = vmatpush1.xpose.msra.mxu0 0.0
    %6624 = vmatprep.subr.mxu0 0.0
    %6625 = vmatpush1.xpose.msra.mxu0 0.0
    %6626 = vmatprep.subr.mxu0 0.0
    %6627 = vmatpush1.xpose.msra.mxu0 0.0
    %6628 = vmatprep.subr.mxu0 0.0
    %6629 = vmatpush1.xpose.msra.mxu0 0.0
    %6630 = vmatprep.subr.mxu0 0.0
    %6631 = vmatpush1.xpose.msra.mxu0 0.0
    %6632 = vmatprep.subr.mxu0 0.0
    %6633 = vmatpush1.xpose.msra.mxu0 0.0
    %6634 = vmatprep.subr.mxu0 0.0
    %6635 = vmatpush1.xpose.msra.mxu0 0.0
    %6636 = vmatprep.subr.mxu0 0.0
    %6637 = vmatpush1.xpose.msra.mxu0 0.0
    %6638 = vmatprep.subr.mxu0 0.0
    %6639 = vmatpush1.xpose.msra.mxu0 0.0
    %6640 = vmatprep.subr.mxu0 0.0
    %6641 = vmatpush1.xpose.msra.mxu0 0.0
    %6642 = vmatprep.subr.mxu0 0.0
    %6643 = vmatpush1.xpose.msra.mxu0 0.0
    %6644 = vmatprep.subr.mxu0 0.0
    %6645 = vmatpush1.xpose.msra.mxu0 0.0
    %6646 = vmatprep.subr.mxu0 0.0
    %6647 = vmatpush1.xpose.msra.mxu0 0.0
    %6648 = vmatprep.subr.mxu0 0.0
    %6649 = vmatpush1.xpose.msra.mxu0 0.0
    %6650 = vmatprep.subr.mxu0 0.0
    %6651 = vmatpush1.xpose.msra.mxu0 0.0
    %6652 = vmatprep.subr.mxu0 0.0
    %6653 = vmatpush1.xpose.msra.mxu0 0.0
    %6654 = vmatprep.subr.mxu0 0.0
    %6655 = vmatpush1.xpose.msra.mxu0 0.0
    %6656 = vmatprep.subr.mxu0 0.0
    %6657 = vmatpush1.xpose.msra.mxu0 0.0
    %6658 = vmatprep.subr.mxu0 0.0
    %6659 = vmatpush1.xpose.msra.mxu0 0.0
    %6660 = vmatprep.subr.mxu0 0.0
    %6661 = vmatpush1.xpose.msra.mxu0 0.0
    %6662 = vmatprep.subr.mxu0 0.0
    %6663 = vmatpush1.xpose.msra.mxu0 0.0
    %6664 = vmatprep.subr.mxu0 0.0
    %6665 = vmatpush1.xpose.msra.mxu0 0.0
    %6666 = vmatprep.subr.mxu0 0.0
    %6667 = vmatpush1.xpose.msra.mxu0 0.0
    %6668 = vmatprep.subr.mxu0 0.0
    %6669 = vmatpush1.xpose.msra.mxu0 0.0
    %6670 = vmatprep.subr.mxu0 0.0
    %6671 = vmatpush1.xpose.msra.mxu0 0.0
    %6672 = vmatprep.subr.mxu0 0.0
    %6673 = vmatpush1.xpose.msra.mxu0 0.0
    %6674 = vmatprep.subr.mxu0 0.0
    %6675 = vmatpush1.xpose.msra.mxu0 0.0
    %6676 = vmatprep.subr.mxu0 0.0
    %6677 = vmatpush1.xpose.msra.mxu0 0.0
    %6678 = vmatprep.subr.mxu0 0.0
    %6679 = vmatpush1.xpose.msra.mxu0 0.0
    %6680 = vmatprep.subr.mxu0 0.0
    %6681 = vmatpush1.xpose.msra.mxu0 0.0
    %6682 = vmatprep.mubr.f32.mxu0 0.0
    %6683 = vmatmul.mubr.f32.gmra.mrb[0].mxu0 %v6608
    %v6684 = vpop.f32.mrb[0].mxu0
    %v6685 = vadd.f32 0.0, %v6684
    %v6686 = vpop.f32.mrb[0].mxu0
    %6687 = vmatprep.mubr.f32.mxu0 0.0
    %6688 = vmatmul.mubr.f32.gmra.mrb[0].mxu0 %v6610
    %v6689 = vpop.f32.mrb[0].mxu0
    %v6690 = vadd.f32 0.0, %v6689
    %v6691 = vpop.f32.mrb[0].mxu0
    %6692 = vmatprep.mubr.f32.mxu0 0.0
    %6693 = vmatmul.mubr.f32.gmra.mrb[0].mxu0 %v6612
    %v6694 = vpop.f32.mrb[0].mxu0
    %v6695 = vadd.f32 0.0, %v6694
    %v6696 = vpop.f32.mrb[0].mxu0
    %6697 = vdwg.mxu0
    %6701 = vrot.lane.b32.xlu0 %v6485, 16
    %v6702 = vpop.permute.xlu0 %6701
    %6703 = vrot.lane.b32.xlu0 %v6490, 16
    %v6704 = vpop.permute.xlu0 %6703
    %6705 = vrot.lane.b32.xlu0 %v6495, 16
    %v6706 = vpop.permute.xlu0 %6705
    %6713 = vrot.lane.b32.xlu0 %v6585, 32
    %v6714 = vpop.permute.xlu0 %6713
    %6715 = vrot.lane.b32.xlu0 %v6590, 32
    %v6716 = vpop.permute.xlu0 %6715
    %6717 = vrot.lane.b32.xlu0 %v6595, 32
    %v6718 = vpop.permute.xlu0 %6717
    %6725 = vrot.lane.b32.xlu0 %v6685, 48
    %v6726 = vpop.permute.xlu0 %6725
    %6727 = vrot.lane.b32.xlu0 %v6690, 48
    %v6728 = vpop.permute.xlu0 %6727
    %6729 = vrot.lane.b32.xlu0 %v6695, 48
    %v6730 = vpop.permute.xlu0 %6729
    %v6734 = vsel %vm593, %v6385, %v6702
    %v6735 = vsel %vm593, %v6390, %v6704
    %v6736 = vsel %vm593, %v6395, %v6706
    %v6737 = vsel %vm49, %v6734, %v6714
    %v6738 = vsel %vm49, %v6735, %v6716
    %v6739 = vsel %vm49, %v6736, %v6718
    %v6740 = vsel %vm598, %v6737, %v6726
    %v6741 = vsel %vm598, %v6738, %v6728
    %v6742 = vsel %vm598, %v6739, %v6730
    %v6743 = vadd.f32 %v6740, %v38
    %v6744 = vadd.f32 %v6741, %v39
    %v6745 = vadd.f32 %v6742, %v40
    %v6746 = vsel %vm603, %v6743, -inf
    %v6747 = vsel %vm603, %v6744, -inf
    %v6748 = vsel %vm4228, %v6745, -inf
    %v6749 = vmax.f32 %v6746, %v6747
    %v6750 = vmax.f32 %v6749, %v6748
    %v6751 = vrot.slane %v6750, 4
    %v6752 = vmax.f32 %v6750, %v6751
    %v6753 = vrot.slane %v6752, 2
    %v6754 = vmax.f32 %v6752, %v6753
    %v6755 = vrot.slane %v6754, 1
    %v6756 = vmax.f32 %v6754, %v6755
    %v6757 = vsub.f32 %v6743, %v6756
    %v6758 = vsub.f32 %v6744, %v6756
    %v6759 = vsub.f32 %v6745, %v6756
    %v6760 = vmul.f32 %v6757, 1.442695
    %v6761 = vpow.pop %v6760
    %v6762 = vmul.f32 %v6758, 1.442695
    %v6763 = vpow.pop %v6762
    %v6764 = vmul.f32 %v6759, 1.442695
    %v6765 = vpow.pop %v6764
    %v6766 = vsel %vm603, %v6761, 0.0
    %v6767 = vsel %vm603, %v6763, 0.0
    %v6768 = vadd.f32 %v6766, %v6767
    %v6769 = vsel %vm4228, %v6765, 0.0
    %v6770 = vadd.f32 %v6768, %v6769
    %v6771 = vrot.slane %v6770, 4
    %v6772 = vadd.f32 %v6770, %v6771
    %v6773 = vrot.slane %v6772, 2
    %v6774 = vadd.f32 %v6772, %v6773
    %v6775 = vrot.slane %v6774, 1
    %v6776 = vadd.f32 %v6774, %v6775
    %v6777 = vrcp.pop %v6776
    %v6778 = vmul.f32 %v6761, %v6777
    %v6779 = vmul.f32 %v6763, %v6777
    %v6780 = vmul.f32 %v6765, %v6777
    %6784 = vrot.lane.b32.xlu0 %v6778, 112
    %v6785 = vpop.permute.xlu0 %6784
    %6786 = vrot.lane.b32.xlu0 %v6779, 112
    %v6787 = vpop.permute.xlu0 %6786
    %6788 = vrot.lane.b32.xlu0 %v6780, 112
    %v6789 = vpop.permute.xlu0 %6788
    %6792 = vrot.lane.b32.xlu0 %v6295, 96
    %v6793 = vpop.permute.xlu0 %6792
    %6794 = vrot.lane.b32.xlu0 %v6300, 96
    %v6795 = vpop.permute.xlu0 %6794
    %v6798 = vsel %vm593, %v6785, 0
    %v6800 = vsel %vm593, %v6787, 0
    %v6802 = vsel %vm593, %v6789, 0
    %6804 = vmatprep.subr.mxu0 0.0
    %6805 = vmatpush1.msra.mxu0 %v6793
    %6806 = vmatprep.subr.mxu0 0.0
    %6807 = vmatpush1.msra.mxu0 %v6795
    %6808 = vmatprep.subr.mxu0 0.0
    %6809 = vmatpush1.msra.mxu0 0.0
    %6810 = vmatprep.subr.mxu0 0.0
    %6811 = vmatpush1.msra.mxu0 0.0
    %6812 = vmatprep.subr.mxu0 0.0
    %6813 = vmatpush1.msra.mxu0 0.0
    %6814 = vmatprep.subr.mxu0 0.0
    %6815 = vmatpush1.msra.mxu0 0.0
    %6816 = vmatprep.subr.mxu0 0.0
    %6817 = vmatpush1.msra.mxu0 0.0
    %6818 = vmatprep.subr.mxu0 0.0
    %6819 = vmatpush1.msra.mxu0 0.0
    %6820 = vmatprep.subr.mxu0 0.0
    %6821 = vmatpush1.msra.mxu0 0.0
    %6822 = vmatprep.subr.mxu0 0.0
    %6823 = vmatpush1.msra.mxu0 0.0
    %6824 = vmatprep.subr.mxu0 0.0
    %6825 = vmatpush1.msra.mxu0 0.0
    %6826 = vmatprep.subr.mxu0 0.0
    %6827 = vmatpush1.msra.mxu0 0.0
    %6828 = vmatprep.subr.mxu0 0.0
    %6829 = vmatpush1.msra.mxu0 0.0
    %6830 = vmatprep.subr.mxu0 0.0
    %6831 = vmatpush1.msra.mxu0 0.0
    %6832 = vmatprep.subr.mxu0 0.0
    %6833 = vmatpush1.msra.mxu0 0.0
    %6834 = vmatprep.subr.mxu0 0.0
    %6835 = vmatpush1.msra.mxu0 0.0
    %6836 = vmatprep.subr.mxu0 0.0
    %6837 = vmatpush1.msra.mxu0 0.0
    %6838 = vmatprep.subr.mxu0 0.0
    %6839 = vmatpush1.msra.mxu0 0.0
    %6840 = vmatprep.subr.mxu0 0.0
    %6841 = vmatpush1.msra.mxu0 0.0
    %6842 = vmatprep.subr.mxu0 0.0
    %6843 = vmatpush1.msra.mxu0 0.0
    %6844 = vmatprep.subr.mxu0 0.0
    %6845 = vmatpush1.msra.mxu0 0.0
    %6846 = vmatprep.subr.mxu0 0.0
    %6847 = vmatpush1.msra.mxu0 0.0
    %6848 = vmatprep.subr.mxu0 0.0
    %6849 = vmatpush1.msra.mxu0 0.0
    %6850 = vmatprep.subr.mxu0 0.0
    %6851 = vmatpush1.msra.mxu0 0.0
    %6852 = vmatprep.subr.mxu0 0.0
    %6853 = vmatpush1.msra.mxu0 0.0
    %6854 = vmatprep.subr.mxu0 0.0
    %6855 = vmatpush1.msra.mxu0 0.0
    %6856 = vmatprep.subr.mxu0 0.0
    %6857 = vmatpush1.msra.mxu0 0.0
    %6858 = vmatprep.subr.mxu0 0.0
    %6859 = vmatpush1.msra.mxu0 0.0
    %6860 = vmatprep.subr.mxu0 0.0
    %6861 = vmatpush1.msra.mxu0 0.0
    %6862 = vmatprep.subr.mxu0 0.0
    %6863 = vmatpush1.msra.mxu0 0.0
    %6864 = vmatprep.subr.mxu0 0.0
    %6865 = vmatpush1.msra.mxu0 0.0
    %6866 = vmatprep.subr.mxu0 0.0
    %6867 = vmatpush1.msra.mxu0 0.0
    %6868 = vmatprep.mubr.f32.mxu0 0.0
    %6869 = vmatmul.mubr.f32.gmra.mrb[0].mxu0 %v6798
    %v6870 = vpop.f32.mrb[0].mxu0
    %v6871 = vadd.f32 0.0, %v6870
    %v6872 = vpop.f32.mrb[0].mxu0
    %6873 = vmatprep.mubr.f32.mxu0 0.0
    %6874 = vmatmul.mubr.f32.gmra.mrb[0].mxu0 %v6800
    %v6875 = vpop.f32.mrb[0].mxu0
    %v6876 = vadd.f32 0.0, %v6875
    %v6877 = vpop.f32.mrb[0].mxu0
    %6878 = vmatprep.mubr.f32.mxu0 0.0
    %6879 = vmatmul.mubr.f32.gmra.mrb[0].mxu0 %v6802
    %v6880 = vpop.f32.mrb[0].mxu0
    %v6881 = vadd.f32 0.0, %v6880
    %v6882 = vpop.f32.mrb[0].mxu0
    %6883 = vdwg.mxu0
    %v6884 = vsel %vm593, %v6778, 0
    %v6886 = vsel %vm593, %v6779, 0
    %v6888 = vsel %vm593, %v6780, 0
    %6890 = vmatprep.subr.mxu0 0.0
    %6891 = vmatpush1.msra.mxu0 %v6295
    %6892 = vmatprep.subr.mxu0 0.0
    %6893 = vmatpush1.msra.mxu0 %v6300
    %6894 = vmatprep.subr.mxu0 0.0
    %6895 = vmatpush1.msra.mxu0 0.0
    %6896 = vmatprep.subr.mxu0 0.0
    %6897 = vmatpush1.msra.mxu0 0.0
    %6898 = vmatprep.subr.mxu0 0.0
    %6899 = vmatpush1.msra.mxu0 0.0
    %6900 = vmatprep.subr.mxu0 0.0
    %6901 = vmatpush1.msra.mxu0 0.0
    %6902 = vmatprep.subr.mxu0 0.0
    %6903 = vmatpush1.msra.mxu0 0.0
    %6904 = vmatprep.subr.mxu0 0.0
    %6905 = vmatpush1.msra.mxu0 0.0
    %6906 = vmatprep.subr.mxu0 0.0
    %6907 = vmatpush1.msra.mxu0 0.0
    %6908 = vmatprep.subr.mxu0 0.0
    %6909 = vmatpush1.msra.mxu0 0.0
    %6910 = vmatprep.subr.mxu0 0.0
    %6911 = vmatpush1.msra.mxu0 0.0
    %6912 = vmatprep.subr.mxu0 0.0
    %6913 = vmatpush1.msra.mxu0 0.0
    %6914 = vmatprep.subr.mxu0 0.0
    %6915 = vmatpush1.msra.mxu0 0.0
    %6916 = vmatprep.subr.mxu0 0.0
    %6917 = vmatpush1.msra.mxu0 0.0
    %6918 = vmatprep.subr.mxu0 0.0
    %6919 = vmatpush1.msra.mxu0 0.0
    %6920 = vmatprep.subr.mxu0 0.0
    %6921 = vmatpush1.msra.mxu0 0.0
    %6922 = vmatprep.subr.mxu0 0.0
    %6923 = vmatpush1.msra.mxu0 0.0
    %6924 = vmatprep.subr.mxu0 0.0
    %6925 = vmatpush1.msra.mxu0 0.0
    %6926 = vmatprep.subr.mxu0 0.0
    %6927 = vmatpush1.msra.mxu0 0.0
    %6928 = vmatprep.subr.mxu0 0.0
    %6929 = vmatpush1.msra.mxu0 0.0
    %6930 = vmatprep.subr.mxu0 0.0
    %6931 = vmatpush1.msra.mxu0 0.0
    %6932 = vmatprep.subr.mxu0 0.0
    %6933 = vmatpush1.msra.mxu0 0.0
    %6934 = vmatprep.subr.mxu0 0.0
    %6935 = vmatpush1.msra.mxu0 0.0
    %6936 = vmatprep.subr.mxu0 0.0
    %6937 = vmatpush1.msra.mxu0 0.0
    %6938 = vmatprep.subr.mxu0 0.0
    %6939 = vmatpush1.msra.mxu0 0.0
    %6940 = vmatprep.subr.mxu0 0.0
    %6941 = vmatpush1.msra.mxu0 0.0
    %6942 = vmatprep.subr.mxu0 0.0
    %6943 = vmatpush1.msra.mxu0 0.0
    %6944 = vmatprep.subr.mxu0 0.0
    %6945 = vmatpush1.msra.mxu0 0.0
    %6946 = vmatprep.subr.mxu0 0.0
    %6947 = vmatpush1.msra.mxu0 0.0
    %6948 = vmatprep.subr.mxu0 0.0
    %6949 = vmatpush1.msra.mxu0 0.0
    %6950 = vmatprep.subr.mxu0 0.0
    %6951 = vmatpush1.msra.mxu0 0.0
    %6952 = vmatprep.subr.mxu0 0.0
    %6953 = vmatpush1.msra.mxu0 0.0
    %6954 = vmatprep.mubr.f32.mxu0 0.0
    %6955 = vmatmul.mubr.f32.gmra.mrb[0].mxu0 %v6884
    %v6956 = vpop.f32.mrb[0].mxu0
    %v6957 = vadd.f32 %v6871, %v6956
    %v6958 = vpop.f32.mrb[0].mxu0
    %6959 = vmatprep.mubr.f32.mxu0 0.0
    %6960 = vmatmul.mubr.f32.gmra.mrb[0].mxu0 %v6886
    %v6961 = vpop.f32.mrb[0].mxu0
    %v6962 = vadd.f32 %v6876, %v6961
    %v6963 = vpop.f32.mrb[0].mxu0
    %6964 = vmatprep.mubr.f32.mxu0 0.0
    %6965 = vmatmul.mubr.f32.gmra.mrb[0].mxu0 %v6888
    %v6966 = vpop.f32.mrb[0].mxu0
    %v6967 = vadd.f32 %v6881, %v6966
    %v6968 = vpop.f32.mrb[0].mxu0
    %6969 = vdwg.mxu0
    %6970 = vrot.lane.b32.xlu0 %v6778, 96
    %v6971 = vpop.permute.xlu0 %6970
    %6972 = vrot.lane.b32.xlu0 %v6779, 96
    %v6973 = vpop.permute.xlu0 %6972
    %6974 = vrot.lane.b32.xlu0 %v6780, 96
    %v6975 = vpop.permute.xlu0 %6974
    %6976 = vrot.lane.b32.xlu0 %v6295, 64
    %v6977 = vpop.permute.xlu0 %6976
    %6978 = vrot.lane.b32.xlu0 %v6300, 64
    %v6979 = vpop.permute.xlu0 %6978
    %v6982 = vsel %vm593, %v6971, 0
    %v6984 = vsel %vm593, %v6973, 0
    %v6986 = vsel %vm593, %v6975, 0
    %6988 = vmatprep.subr.mxu0 0.0
    %6989 = vmatpush1.msra.mxu0 %v6977
    %6990 = vmatprep.subr.mxu0 0.0
    %6991 = vmatpush1.msra.mxu0 %v6979
    %6992 = vmatprep.subr.mxu0 0.0
    %6993 = vmatpush1.msra.mxu0 0.0
    %6994 = vmatprep.subr.mxu0 0.0
    %6995 = vmatpush1.msra.mxu0 0.0
    %6996 = vmatprep.subr.mxu0 0.0
    %6997 = vmatpush1.msra.mxu0 0.0
    %6998 = vmatprep.subr.mxu0 0.0
    %6999 = vmatpush1.msra.mxu0 0.0
    %7000 = vmatprep.subr.mxu0 0.0
    %7001 = vmatpush1.msra.mxu0 0.0
    %7002 = vmatprep.subr.mxu0 0.0
    %7003 = vmatpush1.msra.mxu0 0.0
    %7004 = vmatprep.subr.mxu0 0.0
    %7005 = vmatpush1.msra.mxu0 0.0
    %7006 = vmatprep.subr.mxu0 0.0
    %7007 = vmatpush1.msra.mxu0 0.0
    %7008 = vmatprep.subr.mxu0 0.0
    %7009 = vmatpush1.msra.mxu0 0.0
    %7010 = vmatprep.subr.mxu0 0.0
    %7011 = vmatpush1.msra.mxu0 0.0
    %7012 = vmatprep.subr.mxu0 0.0
    %7013 = vmatpush1.msra.mxu0 0.0
    %7014 = vmatprep.subr.mxu0 0.0
    %7015 = vmatpush1.msra.mxu0 0.0
    %7016 = vmatprep.subr.mxu0 0.0
    %7017 = vmatpush1.msra.mxu0 0.0
    %7018 = vmatprep.subr.mxu0 0.0
    %7019 = vmatpush1.msra.mxu0 0.0
    %7020 = vmatprep.subr.mxu0 0.0
    %7021 = vmatpush1.msra.mxu0 0.0
    %7022 = vmatprep.subr.mxu0 0.0
    %7023 = vmatpush1.msra.mxu0 0.0
    %7024 = vmatprep.subr.mxu0 0.0
    %7025 = vmatpush1.msra.mxu0 0.0
    %7026 = vmatprep.subr.mxu0 0.0
    %7027 = vmatpush1.msra.mxu0 0.0
    %7028 = vmatprep.subr.mxu0 0.0
    %7029 = vmatpush1.msra.mxu0 0.0
    %7030 = vmatprep.subr.mxu0 0.0
    %7031 = vmatpush1.msra.mxu0 0.0
    %7032 = vmatprep.subr.mxu0 0.0
    %7033 = vmatpush1.msra.mxu0 0.0
    %7034 = vmatprep.subr.mxu0 0.0
    %7035 = vmatpush1.msra.mxu0 0.0
    %7036 = vmatprep.subr.mxu0 0.0
    %7037 = vmatpush1.msra.mxu0 0.0
    %7038 = vmatprep.subr.mxu0 0.0
    %7039 = vmatpush1.msra.mxu0 0.0
    %7040 = vmatprep.subr.mxu0 0.0
    %7041 = vmatpush1.msra.mxu0 0.0
    %7042 = vmatprep.subr.mxu0 0.0
    %7043 = vmatpush1.msra.mxu0 0.0
    %7044 = vmatprep.subr.mxu0 0.0
    %7045 = vmatpush1.msra.mxu0 0.0
    %7046 = vmatprep.subr.mxu0 0.0
    %7047 = vmatpush1.msra.mxu0 0.0
    %7048 = vmatprep.subr.mxu0 0.0
    %7049 = vmatpush1.msra.mxu0 0.0
    %7050 = vmatprep.subr.mxu0 0.0
    %7051 = vmatpush1.msra.mxu0 0.0
    %7052 = vmatprep.mubr.f32.mxu0 0.0
    %7053 = vmatmul.mubr.f32.gmra.mrb[0].mxu0 %v6982
    %v7054 = vpop.f32.mrb[0].mxu0
    %v7055 = vadd.f32 0.0, %v7054
    %v7056 = vpop.f32.mrb[0].mxu0
    %7057 = vmatprep.mubr.f32.mxu0 0.0
    %7058 = vmatmul.mubr.f32.gmra.mrb[0].mxu0 %v6984
    %v7059 = vpop.f32.mrb[0].mxu0
    %v7060 = vadd.f32 0.0, %v7059
    %v7061 = vpop.f32.mrb[0].mxu0
    %7062 = vmatprep.mubr.f32.mxu0 0.0
    %7063 = vmatmul.mubr.f32.gmra.mrb[0].mxu0 %v6986
    %v7064 = vpop.f32.mrb[0].mxu0
    %v7065 = vadd.f32 0.0, %v7064
    %v7066 = vpop.f32.mrb[0].mxu0
    %7067 = vdwg.mxu0
    %v7068 = vadd.f32 %v6957, %v7055
    %v7069 = vadd.f32 %v6962, %v7060
    %v7070 = vadd.f32 %v6967, %v7065
    %7071 = vrot.lane.b32.xlu0 %v6778, 80
    %v7072 = vpop.permute.xlu0 %7071
    %7073 = vrot.lane.b32.xlu0 %v6779, 80
    %v7074 = vpop.permute.xlu0 %7073
    %7075 = vrot.lane.b32.xlu0 %v6780, 80
    %v7076 = vpop.permute.xlu0 %7075
    %7077 = vrot.lane.b32.xlu0 %v6295, 32
    %v7078 = vpop.permute.xlu0 %7077
    %7079 = vrot.lane.b32.xlu0 %v6300, 32
    %v7080 = vpop.permute.xlu0 %7079
    %v7083 = vsel %vm593, %v7072, 0
    %v7085 = vsel %vm593, %v7074, 0
    %v7087 = vsel %vm593, %v7076, 0
    %7089 = vmatprep.subr.mxu0 0.0
    %7090 = vmatpush1.msra.mxu0 %v7078
    %7091 = vmatprep.subr.mxu0 0.0
    %7092 = vmatpush1.msra.mxu0 %v7080
    %7093 = vmatprep.subr.mxu0 0.0
    %7094 = vmatpush1.msra.mxu0 0.0
    %7095 = vmatprep.subr.mxu0 0.0
    %7096 = vmatpush1.msra.mxu0 0.0
    %7097 = vmatprep.subr.mxu0 0.0
    %7098 = vmatpush1.msra.mxu0 0.0
    %7099 = vmatprep.subr.mxu0 0.0
    %7100 = vmatpush1.msra.mxu0 0.0
    %7101 = vmatprep.subr.mxu0 0.0
    %7102 = vmatpush1.msra.mxu0 0.0
    %7103 = vmatprep.subr.mxu0 0.0
    %7104 = vmatpush1.msra.mxu0 0.0
    %7105 = vmatprep.subr.mxu0 0.0
    %7106 = vmatpush1.msra.mxu0 0.0
    %7107 = vmatprep.subr.mxu0 0.0
    %7108 = vmatpush1.msra.mxu0 0.0
    %7109 = vmatprep.subr.mxu0 0.0
    %7110 = vmatpush1.msra.mxu0 0.0
    %7111 = vmatprep.subr.mxu0 0.0
    %7112 = vmatpush1.msra.mxu0 0.0
    %7113 = vmatprep.subr.mxu0 0.0
    %7114 = vmatpush1.msra.mxu0 0.0
    %7115 = vmatprep.subr.mxu0 0.0
    %7116 = vmatpush1.msra.mxu0 0.0
    %7117 = vmatprep.subr.mxu0 0.0
    %7118 = vmatpush1.msra.mxu0 0.0
    %7119 = vmatprep.subr.mxu0 0.0
    %7120 = vmatpush1.msra.mxu0 0.0
    %7121 = vmatprep.subr.mxu0 0.0
    %7122 = vmatpush1.msra.mxu0 0.0
    %7123 = vmatprep.subr.mxu0 0.0
    %7124 = vmatpush1.msra.mxu0 0.0
    %7125 = vmatprep.subr.mxu0 0.0
    %7126 = vmatpush1.msra.mxu0 0.0
    %7127 = vmatprep.subr.mxu0 0.0
    %7128 = vmatpush1.msra.mxu0 0.0
    %7129 = vmatprep.subr.mxu0 0.0
    %7130 = vmatpush1.msra.mxu0 0.0
    %7131 = vmatprep.subr.mxu0 0.0
    %7132 = vmatpush1.msra.mxu0 0.0
    %7133 = vmatprep.subr.mxu0 0.0
    %7134 = vmatpush1.msra.mxu0 0.0
    %7135 = vmatprep.subr.mxu0 0.0
    %7136 = vmatpush1.msra.mxu0 0.0
    %7137 = vmatprep.subr.mxu0 0.0
    %7138 = vmatpush1.msra.mxu0 0.0
    %7139 = vmatprep.subr.mxu0 0.0
    %7140 = vmatpush1.msra.mxu0 0.0
    %7141 = vmatprep.subr.mxu0 0.0
    %7142 = vmatpush1.msra.mxu0 0.0
    %7143 = vmatprep.subr.mxu0 0.0
    %7144 = vmatpush1.msra.mxu0 0.0
    %7145 = vmatprep.subr.mxu0 0.0
    %7146 = vmatpush1.msra.mxu0 0.0
    %7147 = vmatprep.subr.mxu0 0.0
    %7148 = vmatpush1.msra.mxu0 0.0
    %7149 = vmatprep.subr.mxu0 0.0
    %7150 = vmatpush1.msra.mxu0 0.0
    %7151 = vmatprep.subr.mxu0 0.0
    %7152 = vmatpush1.msra.mxu0 0.0
    %7153 = vmatprep.mubr.f32.mxu0 0.0
    %7154 = vmatmul.mubr.f32.gmra.mrb[0].mxu0 %v7083
    %v7155 = vpop.f32.mrb[0].mxu0
    %v7156 = vadd.f32 0.0, %v7155
    %v7157 = vpop.f32.mrb[0].mxu0
    %7158 = vmatprep.mubr.f32.mxu0 0.0
    %7159 = vmatmul.mubr.f32.gmra.mrb[0].mxu0 %v7085
    %v7160 = vpop.f32.mrb[0].mxu0
    %v7161 = vadd.f32 0.0, %v7160
    %v7162 = vpop.f32.mrb[0].mxu0
    %7163 = vmatprep.mubr.f32.mxu0 0.0
    %7164 = vmatmul.mubr.f32.gmra.mrb[0].mxu0 %v7087
    %v7165 = vpop.f32.mrb[0].mxu0
    %v7166 = vadd.f32 0.0, %v7165
    %v7167 = vpop.f32.mrb[0].mxu0
    %7168 = vdwg.mxu0
    %v7169 = vadd.f32 %v7068, %v7156
    %v7170 = vadd.f32 %v7069, %v7161
    %v7171 = vadd.f32 %v7070, %v7166
    %v7172 = vadd.f32 %v7169, %v6049
    %v7173 = vadd.f32 %v7170, %v6050
    %v7174 = vadd.f32 %v7171, %v6051
    %v7175 = vsel %vm49, %v7172, 0.0
    %7176 = vadd.xlane.f32.xlu0 %v7175
    %v7177 = vpop.xlane.xlu0 %7176
    %v7178 = vsel %vm49, %v7173, 0.0
    %7179 = vadd.xlane.f32.xlu0 %v7178
    %v7180 = vpop.xlane.xlu0 %7179
    %v7181 = vsel %vm3495, %v7174, 0.0
    %7182 = vadd.xlane.f32.xlu0 %v7181
    %v7183 = vpop.xlane.xlu0 %7182
    %v7184 = vmul.f32 %v7177, %v993
    %v7185 = vmul.f32 %v7180, %v993
    %v7186 = vmul.f32 %v7183, %v993
    %v7187 = vsub.f32 %v7172, %v7184
    %v7188 = vsub.f32 %v7173, %v7185
    %v7189 = vsub.f32 %v7174, %v7186
    %v7190 = vmul.f32 %v7187, %v7187
    %v7191 = vmul.f32 %v7188, %v7188
    %v7192 = vmul.f32 %v7189, %v7189
    %v7193 = vsel %vm49, %v7190, 0.0
    %7194 = vadd.xlane.f32.xlu0 %v7193
    %v7195 = vpop.xlane.xlu0 %7194
    %v7196 = vsel %vm49, %v7191, 0.0
    %7197 = vadd.xlane.f32.xlu0 %v7196
    %v7198 = vpop.xlane.xlu0 %7197
    %v7199 = vsel %vm3495, %v7192, 0.0
    %7200 = vadd.xlane.f32.xlu0 %v7199
    %v7201 = vpop.xlane.xlu0 %7200
    %v7202 = vmul.f32 %v7195, 0.032258064
    %v7203 = vmul.f32 %v7198, 0.032258064
    %v7204 = vmul.f32 %v7201, 0.032258064
    %v7205 = vrsqrt.pop %v7202
    %v7206 = vrsqrt.pop %v7203
    %v7207 = vrsqrt.pop %v7204
    %v7208 = vmul.f32 %v7187, %v7205
    %v7209 = vmul.f32 %v7188, %v7206
    %v7210 = vmul.f32 %v7189, %v7207
    %v7211 = vld [vmem:[#allocation2 + $0x310] sm:$0xff]
    %v7212 = vld [vmem:[#allocation2 + $0x318] sm:$0xff]
    %v7213 = vld [vmem:[#allocation2 + $0x320] sm:$0xff]
    %v7214 = vld [vmem:[#allocation2 + $0x328] sm:$0xff]
    %v7215 = vld [vmem:[#allocation2 + $0x330] sm:$0x1]
    %v7216 = vld [vmem:[#allocation2 + $0x338] sm:$0xff]
    %v7217 = vld [vmem:[#allocation2 + $0x340] sm:$0xff]
    %v7218 = vld [vmem:[#allocation2 + $0x348] sm:$0xff]
    %v7219 = vld [vmem:[#allocation2 + $0x350] sm:$0xff]
    %v7220 = vld [vmem:[#allocation2 + $0x358] sm:$0xff]
    %v7221 = vld [vmem:[#allocation2 + $0x360] sm:$0xff]
    %v7222 = vld [vmem:[#allocation2 + $0x368] sm:$0xff]
    %v7223 = vld [vmem:[#allocation2 + $0x370] sm:$0xff]
    %v7224 = vld [vmem:[#allocation2 + $0x378] sm:$0x1]
    %v7225 = vlaneseq
    %v7226 = vshrl.u32 %v7225, 7
    %v7227 = vsub.s32 0, %v7226
    %v7228 = vrot.slane %v7215, %v7227
    %v7230 = vsel %vm49, %v7208, 0
    %v7233 = vsel %vm49, %v7209, 0
    %v7236 = vsel %vm49, %v7210, 0
    %7238 = vmatprep.subr.mxu0 0.0
    %7239 = vmatpush1.msra.mxu0 %v7211
    %7240 = vmatprep.subr.mxu0 0.0
    %7241 = vmatpush1.msra.mxu0 %v7212
    %7242 = vmatprep.subr.mxu0 0.0
    %7243 = vmatpush1.msra.mxu0 %v7213
    %7244 = vmatprep.subr.mxu0 0.0
    %7245 = vmatpush1.msra.mxu0 %v7214
    %7246 = vmatprep.subr.mxu0 0.0
    %7247 = vmatpush1.msra.mxu0 0.0
    %7248 = vmatprep.subr.mxu0 0.0
    %7249 = vmatpush1.msra.mxu0 0.0
    %7250 = vmatprep.subr.mxu0 0.0
    %7251 = vmatpush1.msra.mxu0 0.0
    %7252 = vmatprep.subr.mxu0 0.0
    %7253 = vmatpush1.msra.mxu0 0.0
    %7254 = vmatprep.subr.mxu0 0.0
    %7255 = vmatpush1.msra.mxu0 0.0
    %7256 = vmatprep.subr.mxu0 0.0
    %7257 = vmatpush1.msra.mxu0 0.0
    %7258 = vmatprep.subr.mxu0 0.0
    %7259 = vmatpush1.msra.mxu0 0.0
    %7260 = vmatprep.subr.mxu0 0.0
    %7261 = vmatpush1.msra.mxu0 0.0
    %7262 = vmatprep.subr.mxu0 0.0
    %7263 = vmatpush1.msra.mxu0 0.0
    %7264 = vmatprep.subr.mxu0 0.0
    %7265 = vmatpush1.msra.mxu0 0.0
    %7266 = vmatprep.subr.mxu0 0.0
    %7267 = vmatpush1.msra.mxu0 0.0
    %7268 = vmatprep.subr.mxu0 0.0
    %7269 = vmatpush1.msra.mxu0 0.0
    %7270 = vmatprep.subr.mxu0 0.0
    %7271 = vmatpush1.msra.mxu0 0.0
    %7272 = vmatprep.subr.mxu0 0.0
    %7273 = vmatpush1.msra.mxu0 0.0
    %7274 = vmatprep.subr.mxu0 0.0
    %7275 = vmatpush1.msra.mxu0 0.0
    %7276 = vmatprep.subr.mxu0 0.0
    %7277 = vmatpush1.msra.mxu0 0.0
    %7278 = vmatprep.subr.mxu0 0.0
    %7279 = vmatpush1.msra.mxu0 0.0
    %7280 = vmatprep.subr.mxu0 0.0
    %7281 = vmatpush1.msra.mxu0 0.0
    %7282 = vmatprep.subr.mxu0 0.0
    %7283 = vmatpush1.msra.mxu0 0.0
    %7284 = vmatprep.subr.mxu0 0.0
    %7285 = vmatpush1.msra.mxu0 0.0
    %7286 = vmatprep.subr.mxu0 0.0
    %7287 = vmatpush1.msra.mxu0 0.0
    %7288 = vmatprep.subr.mxu0 0.0
    %7289 = vmatpush1.msra.mxu0 0.0
    %7290 = vmatprep.subr.mxu0 0.0
    %7291 = vmatpush1.msra.mxu0 0.0
    %7292 = vmatprep.subr.mxu0 0.0
    %7293 = vmatpush1.msra.mxu0 0.0
    %7294 = vmatprep.subr.mxu0 0.0
    %7295 = vmatpush1.msra.mxu0 0.0
    %7296 = vmatprep.subr.mxu0 0.0
    %7297 = vmatpush1.msra.mxu0 0.0
    %7298 = vmatprep.subr.mxu0 0.0
    %7299 = vmatpush1.msra.mxu0 0.0
    %7300 = vmatprep.subr.mxu0 0.0
    %7301 = vmatpush1.msra.mxu0 0.0
    %7302 = vmatprep.mubr.f32.mxu0 0.0
    %7303 = vmatmul.mubr.f32.gmra.mrb[0].mxu0 %v7230
    %v7304 = vpop.f32.mrb[0].mxu0
    %v7305 = vadd.f32 %v7228, %v7304
    %v7306 = vpop.f32.mrb[0].mxu0
    %7307 = vmatprep.mubr.f32.mxu0 0.0
    %7308 = vmatmul.mubr.f32.gmra.mrb[0].mxu0 %v7233
    %v7309 = vpop.f32.mrb[0].mxu0
    %v7310 = vadd.f32 %v7228, %v7309
    %v7311 = vpop.f32.mrb[0].mxu0
    %7312 = vmatprep.mubr.f32.mxu0 0.0
    %7313 = vmatmul.mubr.f32.gmra.mrb[0].mxu0 %v7236
    %v7314 = vpop.f32.mrb[0].mxu0
    %v7315 = vadd.f32 %v7228, %v7314
    %v7316 = vpop.f32.mrb[0].mxu0
    %7317 = vdwg.mxu0
    %v7318 = vmax.f32 %v7305, 0.0
    %v7319 = vmax.f32 %v7310, 0.0
    %v7320 = vmax.f32 %v7315, 0.0
    %v7321 = vlaneseq
    %v7322 = vshrl.u32 %v7321, 7
    %v7323 = vsub.s32 0, %v7322
    %v7324 = vrot.slane %v7224, %v7323
    %v7326 = vsel %vm603, %v7318, 0
    %v7329 = vsel %vm603, %v7319, 0
    %v7332 = vsel %vm603, %v7320, 0
    %7334 = vmatprep.subr.mxu0 0.0
    %7335 = vmatpush1.msra.mxu0 %v7216
    %7336 = vmatprep.subr.mxu0 0.0
    %7337 = vmatpush1.msra.mxu0 %v7217
    %7338 = vmatprep.subr.mxu0 0.0
    %7339 = vmatpush1.msra.mxu0 %v7218
    %7340 = vmatprep.subr.mxu0 0.0
    %7341 = vmatpush1.msra.mxu0 %v7219
    %7342 = vmatprep.subr.mxu0 0.0
    %7343 = vmatpush1.msra.mxu0 %v7220
    %7344 = vmatprep.subr.mxu0 0.0
    %7345 = vmatpush1.msra.mxu0 %v7221
    %7346 = vmatprep.subr.mxu0 0.0
    %7347 = vmatpush1.msra.mxu0 %v7222
    %7348 = vmatprep.subr.mxu0 0.0
    %7349 = vmatpush1.msra.mxu0 %v7223
    %7350 = vmatprep.subr.mxu0 0.0
    %7351 = vmatpush1.msra.mxu0 0.0
    %7352 = vmatprep.subr.mxu0 0.0
    %7353 = vmatpush1.msra.mxu0 0.0
    %7354 = vmatprep.subr.mxu0 0.0
    %7355 = vmatpush1.msra.mxu0 0.0
    %7356 = vmatprep.subr.mxu0 0.0
    %7357 = vmatpush1.msra.mxu0 0.0
    %7358 = vmatprep.subr.mxu0 0.0
    %7359 = vmatpush1.msra.mxu0 0.0
    %7360 = vmatprep.subr.mxu0 0.0
    %7361 = vmatpush1.msra.mxu0 0.0
    %7362 = vmatprep.subr.mxu0 0.0
    %7363 = vmatpush1.msra.mxu0 0.0
    %7364 = vmatprep.subr.mxu0 0.0
    %7365 = vmatpush1.msra.mxu0 0.0
    %7366 = vmatprep.subr.mxu0 0.0
    %7367 = vmatpush1.msra.mxu0 0.0
    %7368 = vmatprep.subr.mxu0 0.0
    %7369 = vmatpush1.msra.mxu0 0.0
    %7370 = vmatprep.subr.mxu0 0.0
    %7371 = vmatpush1.msra.mxu0 0.0
    %7372 = vmatprep.subr.mxu0 0.0
    %7373 = vmatpush1.msra.mxu0 0.0
    %7374 = vmatprep.subr.mxu0 0.0
    %7375 = vmatpush1.msra.mxu0 0.0
    %7376 = vmatprep.subr.mxu0 0.0
    %7377 = vmatpush1.msra.mxu0 0.0
    %7378 = vmatprep.subr.mxu0 0.0
    %7379 = vmatpush1.msra.mxu0 0.0
    %7380 = vmatprep.subr.mxu0 0.0
    %7381 = vmatpush1.msra.mxu0 0.0
    %7382 = vmatprep.subr.mxu0 0.0
    %7383 = vmatpush1.msra.mxu0 0.0
    %7384 = vmatprep.subr.mxu0 0.0
    %7385 = vmatpush1.msra.mxu0 0.0
    %7386 = vmatprep.subr.mxu0 0.0
    %7387 = vmatpush1.msra.mxu0 0.0
    %7388 = vmatprep.subr.mxu0 0.0
    %7389 = vmatpush1.msra.mxu0 0.0
    %7390 = vmatprep.subr.mxu0 0.0
    %7391 = vmatpush1.msra.mxu0 0.0
    %7392 = vmatprep.subr.mxu0 0.0
    %7393 = vmatpush1.msra.mxu0 0.0
    %7394 = vmatprep.subr.mxu0 0.0
    %7395 = vmatpush1.msra.mxu0 0.0
    %7396 = vmatprep.subr.mxu0 0.0
    %7397 = vmatpush1.msra.mxu0 0.0
    %7398 = vmatprep.mubr.f32.mxu0 0.0
    %7399 = vmatmul.mubr.f32.gmra.mrb[0].mxu0 %v7326
    %v7400 = vpop.f32.mrb[0].mxu0
    %v7401 = vadd.f32 %v7324, %v7400
    %v7402 = vpop.f32.mrb[0].mxu0
    %7403 = vmatprep.mubr.f32.mxu0 0.0
    %7404 = vmatmul.mubr.f32.gmra.mrb[0].mxu0 %v7329
    %v7405 = vpop.f32.mrb[0].mxu0
    %v7406 = vadd.f32 %v7324, %v7405
    %v7407 = vpop.f32.mrb[0].mxu0
    %7408 = vmatprep.mubr.f32.mxu0 0.0
    %7409 = vmatmul.mubr.f32.gmra.mrb[0].mxu0 %v7332
    %v7410 = vpop.f32.mrb[0].mxu0
    %v7411 = vadd.f32 %v7324, %v7410
    %v7412 = vpop.f32.mrb[0].mxu0
    %7413 = vdwg.mxu0
    %v7414 = vadd.f32 %v7401, %v7208
    %v7415 = vadd.f32 %v7406, %v7209
    %v7416 = vadd.f32 %v7411, %v7210
    %v7417 = vsel %vm49, %v7414, 0.0
    %7418 = vadd.xlane.f32.xlu0 %v7417
    %v7419 = vpop.xlane.xlu0 %7418
    %v7420 = vsel %vm49, %v7415, 0.0
    %7421 = vadd.xlane.f32.xlu0 %v7420
    %v7422 = vpop.xlane.xlu0 %7421
    %v7423 = vsel %vm3495, %v7416, 0.0
    %7424 = vadd.xlane.f32.xlu0 %v7423
    %v7425 = vpop.xlane.xlu0 %7424
    %v7426 = vmul.f32 %v7419, %v993
    %v7427 = vmul.f32 %v7422, %v993
    %v7428 = vmul.f32 %v7425, %v993
    %v7429 = vsub.f32 %v7414, %v7426
    %v7430 = vsub.f32 %v7415, %v7427
    %v7431 = vsub.f32 %v7416, %v7428
    %v7432 = vmul.f32 %v7429, %v7429
    %v7433 = vmul.f32 %v7430, %v7430
    %v7434 = vmul.f32 %v7431, %v7431
    %v7435 = vsel %vm49, %v7432, 0.0
    %7436 = vadd.xlane.f32.xlu0 %v7435
    %v7437 = vpop.xlane.xlu0 %7436
    %v7438 = vsel %vm49, %v7433, 0.0
    %7439 = vadd.xlane.f32.xlu0 %v7438
    %v7440 = vpop.xlane.xlu0 %7439
    %v7441 = vsel %vm3495, %v7434, 0.0
    %7442 = vadd.xlane.f32.xlu0 %v7441
    %v7443 = vpop.xlane.xlu0 %7442
    %v7444 = vmul.f32 %v7437, 0.032258064
    %v7445 = vmul.f32 %v7440, 0.032258064
    %v7446 = vmul.f32 %v7443, 0.032258064
    %v7447 = vrsqrt.pop %v7444
    %v7448 = vrsqrt.pop %v7445
    %v7449 = vrsqrt.pop %v7446
    %v7450 = vmul.f32 %v7429, %v7447
    %v7451 = vmul.f32 %v7430, %v7448
    %v7452 = vmul.f32 %v7431, %v7449
    %v7453 = vld [vmem:[#allocation2 + $0x380] sm:$0xff]
    %v7454 = vld [vmem:[#allocation2 + $0x388] sm:$0xff]
    %v7455 = vld [vmem:[#allocation2 + $0x390] sm:$0xff]
    %v7456 = vld [vmem:[#allocation2 + $0x398] sm:$0xff]
    %v7457 = vld [vmem:[#allocation2 + $0x3a0] sm:$0x1]
    %v7458 = vlaneseq
    %v7459 = vshrl.u32 %v7458, 7
    %v7460 = vsub.s32 0, %v7459
    %v7461 = vrot.slane %v7457, %v7460
    %v7463 = vsel %vm49, %v7450, 0
    %v7466 = vsel %vm49, %v7451, 0
    %v7469 = vsel %vm49, %v7452, 0
    %7471 = vmatprep.subr.mxu0 0.0
    %7472 = vmatpush1.msra.mxu0 %v7453
    %7473 = vmatprep.subr.mxu0 0.0
    %7474 = vmatpush1.msra.mxu0 %v7454
    %7475 = vmatprep.subr.mxu0 0.0
    %7476 = vmatpush1.msra.mxu0 %v7455
    %7477 = vmatprep.subr.mxu0 0.0
    %7478 = vmatpush1.msra.mxu0 %v7456
    %7479 = vmatprep.subr.mxu0 0.0
    %7480 = vmatpush1.msra.mxu0 0.0
    %7481 = vmatprep.subr.mxu0 0.0
    %7482 = vmatpush1.msra.mxu0 0.0
    %7483 = vmatprep.subr.mxu0 0.0
    %7484 = vmatpush1.msra.mxu0 0.0
    %7485 = vmatprep.subr.mxu0 0.0
    %7486 = vmatpush1.msra.mxu0 0.0
    %7487 = vmatprep.subr.mxu0 0.0
    %7488 = vmatpush1.msra.mxu0 0.0
    %7489 = vmatprep.subr.mxu0 0.0
    %7490 = vmatpush1.msra.mxu0 0.0
    %7491 = vmatprep.subr.mxu0 0.0
    %7492 = vmatpush1.msra.mxu0 0.0
    %7493 = vmatprep.subr.mxu0 0.0
    %7494 = vmatpush1.msra.mxu0 0.0
    %7495 = vmatprep.subr.mxu0 0.0
    %7496 = vmatpush1.msra.mxu0 0.0
    %7497 = vmatprep.subr.mxu0 0.0
    %7498 = vmatpush1.msra.mxu0 0.0
    %7499 = vmatprep.subr.mxu0 0.0
    %7500 = vmatpush1.msra.mxu0 0.0
    %7501 = vmatprep.subr.mxu0 0.0
    %7502 = vmatpush1.msra.mxu0 0.0
    %7503 = vmatprep.subr.mxu0 0.0
    %7504 = vmatpush1.msra.mxu0 0.0
    %7505 = vmatprep.subr.mxu0 0.0
    %7506 = vmatpush1.msra.mxu0 0.0
    %7507 = vmatprep.subr.mxu0 0.0
    %7508 = vmatpush1.msra.mxu0 0.0
    %7509 = vmatprep.subr.mxu0 0.0
    %7510 = vmatpush1.msra.mxu0 0.0
    %7511 = vmatprep.subr.mxu0 0.0
    %7512 = vmatpush1.msra.mxu0 0.0
    %7513 = vmatprep.subr.mxu0 0.0
    %7514 = vmatpush1.msra.mxu0 0.0
    %7515 = vmatprep.subr.mxu0 0.0
    %7516 = vmatpush1.msra.mxu0 0.0
    %7517 = vmatprep.subr.mxu0 0.0
    %7518 = vmatpush1.msra.mxu0 0.0
    %7519 = vmatprep.subr.mxu0 0.0
    %7520 = vmatpush1.msra.mxu0 0.0
    %7521 = vmatprep.subr.mxu0 0.0
    %7522 = vmatpush1.msra.mxu0 0.0
    %7523 = vmatprep.subr.mxu0 0.0
    %7524 = vmatpush1.msra.mxu0 0.0
    %7525 = vmatprep.subr.mxu0 0.0
    %7526 = vmatpush1.msra.mxu0 0.0
    %7527 = vmatprep.subr.mxu0 0.0
    %7528 = vmatpush1.msra.mxu0 0.0
    %7529 = vmatprep.subr.mxu0 0.0
    %7530 = vmatpush1.msra.mxu0 0.0
    %7531 = vmatprep.subr.mxu0 0.0
    %7532 = vmatpush1.msra.mxu0 0.0
    %7533 = vmatprep.subr.mxu0 0.0
    %7534 = vmatpush1.msra.mxu0 0.0
    %7535 = vmatprep.mubr.f32.mxu0 0.0
    %7536 = vmatmul.mubr.f32.gmra.mrb[0].mxu0 %v7463
    %v7537 = vpop.f32.mrb[0].mxu0
    %v7538 = vadd.f32 %v7461, %v7537
    %v7539 = vpop.f32.mrb[0].mxu0
    %7540 = vmatprep.mubr.f32.mxu0 0.0
    %7541 = vmatmul.mubr.f32.gmra.mrb[0].mxu0 %v7466
    %v7542 = vpop.f32.mrb[0].mxu0
    %v7543 = vadd.f32 %v7461, %v7542
    %v7544 = vpop.f32.mrb[0].mxu0
    %7545 = vmatprep.mubr.f32.mxu0 0.0
    %7546 = vmatmul.mubr.f32.gmra.mrb[0].mxu0 %v7469
    %v7547 = vpop.f32.mrb[0].mxu0
    %v7548 = vadd.f32 %v7461, %v7547
    %v7549 = vpop.f32.mrb[0].mxu0
    %7550 = vdwg.mxu0
    %7551 = vmax.xlane.f32.xlu0 %v7538
    %v7552 = vpop.xlane.xlu0 %7551
    %7553 = vmax.xlane.f32.xlu0 %v7543
    %v7554 = vpop.xlane.xlu0 %7553
    %v7555 = vsel %vm3105, %v7548, -inf
    %7556 = vmax.xlane.f32.xlu0 %v7555
    %v7557 = vpop.xlane.xlu0 %7556
    %v7558 = vsub.f32 %v7538, %v7552
    %v7559 = vsub.f32 %v7543, %v7554
    %v7560 = vsub.f32 %v7548, %v7557
    %v7561 = vmul.f32 %v7558, 1.442695
    %v7562 = vpow.pop %v7561
    %v7563 = vmul.f32 %v7559, 1.442695
    %v7564 = vpow.pop %v7563
    %v7565 = vmul.f32 %v7560, 1.442695
    %v7566 = vpow.pop %v7565
    %7567 = vadd.xlane.f32.xlu0 %v7562
    %v7568 = vpop.xlane.xlu0 %7567
    %7569 = vadd.xlane.f32.xlu0 %v7564
    %v7570 = vpop.xlane.xlu0 %7569
    %v7571 = vsel %vm3105, %v7566, 0.0
    %7572 = vadd.xlane.f32.xlu0 %v7571
    %v7573 = vpop.xlane.xlu0 %7572
    %v7574 = vrcp.pop %v7568
    %v7575 = vmul.f32 %v7562, %v7574
    %v7576 = vrcp.pop %v7570
    %v7577 = vmul.f32 %v7564, %v7576
    %v7578 = vrcp.pop %v7573
    %v7579 = vmul.f32 %v7566, %v7578
    %7580 = vst [vmem:[%s3] sm:$0xff] %v7575
    %7581 = vst [vmem:[%s3 + $0x8] sm:$0xff] %v7577
    %7582 = vst [vmem:[%s3 + $0x10] sm:$0x3] %v7579
    // Predicated region
    $region18: #{forward.1} parent=1 // pred_check
      _
    $region19: #{forward.1} parent=1 // pred_check_branch
      %7584 = sbr.rel (0) target = $region21
    $region20: #{forward.1} parent=1 // pred_region
      _
    $region21: #{forward.1} parent=1 // pred_fallthru
      _
    // Predicated region
    $region22: #{forward.1} parent=1 // pred_check
      _
    $region23: #{forward.1} parent=1 // pred_check_branch
      %7586 = sbr.rel (0) target = $region25
    $region24: #{forward.1} parent=1 // pred_region
      _
    $region25: #{forward.1} parent=1 // pred_fallthru
      _
    %7587 = vsyncpa [#allocation3], 1

</llo_original>
